<compile_context>
chip_gen: v7x
topology: tpu7x:2x2x1
jax: 0.10.0
libtpu: 0.0.40
codegen_flags: <defaults>
</compile_context>

<pallas_src>
import functools

import numpy as np

import jax
import jax.numpy as jnp
from jax.experimental import pallas as pl
from jax.experimental.pallas import tpu as pltpu


# ----------------------------------------------------------------------------
# Architecture dims (input HxW -> conv5 -> conv5 -> pool2 -> conv3 -> conv3 -> pool2)
# ----------------------------------------------------------------------------
def _derive_dims(H0, W0):
    H1, W1 = H0 - 4, W0 - 4
    H2, W2 = H1 - 4, W1 - 4
    Hp1, Wp1 = H2 // 2, W2 // 2
    H3, W3 = Hp1 - 2, Wp1 - 2
    H4, W4 = H3 - 2, W3 - 2
    Hp2, Wp2 = H4 // 2, W4 // 2
    return dict(H0=H0, W0=W0, H1=H1, W1=W1, H2=H2, W2=W2, Hp1=Hp1, Wp1=Wp1,
                H3=H3, W3=W3, H4=H4, W4=W4, Hp2=Hp2, Wp2=Wp2)


# ----------------------------------------------------------------------------
# Host-side (numpy) constant builders
# ----------------------------------------------------------------------------
def _conv_toeplitz(w_hwio, w_in):
    """(KH,KW,Cin,Cout) conv weights -> (KH*W_in*Cin, W_out*Cout) width-Toeplitz."""
    kh_, kw_, cin, cout = w_hwio.shape
    w_out = w_in - kw_ + 1
    t = np.zeros((kh_, w_in, cin, w_out, cout), np.float32)
    for kh in range(kh_):
        for kw in range(kw_):
            for wo in range(w_out):
                t[kh, wo + kw, :, wo, :] = w_hwio[kh, kw]
    return t.reshape(kh_ * w_in * cin, w_out * cout)


def _pool_row_select(h_in, n):
    """0/1 matrix (2*H_out*N, H_in*N) selecting rows (2*ho+dh, n), dh-major."""
    h_out = h_in // 2
    r = np.zeros((2, h_out, n, h_in * n), np.float32)
    for dh in range(2):
        for ho in range(h_out):
            for b in range(n):
                r[dh, ho, b, (2 * ho + dh) * n + b] = 1.0
    return r.reshape(2 * h_out * n, h_in * n)


def _pool_col_select(w_in, c):
    """0/1 matrix (W_in*C, 2*W_out*C) selecting cols (2*wo+dw, c), dw-major."""
    w_out = w_in // 2
    s = np.zeros((w_in, c, 2, w_out, c), np.float32)
    for dw in range(2):
        for wo in range(w_out):
            for ch in range(c):
                s[2 * wo + dw, ch, dw, wo, ch] = 1.0
    return s.reshape(w_in * c, 2 * w_out * c)


def _spatial_attn_matrix(w_sa, h, w):
    """7x7 (pad 3) conv over [mean,max] maps -> dense (H*2*W, H*W) matrix."""
    k = w_sa.shape[0]
    p = k // 2
    g = np.zeros((h, 2, w, h, w), np.float32)
    for hp in range(h):
        for wp in range(w):
            for ho in range(h):
                for wo in range(w):
                    i, j = hp - ho + p, wp - wo + p
                    if 0 <= i < k and 0 <= j < k:
                        g[hp, 0, wp, ho, wo] = w_sa[i, j, 0]   # mean channel
                        g[hp, 1, wp, ho, wo] = w_sa[i, j, 1]   # max channel
    return g.reshape(h * 2 * w, h * w)


# ----------------------------------------------------------------------------
# The fused kernel
# ----------------------------------------------------------------------------
def _normal_cnn_kernel(
    x0_ref,
    t1_ref, sh1_ref,
    t2_ref, sc2_ref, sh2_ref,
    rp1_ref, sp1_ref,
    t3_ref, sh3_ref,
    t4_ref, sh4_ref,
    w1a_ref, b1a_ref, w2a_ref, b2a_ref,
    g_ref, bsa_ref,
    s2r_ref, t2r_ref,
    rp2_ref, sp2_ref,
    out_ref,
    *, N, C, H1, H2, Hp1, Wp1, H3, H4, W4, Hp2, Wp2,
):
    f32 = jnp.float32
    bf16 = jnp.bfloat16

    def sigmoid(z):
        return 1.0 / (1.0 + jnp.exp(-z))

    def conv(act, t_ref, kh_taps, h_out):
        # act: (H_in*N, W_in*Cin) f32.  One MXU matmul with K = KH*W_in*Cin.
        lhs = jnp.concatenate(
            [act[kh * N: kh * N + h_out * N, :] for kh in range(kh_taps)],
            axis=1)
        return jnp.dot(lhs.astype(bf16), t_ref[...],
                       preferred_element_type=f32)

    def maxpool2(act, r_ref, s_ref, hp_n, wp_c):
        # 2x2 / stride-2 max pool via exact 0/1 selection matmuls.
        b = jnp.dot(r_ref[...], act.astype(bf16), preferred_element_type=f32)
        b = jnp.maximum(b[:hp_n, :], b[hp_n:, :])
        d = jnp.dot(b.astype(bf16), s_ref[...], preferred_element_type=f32)
        return jnp.maximum(d[:, :wp_c], d[:, wp_c:])

    # ---------------- features ----------------
    x0 = x0_ref[...].astype(f32)
    a1 = jnp.maximum(conv(x0, t1_ref, 5, H1) + sh1_ref[...], 0.0)          # conv1 + ReLU
    a2 = conv(a1, t2_ref, 5, H2) * sc2_ref[...] + sh2_ref[...]             # conv2 + BN1
    a2 = jnp.maximum(a2, 0.0)                                              # ReLU
    a2p = maxpool2(a2, rp1_ref, sp1_ref, Hp1 * N, Wp1 * C)                 # MaxPool2d(2)
    a3 = jnp.maximum(conv(a2p, t3_ref, 3, H3) + sh3_ref[...], 0.0)         # conv3 + ReLU
    a4 = conv(a3, t4_ref, 3, H4) + sh4_ref[...]                            # conv4 (no ReLU)

    # ------------- hybrid attention: channel gate -------------
    def wchunk_reduce(x, op):          # reduce over w (lane chunks of C)
        r = x[:, 0:C]
        for w in range(1, W4):
            r = op(r, x[:, w * C:(w + 1) * C])
        return r

    def hblock_reduce(x, op):          # reduce over h (row blocks of N) -> (N, C)
        r = x[0:N, :]
        for hh in range(1, H4):
            r = op(r, x[hh * N:(hh + 1) * N, :])
        return r

    csum = wchunk_reduce(a4, jnp.add)
    cmax = wchunk_reduce(a4, jnp.maximum)
    avg = hblock_reduce(csum, jnp.add) * (1.0 / (H4 * W4))                 # (N, C)
    mxp = hblock_reduce(cmax, jnp.maximum)                                 # (N, C)
    stat = jnp.concatenate([avg, mxp], axis=0)                             # (2N, C)

    h = jnp.maximum(jnp.dot(stat.astype(bf16), w1a_ref[...],
                            preferred_element_type=f32) + b1a_ref[...], 0.0)
    h = jnp.dot(h.astype(bf16), w2a_ref[...],
                preferred_element_type=f32) + b2a_ref[...]
    ca = sigmoid(h[:N, :] + h[N:, :])                                      # (N, C)
    gate_c = jnp.concatenate([jnp.concatenate([ca] * W4, axis=1)] * H4, axis=0)
    xc = a4 * gate_c                                                       # (H4*N, W4*C)

    # ------------- hybrid attention: spatial gate -------------
    cm, cx = [], []
    for w in range(W4):
        blk = xc[:, w * C:(w + 1) * C]
        cm.append(jnp.sum(blk, axis=1, keepdims=True) * (1.0 / C))
        cx.append(jnp.max(blk, axis=1, keepdims=True))
    cm = jnp.concatenate(cm, axis=1)                                       # (H4*N, W4)
    cx = jnp.concatenate(cx, axis=1)                                       # (H4*N, W4)
    big = jnp.concatenate(
        [jnp.concatenate([cm[hh * N:(hh + 1) * N, :],
                          cx[hh * N:(hh + 1) * N, :]], axis=1)
         for hh in range(H4)], axis=1)                                     # (N, H4*2*W4)
    sa = sigmoid(jnp.dot(big.astype(bf16), g_ref[...],
                         preferred_element_type=f32) + bsa_ref[...])       # (N, H4*W4)
    rows = []
    for hh in range(H4):
        sah = sa[:, hh * W4:(hh + 1) * W4]                                 # (N, W4)
        rows.append(jnp.concatenate(
            [jnp.broadcast_to(sah[:, w:w + 1], (N, C)) for w in range(W4)],
            axis=1))
    gate_s = jnp.concatenate(rows, axis=0)                                 # (H4*N, W4*C)
    att = xc * gate_s

    # ------------- BRXF: BN2 + ReLU + MaxPool2d(2) -------------
    y = jnp.maximum(att * s2r_ref[...] + t2r_ref[...], 0.0)
    out = maxpool2(y, rp2_ref, sp2_ref, Hp2 * N, Wp2 * C)                  # (Hp2*N, Wp2*C)
    out_ref[...] = out.astype(out_ref.dtype)


# ----------------------------------------------------------------------------
# Parameters (deterministic, synthetic) + kernel-input preparation
# ----------------------------------------------------------------------------
def init_params(key, in_ch=3, C=32, reduction=4):
    ks = list(jax.random.split(key, 24))

    def nrm(k, shape, s=0.1):
        return s * jax.random.normal(k, shape, jnp.float32)

    p = {}
    # features: conv1 / conv2+bn1 / conv3 / conv4   (PyTorch OIHW -> HWIO)
    p["cw1"] = jnp.transpose(nrm(ks[0], (C, in_ch, 5, 5)), (2, 3, 1, 0))
    p["cb1"] = nrm(ks[1], (C,))
    p["cw2"] = jnp.transpose(nrm(ks[2], (C, C, 5, 5), 0.05), (2, 3, 1, 0))
    p["cb2"] = nrm(ks[3], (C,))
    p["bn1_g"] = 1.0 + nrm(ks[4], (C,))
    p["bn1_b"] = nrm(ks[5], (C,))
    p["bn1_m"] = nrm(ks[6], (C,))
    p["bn1_v"] = 0.5 + jax.random.uniform(ks[7], (C,), jnp.float32)
    p["cw3"] = jnp.transpose(nrm(ks[8], (C, C, 3, 3)), (2, 3, 1, 0))
    p["cb3"] = nrm(ks[9], (C,))
    p["cw4"] = jnp.transpose(nrm(ks[10], (C, C, 3, 3)), (2, 3, 1, 0))
    p["cb4"] = nrm(ks[11], (C,))
    # hybrid attention (CBAM-style): channel MLP + 7x7 spatial conv
    Cr = C // reduction
    p["aw1"] = nrm(ks[12], (C, Cr))
    p["ab1"] = nrm(ks[13], (Cr,))
    p["aw2"] = nrm(ks[14], (Cr, C))
    p["ab2"] = nrm(ks[15], (C,))
    p["wsa"] = nrm(ks[16], (7, 7, 2))
    p["absa"] = nrm(ks[17], (1,))
    # BRXF batchnorm
    p["bn2_g"] = 1.0 + nrm(ks[18], (C,))
    p["bn2_b"] = nrm(ks[19], (C,))
    p["bn2_m"] = nrm(ks[20], (C,))
    p["bn2_v"] = 0.5 + jax.random.uniform(ks[21], (C,), jnp.float32)
    return p


def prepare_kernel_inputs(p, N, H0, W0, C=32):
    """Build the per-layer Toeplitz / selection / affine constants (host side)."""
    eps = 1e-5
    d = _derive_dims(H0, W0)
    W1, W2, W3, W4 = d["W1"], d["W2"], d["W3"], d["W4"]
    H2, H4, Wp1 = d["H2"], d["H4"], d["Wp1"]
    assert H2 % 2 == 0 and W2 % 2 == 0 and H4 % 2 == 0 and W4 % 2 == 0

    def row(vec, times):
        return jnp.asarray(np.tile(np.asarray(vec, np.float32), times)[None, :])

    def bf(a):
        return jnp.asarray(a, jnp.bfloat16)

    # fold BN1 into conv2's per-channel affine; BN2 into BRXF affine (inference mode)
    s1 = np.asarray(p["bn1_g"]) / np.sqrt(np.asarray(p["bn1_v"]) + eps)
    t1 = (np.asarray(p["cb2"]) - np.asarray(p["bn1_m"])) * s1 + np.asarray(p["bn1_b"])
    s2 = np.asarray(p["bn2_g"]) / np.sqrt(np.asarray(p["bn2_v"]) + eps)
    t2 = np.asarray(p["bn2_b"]) - np.asarray(p["bn2_m"]) * s2

    consts = (
        bf(_conv_toeplitz(np.asarray(p["cw1"]), W0)), row(p["cb1"], W1),
        bf(_conv_toeplitz(np.asarray(p["cw2"]), W1)), row(s1, W2), row(t1, W2),
        bf(_pool_row_select(H2, N)), bf(_pool_col_select(W2, C)),
        bf(_conv_toeplitz(np.asarray(p["cw3"]), Wp1)), row(p["cb3"], W3),
        bf(_conv_toeplitz(np.asarray(p["cw4"]), W3)), row(p["cb4"], W4),
        bf(p["aw1"]), jnp.asarray(np.asarray(p["ab1"], np.float32)[None, :]),
        bf(p["aw2"]), jnp.asarray(np.asarray(p["ab2"], np.float32)[None, :]),
        bf(_spatial_attn_matrix(np.asarray(p["wsa"]), H4, W4)),
        jnp.full((1, H4 * W4), float(np.asarray(p["absa"])[0]), jnp.float32),
        row(s2, W4), row(t2, W4),
        bf(_pool_row_select(H4, N)), bf(_pool_col_select(W4, C)),
    )
    return d, consts


# ----------------------------------------------------------------------------
# NormalCNN forward (single pallas_call)
# ----------------------------------------------------------------------------
def normal_cnn_forward(x_nchw, dims, consts, C=32):
    N, Cin, H0, W0 = x_nchw.shape
    d = dims

    # NCHW -> (h*N + n, w*Cin + ci) layout (tiny, pure XLA layout glue).
    x0 = jnp.transpose(x_nchw.astype(jnp.float32), (2, 0, 3, 1)).reshape(
        H0 * N, W0 * Cin)
    inputs = (x0,) + tuple(consts)

    kern = functools.partial(
        _normal_cnn_kernel, N=N, C=C,
        H1=d["H1"], H2=d["H2"], Hp1=d["Hp1"], Wp1=d["Wp1"],
        H3=d["H3"], H4=d["H4"], W4=d["W4"], Hp2=d["Hp2"], Wp2=d["Wp2"])

    out = pl.pallas_call(
        kern,
        out_shape=jax.ShapeDtypeStruct((d["Hp2"] * N, d["Wp2"] * C), jnp.float32),
        grid=(1,),
        in_specs=[pl.BlockSpec(a.shape, lambda i: (0, 0)) for a in inputs],
        out_specs=pl.BlockSpec((d["Hp2"] * N, d["Wp2"] * C), lambda i: (0, 0)),
        compiler_params=pltpu.CompilerParams(
            dimension_semantics=("arbitrary",),
            vmem_limit_bytes=32 * 1024 * 1024),
    )(*inputs)

    # torch nn.Flatten on NCHW => channel-major (c, h, w) flatten per image.
    y = out.reshape(d["Hp2"], N, d["Wp2"], C).transpose(1, 3, 0, 2).reshape(N, -1)
    return y                                                   # fc = Identity


if __name__ == "__main__":
    key = jax.random.PRNGKey(0)
    pkey, xkey = jax.random.split(key)

    # input 24x24 -> conv5:20 -> conv5:16 -> pool:8 -> conv3:6 -> conv3:4
    # -> attention(4x4x32) -> pool:2 -> flatten: 32*2*2 = 128 features
    N, Cin, H0, W0, C = 2, 3, 24, 24, 32
    params = init_params(pkey, in_ch=Cin, C=C, reduction=4)
    dims, consts = prepare_kernel_inputs(params, N=N, H0=H0, W0=W0, C=C)

    x = jax.random.normal(xkey, (N, Cin, H0, W0), jnp.float32)   # NCHW, PyTorch-style
    y = normal_cnn_forward(x, dims, consts, C=C)
    y = jax.block_until_ready(y)

    assert y.shape == (N, C * dims["Hp2"] * dims["Wp2"]), y.shape
    assert bool(jnp.all(jnp.isfinite(y)))
    print("KERNEL_OK")
</pallas_src>

<mosaic_0001>
module attributes {stable_mosaic.version = 11 : i64} {
  func.func @_normal_cnn_kernel(%arg0: i32, %arg1: memref<48x72xf32, #tpu.memory_space<vmem>>, %arg2: memref<360x640xbf16, #tpu.memory_space<vmem>>, %arg3: memref<1x640xf32, #tpu.memory_space<vmem>>, %arg4: memref<3200x512xbf16, #tpu.memory_space<vmem>>, %arg5: memref<1x512xf32, #tpu.memory_space<vmem>>, %arg6: memref<1x512xf32, #tpu.memory_space<vmem>>, %arg7: memref<32x32xbf16, #tpu.memory_space<vmem>>, %arg8: memref<512x512xbf16, #tpu.memory_space<vmem>>, %arg9: memref<768x192xbf16, #tpu.memory_space<vmem>>, %arg10: memref<1x192xf32, #tpu.memory_space<vmem>>, %arg11: memref<576x128xbf16, #tpu.memory_space<vmem>>, %arg12: memref<1x128xf32, #tpu.memory_space<vmem>>, %arg13: memref<32x8xbf16, #tpu.memory_space<vmem>>, %arg14: memref<1x8xf32, #tpu.memory_space<vmem>>, %arg15: memref<8x32xbf16, #tpu.memory_space<vmem>>, %arg16: memref<1x32xf32, #tpu.memory_space<vmem>>, %arg17: memref<32x16xbf16, #tpu.memory_space<vmem>>, %arg18: memref<1x16xf32, #tpu.memory_space<vmem>>, %arg19: memref<1x128xf32, #tpu.memory_space<vmem>>, %arg20: memref<1x128xf32, #tpu.memory_space<vmem>>, %arg21: memref<8x8xbf16, #tpu.memory_space<vmem>>, %arg22: memref<128x128xbf16, #tpu.memory_space<vmem>>, %arg23: memref<4x64xf32, #tpu.memory_space<vmem>>) attributes {dimension_semantics = [#tpu.dimension_semantics<arbitrary>], iteration_bounds = array<i64: 1>, scalar_prefetch = 0 : i64, scratch_operands = 0 : i64, tpu.core_type = #tpu.core_type<tc>, window_params = [{pipeline_mode = #tpu.pipeline_mode<synchronous>, transform_indices = @transform_0, window_bounds = array<i64: 48, 72>}, {pipeline_mode = #tpu.pipeline_mode<synchronous>, transform_indices = @transform_1, window_bounds = array<i64: 360, 640>}, {pipeline_mode = #tpu.pipeline_mode<synchronous>, transform_indices = @transform_2, window_bounds = array<i64: 1, 640>}, {pipeline_mode = #tpu.pipeline_mode<synchronous>, transform_indices = @transform_3, window_bounds = array<i64: 3200, 512>}, {pipeline_mode = #tpu.pipeline_mode<synchronous>, transform_indices = @transform_4, window_bounds = array<i64: 1, 512>}, {pipeline_mode = #tpu.pipeline_mode<synchronous>, transform_indices = @transform_5, window_bounds = array<i64: 1, 512>}, {pipeline_mode = #tpu.pipeline_mode<synchronous>, transform_indices = @transform_6, window_bounds = array<i64: 32, 32>}, {pipeline_mode = #tpu.pipeline_mode<synchronous>, transform_indices = @transform_7, window_bounds = array<i64: 512, 512>}, {pipeline_mode = #tpu.pipeline_mode<synchronous>, transform_indices = @transform_8, window_bounds = array<i64: 768, 192>}, {pipeline_mode = #tpu.pipeline_mode<synchronous>, transform_indices = @transform_9, window_bounds = array<i64: 1, 192>}, {pipeline_mode = #tpu.pipeline_mode<synchronous>, transform_indices = @transform_10, window_bounds = array<i64: 576, 128>}, {pipeline_mode = #tpu.pipeline_mode<synchronous>, transform_indices = @transform_11, window_bounds = array<i64: 1, 128>}, {pipeline_mode = #tpu.pipeline_mode<synchronous>, transform_indices = @transform_12, window_bounds = array<i64: 32, 8>}, {pipeline_mode = #tpu.pipeline_mode<synchronous>, transform_indices = @transform_13, window_bounds = array<i64: 1, 8>}, {pipeline_mode = #tpu.pipeline_mode<synchronous>, transform_indices = @transform_14, window_bounds = array<i64: 8, 32>}, {pipeline_mode = #tpu.pipeline_mode<synchronous>, transform_indices = @transform_15, window_bounds = array<i64: 1, 32>}, {pipeline_mode = #tpu.pipeline_mode<synchronous>, transform_indices = @transform_16, window_bounds = array<i64: 32, 16>}, {pipeline_mode = #tpu.pipeline_mode<synchronous>, transform_indices = @transform_17, window_bounds = array<i64: 1, 16>}, {pipeline_mode = #tpu.pipeline_mode<synchronous>, transform_indices = @transform_18, window_bounds = array<i64: 1, 128>}, {pipeline_mode = #tpu.pipeline_mode<synchronous>, transform_indices = @transform_19, window_bounds = array<i64: 1, 128>}, {pipeline_mode = #tpu.pipeline_mode<synchronous>, transform_indices = @transform_20, window_bounds = array<i64: 8, 8>}, {pipeline_mode = #tpu.pipeline_mode<synchronous>, transform_indices = @transform_21, window_bounds = array<i64: 128, 128>}, {pipeline_mode = #tpu.pipeline_mode<synchronous>, transform_indices = @transform_22, window_bounds = array<i64: 4, 64>}]} {
    %c0 = arith.constant 0 : index
    %c0_0 = arith.constant 0 : index
    %0 = vector.load %arg1[%c0, %c0_0] : memref<48x72xf32, #tpu.memory_space<vmem>>, vector<48x72xf32>
    %1 = vector.extract_strided_slice %0 {offsets = [0, 0], sizes = [40, 72], strides = [1, 1]} : vector<48x72xf32> to vector<40x72xf32>
    %2 = vector.extract_strided_slice %0 {offsets = [2, 0], sizes = [40, 72], strides = [1, 1]} : vector<48x72xf32> to vector<40x72xf32>
    %3 = vector.extract_strided_slice %0 {offsets = [4, 0], sizes = [40, 72], strides = [1, 1]} : vector<48x72xf32> to vector<40x72xf32>
    %4 = vector.extract_strided_slice %0 {offsets = [6, 0], sizes = [40, 72], strides = [1, 1]} : vector<48x72xf32> to vector<40x72xf32>
    %5 = vector.extract_strided_slice %0 {offsets = [8, 0], sizes = [40, 72], strides = [1, 1]} : vector<48x72xf32> to vector<40x72xf32>
    %6 = tpu.concatenate %1, %2, %3, %4, %5 in 1 : vector<40x72xf32>, vector<40x72xf32>, vector<40x72xf32>, vector<40x72xf32>, vector<40x72xf32> -> vector<40x360xf32>
    %7 = arith.truncf %6 : vector<40x360xf32> to vector<40x360xbf16>
    %c0_1 = arith.constant 0 : index
    %c0_2 = arith.constant 0 : index
    %8 = vector.load %arg2[%c0_1, %c0_2] : memref<360x640xbf16, #tpu.memory_space<vmem>>, vector<360x640xbf16>
    %cst = arith.constant dense<0.000000e+00> : vector<40x640xf32>
    %9 = tpu.matmul %7, %8, %cst {dimension_numbers = #tpu.dot_dimension_numbers<[1], [0], [0], [1], [0, 0, 1, 1], [], []>} : vector<40x360xbf16>, vector<360x640xbf16>, vector<40x640xf32> -> vector<40x640xf32>
    %c0_3 = arith.constant 0 : index
    %c0_4 = arith.constant 0 : index
    %10 = vector.load %arg3[%c0_3, %c0_4] : memref<1x640xf32, #tpu.memory_space<vmem>>, vector<1x640xf32>
    %11 = vector.broadcast %10 : vector<1x640xf32> to vector<40x640xf32>
    %12 = arith.addf %9, %11 : vector<40x640xf32>
    %cst_5 = arith.constant 0.000000e+00 : f32
    %13 = vector.broadcast %cst_5 : f32 to vector<40x640xf32>
    %14 = arith.maximumf %12, %13 : vector<40x640xf32>
    %15 = vector.extract_strided_slice %14 {offsets = [0, 0], sizes = [32, 640], strides = [1, 1]} : vector<40x640xf32> to vector<32x640xf32>
    %16 = vector.extract_strided_slice %14 {offsets = [2, 0], sizes = [32, 640], strides = [1, 1]} : vector<40x640xf32> to vector<32x640xf32>
    %17 = vector.extract_strided_slice %14 {offsets = [4, 0], sizes = [32, 640], strides = [1, 1]} : vector<40x640xf32> to vector<32x640xf32>
    %18 = vector.extract_strided_slice %14 {offsets = [6, 0], sizes = [32, 640], strides = [1, 1]} : vector<40x640xf32> to vector<32x640xf32>
    %19 = vector.extract_strided_slice %14 {offsets = [8, 0], sizes = [32, 640], strides = [1, 1]} : vector<40x640xf32> to vector<32x640xf32>
    %20 = tpu.concatenate %15, %16, %17, %18, %19 in 1 : vector<32x640xf32>, vector<32x640xf32>, vector<32x640xf32>, vector<32x640xf32>, vector<32x640xf32> -> vector<32x3200xf32>
    %21 = arith.truncf %20 : vector<32x3200xf32> to vector<32x3200xbf16>
    %c0_6 = arith.constant 0 : index
    %c0_7 = arith.constant 0 : index
    %22 = vector.load %arg4[%c0_6, %c0_7] : memref<3200x512xbf16, #tpu.memory_space<vmem>>, vector<3200x512xbf16>
    %cst_8 = arith.constant dense<0.000000e+00> : vector<32x512xf32>
    %23 = tpu.matmul %21, %22, %cst_8 {dimension_numbers = #tpu.dot_dimension_numbers<[1], [0], [0], [1], [0, 0, 1, 1], [], []>} : vector<32x3200xbf16>, vector<3200x512xbf16>, vector<32x512xf32> -> vector<32x512xf32>
    %c0_9 = arith.constant 0 : index
    %c0_10 = arith.constant 0 : index
    %24 = vector.load %arg5[%c0_9, %c0_10] : memref<1x512xf32, #tpu.memory_space<vmem>>, vector<1x512xf32>
    %25 = vector.broadcast %24 : vector<1x512xf32> to vector<32x512xf32>
    %26 = arith.mulf %23, %25 : vector<32x512xf32>
    %c0_11 = arith.constant 0 : index
    %c0_12 = arith.constant 0 : index
    %27 = vector.load %arg6[%c0_11, %c0_12] : memref<1x512xf32, #tpu.memory_space<vmem>>, vector<1x512xf32>
    %28 = vector.broadcast %27 : vector<1x512xf32> to vector<32x512xf32>
    %29 = arith.addf %26, %28 : vector<32x512xf32>
    %cst_13 = arith.constant 0.000000e+00 : f32
    %30 = vector.broadcast %cst_13 : f32 to vector<32x512xf32>
    %31 = arith.maximumf %29, %30 : vector<32x512xf32>
    %c0_14 = arith.constant 0 : index
    %c0_15 = arith.constant 0 : index
    %32 = vector.load %arg7[%c0_14, %c0_15] : memref<32x32xbf16, #tpu.memory_space<vmem>>, vector<32x32xbf16>
    %33 = arith.truncf %31 : vector<32x512xf32> to vector<32x512xbf16>
    %cst_16 = arith.constant dense<0.000000e+00> : vector<32x512xf32>
    %34 = tpu.matmul %32, %33, %cst_16 {dimension_numbers = #tpu.dot_dimension_numbers<[1], [0], [0], [1], [0, 0, 1, 1], [], []>} : vector<32x32xbf16>, vector<32x512xbf16>, vector<32x512xf32> -> vector<32x512xf32>
    %35 = vector.extract_strided_slice %34 {offsets = [0, 0], sizes = [16, 512], strides = [1, 1]} : vector<32x512xf32> to vector<16x512xf32>
    %36 = vector.extract_strided_slice %34 {offsets = [16, 0], sizes = [16, 512], strides = [1, 1]} : vector<32x512xf32> to vector<16x512xf32>
    %37 = arith.maximumf %35, %36 : vector<16x512xf32>
    %38 = arith.truncf %37 : vector<16x512xf32> to vector<16x512xbf16>
    %c0_17 = arith.constant 0 : index
    %c0_18 = arith.constant 0 : index
    %39 = vector.load %arg8[%c0_17, %c0_18] : memref<512x512xbf16, #tpu.memory_space<vmem>>, vector<512x512xbf16>
    %cst_19 = arith.constant dense<0.000000e+00> : vector<16x512xf32>
    %40 = tpu.matmul %38, %39, %cst_19 {dimension_numbers = #tpu.dot_dimension_numbers<[1], [0], [0], [1], [0, 0, 1, 1], [], []>} : vector<16x512xbf16>, vector<512x512xbf16>, vector<16x512xf32> -> vector<16x512xf32>
    %41 = vector.extract_strided_slice %40 {offsets = [0, 0], sizes = [16, 256], strides = [1, 1]} : vector<16x512xf32> to vector<16x256xf32>
    %42 = vector.extract_strided_slice %40 {offsets = [0, 256], sizes = [16, 256], strides = [1, 1]} : vector<16x512xf32> to vector<16x256xf32>
    %43 = arith.maximumf %41, %42 : vector<16x256xf32>
    %44 = vector.extract_strided_slice %43 {offsets = [0, 0], sizes = [12, 256], strides = [1, 1]} : vector<16x256xf32> to vector<12x256xf32>
    %45 = vector.extract_strided_slice %43 {offsets = [2, 0], sizes = [12, 256], strides = [1, 1]} : vector<16x256xf32> to vector<12x256xf32>
    %46 = vector.extract_strided_slice %43 {offsets = [4, 0], sizes = [12, 256], strides = [1, 1]} : vector<16x256xf32> to vector<12x256xf32>
    %47 = tpu.concatenate %44, %45, %46 in 1 : vector<12x256xf32>, vector<12x256xf32>, vector<12x256xf32> -> vector<12x768xf32>
    %48 = arith.truncf %47 : vector<12x768xf32> to vector<12x768xbf16>
    %c0_20 = arith.constant 0 : index
    %c0_21 = arith.constant 0 : index
    %49 = vector.load %arg9[%c0_20, %c0_21] : memref<768x192xbf16, #tpu.memory_space<vmem>>, vector<768x192xbf16>
    %cst_22 = arith.constant dense<0.000000e+00> : vector<12x192xf32>
    %50 = tpu.matmul %48, %49, %cst_22 {dimension_numbers = #tpu.dot_dimension_numbers<[1], [0], [0], [1], [0, 0, 1, 1], [], []>} : vector<12x768xbf16>, vector<768x192xbf16>, vector<12x192xf32> -> vector<12x192xf32>
    %c0_23 = arith.constant 0 : index
    %c0_24 = arith.constant 0 : index
    %51 = vector.load %arg10[%c0_23, %c0_24] : memref<1x192xf32, #tpu.memory_space<vmem>>, vector<1x192xf32>
    %52 = vector.broadcast %51 : vector<1x192xf32> to vector<12x192xf32>
    %53 = arith.addf %50, %52 : vector<12x192xf32>
    %cst_25 = arith.constant 0.000000e+00 : f32
    %54 = vector.broadcast %cst_25 : f32 to vector<12x192xf32>
    %55 = arith.maximumf %53, %54 : vector<12x192xf32>
    %56 = vector.extract_strided_slice %55 {offsets = [0, 0], sizes = [8, 192], strides = [1, 1]} : vector<12x192xf32> to vector<8x192xf32>
    %57 = vector.extract_strided_slice %55 {offsets = [2, 0], sizes = [8, 192], strides = [1, 1]} : vector<12x192xf32> to vector<8x192xf32>
    %58 = vector.extract_strided_slice %55 {offsets = [4, 0], sizes = [8, 192], strides = [1, 1]} : vector<12x192xf32> to vector<8x192xf32>
    %59 = tpu.concatenate %56, %57, %58 in 1 : vector<8x192xf32>, vector<8x192xf32>, vector<8x192xf32> -> vector<8x576xf32>
    %60 = arith.truncf %59 : vector<8x576xf32> to vector<8x576xbf16>
    %c0_26 = arith.constant 0 : index
    %c0_27 = arith.constant 0 : index
    %61 = vector.load %arg11[%c0_26, %c0_27] : memref<576x128xbf16, #tpu.memory_space<vmem>>, vector<576x128xbf16>
    %cst_28 = arith.constant dense<0.000000e+00> : vector<8x128xf32>
    %62 = tpu.matmul %60, %61, %cst_28 {dimension_numbers = #tpu.dot_dimension_numbers<[1], [0], [0], [1], [0, 0, 1, 1], [], []>} : vector<8x576xbf16>, vector<576x128xbf16>, vector<8x128xf32> -> vector<8x128xf32>
    %c0_29 = arith.constant 0 : index
    %c0_30 = arith.constant 0 : index
    %63 = vector.load %arg12[%c0_29, %c0_30] : memref<1x128xf32, #tpu.memory_space<vmem>>, vector<1x128xf32>
    %64 = vector.broadcast %63 : vector<1x128xf32> to vector<8x128xf32>
    %65 = arith.addf %62, %64 : vector<8x128xf32>
    %66 = vector.extract_strided_slice %65 {offsets = [0, 0], sizes = [8, 32], strides = [1, 1]} : vector<8x128xf32> to vector<8x32xf32>
    %67 = vector.extract_strided_slice %65 {offsets = [0, 32], sizes = [8, 32], strides = [1, 1]} : vector<8x128xf32> to vector<8x32xf32>
    %68 = arith.addf %66, %67 : vector<8x32xf32>
    %69 = vector.extract_strided_slice %65 {offsets = [0, 64], sizes = [8, 32], strides = [1, 1]} : vector<8x128xf32> to vector<8x32xf32>
    %70 = arith.addf %68, %69 : vector<8x32xf32>
    %71 = vector.extract_strided_slice %65 {offsets = [0, 96], sizes = [8, 32], strides = [1, 1]} : vector<8x128xf32> to vector<8x32xf32>
    %72 = arith.addf %70, %71 : vector<8x32xf32>
    %73 = vector.extract_strided_slice %65 {offsets = [0, 0], sizes = [8, 32], strides = [1, 1]} : vector<8x128xf32> to vector<8x32xf32>
    %74 = vector.extract_strided_slice %65 {offsets = [0, 32], sizes = [8, 32], strides = [1, 1]} : vector<8x128xf32> to vector<8x32xf32>
    %75 = arith.maximumf %73, %74 : vector<8x32xf32>
    %76 = vector.extract_strided_slice %65 {offsets = [0, 64], sizes = [8, 32], strides = [1, 1]} : vector<8x128xf32> to vector<8x32xf32>
    %77 = arith.maximumf %75, %76 : vector<8x32xf32>
    %78 = vector.extract_strided_slice %65 {offsets = [0, 96], sizes = [8, 32], strides = [1, 1]} : vector<8x128xf32> to vector<8x32xf32>
    %79 = arith.maximumf %77, %78 : vector<8x32xf32>
    %80 = vector.extract_strided_slice %72 {offsets = [0, 0], sizes = [2, 32], strides = [1, 1]} : vector<8x32xf32> to vector<2x32xf32>
    %81 = vector.extract_strided_slice %72 {offsets = [2, 0], sizes = [2, 32], strides = [1, 1]} : vector<8x32xf32> to vector<2x32xf32>
    %82 = arith.addf %80, %81 : vector<2x32xf32>
    %83 = vector.extract_strided_slice %72 {offsets = [4, 0], sizes = [2, 32], strides = [1, 1]} : vector<8x32xf32> to vector<2x32xf32>
    %84 = arith.addf %82, %83 : vector<2x32xf32>
    %85 = vector.extract_strided_slice %72 {offsets = [6, 0], sizes = [2, 32], strides = [1, 1]} : vector<8x32xf32> to vector<2x32xf32>
    %86 = arith.addf %84, %85 : vector<2x32xf32>
    %cst_31 = arith.constant 6.250000e-02 : f32
    %87 = vector.broadcast %cst_31 : f32 to vector<2x32xf32>
    %88 = arith.mulf %86, %87 : vector<2x32xf32>
    %89 = vector.extract_strided_slice %79 {offsets = [0, 0], sizes = [2, 32], strides = [1, 1]} : vector<8x32xf32> to vector<2x32xf32>
    %90 = vector.extract_strided_slice %79 {offsets = [2, 0], sizes = [2, 32], strides = [1, 1]} : vector<8x32xf32> to vector<2x32xf32>
    %91 = arith.maximumf %89, %90 : vector<2x32xf32>
    %92 = vector.extract_strided_slice %79 {offsets = [4, 0], sizes = [2, 32], strides = [1, 1]} : vector<8x32xf32> to vector<2x32xf32>
    %93 = arith.maximumf %91, %92 : vector<2x32xf32>
    %94 = vector.extract_strided_slice %79 {offsets = [6, 0], sizes = [2, 32], strides = [1, 1]} : vector<8x32xf32> to vector<2x32xf32>
    %95 = arith.maximumf %93, %94 : vector<2x32xf32>
    %96 = tpu.concatenate %88, %95 in 0 : vector<2x32xf32>, vector<2x32xf32> -> vector<4x32xf32>
    %97 = arith.truncf %96 : vector<4x32xf32> to vector<4x32xbf16>
    %c0_32 = arith.constant 0 : index
    %c0_33 = arith.constant 0 : index
    %98 = vector.load %arg13[%c0_32, %c0_33] : memref<32x8xbf16, #tpu.memory_space<vmem>>, vector<32x8xbf16>
    %cst_34 = arith.constant dense<0.000000e+00> : vector<4x8xf32>
    %99 = tpu.matmul %97, %98, %cst_34 {dimension_numbers = #tpu.dot_dimension_numbers<[1], [0], [0], [1], [0, 0, 1, 1], [], []>} : vector<4x32xbf16>, vector<32x8xbf16>, vector<4x8xf32> -> vector<4x8xf32>
    %c0_35 = arith.constant 0 : index
    %c0_36 = arith.constant 0 : index
    %100 = vector.load %arg14[%c0_35, %c0_36] : memref<1x8xf32, #tpu.memory_space<vmem>>, vector<1x8xf32>
    %101 = vector.broadcast %100 : vector<1x8xf32> to vector<4x8xf32>
    %102 = arith.addf %99, %101 : vector<4x8xf32>
    %cst_37 = arith.constant 0.000000e+00 : f32
    %103 = vector.broadcast %cst_37 : f32 to vector<4x8xf32>
    %104 = arith.maximumf %102, %103 : vector<4x8xf32>
    %105 = arith.truncf %104 : vector<4x8xf32> to vector<4x8xbf16>
    %c0_38 = arith.constant 0 : index
    %c0_39 = arith.constant 0 : index
    %106 = vector.load %arg15[%c0_38, %c0_39] : memref<8x32xbf16, #tpu.memory_space<vmem>>, vector<8x32xbf16>
    %cst_40 = arith.constant dense<0.000000e+00> : vector<4x32xf32>
    %107 = tpu.matmul %105, %106, %cst_40 {dimension_numbers = #tpu.dot_dimension_numbers<[1], [0], [0], [1], [0, 0, 1, 1], [], []>} : vector<4x8xbf16>, vector<8x32xbf16>, vector<4x32xf32> -> vector<4x32xf32>
    %c0_41 = arith.constant 0 : index
    %c0_42 = arith.constant 0 : index
    %108 = vector.load %arg16[%c0_41, %c0_42] : memref<1x32xf32, #tpu.memory_space<vmem>>, vector<1x32xf32>
    %109 = vector.broadcast %108 : vector<1x32xf32> to vector<4x32xf32>
    %110 = arith.addf %107, %109 : vector<4x32xf32>
    %111 = vector.extract_strided_slice %110 {offsets = [0, 0], sizes = [2, 32], strides = [1, 1]} : vector<4x32xf32> to vector<2x32xf32>
    %112 = vector.extract_strided_slice %110 {offsets = [2, 0], sizes = [2, 32], strides = [1, 1]} : vector<4x32xf32> to vector<2x32xf32>
    %113 = arith.addf %111, %112 : vector<2x32xf32>
    %cst_43 = arith.constant 0.000000e+00 : f32
    %114 = vector.broadcast %cst_43 : f32 to vector<2x32xf32>
    %115 = arith.subf %114, %113 : vector<2x32xf32>
    %116 = math.exp %115 : vector<2x32xf32>
    %cst_44 = arith.constant 1.000000e+00 : f32
    %117 = vector.broadcast %cst_44 : f32 to vector<2x32xf32>
    %118 = arith.addf %117, %116 : vector<2x32xf32>
    %cst_45 = arith.constant 1.000000e+00 : f32
    %119 = vector.broadcast %cst_45 : f32 to vector<2x32xf32>
    %120 = arith.divf %119, %118 : vector<2x32xf32>
    %121 = tpu.concatenate %120, %120, %120, %120 in 1 : vector<2x32xf32>, vector<2x32xf32>, vector<2x32xf32>, vector<2x32xf32> -> vector<2x128xf32>
    %122 = tpu.concatenate %121, %121, %121, %121 in 0 : vector<2x128xf32>, vector<2x128xf32>, vector<2x128xf32>, vector<2x128xf32> -> vector<8x128xf32>
    %123 = arith.mulf %65, %122 : vector<8x128xf32>
    %124 = vector.extract_strided_slice %123 {offsets = [0, 0], sizes = [8, 32], strides = [1, 1]} : vector<8x128xf32> to vector<8x32xf32>
    %cst_46 = arith.constant dense<0.000000e+00> : vector<8xf32>
    %125 = vector.multi_reduction <add>, %124, %cst_46 [1] : vector<8x32xf32> to vector<8xf32>
    %126 = vector.shape_cast %125 : vector<8xf32> to vector<8x1xf32>
    %cst_47 = arith.constant 3.125000e-02 : f32
    %127 = vector.broadcast %cst_47 : f32 to vector<8x1xf32>
    %128 = arith.mulf %126, %127 : vector<8x1xf32>
    %cst_48 = arith.constant dense<0xFF800000> : vector<8xf32>
    %129 = vector.multi_reduction <maximumf>, %124, %cst_48 [1] : vector<8x32xf32> to vector<8xf32>
    %130 = vector.shape_cast %129 : vector<8xf32> to vector<8x1xf32>
    %131 = vector.extract_strided_slice %123 {offsets = [0, 32], sizes = [8, 32], strides = [1, 1]} : vector<8x128xf32> to vector<8x32xf32>
    %cst_49 = arith.constant dense<0.000000e+00> : vector<8xf32>
    %132 = vector.multi_reduction <add>, %131, %cst_49 [1] : vector<8x32xf32> to vector<8xf32>
    %133 = vector.shape_cast %132 : vector<8xf32> to vector<8x1xf32>
    %cst_50 = arith.constant 3.125000e-02 : f32
    %134 = vector.broadcast %cst_50 : f32 to vector<8x1xf32>
    %135 = arith.mulf %133, %134 : vector<8x1xf32>
    %cst_51 = arith.constant dense<0xFF800000> : vector<8xf32>
    %136 = vector.multi_reduction <maximumf>, %131, %cst_51 [1] : vector<8x32xf32> to vector<8xf32>
    %137 = vector.shape_cast %136 : vector<8xf32> to vector<8x1xf32>
    %138 = vector.extract_strided_slice %123 {offsets = [0, 64], sizes = [8, 32], strides = [1, 1]} : vector<8x128xf32> to vector<8x32xf32>
    %cst_52 = arith.constant dense<0.000000e+00> : vector<8xf32>
    %139 = vector.multi_reduction <add>, %138, %cst_52 [1] : vector<8x32xf32> to vector<8xf32>
    %140 = vector.shape_cast %139 : vector<8xf32> to vector<8x1xf32>
    %cst_53 = arith.constant 3.125000e-02 : f32
    %141 = vector.broadcast %cst_53 : f32 to vector<8x1xf32>
    %142 = arith.mulf %140, %141 : vector<8x1xf32>
    %cst_54 = arith.constant dense<0xFF800000> : vector<8xf32>
    %143 = vector.multi_reduction <maximumf>, %138, %cst_54 [1] : vector<8x32xf32> to vector<8xf32>
    %144 = vector.shape_cast %143 : vector<8xf32> to vector<8x1xf32>
    %145 = vector.extract_strided_slice %123 {offsets = [0, 96], sizes = [8, 32], strides = [1, 1]} : vector<8x128xf32> to vector<8x32xf32>
    %cst_55 = arith.constant dense<0.000000e+00> : vector<8xf32>
    %146 = vector.multi_reduction <add>, %145, %cst_55 [1] : vector<8x32xf32> to vector<8xf32>
    %147 = vector.shape_cast %146 : vector<8xf32> to vector<8x1xf32>
    %cst_56 = arith.constant 3.125000e-02 : f32
    %148 = vector.broadcast %cst_56 : f32 to vector<8x1xf32>
    %149 = arith.mulf %147, %148 : vector<8x1xf32>
    %cst_57 = arith.constant dense<0xFF800000> : vector<8xf32>
    %150 = vector.multi_reduction <maximumf>, %145, %cst_57 [1] : vector<8x32xf32> to vector<8xf32>
    %151 = vector.shape_cast %150 : vector<8xf32> to vector<8x1xf32>
    %152 = tpu.concatenate %128, %135, %142, %149 in 1 : vector<8x1xf32>, vector<8x1xf32>, vector<8x1xf32>, vector<8x1xf32> -> vector<8x4xf32>
    %153 = tpu.concatenate %130, %137, %144, %151 in 1 : vector<8x1xf32>, vector<8x1xf32>, vector<8x1xf32>, vector<8x1xf32> -> vector<8x4xf32>
    %154 = vector.extract_strided_slice %152 {offsets = [0, 0], sizes = [2, 4], strides = [1, 1]} : vector<8x4xf32> to vector<2x4xf32>
    %155 = vector.extract_strided_slice %153 {offsets = [0, 0], sizes = [2, 4], strides = [1, 1]} : vector<8x4xf32> to vector<2x4xf32>
    %156 = tpu.concatenate %154, %155 in 1 : vector<2x4xf32>, vector<2x4xf32> -> vector<2x8xf32>
    %157 = vector.extract_strided_slice %152 {offsets = [2, 0], sizes = [2, 4], strides = [1, 1]} : vector<8x4xf32> to vector<2x4xf32>
    %158 = vector.extract_strided_slice %153 {offsets = [2, 0], sizes = [2, 4], strides = [1, 1]} : vector<8x4xf32> to vector<2x4xf32>
    %159 = tpu.concatenate %157, %158 in 1 : vector<2x4xf32>, vector<2x4xf32> -> vector<2x8xf32>
    %160 = vector.extract_strided_slice %152 {offsets = [4, 0], sizes = [2, 4], strides = [1, 1]} : vector<8x4xf32> to vector<2x4xf32>
    %161 = vector.extract_strided_slice %153 {offsets = [4, 0], sizes = [2, 4], strides = [1, 1]} : vector<8x4xf32> to vector<2x4xf32>
    %162 = tpu.concatenate %160, %161 in 1 : vector<2x4xf32>, vector<2x4xf32> -> vector<2x8xf32>
    %163 = vector.extract_strided_slice %152 {offsets = [6, 0], sizes = [2, 4], strides = [1, 1]} : vector<8x4xf32> to vector<2x4xf32>
    %164 = vector.extract_strided_slice %153 {offsets = [6, 0], sizes = [2, 4], strides = [1, 1]} : vector<8x4xf32> to vector<2x4xf32>
    %165 = tpu.concatenate %163, %164 in 1 : vector<2x4xf32>, vector<2x4xf32> -> vector<2x8xf32>
    %166 = tpu.concatenate %156, %159, %162, %165 in 1 : vector<2x8xf32>, vector<2x8xf32>, vector<2x8xf32>, vector<2x8xf32> -> vector<2x32xf32>
    %167 = arith.truncf %166 : vector<2x32xf32> to vector<2x32xbf16>
    %c0_58 = arith.constant 0 : index
    %c0_59 = arith.constant 0 : index
    %168 = vector.load %arg17[%c0_58, %c0_59] : memref<32x16xbf16, #tpu.memory_space<vmem>>, vector<32x16xbf16>
    %cst_60 = arith.constant dense<0.000000e+00> : vector<2x16xf32>
    %169 = tpu.matmul %167, %168, %cst_60 {dimension_numbers = #tpu.dot_dimension_numbers<[1], [0], [0], [1], [0, 0, 1, 1], [], []>} : vector<2x32xbf16>, vector<32x16xbf16>, vector<2x16xf32> -> vector<2x16xf32>
    %c0_61 = arith.constant 0 : index
    %c0_62 = arith.constant 0 : index
    %170 = vector.load %arg18[%c0_61, %c0_62] : memref<1x16xf32, #tpu.memory_space<vmem>>, vector<1x16xf32>
    %171 = vector.broadcast %170 : vector<1x16xf32> to vector<2x16xf32>
    %172 = arith.addf %169, %171 : vector<2x16xf32>
    %cst_63 = arith.constant 0.000000e+00 : f32
    %173 = vector.broadcast %cst_63 : f32 to vector<2x16xf32>
    %174 = arith.subf %173, %172 : vector<2x16xf32>
    %175 = math.exp %174 : vector<2x16xf32>
    %cst_64 = arith.constant 1.000000e+00 : f32
    %176 = vector.broadcast %cst_64 : f32 to vector<2x16xf32>
    %177 = arith.addf %176, %175 : vector<2x16xf32>
    %cst_65 = arith.constant 1.000000e+00 : f32
    %178 = vector.broadcast %cst_65 : f32 to vector<2x16xf32>
    %179 = arith.divf %178, %177 : vector<2x16xf32>
    %180 = vector.extract_strided_slice %179 {offsets = [0, 0], sizes = [2, 4], strides = [1, 1]} : vector<2x16xf32> to vector<2x4xf32>
    %181 = vector.extract_strided_slice %180 {offsets = [0, 0], sizes = [2, 1], strides = [1, 1]} : vector<2x4xf32> to vector<2x1xf32>
    %182 = vector.shape_cast %181 : vector<2x1xf32> to vector<2x1xf32>
    %183 = vector.broadcast %182 : vector<2x1xf32> to vector<2x32xf32>
    %184 = vector.extract_strided_slice %180 {offsets = [0, 1], sizes = [2, 1], strides = [1, 1]} : vector<2x4xf32> to vector<2x1xf32>
    %185 = vector.shape_cast %184 : vector<2x1xf32> to vector<2x1xf32>
    %186 = vector.broadcast %185 : vector<2x1xf32> to vector<2x32xf32>
    %187 = vector.extract_strided_slice %180 {offsets = [0, 2], sizes = [2, 1], strides = [1, 1]} : vector<2x4xf32> to vector<2x1xf32>
    %188 = vector.shape_cast %187 : vector<2x1xf32> to vector<2x1xf32>
    %189 = vector.broadcast %188 : vector<2x1xf32> to vector<2x32xf32>
    %190 = vector.extract_strided_slice %180 {offsets = [0, 3], sizes = [2, 1], strides = [1, 1]} : vector<2x4xf32> to vector<2x1xf32>
    %191 = vector.shape_cast %190 : vector<2x1xf32> to vector<2x1xf32>
    %192 = vector.broadcast %191 : vector<2x1xf32> to vector<2x32xf32>
    %193 = tpu.concatenate %183, %186, %189, %192 in 1 : vector<2x32xf32>, vector<2x32xf32>, vector<2x32xf32>, vector<2x32xf32> -> vector<2x128xf32>
    %194 = vector.extract_strided_slice %179 {offsets = [0, 4], sizes = [2, 4], strides = [1, 1]} : vector<2x16xf32> to vector<2x4xf32>
    %195 = vector.extract_strided_slice %194 {offsets = [0, 0], sizes = [2, 1], strides = [1, 1]} : vector<2x4xf32> to vector<2x1xf32>
    %196 = vector.shape_cast %195 : vector<2x1xf32> to vector<2x1xf32>
    %197 = vector.broadcast %196 : vector<2x1xf32> to vector<2x32xf32>
    %198 = vector.extract_strided_slice %194 {offsets = [0, 1], sizes = [2, 1], strides = [1, 1]} : vector<2x4xf32> to vector<2x1xf32>
    %199 = vector.shape_cast %198 : vector<2x1xf32> to vector<2x1xf32>
    %200 = vector.broadcast %199 : vector<2x1xf32> to vector<2x32xf32>
    %201 = vector.extract_strided_slice %194 {offsets = [0, 2], sizes = [2, 1], strides = [1, 1]} : vector<2x4xf32> to vector<2x1xf32>
    %202 = vector.shape_cast %201 : vector<2x1xf32> to vector<2x1xf32>
    %203 = vector.broadcast %202 : vector<2x1xf32> to vector<2x32xf32>
    %204 = vector.extract_strided_slice %194 {offsets = [0, 3], sizes = [2, 1], strides = [1, 1]} : vector<2x4xf32> to vector<2x1xf32>
    %205 = vector.shape_cast %204 : vector<2x1xf32> to vector<2x1xf32>
    %206 = vector.broadcast %205 : vector<2x1xf32> to vector<2x32xf32>
    %207 = tpu.concatenate %197, %200, %203, %206 in 1 : vector<2x32xf32>, vector<2x32xf32>, vector<2x32xf32>, vector<2x32xf32> -> vector<2x128xf32>
    %208 = vector.extract_strided_slice %179 {offsets = [0, 8], sizes = [2, 4], strides = [1, 1]} : vector<2x16xf32> to vector<2x4xf32>
    %209 = vector.extract_strided_slice %208 {offsets = [0, 0], sizes = [2, 1], strides = [1, 1]} : vector<2x4xf32> to vector<2x1xf32>
    %210 = vector.shape_cast %209 : vector<2x1xf32> to vector<2x1xf32>
    %211 = vector.broadcast %210 : vector<2x1xf32> to vector<2x32xf32>
    %212 = vector.extract_strided_slice %208 {offsets = [0, 1], sizes = [2, 1], strides = [1, 1]} : vector<2x4xf32> to vector<2x1xf32>
    %213 = vector.shape_cast %212 : vector<2x1xf32> to vector<2x1xf32>
    %214 = vector.broadcast %213 : vector<2x1xf32> to vector<2x32xf32>
    %215 = vector.extract_strided_slice %208 {offsets = [0, 2], sizes = [2, 1], strides = [1, 1]} : vector<2x4xf32> to vector<2x1xf32>
    %216 = vector.shape_cast %215 : vector<2x1xf32> to vector<2x1xf32>
    %217 = vector.broadcast %216 : vector<2x1xf32> to vector<2x32xf32>
    %218 = vector.extract_strided_slice %208 {offsets = [0, 3], sizes = [2, 1], strides = [1, 1]} : vector<2x4xf32> to vector<2x1xf32>
    %219 = vector.shape_cast %218 : vector<2x1xf32> to vector<2x1xf32>
    %220 = vector.broadcast %219 : vector<2x1xf32> to vector<2x32xf32>
    %221 = tpu.concatenate %211, %214, %217, %220 in 1 : vector<2x32xf32>, vector<2x32xf32>, vector<2x32xf32>, vector<2x32xf32> -> vector<2x128xf32>
    %222 = vector.extract_strided_slice %179 {offsets = [0, 12], sizes = [2, 4], strides = [1, 1]} : vector<2x16xf32> to vector<2x4xf32>
    %223 = vector.extract_strided_slice %222 {offsets = [0, 0], sizes = [2, 1], strides = [1, 1]} : vector<2x4xf32> to vector<2x1xf32>
    %224 = vector.shape_cast %223 : vector<2x1xf32> to vector<2x1xf32>
    %225 = vector.broadcast %224 : vector<2x1xf32> to vector<2x32xf32>
    %226 = vector.extract_strided_slice %222 {offsets = [0, 1], sizes = [2, 1], strides = [1, 1]} : vector<2x4xf32> to vector<2x1xf32>
    %227 = vector.shape_cast %226 : vector<2x1xf32> to vector<2x1xf32>
    %228 = vector.broadcast %227 : vector<2x1xf32> to vector<2x32xf32>
    %229 = vector.extract_strided_slice %222 {offsets = [0, 2], sizes = [2, 1], strides = [1, 1]} : vector<2x4xf32> to vector<2x1xf32>
    %230 = vector.shape_cast %229 : vector<2x1xf32> to vector<2x1xf32>
    %231 = vector.broadcast %230 : vector<2x1xf32> to vector<2x32xf32>
    %232 = vector.extract_strided_slice %222 {offsets = [0, 3], sizes = [2, 1], strides = [1, 1]} : vector<2x4xf32> to vector<2x1xf32>
    %233 = vector.shape_cast %232 : vector<2x1xf32> to vector<2x1xf32>
    %234 = vector.broadcast %233 : vector<2x1xf32> to vector<2x32xf32>
    %235 = tpu.concatenate %225, %228, %231, %234 in 1 : vector<2x32xf32>, vector<2x32xf32>, vector<2x32xf32>, vector<2x32xf32> -> vector<2x128xf32>
    %236 = tpu.concatenate %193, %207, %221, %235 in 0 : vector<2x128xf32>, vector<2x128xf32>, vector<2x128xf32>, vector<2x128xf32> -> vector<8x128xf32>
    %237 = arith.mulf %123, %236 : vector<8x128xf32>
    %c0_66 = arith.constant 0 : index
    %c0_67 = arith.constant 0 : index
    %238 = vector.load %arg19[%c0_66, %c0_67] : memref<1x128xf32, #tpu.memory_space<vmem>>, vector<1x128xf32>
    %239 = vector.broadcast %238 : vector<1x128xf32> to vector<8x128xf32>
    %240 = arith.mulf %237, %239 : vector<8x128xf32>
    %c0_68 = arith.constant 0 : index
    %c0_69 = arith.constant 0 : index
    %241 = vector.load %arg20[%c0_68, %c0_69] : memref<1x128xf32, #tpu.memory_space<vmem>>, vector<1x128xf32>
    %242 = vector.broadcast %241 : vector<1x128xf32> to vector<8x128xf32>
    %243 = arith.addf %240, %242 : vector<8x128xf32>
    %cst_70 = arith.constant 0.000000e+00 : f32
    %244 = vector.broadcast %cst_70 : f32 to vector<8x128xf32>
    %245 = arith.maximumf %243, %244 : vector<8x128xf32>
    %c0_71 = arith.constant 0 : index
    %c0_72 = arith.constant 0 : index
    %246 = vector.load %arg21[%c0_71, %c0_72] : memref<8x8xbf16, #tpu.memory_space<vmem>>, vector<8x8xbf16>
    %247 = arith.truncf %245 : vector<8x128xf32> to vector<8x128xbf16>
    %cst_73 = arith.constant dense<0.000000e+00> : vector<8x128xf32>
    %248 = tpu.matmul %246, %247, %cst_73 {dimension_numbers = #tpu.dot_dimension_numbers<[1], [0], [0], [1], [0, 0, 1, 1], [], []>} : vector<8x8xbf16>, vector<8x128xbf16>, vector<8x128xf32> -> vector<8x128xf32>
    %249 = vector.extract_strided_slice %248 {offsets = [0, 0], sizes = [4, 128], strides = [1, 1]} : vector<8x128xf32> to vector<4x128xf32>
    %250 = vector.extract_strided_slice %248 {offsets = [4, 0], sizes = [4, 128], strides = [1, 1]} : vector<8x128xf32> to vector<4x128xf32>
    %251 = arith.maximumf %249, %250 : vector<4x128xf32>
    %252 = arith.truncf %251 : vector<4x128xf32> to vector<4x128xbf16>
    %c0_74 = arith.constant 0 : index
    %c0_75 = arith.constant 0 : index
    %253 = vector.load %arg22[%c0_74, %c0_75] : memref<128x128xbf16, #tpu.memory_space<vmem>>, vector<128x128xbf16>
    %cst_76 = arith.constant dense<0.000000e+00> : vector<4x128xf32>
    %254 = tpu.matmul %252, %253, %cst_76 {dimension_numbers = #tpu.dot_dimension_numbers<[1], [0], [0], [1], [0, 0, 1, 1], [], []>} : vector<4x128xbf16>, vector<128x128xbf16>, vector<4x128xf32> -> vector<4x128xf32>
    %255 = vector.extract_strided_slice %254 {offsets = [0, 0], sizes = [4, 64], strides = [1, 1]} : vector<4x128xf32> to vector<4x64xf32>
    %256 = vector.extract_strided_slice %254 {offsets = [0, 64], sizes = [4, 64], strides = [1, 1]} : vector<4x128xf32> to vector<4x64xf32>
    %257 = arith.maximumf %255, %256 : vector<4x64xf32>
    %c0_77 = arith.constant 0 : index
    %c0_78 = arith.constant 0 : index
    %258 = vector.load %arg23[%c0_77, %c0_78] : memref<4x64xf32, #tpu.memory_space<vmem>>, vector<4x64xf32>
    tpu.vector_store %arg23[%c0_77, %c0_78], %257 {strides = array<i32>} : memref<4x64xf32, #tpu.memory_space<vmem>>, vector<4x64xf32>,
    return
  }
  func.func @transform_0(%arg0: i32) -> (i32, i32) {
    %c0_i32 = arith.constant 0 : i32
    %c0_i32_0 = arith.constant 0 : i32
    %c0_i32_1 = arith.constant 0 : i32
    return %c0_i32, %c0_i32_0 : i32, i32
  }
  func.func @transform_1(%arg0: i32) -> (i32, i32) {
    %c0_i32 = arith.constant 0 : i32
    %c0_i32_0 = arith.constant 0 : i32
    %c0_i32_1 = arith.constant 0 : i32
    return %c0_i32, %c0_i32_0 : i32, i32
  }
  func.func @transform_2(%arg0: i32) -> (i32, i32) {
    %c0_i32 = arith.constant 0 : i32
    %c0_i32_0 = arith.constant 0 : i32
    %c0_i32_1 = arith.constant 0 : i32
    return %c0_i32, %c0_i32_0 : i32, i32
  }
  func.func @transform_3(%arg0: i32) -> (i32, i32) {
    %c0_i32 = arith.constant 0 : i32
    %c0_i32_0 = arith.constant 0 : i32
    %c0_i32_1 = arith.constant 0 : i32
    return %c0_i32, %c0_i32_0 : i32, i32
  }
  func.func @transform_4(%arg0: i32) -> (i32, i32) {
    %c0_i32 = arith.constant 0 : i32
    %c0_i32_0 = arith.constant 0 : i32
    %c0_i32_1 = arith.constant 0 : i32
    return %c0_i32, %c0_i32_0 : i32, i32
  }
  func.func @transform_5(%arg0: i32) -> (i32, i32) {
    %c0_i32 = arith.constant 0 : i32
    %c0_i32_0 = arith.constant 0 : i32
    %c0_i32_1 = arith.constant 0 : i32
    return %c0_i32, %c0_i32_0 : i32, i32
  }
  func.func @transform_6(%arg0: i32) -> (i32, i32) {
    %c0_i32 = arith.constant 0 : i32
    %c0_i32_0 = arith.constant 0 : i32
    %c0_i32_1 = arith.constant 0 : i32
    return %c0_i32, %c0_i32_0 : i32, i32
  }
  func.func @transform_7(%arg0: i32) -> (i32, i32) {
    %c0_i32 = arith.constant 0 : i32
    %c0_i32_0 = arith.constant 0 : i32
    %c0_i32_1 = arith.constant 0 : i32
    return %c0_i32, %c0_i32_0 : i32, i32
  }
  func.func @transform_8(%arg0: i32) -> (i32, i32) {
    %c0_i32 = arith.constant 0 : i32
    %c0_i32_0 = arith.constant 0 : i32
    %c0_i32_1 = arith.constant 0 : i32
    return %c0_i32, %c0_i32_0 : i32, i32
  }
  func.func @transform_9(%arg0: i32) -> (i32, i32) {
    %c0_i32 = arith.constant 0 : i32
    %c0_i32_0 = arith.constant 0 : i32
    %c0_i32_1 = arith.constant 0 : i32
    return %c0_i32, %c0_i32_0 : i32, i32
  }
  func.func @transform_10(%arg0: i32) -> (i32, i32) {
    %c0_i32 = arith.constant 0 : i32
    %c0_i32_0 = arith.constant 0 : i32
    %c0_i32_1 = arith.constant 0 : i32
    return %c0_i32, %c0_i32_0 : i32, i32
  }
  func.func @transform_11(%arg0: i32) -> (i32, i32) {
    %c0_i32 = arith.constant 0 : i32
    %c0_i32_0 = arith.constant 0 : i32
    %c0_i32_1 = arith.constant 0 : i32
    return %c0_i32, %c0_i32_0 : i32, i32
  }
  func.func @transform_12(%arg0: i32) -> (i32, i32) {
    %c0_i32 = arith.constant 0 : i32
    %c0_i32_0 = arith.constant 0 : i32
    %c0_i32_1 = arith.constant 0 : i32
    return %c0_i32, %c0_i32_0 : i32, i32
  }
  func.func @transform_13(%arg0: i32) -> (i32, i32) {
    %c0_i32 = arith.constant 0 : i32
    %c0_i32_0 = arith.constant 0 : i32
    %c0_i32_1 = arith.constant 0 : i32
    return %c0_i32, %c0_i32_0 : i32, i32
  }
  func.func @transform_14(%arg0: i32) -> (i32, i32) {
    %c0_i32 = arith.constant 0 : i32
    %c0_i32_0 = arith.constant 0 : i32
    %c0_i32_1 = arith.constant 0 : i32
    return %c0_i32, %c0_i32_0 : i32, i32
  }
  func.func @transform_15(%arg0: i32) -> (i32, i32) {
    %c0_i32 = arith.constant 0 : i32
    %c0_i32_0 = arith.constant 0 : i32
    %c0_i32_1 = arith.constant 0 : i32
    return %c0_i32, %c0_i32_0 : i32, i32
  }
  func.func @transform_16(%arg0: i32) -> (i32, i32) {
    %c0_i32 = arith.constant 0 : i32
    %c0_i32_0 = arith.constant 0 : i32
    %c0_i32_1 = arith.constant 0 : i32
    return %c0_i32, %c0_i32_0 : i32, i32
  }
  func.func @transform_17(%arg0: i32) -> (i32, i32) {
    %c0_i32 = arith.constant 0 : i32
    %c0_i32_0 = arith.constant 0 : i32
    %c0_i32_1 = arith.constant 0 : i32
    return %c0_i32, %c0_i32_0 : i32, i32
  }
  func.func @transform_18(%arg0: i32) -> (i32, i32) {
    %c0_i32 = arith.constant 0 : i32
    %c0_i32_0 = arith.constant 0 : i32
    %c0_i32_1 = arith.constant 0 : i32
    return %c0_i32, %c0_i32_0 : i32, i32
  }
  func.func @transform_19(%arg0: i32) -> (i32, i32) {
    %c0_i32 = arith.constant 0 : i32
    %c0_i32_0 = arith.constant 0 : i32
    %c0_i32_1 = arith.constant 0 : i32
    return %c0_i32, %c0_i32_0 : i32, i32
  }
  func.func @transform_20(%arg0: i32) -> (i32, i32) {
    %c0_i32 = arith.constant 0 : i32
    %c0_i32_0 = arith.constant 0 : i32
    %c0_i32_1 = arith.constant 0 : i32
    return %c0_i32, %c0_i32_0 : i32, i32
  }
  func.func @transform_21(%arg0: i32) -> (i32, i32) {
    %c0_i32 = arith.constant 0 : i32
    %c0_i32_0 = arith.constant 0 : i32
    %c0_i32_1 = arith.constant 0 : i32
    return %c0_i32, %c0_i32_0 : i32, i32
  }
  func.func @transform_22(%arg0: i32) -> (i32, i32) {
    %c0_i32 = arith.constant 0 : i32
    %c0_i32_0 = arith.constant 0 : i32
    %c0_i32_1 = arith.constant 0 : i32
    return %c0_i32, %c0_i32_0 : i32, i32
  }
}

</mosaic_0001>

<llo_original>
// kernel: tpu_custom_call.1
$region0: #{tpu_custom_call.1}
  #allocation0 [shape = 'u32[]', space=smem, size = 0x4, offset = 0x4, fixed_abs, tag = 'smem constant byte address 0x4 - core index']
  #allocation1 [shape = 'u32[144,128]{1,0:T(1,128)}', space=vmem, size = 0x12000, scoped, tag = 'internal scratch']
  %s0 = inlined_call_operand.hbm [shape: f32[48,72], index: 0, kind: input, shape index: {}]
  %s1 = inlined_call_operand.hbm [shape: bf16[360,640], index: 1, kind: input, shape index: {}]
  %s2 = inlined_call_operand.hbm [shape: f32[1,640], index: 2, kind: input, shape index: {}]
  %s3 = inlined_call_operand.hbm [shape: bf16[3200,512], index: 3, kind: input, shape index: {}]
  %s4 = inlined_call_operand.hbm [shape: f32[1,512], index: 4, kind: input, shape index: {}]
  %s5 = inlined_call_operand.hbm [shape: f32[1,512], index: 5, kind: input, shape index: {}]
  %s6 = inlined_call_operand.hbm [shape: bf16[32,32], index: 6, kind: input, shape index: {}]
  %s7 = inlined_call_operand.hbm [shape: bf16[512,512], index: 7, kind: input, shape index: {}]
  %s8 = inlined_call_operand.vmem [shape: bf16[768,192], index: 8, kind: input, shape index: {}]
  %s9 = inlined_call_operand.hbm [shape: f32[1,192], index: 9, kind: input, shape index: {}]
  %s10 = inlined_call_operand.hbm [shape: bf16[576,128], index: 10, kind: input, shape index: {}]
  %s11 = inlined_call_operand.hbm [shape: f32[1,128], index: 11, kind: input, shape index: {}]
  %s12 = inlined_call_operand.vmem [shape: bf16[32,8], index: 12, kind: input, shape index: {}]
  %s13 = inlined_call_operand.hbm [shape: f32[1,8], index: 13, kind: input, shape index: {}]
  %s14 = inlined_call_operand.hbm [shape: bf16[8,32], index: 14, kind: input, shape index: {}]
  %s15 = inlined_call_operand.hbm [shape: f32[1,32], index: 15, kind: input, shape index: {}]
  %s16 = inlined_call_operand.vmem [shape: bf16[32,16], index: 16, kind: input, shape index: {}]
  %s17 = inlined_call_operand.hbm [shape: f32[1,16], index: 17, kind: input, shape index: {}]
  %s18 = inlined_call_operand.hbm [shape: f32[1,128], index: 18, kind: input, shape index: {}]
  %s19 = inlined_call_operand.hbm [shape: f32[1,128], index: 19, kind: input, shape index: {}]
  %s20 = inlined_call_operand.hbm [shape: bf16[8,8], index: 20, kind: input, shape index: {}]
  %s21 = inlined_call_operand.hbm [shape: bf16[128,128], index: 21, kind: input, shape index: {}]
  %s22 = inlined_call_operand.hbm [shape: f32[4,64], index: 22, kind: output, shape index: {}]
  %s23 = sld [smem:[#allocation0]]
  $region174: #{tpu_custom_call.1} parent=0
    _
  %s25 = ssub.s32 1, %s23
  %s26 = scalar_select 0, %s25, %s23
  $region1: #{tpu_custom_call.1} parent=0
    #allocation2 [shape = 'u8[24576]{0}', space=vmem, size = 0x6000, scoped, tag = 'input window, operand 0, single buffered']
    #allocation3 [shape = 's32[1]{0}', space=sflag, size = 0x4, scoped, tag = 'scoped memory for tpu_custom_call.1']
    #allocation4 [shape = 's32[1]{0}', space=sflag, size = 0x4, scoped, tag = 'scoped memory for tpu_custom_call.1']
    #allocation5 [shape = 'u8[460800]{0}', space=vmem, size = 0x70800, scoped, tag = 'input window, operand 1, single buffered']
    #allocation6 [shape = 's32[1]{0}', space=sflag, size = 0x4, scoped, tag = 'scoped memory for tpu_custom_call.1']
    #allocation7 [shape = 'u8[2560]{0}', space=vmem, size = 0xc00, scoped, tag = 'input window, operand 2, single buffered']
    #allocation8 [shape = 'u8[3276800]{0}', space=vmem, size = 0x320000, scoped, tag = 'input window, operand 3, single buffered']
    #allocation9 [shape = 's32[1]{0}', space=sflag, size = 0x4, scoped, tag = 'scoped memory for tpu_custom_call.1']
    #allocation10 [shape = 'u8[2048]{0}', space=vmem, size = 0x800, scoped, tag = 'input window, operand 4, single buffered']
    #allocation11 [shape = 'u8[2048]{0}', space=vmem, size = 0x800, scoped, tag = 'input window, operand 5, single buffered']
    #allocation12 [shape = 's32[1]{0}', space=sflag, size = 0x4, scoped, tag = 'scoped memory for tpu_custom_call.1']
    #allocation13 [shape = 'u8[8192]{0}', space=vmem, size = 0x2000, scoped, tag = 'input window, operand 6, single buffered']
    #allocation14 [shape = 'u8[524288]{0}', space=vmem, size = 0x80000, scoped, tag = 'input window, operand 7, single buffered']
    #allocation15 [shape = 's32[1]{0}', space=sflag, size = 0x4, scoped, tag = 'scoped memory for tpu_custom_call.1']
    #allocation16 [shape = 'u8[1024]{0}', space=vmem, size = 0x400, scoped, tag = 'input window, operand 9, single buffered']
    #allocation17 [shape = 'u8[147456]{0}', space=vmem, size = 0x24000, scoped, tag = 'input window, operand 10, single buffered']
    #allocation18 [shape = 's32[1]{0}', space=sflag, size = 0x4, scoped, tag = 'scoped memory for tpu_custom_call.1']
    #allocation19 [shape = 'u8[512]{0}', space=vmem, size = 0x400, scoped, tag = 'input window, operand 11, single buffered']
    #allocation20 [shape = 'u8[512]{0}', space=vmem, size = 0x400, scoped, tag = 'input window, operand 13, single buffered']
    #allocation21 [shape = 's32[1]{0}', space=sflag, size = 0x4, scoped, tag = 'scoped memory for tpu_custom_call.1']
    #allocation22 [shape = 'u8[2048]{0}', space=vmem, size = 0x800, scoped, tag = 'input window, operand 14, single buffered']
    #allocation23 [shape = 'u8[512]{0}', space=vmem, size = 0x400, scoped, tag = 'input window, operand 15, single buffered']
    #allocation24 [shape = 's32[1]{0}', space=sflag, size = 0x4, scoped, tag = 'scoped memory for tpu_custom_call.1']
    #allocation25 [shape = 'u8[512]{0}', space=vmem, size = 0x400, scoped, tag = 'input window, operand 17, single buffered']
    #allocation26 [shape = 'u8[512]{0}', space=vmem, size = 0x400, scoped, tag = 'input window, operand 18, single buffered']
    #allocation27 [shape = 's32[1]{0}', space=sflag, size = 0x4, scoped, tag = 'scoped memory for tpu_custom_call.1']
    #allocation28 [shape = 'u8[512]{0}', space=vmem, size = 0x400, scoped, tag = 'input window, operand 19, single buffered']
    #allocation29 [shape = 'u8[2048]{0}', space=vmem, size = 0x800, scoped, tag = 'input window, operand 20, single buffered']
    #allocation30 [shape = 's32[1]{0}', space=sflag, size = 0x4, scoped, tag = 'scoped memory for tpu_custom_call.1']
    #allocation31 [shape = 'u8[32768]{0}', space=vmem, size = 0x8000, scoped, tag = 'input window, operand 21, single buffered']
    #allocation32 [shape = 'u8[2048]{0}', space=vmem, size = 0x800, scoped, tag = 'output window, operand 0, single buffered']
    %27 = vsyncpa [#allocation3], 0
    %28 = vsyncpa [#allocation6], 0
    %29 = vsyncpa [#allocation9], 0
    %30 = vsyncpa [#allocation12], 0
    %31 = vsyncpa [#allocation15], 0
    %32 = vsyncpa [#allocation18], 0
    %33 = vsyncpa [#allocation21], 0
    %34 = vsyncpa [#allocation24], 0
    %35 = vsyncpa [#allocation27], 0
    %36 = vsyncpa [#allocation30], 0
    %37 = vsyncpa [#allocation4], 0
    // Predicated region
    $region2: #{tpu_custom_call.1} parent=1 // pred_check
      _
    $region3: #{tpu_custom_call.1} parent=1 // pred_check_branch
      %39 = sbr.rel (0) target = $region5
    $region4: #{tpu_custom_call.1} parent=1 // pred_region
      %s41 = ssub.s32 768, 768
      %42 = vsyncadd [#allocation3], %s41
      %s43 = sshll.u32 [#allocation2], 4
      %s44 = int_to_ptr.vmem [resolvable:$true] %s43
      %49 = dma.hbm_to_vmem [thread:$0]  %s0, 768, %s44, [#allocation3], 128, 128, 8
    $region5: #{tpu_custom_call.1} parent=1 // pred_fallthru
      _
    // Predicated region
    $region6: #{tpu_custom_call.1} parent=1 // pred_check
      _
    $region7: #{tpu_custom_call.1} parent=1 // pred_check_branch
      %51 = sbr.rel (0) target = $region9
    $region8: #{tpu_custom_call.1} parent=1 // pred_region
      %s53 = ssub.s32 14400, 14400
      %54 = vsyncadd [#allocation6], %s53
      %s55 = sshll.u32 [#allocation5], 4
      %s56 = int_to_ptr.vmem [resolvable:$true] %s55
      %61 = dma.hbm_to_vmem [thread:$0]  %s1, 14400, %s56, [#allocation6], 320, 320, 20
    $region9: #{tpu_custom_call.1} parent=1 // pred_fallthru
      _
    // Predicated region
    $region10: #{tpu_custom_call.1} parent=1 // pred_check
      _
    $region11: #{tpu_custom_call.1} parent=1 // pred_check_branch
      %63 = sbr.rel (0) target = $region13
    $region12: #{tpu_custom_call.1} parent=1 // pred_region
      %s65 = ssub.s32 80, 80
      %66 = vsyncadd [#allocation6], %s65
      %s68 = sshll.u32 [#allocation7], 4
      %s69 = int_to_ptr.vmem [resolvable:$true] %s68
      %71 = dma.hbm_to_vmem [thread:$0]  %s2, 80, %s69, [#allocation6]
    $region13: #{tpu_custom_call.1} parent=1 // pred_fallthru
      _
    // Predicated region
    $region14: #{tpu_custom_call.1} parent=1 // pred_check
      _
    $region15: #{tpu_custom_call.1} parent=1 // pred_check_branch
      %73 = sbr.rel (0) target = $region17
    $region16: #{tpu_custom_call.1} parent=1 // pred_region
      %s75 = ssub.s32 102400, 102400
      %76 = vsyncadd [#allocation9], %s75
      %s77 = sshll.u32 [#allocation8], 4
      %s78 = int_to_ptr.vmem [resolvable:$true] %s77
      %83 = dma.hbm_to_vmem [thread:$0]  %s3, 102400, %s78, [#allocation9], 256, 256, 16
    $region17: #{tpu_custom_call.1} parent=1 // pred_fallthru
      _
    // Predicated region
    $region18: #{tpu_custom_call.1} parent=1 // pred_check
      _
    $region19: #{tpu_custom_call.1} parent=1 // pred_check_branch
      %85 = sbr.rel (0) target = $region21
    $region20: #{tpu_custom_call.1} parent=1 // pred_region
      %s87 = ssub.s32 64, 64
      %88 = vsyncadd [#allocation9], %s87
      %s90 = sshll.u32 [#allocation10], 4
      %s91 = int_to_ptr.vmem [resolvable:$true] %s90
      %93 = dma.hbm_to_vmem [thread:$0]  %s4, 64, %s91, [#allocation9]
    $region21: #{tpu_custom_call.1} parent=1 // pred_fallthru
      _
    // Predicated region
    $region22: #{tpu_custom_call.1} parent=1 // pred_check
      _
    $region23: #{tpu_custom_call.1} parent=1 // pred_check_branch
      %95 = sbr.rel (0) target = $region25
    $region24: #{tpu_custom_call.1} parent=1 // pred_region
      %s97 = ssub.s32 64, 64
      %98 = vsyncadd [#allocation12], %s97
      %s100 = sshll.u32 [#allocation11], 4
      %s101 = int_to_ptr.vmem [resolvable:$true] %s100
      %103 = dma.hbm_to_vmem [thread:$0]  %s5, 64, %s101, [#allocation12]
    $region25: #{tpu_custom_call.1} parent=1 // pred_fallthru
      _
    // Predicated region
    $region26: #{tpu_custom_call.1} parent=1 // pred_check
      _
    $region27: #{tpu_custom_call.1} parent=1 // pred_check_branch
      %105 = sbr.rel (0) target = $region29
    $region28: #{tpu_custom_call.1} parent=1 // pred_region
      %s107 = ssub.s32 256, 256
      %108 = vsyncadd [#allocation12], %s107
      %s109 = sshll.u32 [#allocation13], 4
      %s110 = int_to_ptr.vmem [resolvable:$true] %s109
      %115 = dma.hbm_to_vmem [thread:$0]  %s6, 256, %s110, [#allocation12], 64, 64, 4
    $region29: #{tpu_custom_call.1} parent=1 // pred_fallthru
      _
    // Predicated region
    $region30: #{tpu_custom_call.1} parent=1 // pred_check
      _
    $region31: #{tpu_custom_call.1} parent=1 // pred_check_branch
      %117 = sbr.rel (0) target = $region33
    $region32: #{tpu_custom_call.1} parent=1 // pred_region
      %s119 = ssub.s32 16384, 16384
      %120 = vsyncadd [#allocation15], %s119
      %s121 = sshll.u32 [#allocation14], 4
      %s122 = int_to_ptr.vmem [resolvable:$true] %s121
      %127 = dma.hbm_to_vmem [thread:$0]  %s7, 16384, %s122, [#allocation15], 256, 256, 16
    $region33: #{tpu_custom_call.1} parent=1 // pred_fallthru
      _
    // Predicated region
    $region34: #{tpu_custom_call.1} parent=1 // pred_check
      _
    $region35: #{tpu_custom_call.1} parent=1 // pred_check_branch
      %129 = sbr.rel (0) target = $region37
    $region36: #{tpu_custom_call.1} parent=1 // pred_region
      _
    $region37: #{tpu_custom_call.1} parent=1 // pred_fallthru
      _
    // Predicated region
    $region38: #{tpu_custom_call.1} parent=1 // pred_check
      _
    $region39: #{tpu_custom_call.1} parent=1 // pred_check_branch
      %131 = sbr.rel (0) target = $region41
    $region40: #{tpu_custom_call.1} parent=1 // pred_region
      %s133 = ssub.s32 32, 32
      %134 = vsyncadd [#allocation15], %s133
      %s136 = sshll.u32 [#allocation16], 4
      %s137 = int_to_ptr.vmem [resolvable:$true] %s136
      %139 = dma.hbm_to_vmem [thread:$0]  %s9, 32, %s137, [#allocation15]
    $region41: #{tpu_custom_call.1} parent=1 // pred_fallthru
      _
    // Predicated region
    $region42: #{tpu_custom_call.1} parent=1 // pred_check
      _
    $region43: #{tpu_custom_call.1} parent=1 // pred_check_branch
      %141 = sbr.rel (0) target = $region45
    $region44: #{tpu_custom_call.1} parent=1 // pred_region
      %s143 = ssub.s32 4608, 4608
      %144 = vsyncadd [#allocation18], %s143
      %s145 = sshll.u32 [#allocation17], 4
      %s146 = int_to_ptr.vmem [resolvable:$true] %s145
      %151 = dma.hbm_to_vmem [thread:$0]  %s10, 4608, %s146, [#allocation18], 64, 64, 4
    $region45: #{tpu_custom_call.1} parent=1 // pred_fallthru
      _
    // Predicated region
    $region46: #{tpu_custom_call.1} parent=1 // pred_check
      _
    $region47: #{tpu_custom_call.1} parent=1 // pred_check_branch
      %153 = sbr.rel (0) target = $region49
    $region48: #{tpu_custom_call.1} parent=1 // pred_region
      %s155 = ssub.s32 16, 16
      %156 = vsyncadd [#allocation18], %s155
      %s158 = sshll.u32 [#allocation19], 4
      %s159 = int_to_ptr.vmem [resolvable:$true] %s158
      %161 = dma.hbm_to_vmem [thread:$0]  %s11, 16, %s159, [#allocation18]
    $region49: #{tpu_custom_call.1} parent=1 // pred_fallthru
      _
    // Predicated region
    $region50: #{tpu_custom_call.1} parent=1 // pred_check
      _
    $region51: #{tpu_custom_call.1} parent=1 // pred_check_branch
      %163 = sbr.rel (0) target = $region53
    $region52: #{tpu_custom_call.1} parent=1 // pred_region
      _
    $region53: #{tpu_custom_call.1} parent=1 // pred_fallthru
      _
    // Predicated region
    $region54: #{tpu_custom_call.1} parent=1 // pred_check
      _
    $region55: #{tpu_custom_call.1} parent=1 // pred_check_branch
      %165 = sbr.rel (0) target = $region57
    $region56: #{tpu_custom_call.1} parent=1 // pred_region
      %s167 = ssub.s32 16, 16
      %168 = vsyncadd [#allocation21], %s167
      %s170 = sshll.u32 [#allocation20], 4
      %s171 = int_to_ptr.vmem [resolvable:$true] %s170
      %173 = dma.hbm_to_vmem [thread:$0]  %s13, 16, %s171, [#allocation21]
    $region57: #{tpu_custom_call.1} parent=1 // pred_fallthru
      _
    // Predicated region
    $region58: #{tpu_custom_call.1} parent=1 // pred_check
      _
    $region59: #{tpu_custom_call.1} parent=1 // pred_check_branch
      %175 = sbr.rel (0) target = $region61
    $region60: #{tpu_custom_call.1} parent=1 // pred_region
      %s177 = ssub.s32 64, 64
      %178 = vsyncadd [#allocation21], %s177
      %s180 = sshll.u32 [#allocation22], 4
      %s181 = int_to_ptr.vmem [resolvable:$true] %s180
      %183 = dma.hbm_to_vmem [thread:$0]  %s14, 64, %s181, [#allocation21]
    $region61: #{tpu_custom_call.1} parent=1 // pred_fallthru
      _
    // Predicated region
    $region62: #{tpu_custom_call.1} parent=1 // pred_check
      _
    $region63: #{tpu_custom_call.1} parent=1 // pred_check_branch
      %185 = sbr.rel (0) target = $region65
    $region64: #{tpu_custom_call.1} parent=1 // pred_region
      %s187 = ssub.s32 16, 16
      %188 = vsyncadd [#allocation24], %s187
      %s190 = sshll.u32 [#allocation23], 4
      %s191 = int_to_ptr.vmem [resolvable:$true] %s190
      %193 = dma.hbm_to_vmem [thread:$0]  %s15, 16, %s191, [#allocation24]
    $region65: #{tpu_custom_call.1} parent=1 // pred_fallthru
      _
    // Predicated region
    $region66: #{tpu_custom_call.1} parent=1 // pred_check
      _
    $region67: #{tpu_custom_call.1} parent=1 // pred_check_branch
      %195 = sbr.rel (0) target = $region69
    $region68: #{tpu_custom_call.1} parent=1 // pred_region
      _
    $region69: #{tpu_custom_call.1} parent=1 // pred_fallthru
      _
    // Predicated region
    $region70: #{tpu_custom_call.1} parent=1 // pred_check
      _
    $region71: #{tpu_custom_call.1} parent=1 // pred_check_branch
      %197 = sbr.rel (0) target = $region73
    $region72: #{tpu_custom_call.1} parent=1 // pred_region
      %s199 = ssub.s32 16, 16
      %200 = vsyncadd [#allocation24], %s199
      %s202 = sshll.u32 [#allocation25], 4
      %s203 = int_to_ptr.vmem [resolvable:$true] %s202
      %205 = dma.hbm_to_vmem [thread:$0]  %s17, 16, %s203, [#allocation24]
    $region73: #{tpu_custom_call.1} parent=1 // pred_fallthru
      _
    // Predicated region
    $region74: #{tpu_custom_call.1} parent=1 // pred_check
      _
    $region75: #{tpu_custom_call.1} parent=1 // pred_check_branch
      %207 = sbr.rel (0) target = $region77
    $region76: #{tpu_custom_call.1} parent=1 // pred_region
      %s209 = ssub.s32 16, 16
      %210 = vsyncadd [#allocation27], %s209
      %s212 = sshll.u32 [#allocation26], 4
      %s213 = int_to_ptr.vmem [resolvable:$true] %s212
      %215 = dma.hbm_to_vmem [thread:$0]  %s18, 16, %s213, [#allocation27]
    $region77: #{tpu_custom_call.1} parent=1 // pred_fallthru
      _
    // Predicated region
    $region78: #{tpu_custom_call.1} parent=1 // pred_check
      _
    $region79: #{tpu_custom_call.1} parent=1 // pred_check_branch
      %217 = sbr.rel (0) target = $region81
    $region80: #{tpu_custom_call.1} parent=1 // pred_region
      %s219 = ssub.s32 16, 16
      %220 = vsyncadd [#allocation27], %s219
      %s222 = sshll.u32 [#allocation28], 4
      %s223 = int_to_ptr.vmem [resolvable:$true] %s222
      %225 = dma.hbm_to_vmem [thread:$0]  %s19, 16, %s223, [#allocation27]
    $region81: #{tpu_custom_call.1} parent=1 // pred_fallthru
      _
    // Predicated region
    $region82: #{tpu_custom_call.1} parent=1 // pred_check
      _
    $region83: #{tpu_custom_call.1} parent=1 // pred_check_branch
      %227 = sbr.rel (0) target = $region85
    $region84: #{tpu_custom_call.1} parent=1 // pred_region
      %s229 = ssub.s32 64, 64
      %230 = vsyncadd [#allocation30], %s229
      %s232 = sshll.u32 [#allocation29], 4
      %s233 = int_to_ptr.vmem [resolvable:$true] %s232
      %235 = dma.hbm_to_vmem [thread:$0]  %s20, 64, %s233, [#allocation30]
    $region85: #{tpu_custom_call.1} parent=1 // pred_fallthru
      _
    // Predicated region
    $region86: #{tpu_custom_call.1} parent=1 // pred_check
      _
    $region87: #{tpu_custom_call.1} parent=1 // pred_check_branch
      %237 = sbr.rel (0) target = $region89
    $region88: #{tpu_custom_call.1} parent=1 // pred_region
      %s239 = ssub.s32 1024, 1024
      %240 = vsyncadd [#allocation30], %s239
      %s241 = sshll.u32 [#allocation31], 4
      %s242 = int_to_ptr.vmem [resolvable:$true] %s241
      %247 = dma.hbm_to_vmem [thread:$0]  %s21, 1024, %s242, [#allocation30], 64, 64, 4
    $region89: #{tpu_custom_call.1} parent=1 // pred_fallthru
      _
    // Predicated region
    $region90: #{tpu_custom_call.1} parent=1 // pred_check
      _
    $region91: #{tpu_custom_call.1} parent=1 // pred_check_branch
      %249 = sbr.rel (0) target = $region93
    $region92: #{tpu_custom_call.1} parent=1 // pred_region
      %250 = dma.done [#allocation3], 768
    $region93: #{tpu_custom_call.1} parent=1 // pred_fallthru
      _
    // Predicated region
    $region94: #{tpu_custom_call.1} parent=1 // pred_check
      _
    $region95: #{tpu_custom_call.1} parent=1 // pred_check_branch
      %252 = sbr.rel (0) target = $region97
    $region96: #{tpu_custom_call.1} parent=1 // pred_region
      %253 = dma.done [#allocation6], 14400
    $region97: #{tpu_custom_call.1} parent=1 // pred_fallthru
      _
    // Predicated region
    $region98: #{tpu_custom_call.1} parent=1 // pred_check
      _
    $region99: #{tpu_custom_call.1} parent=1 // pred_check_branch
      %255 = sbr.rel (0) target = $region101
    $region100: #{tpu_custom_call.1} parent=1 // pred_region
      %256 = dma.done [#allocation6], 80
    $region101: #{tpu_custom_call.1} parent=1 // pred_fallthru
      _
    // Predicated region
    $region102: #{tpu_custom_call.1} parent=1 // pred_check
      _
    $region103: #{tpu_custom_call.1} parent=1 // pred_check_branch
      %258 = sbr.rel (0) target = $region105
    $region104: #{tpu_custom_call.1} parent=1 // pred_region
      %259 = dma.done [#allocation9], 102400
    $region105: #{tpu_custom_call.1} parent=1 // pred_fallthru
      _
    // Predicated region
    $region106: #{tpu_custom_call.1} parent=1 // pred_check
      _
    $region107: #{tpu_custom_call.1} parent=1 // pred_check_branch
      %261 = sbr.rel (0) target = $region109
    $region108: #{tpu_custom_call.1} parent=1 // pred_region
      %262 = dma.done [#allocation9], 64
    $region109: #{tpu_custom_call.1} parent=1 // pred_fallthru
      _
    // Predicated region
    $region110: #{tpu_custom_call.1} parent=1 // pred_check
      _
    $region111: #{tpu_custom_call.1} parent=1 // pred_check_branch
      %264 = sbr.rel (0) target = $region113
    $region112: #{tpu_custom_call.1} parent=1 // pred_region
      %265 = dma.done [#allocation12], 64
    $region113: #{tpu_custom_call.1} parent=1 // pred_fallthru
      _
    // Predicated region
    $region114: #{tpu_custom_call.1} parent=1 // pred_check
      _
    $region115: #{tpu_custom_call.1} parent=1 // pred_check_branch
      %267 = sbr.rel (0) target = $region117
    $region116: #{tpu_custom_call.1} parent=1 // pred_region
      %268 = dma.done [#allocation12], 256
    $region117: #{tpu_custom_call.1} parent=1 // pred_fallthru
      _
    // Predicated region
    $region118: #{tpu_custom_call.1} parent=1 // pred_check
      _
    $region119: #{tpu_custom_call.1} parent=1 // pred_check_branch
      %270 = sbr.rel (0) target = $region121
    $region120: #{tpu_custom_call.1} parent=1 // pred_region
      %271 = dma.done [#allocation15], 16384
    $region121: #{tpu_custom_call.1} parent=1 // pred_fallthru
      _
    // Predicated region
    $region122: #{tpu_custom_call.1} parent=1 // pred_check
      _
    $region123: #{tpu_custom_call.1} parent=1 // pred_check_branch
      %273 = sbr.rel (0) target = $region125
    $region124: #{tpu_custom_call.1} parent=1 // pred_region
      %274 = dma.done [#allocation15], 32
    $region125: #{tpu_custom_call.1} parent=1 // pred_fallthru
      _
    // Predicated region
    $region126: #{tpu_custom_call.1} parent=1 // pred_check
      _
    $region127: #{tpu_custom_call.1} parent=1 // pred_check_branch
      %276 = sbr.rel (0) target = $region129
    $region128: #{tpu_custom_call.1} parent=1 // pred_region
      %277 = dma.done [#allocation18], 4608
    $region129: #{tpu_custom_call.1} parent=1 // pred_fallthru
      _
    // Predicated region
    $region130: #{tpu_custom_call.1} parent=1 // pred_check
      _
    $region131: #{tpu_custom_call.1} parent=1 // pred_check_branch
      %279 = sbr.rel (0) target = $region133
    $region132: #{tpu_custom_call.1} parent=1 // pred_region
      %280 = dma.done [#allocation18], 16
    $region133: #{tpu_custom_call.1} parent=1 // pred_fallthru
      _
    // Predicated region
    $region134: #{tpu_custom_call.1} parent=1 // pred_check
      _
    $region135: #{tpu_custom_call.1} parent=1 // pred_check_branch
      %282 = sbr.rel (0) target = $region137
    $region136: #{tpu_custom_call.1} parent=1 // pred_region
      %283 = dma.done [#allocation21], 16
    $region137: #{tpu_custom_call.1} parent=1 // pred_fallthru
      _
    // Predicated region
    $region138: #{tpu_custom_call.1} parent=1 // pred_check
      _
    $region139: #{tpu_custom_call.1} parent=1 // pred_check_branch
      %285 = sbr.rel (0) target = $region141
    $region140: #{tpu_custom_call.1} parent=1 // pred_region
      %286 = dma.done [#allocation21], 64
    $region141: #{tpu_custom_call.1} parent=1 // pred_fallthru
      _
    // Predicated region
    $region142: #{tpu_custom_call.1} parent=1 // pred_check
      _
    $region143: #{tpu_custom_call.1} parent=1 // pred_check_branch
      %288 = sbr.rel (0) target = $region145
    $region144: #{tpu_custom_call.1} parent=1 // pred_region
      %289 = dma.done [#allocation24], 16
    $region145: #{tpu_custom_call.1} parent=1 // pred_fallthru
      _
    // Predicated region
    $region146: #{tpu_custom_call.1} parent=1 // pred_check
      _
    $region147: #{tpu_custom_call.1} parent=1 // pred_check_branch
      %291 = sbr.rel (0) target = $region149
    $region148: #{tpu_custom_call.1} parent=1 // pred_region
      %292 = dma.done [#allocation24], 16
    $region149: #{tpu_custom_call.1} parent=1 // pred_fallthru
      _
    // Predicated region
    $region150: #{tpu_custom_call.1} parent=1 // pred_check
      _
    $region151: #{tpu_custom_call.1} parent=1 // pred_check_branch
      %294 = sbr.rel (0) target = $region153
    $region152: #{tpu_custom_call.1} parent=1 // pred_region
      %295 = dma.done [#allocation27], 16
    $region153: #{tpu_custom_call.1} parent=1 // pred_fallthru
      _
    // Predicated region
    $region154: #{tpu_custom_call.1} parent=1 // pred_check
      _
    $region155: #{tpu_custom_call.1} parent=1 // pred_check_branch
      %297 = sbr.rel (0) target = $region157
    $region156: #{tpu_custom_call.1} parent=1 // pred_region
      %298 = dma.done [#allocation27], 16
    $region157: #{tpu_custom_call.1} parent=1 // pred_fallthru
      _
    // Predicated region
    $region158: #{tpu_custom_call.1} parent=1 // pred_check
      _
    $region159: #{tpu_custom_call.1} parent=1 // pred_check_branch
      %300 = sbr.rel (0) target = $region161
    $region160: #{tpu_custom_call.1} parent=1 // pred_region
      %301 = dma.done [#allocation30], 64
    $region161: #{tpu_custom_call.1} parent=1 // pred_fallthru
      _
    // Predicated region
    $region162: #{tpu_custom_call.1} parent=1 // pred_check
      _
    $region163: #{tpu_custom_call.1} parent=1 // pred_check_branch
      %303 = sbr.rel (0) target = $region165
    $region164: #{tpu_custom_call.1} parent=1 // pred_region
      %304 = dma.done [#allocation30], 1024
    $region165: #{tpu_custom_call.1} parent=1 // pred_fallthru
      _
    %v306 = vld [vmem:[#allocation2] sm:$0xff]
    %v307 = vld [vmem:[#allocation2 + $0x8] sm:$0xff]
    %v308 = vld [vmem:[#allocation2 + $0x10] sm:$0xff]
    %v309 = vld [vmem:[#allocation2 + $0x18] sm:$0xff]
    %v310 = vld [vmem:[#allocation2 + $0x20] sm:$0xff]
    %v311 = vld [vmem:[#allocation2 + $0x28] sm:$0xff]
    %vm318 = vcmask 1045504
    %v319 = vrot.slane %v306, 2
    %v320 = vrot.slane %v307, 2
    %v321 = vsel %vm318, %v319, %v320
    %v322 = vrot.slane %v308, 2
    %v323 = vsel %vm318, %v320, %v322
    %v324 = vrot.slane %v309, 2
    %v325 = vsel %vm318, %v322, %v324
    %v326 = vrot.slane %v310, 2
    %v327 = vsel %vm318, %v324, %v326
    %v328 = vrot.slane %v311, 2
    %v329 = vsel %vm318, %v326, %v328
    %330 = vrot.lane.b32.xlu0 %v321, 72
    %v331 = vpop.permute.xlu0 %330
    %332 = vrot.lane.b32.xlu0 %v323, 72
    %v333 = vpop.permute.xlu0 %332
    %334 = vrot.lane.b32.xlu0 %v325, 72
    %v335 = vpop.permute.xlu0 %334
    %336 = vrot.lane.b32.xlu0 %v327, 72
    %v337 = vpop.permute.xlu0 %336
    %338 = vrot.lane.b32.xlu0 %v329, 72
    %v339 = vpop.permute.xlu0 %338
    %vm345 = vcmask 1043456
    %v346 = vrot.slane %v306, 4
    %v347 = vrot.slane %v307, 4
    %v348 = vsel %vm345, %v346, %v347
    %v349 = vrot.slane %v308, 4
    %v350 = vsel %vm345, %v347, %v349
    %v351 = vrot.slane %v309, 4
    %v352 = vsel %vm345, %v349, %v351
    %v353 = vrot.slane %v310, 4
    %v354 = vsel %vm345, %v351, %v353
    %v355 = vrot.slane %v311, 4
    %v356 = vsel %vm345, %v353, %v355
    %357 = vrot.lane.b32.xlu0 %v348, 16
    %v358 = vpop.permute.xlu0 %357
    %359 = vrot.lane.b32.xlu0 %v350, 16
    %v360 = vpop.permute.xlu0 %359
    %361 = vrot.lane.b32.xlu0 %v352, 16
    %v362 = vpop.permute.xlu0 %361
    %363 = vrot.lane.b32.xlu0 %v354, 16
    %v364 = vpop.permute.xlu0 %363
    %365 = vrot.lane.b32.xlu0 %v356, 16
    %v366 = vpop.permute.xlu0 %365
    %vm372 = vcmask 1041408
    %v373 = vrot.slane %v306, 6
    %v374 = vrot.slane %v307, 6
    %v375 = vsel %vm372, %v373, %v374
    %v376 = vrot.slane %v308, 6
    %v377 = vsel %vm372, %v374, %v376
    %v378 = vrot.slane %v309, 6
    %v379 = vsel %vm372, %v376, %v378
    %v380 = vrot.slane %v310, 6
    %v381 = vsel %vm372, %v378, %v380
    %v382 = vrot.slane %v311, 6
    %v383 = vsel %vm372, %v380, %v382
    %384 = vrot.lane.b32.xlu0 %v375, 88
    %v385 = vpop.permute.xlu0 %384
    %386 = vrot.lane.b32.xlu0 %v377, 88
    %v387 = vpop.permute.xlu0 %386
    %388 = vrot.lane.b32.xlu0 %v379, 88
    %v389 = vpop.permute.xlu0 %388
    %390 = vrot.lane.b32.xlu0 %v381, 88
    %v391 = vpop.permute.xlu0 %390
    %392 = vrot.lane.b32.xlu0 %v383, 88
    %v393 = vpop.permute.xlu0 %392
    %399 = vrot.lane.b32.xlu0 %v307, 32
    %v400 = vpop.permute.xlu0 %399
    %401 = vrot.lane.b32.xlu0 %v308, 32
    %v402 = vpop.permute.xlu0 %401
    %403 = vrot.lane.b32.xlu0 %v309, 32
    %v404 = vpop.permute.xlu0 %403
    %405 = vrot.lane.b32.xlu0 %v310, 32
    %v406 = vpop.permute.xlu0 %405
    %407 = vrot.lane.b32.xlu0 %v311, 32
    %v408 = vpop.permute.xlu0 %407
    %vm414 = vcmask 588800
    %v415 = vsel %vm414, %v306, %v331
    %v416 = vsel %vm414, %v307, %v333
    %v417 = vsel %vm414, %v308, %v335
    %v418 = vsel %vm414, %v309, %v337
    %v419 = vsel %vm414, %v310, %v339
    %vm420 = vcmask 130048
    %v421 = vsel %vm420, %v331, %v358
    %v422 = vsel %vm420, %v333, %v360
    %v423 = vsel %vm420, %v335, %v362
    %v424 = vsel %vm420, %v337, %v364
    %v425 = vsel %vm420, %v339, %v366
    %vm426 = vcmask 719872
    %v427 = vsel %vm426, %v421, %v385
    %v428 = vsel %vm426, %v422, %v387
    %v429 = vsel %vm426, %v423, %v389
    %v430 = vsel %vm426, %v424, %v391
    %v431 = vsel %vm426, %v425, %v393
    %vm432 = vcmask 261120
    %v433 = vsel %vm432, %v385, %v400
    %v434 = vsel %vm432, %v387, %v402
    %v435 = vsel %vm432, %v389, %v404
    %v436 = vsel %vm432, %v391, %v406
    %v437 = vsel %vm432, %v393, %v408
    %v438 = vpack.c.bf16 %v416, %v415
    %v439 = vpack.c.bf16 %v428, %v427
    %v440 = vpack.c.bf16 %v434, %v433
    %v441 = vpack.c.bf16 %v418, %v417
    %v442 = vpack.c.bf16 %v430, %v429
    %v443 = vpack.c.bf16 %v436, %v435
    %v444 = vpack.c.bf16 %v419, %v419
    %v445 = vpack.c.bf16 %v431, %v431
    %v446 = vpack.c.bf16 %v437, %v437
    %v447 = vld [vmem:[#allocation5] sm:$0xff]
    %v448 = vld [vmem:[#allocation5 + $0x8] sm:$0xff]
    %v449 = vld [vmem:[#allocation5 + $0x10] sm:$0xf]
    %v450 = vld [vmem:[#allocation5 + $0x14] sm:$0xff]
    %v451 = vld [vmem:[#allocation5 + $0x1c] sm:$0xff]
    %v452 = vld [vmem:[#allocation5 + $0x24] sm:$0xf]
    %v453 = vld [vmem:[#allocation5 + $0x28] sm:$0xff]
    %v454 = vld [vmem:[#allocation5 + $0x30] sm:$0xff]
    %v455 = vld [vmem:[#allocation5 + $0x38] sm:$0xf]
    %v456 = vld [vmem:[#allocation5 + $0x3c] sm:$0xff]
    %v457 = vld [vmem:[#allocation5 + $0x44] sm:$0xff]
    %v458 = vld [vmem:[#allocation5 + $0x4c] sm:$0xf]
    %v459 = vld [vmem:[#allocation5 + $0x50] sm:$0xff]
    %v460 = vld [vmem:[#allocation5 + $0x58] sm:$0xff]
    %v461 = vld [vmem:[#allocation5 + $0x60] sm:$0xf]
    %v462 = vld [vmem:[#allocation5 + $0x64] sm:$0xff]
    %v463 = vld [vmem:[#allocation5 + $0x6c] sm:$0xff]
    %v464 = vld [vmem:[#allocation5 + $0x74] sm:$0xf]
    %v465 = vld [vmem:[#allocation5 + $0x78] sm:$0xff]
    %v466 = vld [vmem:[#allocation5 + $0x80] sm:$0xff]
    %v467 = vld [vmem:[#allocation5 + $0x88] sm:$0xf]
    %v468 = vld [vmem:[#allocation5 + $0x8c] sm:$0xff]
    %v469 = vld [vmem:[#allocation5 + $0x94] sm:$0xff]
    %v470 = vld [vmem:[#allocation5 + $0x9c] sm:$0xf]
    %v471 = vld [vmem:[#allocation5 + $0xa0] sm:$0xff]
    %v472 = vld [vmem:[#allocation5 + $0xa8] sm:$0xff]
    %v473 = vld [vmem:[#allocation5 + $0xb0] sm:$0xf]
    %v474 = vld [vmem:[#allocation5 + $0xb4] sm:$0xff]
    %v475 = vld [vmem:[#allocation5 + $0xbc] sm:$0xff]
    %v476 = vld [vmem:[#allocation5 + $0xc4] sm:$0xf]
    %v477 = vld [vmem:[#allocation5 + $0xc8] sm:$0xff]
    %v478 = vld [vmem:[#allocation5 + $0xd0] sm:$0xff]
    %v479 = vld [vmem:[#allocation5 + $0xd8] sm:$0xf]
    %v480 = vld [vmem:[#allocation5 + $0xdc] sm:$0xff]
    %v481 = vld [vmem:[#allocation5 + $0xe4] sm:$0xff]
    %v482 = vld [vmem:[#allocation5 + $0xec] sm:$0xf]
    %v483 = vld [vmem:[#allocation5 + $0xf0] sm:$0xff]
    %v484 = vld [vmem:[#allocation5 + $0xf8] sm:$0xff]
    %v485 = vld [vmem:[#allocation5 + $0x100] sm:$0xf]
    %v486 = vld [vmem:[#allocation5 + $0x104] sm:$0xff]
    %v487 = vld [vmem:[#allocation5 + $0x10c] sm:$0xff]
    %v488 = vld [vmem:[#allocation5 + $0x114] sm:$0xf]
    %v489 = vld [vmem:[#allocation5 + $0x118] sm:$0xff]
    %v490 = vld [vmem:[#allocation5 + $0x120] sm:$0xff]
    %v491 = vld [vmem:[#allocation5 + $0x128] sm:$0xf]
    %v492 = vld [vmem:[#allocation5 + $0x12c] sm:$0xff]
    %v493 = vld [vmem:[#allocation5 + $0x134] sm:$0xff]
    %v494 = vld [vmem:[#allocation5 + $0x13c] sm:$0xf]
    %v495 = vld [vmem:[#allocation5 + $0x140] sm:$0xff]
    %v496 = vld [vmem:[#allocation5 + $0x148] sm:$0xff]
    %v497 = vld [vmem:[#allocation5 + $0x150] sm:$0xf]
    %v498 = vld [vmem:[#allocation5 + $0x154] sm:$0xff]
    %v499 = vld [vmem:[#allocation5 + $0x15c] sm:$0xff]
    %v500 = vld [vmem:[#allocation5 + $0x164] sm:$0xf]
    %v501 = vld [vmem:[#allocation5 + $0x168] sm:$0xff]
    %v502 = vld [vmem:[#allocation5 + $0x170] sm:$0xff]
    %v503 = vld [vmem:[#allocation5 + $0x178] sm:$0xf]
    %v504 = vld [vmem:[#allocation5 + $0x17c] sm:$0xff]
    %v505 = vld [vmem:[#allocation5 + $0x184] sm:$0xff]
    %v506 = vld [vmem:[#allocation5 + $0x18c] sm:$0xf]
    %v507 = vld [vmem:[#allocation5 + $0x190] sm:$0xff]
    %v508 = vld [vmem:[#allocation5 + $0x198] sm:$0xff]
    %v509 = vld [vmem:[#allocation5 + $0x1a0] sm:$0xf]
    %v510 = vld [vmem:[#allocation5 + $0x1a4] sm:$0xff]
    %v511 = vld [vmem:[#allocation5 + $0x1ac] sm:$0xff]
    %v512 = vld [vmem:[#allocation5 + $0x1b4] sm:$0xf]
    %v513 = vld [vmem:[#allocation5 + $0x1b8] sm:$0xff]
    %v514 = vld [vmem:[#allocation5 + $0x1c0] sm:$0xff]
    %v515 = vld [vmem:[#allocation5 + $0x1c8] sm:$0xf]
    %v516 = vld [vmem:[#allocation5 + $0x1cc] sm:$0xff]
    %v517 = vld [vmem:[#allocation5 + $0x1d4] sm:$0xff]
    %v518 = vld [vmem:[#allocation5 + $0x1dc] sm:$0xf]
    %v519 = vld [vmem:[#allocation5 + $0x1e0] sm:$0xff]
    %v520 = vld [vmem:[#allocation5 + $0x1e8] sm:$0xff]
    %v521 = vld [vmem:[#allocation5 + $0x1f0] sm:$0xf]
    %v522 = vld [vmem:[#allocation5 + $0x1f4] sm:$0xff]
    %v523 = vld [vmem:[#allocation5 + $0x1fc] sm:$0xff]
    %v524 = vld [vmem:[#allocation5 + $0x204] sm:$0xf]
    %v525 = vld [vmem:[#allocation5 + $0x208] sm:$0xff]
    %v526 = vld [vmem:[#allocation5 + $0x210] sm:$0xff]
    %v527 = vld [vmem:[#allocation5 + $0x218] sm:$0xf]
    %v528 = vld [vmem:[#allocation5 + $0x21c] sm:$0xff]
    %v529 = vld [vmem:[#allocation5 + $0x224] sm:$0xff]
    %v530 = vld [vmem:[#allocation5 + $0x22c] sm:$0xf]
    %v531 = vld [vmem:[#allocation5 + $0x230] sm:$0xff]
    %v532 = vld [vmem:[#allocation5 + $0x238] sm:$0xff]
    %v533 = vld [vmem:[#allocation5 + $0x240] sm:$0xf]
    %v534 = vld [vmem:[#allocation5 + $0x244] sm:$0xff]
    %v535 = vld [vmem:[#allocation5 + $0x24c] sm:$0xff]
    %v536 = vld [vmem:[#allocation5 + $0x254] sm:$0xf]
    %v537 = vld [vmem:[#allocation5 + $0x258] sm:$0xff]
    %v538 = vld [vmem:[#allocation5 + $0x260] sm:$0xff]
    %v539 = vld [vmem:[#allocation5 + $0x268] sm:$0xf]
    %v540 = vld [vmem:[#allocation5 + $0x26c] sm:$0xff]
    %v541 = vld [vmem:[#allocation5 + $0x274] sm:$0xff]
    %v542 = vld [vmem:[#allocation5 + $0x27c] sm:$0xf]
    %v543 = vld [vmem:[#allocation5 + $0x280] sm:$0xff]
    %v544 = vld [vmem:[#allocation5 + $0x288] sm:$0xff]
    %v545 = vld [vmem:[#allocation5 + $0x290] sm:$0xf]
    %v546 = vld [vmem:[#allocation5 + $0x294] sm:$0xff]
    %v547 = vld [vmem:[#allocation5 + $0x29c] sm:$0xff]
    %v548 = vld [vmem:[#allocation5 + $0x2a4] sm:$0xf]
    %v549 = vld [vmem:[#allocation5 + $0x2a8] sm:$0xff]
    %v550 = vld [vmem:[#allocation5 + $0x2b0] sm:$0xff]
    %v551 = vld [vmem:[#allocation5 + $0x2b8] sm:$0xf]
    %v552 = vld [vmem:[#allocation5 + $0x2bc] sm:$0xff]
    %v553 = vld [vmem:[#allocation5 + $0x2c4] sm:$0xff]
    %v554 = vld [vmem:[#allocation5 + $0x2cc] sm:$0xf]
    %v555 = vld [vmem:[#allocation5 + $0x2d0] sm:$0xff]
    %v556 = vld [vmem:[#allocation5 + $0x2d8] sm:$0xff]
    %v557 = vld [vmem:[#allocation5 + $0x2e0] sm:$0xf]
    %v558 = vld [vmem:[#allocation5 + $0x2e4] sm:$0xff]
    %v559 = vld [vmem:[#allocation5 + $0x2ec] sm:$0xff]
    %v560 = vld [vmem:[#allocation5 + $0x2f4] sm:$0xf]
    %v561 = vld [vmem:[#allocation5 + $0x2f8] sm:$0xff]
    %v562 = vld [vmem:[#allocation5 + $0x300] sm:$0xff]
    %v563 = vld [vmem:[#allocation5 + $0x308] sm:$0xf]
    %v564 = vld [vmem:[#allocation5 + $0x30c] sm:$0xff]
    %v565 = vld [vmem:[#allocation5 + $0x314] sm:$0xff]
    %v566 = vld [vmem:[#allocation5 + $0x31c] sm:$0xf]
    %v567 = vld [vmem:[#allocation5 + $0x320] sm:$0xff]
    %v568 = vld [vmem:[#allocation5 + $0x328] sm:$0xff]
    %v569 = vld [vmem:[#allocation5 + $0x330] sm:$0xf]
    %v570 = vld [vmem:[#allocation5 + $0x334] sm:$0xff]
    %v571 = vld [vmem:[#allocation5 + $0x33c] sm:$0xff]
    %v572 = vld [vmem:[#allocation5 + $0x344] sm:$0xf]
    %v573 = vld [vmem:[#allocation5 + $0x348] sm:$0xff]
    %v574 = vld [vmem:[#allocation5 + $0x350] sm:$0xff]
    %v575 = vld [vmem:[#allocation5 + $0x358] sm:$0xf]
    %v576 = vld [vmem:[#allocation5 + $0x35c] sm:$0xff]
    %v577 = vld [vmem:[#allocation5 + $0x364] sm:$0xff]
    %v578 = vld [vmem:[#allocation5 + $0x36c] sm:$0xf]
    %v579 = vld [vmem:[#allocation5 + $0x370] sm:$0xff]
    %v580 = vld [vmem:[#allocation5 + $0x378] sm:$0xff]
    %v581 = vld [vmem:[#allocation5 + $0x380] sm:$0xf]
    %v582 = vld [vmem:[#allocation7] sm:$0x1f]
    %v584 = vlaneseq
    %v585 = vshrl.u32 %v584, 7
    %v586 = vsub.s32 0, %v585
    %v587 = vrot.slane %v582, %v586
    %v588 = vlaneseq
    %v589 = vshrl.u32 %v588, 7
    %v590 = vsub.s32 1, %v589
    %v591 = vrot.slane %v582, %v590
    %v592 = vlaneseq
    %v593 = vshrl.u32 %v592, 7
    %v594 = vsub.s32 2, %v593
    %v595 = vrot.slane %v582, %v594
    %v596 = vlaneseq
    %v597 = vshrl.u32 %v596, 7
    %v598 = vsub.s32 3, %v597
    %v599 = vrot.slane %v582, %v598
    %v600 = vlaneseq
    %v601 = vshrl.u32 %v600, 7
    %v602 = vsub.s32 4, %v601
    %v603 = vrot.slane %v582, %v602
    %v744 = vunpack.c.l.b16 %v447
    %v745 = vunpack.c.h.b16 %v447
    %v746 = vunpack.c.l.b16 %v448
    %v747 = vunpack.c.h.b16 %v448
    %v748 = vunpack.c.l.b16 %v449
    %v749 = vunpack.c.l.b16 %v450
    %v750 = vunpack.c.h.b16 %v450
    %v751 = vunpack.c.l.b16 %v451
    %v752 = vunpack.c.h.b16 %v451
    %v753 = vunpack.c.l.b16 %v452
    %v754 = vunpack.c.l.b16 %v453
    %v755 = vunpack.c.h.b16 %v453
    %v756 = vunpack.c.l.b16 %v454
    %v757 = vunpack.c.h.b16 %v454
    %v758 = vunpack.c.l.b16 %v455
    %v759 = vunpack.c.l.b16 %v456
    %v760 = vunpack.c.h.b16 %v456
    %v761 = vunpack.c.l.b16 %v457
    %v762 = vunpack.c.h.b16 %v457
    %v763 = vunpack.c.l.b16 %v458
    %v764 = vunpack.c.l.b16 %v459
    %v765 = vunpack.c.h.b16 %v459
    %v766 = vunpack.c.l.b16 %v460
    %v767 = vunpack.c.h.b16 %v460
    %v768 = vunpack.c.l.b16 %v461
    %v769 = vunpack.c.l.b16 %v462
    %v770 = vunpack.c.h.b16 %v462
    %v771 = vunpack.c.l.b16 %v463
    %v772 = vunpack.c.h.b16 %v463
    %v773 = vunpack.c.l.b16 %v464
    %v774 = vunpack.c.l.b16 %v465
    %v775 = vunpack.c.h.b16 %v465
    %v776 = vunpack.c.l.b16 %v466
    %v777 = vunpack.c.h.b16 %v466
    %v778 = vunpack.c.l.b16 %v467
    %v779 = vunpack.c.l.b16 %v468
    %v780 = vunpack.c.h.b16 %v468
    %v781 = vunpack.c.l.b16 %v469
    %v782 = vunpack.c.h.b16 %v469
    %v783 = vunpack.c.l.b16 %v470
    %v784 = vunpack.c.l.b16 %v471
    %v785 = vunpack.c.h.b16 %v471
    %v786 = vunpack.c.l.b16 %v472
    %v787 = vunpack.c.h.b16 %v472
    %v788 = vunpack.c.l.b16 %v473
    %v789 = vunpack.c.l.b16 %v474
    %v790 = vunpack.c.h.b16 %v474
    %v791 = vunpack.c.l.b16 %v475
    %v792 = vunpack.c.h.b16 %v475
    %v793 = vunpack.c.l.b16 %v476
    %v794 = vunpack.c.l.b16 %v477
    %v795 = vunpack.c.h.b16 %v477
    %v796 = vunpack.c.l.b16 %v478
    %v797 = vunpack.c.h.b16 %v478
    %v798 = vunpack.c.l.b16 %v479
    %v799 = vunpack.c.l.b16 %v480
    %v800 = vunpack.c.h.b16 %v480
    %v801 = vunpack.c.l.b16 %v481
    %v802 = vunpack.c.h.b16 %v481
    %v803 = vunpack.c.l.b16 %v482
    %v804 = vunpack.c.l.b16 %v483
    %v805 = vunpack.c.h.b16 %v483
    %v806 = vunpack.c.l.b16 %v484
    %v807 = vunpack.c.h.b16 %v484
    %v808 = vunpack.c.l.b16 %v485
    %v809 = vunpack.c.l.b16 %v486
    %v810 = vunpack.c.h.b16 %v486
    %v811 = vunpack.c.l.b16 %v487
    %v812 = vunpack.c.h.b16 %v487
    %v813 = vunpack.c.l.b16 %v488
    %v814 = vunpack.c.l.b16 %v489
    %v815 = vunpack.c.h.b16 %v489
    %v816 = vunpack.c.l.b16 %v490
    %v817 = vunpack.c.h.b16 %v490
    %v818 = vunpack.c.l.b16 %v491
    %v819 = vunpack.c.l.b16 %v492
    %v820 = vunpack.c.h.b16 %v492
    %v821 = vunpack.c.l.b16 %v493
    %v822 = vunpack.c.h.b16 %v493
    %v823 = vunpack.c.l.b16 %v494
    %v824 = vunpack.c.l.b16 %v495
    %v825 = vunpack.c.h.b16 %v495
    %v826 = vunpack.c.l.b16 %v496
    %v827 = vunpack.c.h.b16 %v496
    %v828 = vunpack.c.l.b16 %v497
    %v829 = vunpack.c.l.b16 %v498
    %v830 = vunpack.c.h.b16 %v498
    %v831 = vunpack.c.l.b16 %v499
    %v832 = vunpack.c.h.b16 %v499
    %v833 = vunpack.c.l.b16 %v500
    %v834 = vunpack.c.l.b16 %v501
    %v835 = vunpack.c.h.b16 %v501
    %v836 = vunpack.c.l.b16 %v502
    %v837 = vunpack.c.h.b16 %v502
    %v838 = vunpack.c.l.b16 %v503
    %v839 = vunpack.c.l.b16 %v504
    %v840 = vunpack.c.h.b16 %v504
    %v841 = vunpack.c.l.b16 %v505
    %v842 = vunpack.c.h.b16 %v505
    %v843 = vunpack.c.l.b16 %v506
    %v844 = vunpack.c.l.b16 %v507
    %v845 = vunpack.c.h.b16 %v507
    %v846 = vunpack.c.l.b16 %v508
    %v847 = vunpack.c.h.b16 %v508
    %v848 = vunpack.c.l.b16 %v509
    %v849 = vunpack.c.l.b16 %v510
    %v850 = vunpack.c.h.b16 %v510
    %v851 = vunpack.c.l.b16 %v511
    %v852 = vunpack.c.h.b16 %v511
    %v853 = vunpack.c.l.b16 %v512
    %v854 = vunpack.c.l.b16 %v513
    %v855 = vunpack.c.h.b16 %v513
    %v856 = vunpack.c.l.b16 %v514
    %v857 = vunpack.c.h.b16 %v514
    %v858 = vunpack.c.l.b16 %v515
    %v859 = vunpack.c.l.b16 %v516
    %v860 = vunpack.c.h.b16 %v516
    %v861 = vunpack.c.l.b16 %v517
    %v862 = vunpack.c.h.b16 %v517
    %v863 = vunpack.c.l.b16 %v518
    %v864 = vunpack.c.l.b16 %v519
    %v865 = vunpack.c.h.b16 %v519
    %v866 = vunpack.c.l.b16 %v520
    %v867 = vunpack.c.h.b16 %v520
    %v868 = vunpack.c.l.b16 %v521
    %v869 = vunpack.c.l.b16 %v522
    %v870 = vunpack.c.h.b16 %v522
    %v871 = vunpack.c.l.b16 %v523
    %v872 = vunpack.c.h.b16 %v523
    %v873 = vunpack.c.l.b16 %v524
    %v874 = vunpack.c.l.b16 %v525
    %v875 = vunpack.c.h.b16 %v525
    %v876 = vunpack.c.l.b16 %v526
    %v877 = vunpack.c.h.b16 %v526
    %v878 = vunpack.c.l.b16 %v527
    %v879 = vunpack.c.l.b16 %v528
    %v880 = vunpack.c.h.b16 %v528
    %v881 = vunpack.c.l.b16 %v529
    %v882 = vunpack.c.h.b16 %v529
    %v883 = vunpack.c.l.b16 %v530
    %v884 = vunpack.c.l.b16 %v531
    %v885 = vunpack.c.h.b16 %v531
    %v886 = vunpack.c.l.b16 %v532
    %v887 = vunpack.c.h.b16 %v532
    %v888 = vunpack.c.l.b16 %v533
    %v889 = vunpack.c.l.b16 %v534
    %v890 = vunpack.c.h.b16 %v534
    %v891 = vunpack.c.l.b16 %v535
    %v892 = vunpack.c.h.b16 %v535
    %v893 = vunpack.c.l.b16 %v536
    %v894 = vunpack.c.l.b16 %v537
    %v895 = vunpack.c.h.b16 %v537
    %v896 = vunpack.c.l.b16 %v538
    %v897 = vunpack.c.h.b16 %v538
    %v898 = vunpack.c.l.b16 %v539
    %v899 = vunpack.c.l.b16 %v540
    %v900 = vunpack.c.h.b16 %v540
    %v901 = vunpack.c.l.b16 %v541
    %v902 = vunpack.c.h.b16 %v541
    %v903 = vunpack.c.l.b16 %v542
    %v904 = vunpack.c.l.b16 %v543
    %v905 = vunpack.c.h.b16 %v543
    %v906 = vunpack.c.l.b16 %v544
    %v907 = vunpack.c.h.b16 %v544
    %v908 = vunpack.c.l.b16 %v545
    %v909 = vunpack.c.l.b16 %v546
    %v910 = vunpack.c.h.b16 %v546
    %v911 = vunpack.c.l.b16 %v547
    %v912 = vunpack.c.h.b16 %v547
    %v913 = vunpack.c.l.b16 %v548
    %v914 = vunpack.c.l.b16 %v549
    %v915 = vunpack.c.h.b16 %v549
    %v916 = vunpack.c.l.b16 %v550
    %v917 = vunpack.c.h.b16 %v550
    %v918 = vunpack.c.l.b16 %v551
    %v919 = vunpack.c.l.b16 %v552
    %v920 = vunpack.c.h.b16 %v552
    %v921 = vunpack.c.l.b16 %v553
    %v922 = vunpack.c.h.b16 %v553
    %v923 = vunpack.c.l.b16 %v554
    %v924 = vunpack.c.l.b16 %v555
    %v925 = vunpack.c.h.b16 %v555
    %v926 = vunpack.c.l.b16 %v556
    %v927 = vunpack.c.h.b16 %v556
    %v928 = vunpack.c.l.b16 %v557
    %v929 = vunpack.c.l.b16 %v558
    %v930 = vunpack.c.h.b16 %v558
    %v931 = vunpack.c.l.b16 %v559
    %v932 = vunpack.c.h.b16 %v559
    %v933 = vunpack.c.l.b16 %v560
    %v934 = vunpack.c.l.b16 %v561
    %v935 = vunpack.c.h.b16 %v561
    %v936 = vunpack.c.l.b16 %v562
    %v937 = vunpack.c.h.b16 %v562
    %v938 = vunpack.c.l.b16 %v563
    %v939 = vunpack.c.l.b16 %v564
    %v940 = vunpack.c.h.b16 %v564
    %v941 = vunpack.c.l.b16 %v565
    %v942 = vunpack.c.h.b16 %v565
    %v943 = vunpack.c.l.b16 %v566
    %v944 = vunpack.c.l.b16 %v567
    %v945 = vunpack.c.h.b16 %v567
    %v946 = vunpack.c.l.b16 %v568
    %v947 = vunpack.c.h.b16 %v568
    %v948 = vunpack.c.l.b16 %v569
    %v949 = vunpack.c.l.b16 %v570
    %v950 = vunpack.c.h.b16 %v570
    %v951 = vunpack.c.l.b16 %v571
    %v952 = vunpack.c.h.b16 %v571
    %v953 = vunpack.c.l.b16 %v572
    %v954 = vunpack.c.l.b16 %v573
    %v955 = vunpack.c.h.b16 %v573
    %v956 = vunpack.c.l.b16 %v574
    %v957 = vunpack.c.h.b16 %v574
    %v958 = vunpack.c.l.b16 %v575
    %v959 = vunpack.c.l.b16 %v576
    %v960 = vunpack.c.h.b16 %v576
    %v961 = vunpack.c.l.b16 %v577
    %v962 = vunpack.c.h.b16 %v577
    %v963 = vunpack.c.l.b16 %v578
    %v964 = vunpack.c.l.b16 %v579
    %v965 = vunpack.c.h.b16 %v579
    %v966 = vunpack.c.l.b16 %v580
    %v967 = vunpack.c.h.b16 %v580
    %v968 = vunpack.c.l.b16 %v581
    %v969 = vpack.c.b16 %v749, %v744
    %v970 = vpack.c.b16 %v750, %v745
    %v971 = vpack.c.b16 %v751, %v746
    %v972 = vpack.c.b16 %v752, %v747
    %v973 = vpack.c.b16 %v753, %v748
    %v974 = vpack.c.b16 %v759, %v754
    %v975 = vpack.c.b16 %v760, %v755
    %v976 = vpack.c.b16 %v761, %v756
    %v977 = vpack.c.b16 %v762, %v757
    %v978 = vpack.c.b16 %v763, %v758
    %v979 = vpack.c.b16 %v769, %v764
    %v980 = vpack.c.b16 %v770, %v765
    %v981 = vpack.c.b16 %v771, %v766
    %v982 = vpack.c.b16 %v772, %v767
    %v983 = vpack.c.b16 %v773, %v768
    %v984 = vpack.c.b16 %v779, %v774
    %v985 = vpack.c.b16 %v780, %v775
    %v986 = vpack.c.b16 %v781, %v776
    %v987 = vpack.c.b16 %v782, %v777
    %v988 = vpack.c.b16 %v783, %v778
    %v989 = vpack.c.b16 %v789, %v784
    %v990 = vpack.c.b16 %v790, %v785
    %v991 = vpack.c.b16 %v791, %v786
    %v992 = vpack.c.b16 %v792, %v787
    %v993 = vpack.c.b16 %v793, %v788
    %v994 = vpack.c.b16 %v799, %v794
    %v995 = vpack.c.b16 %v800, %v795
    %v996 = vpack.c.b16 %v801, %v796
    %v997 = vpack.c.b16 %v802, %v797
    %v998 = vpack.c.b16 %v803, %v798
    %v999 = vpack.c.b16 %v809, %v804
    %v1000 = vpack.c.b16 %v810, %v805
    %v1001 = vpack.c.b16 %v811, %v806
    %v1002 = vpack.c.b16 %v812, %v807
    %v1003 = vpack.c.b16 %v813, %v808
    %v1004 = vpack.c.b16 %v819, %v814
    %v1005 = vpack.c.b16 %v820, %v815
    %v1006 = vpack.c.b16 %v821, %v816
    %v1007 = vpack.c.b16 %v822, %v817
    %v1008 = vpack.c.b16 %v823, %v818
    %v1009 = vpack.c.b16 %v829, %v824
    %v1010 = vpack.c.b16 %v830, %v825
    %v1011 = vpack.c.b16 %v831, %v826
    %v1012 = vpack.c.b16 %v832, %v827
    %v1013 = vpack.c.b16 %v833, %v828
    %v1014 = vpack.c.b16 %v839, %v834
    %v1015 = vpack.c.b16 %v840, %v835
    %v1016 = vpack.c.b16 %v841, %v836
    %v1017 = vpack.c.b16 %v842, %v837
    %v1018 = vpack.c.b16 %v843, %v838
    %v1019 = vpack.c.b16 %v849, %v844
    %v1020 = vpack.c.b16 %v850, %v845
    %v1021 = vpack.c.b16 %v851, %v846
    %v1022 = vpack.c.b16 %v852, %v847
    %v1023 = vpack.c.b16 %v853, %v848
    %v1024 = vpack.c.b16 %v859, %v854
    %v1025 = vpack.c.b16 %v860, %v855
    %v1026 = vpack.c.b16 %v861, %v856
    %v1027 = vpack.c.b16 %v862, %v857
    %v1028 = vpack.c.b16 %v863, %v858
    %v1029 = vpack.c.b16 %v869, %v864
    %v1030 = vpack.c.b16 %v870, %v865
    %v1031 = vpack.c.b16 %v871, %v866
    %v1032 = vpack.c.b16 %v872, %v867
    %v1033 = vpack.c.b16 %v873, %v868
    %v1034 = vpack.c.b16 %v879, %v874
    %v1035 = vpack.c.b16 %v880, %v875
    %v1036 = vpack.c.b16 %v881, %v876
    %v1037 = vpack.c.b16 %v882, %v877
    %v1038 = vpack.c.b16 %v883, %v878
    %v1039 = vpack.c.b16 %v889, %v884
    %v1040 = vpack.c.b16 %v890, %v885
    %v1041 = vpack.c.b16 %v891, %v886
    %v1042 = vpack.c.b16 %v892, %v887
    %v1043 = vpack.c.b16 %v893, %v888
    %v1044 = vpack.c.b16 %v899, %v894
    %v1045 = vpack.c.b16 %v900, %v895
    %v1046 = vpack.c.b16 %v901, %v896
    %v1047 = vpack.c.b16 %v902, %v897
    %v1048 = vpack.c.b16 %v903, %v898
    %v1049 = vpack.c.b16 %v909, %v904
    %v1050 = vpack.c.b16 %v910, %v905
    %v1051 = vpack.c.b16 %v911, %v906
    %v1052 = vpack.c.b16 %v912, %v907
    %v1053 = vpack.c.b16 %v913, %v908
    %v1054 = vpack.c.b16 %v919, %v914
    %v1055 = vpack.c.b16 %v920, %v915
    %v1056 = vpack.c.b16 %v921, %v916
    %v1057 = vpack.c.b16 %v922, %v917
    %v1058 = vpack.c.b16 %v923, %v918
    %v1059 = vpack.c.b16 %v929, %v924
    %v1060 = vpack.c.b16 %v930, %v925
    %v1061 = vpack.c.b16 %v931, %v926
    %v1062 = vpack.c.b16 %v932, %v927
    %v1063 = vpack.c.b16 %v933, %v928
    %v1064 = vpack.c.b16 %v939, %v934
    %v1065 = vpack.c.b16 %v940, %v935
    %v1066 = vpack.c.b16 %v941, %v936
    %v1067 = vpack.c.b16 %v942, %v937
    %v1068 = vpack.c.b16 %v943, %v938
    %v1069 = vpack.c.b16 %v949, %v944
    %v1070 = vpack.c.b16 %v950, %v945
    %v1071 = vpack.c.b16 %v951, %v946
    %v1072 = vpack.c.b16 %v952, %v947
    %v1073 = vpack.c.b16 %v953, %v948
    %v1074 = vpack.c.b16 %v959, %v954
    %v1075 = vpack.c.b16 %v960, %v955
    %v1076 = vpack.c.b16 %v961, %v956
    %v1077 = vpack.c.b16 %v962, %v957
    %v1078 = vpack.c.b16 %v963, %v958
    %v1079 = vpack.c.b16 %v964, %v964
    %v1080 = vpack.c.b16 %v965, %v965
    %v1081 = vpack.c.b16 %v966, %v966
    %v1082 = vpack.c.b16 %v967, %v967
    %v1083 = vpack.c.b16 %v968, %v968
    %vm1194 = vcmask 850944
    %v1196 = vsel %vm1194, %v440, 0
    %v1199 = vsel %vm1194, %v443, 0
    %v1202 = vsel %vm1194, %v446, 0
    %v1205 = vsel %vm345, %v1079, 0
    %v1208 = vsel %vm345, %v1080, 0
    %v1211 = vsel %vm345, %v1081, 0
    %v1214 = vsel %vm345, %v1082, 0
    %v1217 = vsel %vm345, %v1083, 0
    %1219 = vmatprep.subr.bf16.mxu0 %v970
    %1220 = vmatpush1.bf16.msra.mxu0 %v969
    %1221 = vmatprep.subr.bf16.mxu0 %v975
    %1222 = vmatpush1.bf16.msra.mxu0 %v974
    %1223 = vmatprep.subr.bf16.mxu0 %v980
    %1224 = vmatpush1.bf16.msra.mxu0 %v979
    %1225 = vmatprep.subr.bf16.mxu0 %v985
    %1226 = vmatpush1.bf16.msra.mxu0 %v984
    %1227 = vmatprep.subr.bf16.mxu0 %v990
    %1228 = vmatpush1.bf16.msra.mxu0 %v989
    %1229 = vmatprep.subr.bf16.mxu0 %v995
    %1230 = vmatpush1.bf16.msra.mxu0 %v994
    %1231 = vmatprep.subr.bf16.mxu0 %v1000
    %1232 = vmatpush1.bf16.msra.mxu0 %v999
    %1233 = vmatprep.subr.bf16.mxu0 %v1005
    %1234 = vmatpush1.bf16.msra.mxu0 %v1004
    %1235 = vmatprep.subr.bf16.mxu0 %v1010
    %1236 = vmatpush1.bf16.msra.mxu0 %v1009
    %1237 = vmatprep.subr.bf16.mxu0 %v1015
    %1238 = vmatpush1.bf16.msra.mxu0 %v1014
    %1239 = vmatprep.subr.bf16.mxu0 %v1020
    %1240 = vmatpush1.bf16.msra.mxu0 %v1019
    %1241 = vmatprep.subr.bf16.mxu0 %v1025
    %1242 = vmatpush1.bf16.msra.mxu0 %v1024
    %1243 = vmatprep.subr.bf16.mxu0 %v1030
    %1244 = vmatpush1.bf16.msra.mxu0 %v1029
    %1245 = vmatprep.subr.bf16.mxu0 %v1035
    %1246 = vmatpush1.bf16.msra.mxu0 %v1034
    %1247 = vmatprep.subr.bf16.mxu0 %v1040
    %1248 = vmatpush1.bf16.msra.mxu0 %v1039
    %1249 = vmatprep.subr.bf16.mxu0 %v1045
    %1250 = vmatpush1.bf16.msra.mxu0 %v1044
    %1251 = vmatprep.mubr.bf16.mxu0 %v439
    %1252 = vmatmul.mubr.bf16.gmra.mrb[0].mxu0 %v438
    %v1253 = vpop.f32.mrb[0].mxu0
    %v1254 = vadd.f32 %v587, %v1253
    %v1255 = vpop.f32.mrb[0].mxu0
    %v1256 = vadd.f32 %v591, %v1255
    %v1257 = vpop.f32.mrb[0].mxu0
    %v1258 = vadd.f32 %v587, %v1257
    %v1259 = vpop.f32.mrb[0].mxu0
    %v1260 = vadd.f32 %v591, %v1259
    %1261 = vmatprep.mubr.bf16.mxu0 %v442
    %1262 = vmatmul.mubr.bf16.gmra.mrb[0].mxu0 %v441
    %v1263 = vpop.f32.mrb[0].mxu0
    %v1264 = vadd.f32 %v587, %v1263
    %v1265 = vpop.f32.mrb[0].mxu0
    %v1266 = vadd.f32 %v591, %v1265
    %v1267 = vpop.f32.mrb[0].mxu0
    %v1268 = vadd.f32 %v587, %v1267
    %v1269 = vpop.f32.mrb[0].mxu0
    %v1270 = vadd.f32 %v591, %v1269
    %1271 = vmatprep.mubr.bf16.mxu0 %v445
    %1272 = vmatmul.mubr.bf16.gmra.mrb[0].mxu0 %v444
    %v1273 = vpop.f32.mrb[0].mxu0
    %v1274 = vadd.f32 %v587, %v1273
    %v1275 = vpop.f32.mrb[0].mxu0
    %v1276 = vadd.f32 %v591, %v1275
    %v1277 = vpop.f32.mrb[0].mxu0
    %v1278 = vpop.f32.mrb[0].mxu0
    %1279 = vdwg.mxu0
    %1280 = vmatprep.subr.bf16.mxu0 %v1050
    %1281 = vmatpush1.bf16.msra.mxu0 %v1049
    %1282 = vmatprep.subr.bf16.mxu0 %v1055
    %1283 = vmatpush1.bf16.msra.mxu0 %v1054
    %1284 = vmatprep.subr.bf16.mxu0 %v1060
    %1285 = vmatpush1.bf16.msra.mxu0 %v1059
    %1286 = vmatprep.subr.bf16.mxu0 %v1065
    %1287 = vmatpush1.bf16.msra.mxu0 %v1064
    %1288 = vmatprep.subr.bf16.mxu0 %v1070
    %1289 = vmatpush1.bf16.msra.mxu0 %v1069
    %1290 = vmatprep.subr.bf16.mxu0 %v1075
    %1291 = vmatpush1.bf16.msra.mxu0 %v1074
    %1292 = vmatprep.subr.bf16.mxu0 %v1208
    %1293 = vmatpush1.bf16.msra.mxu0 %v1205
    %1294 = vmatprep.subr.bf16.mxu0 0
    %1295 = vmatpush1.bf16.msra.mxu0 0
    %1296 = vmatprep.subr.bf16.mxu0 0
    %1297 = vmatpush1.bf16.msra.mxu0 0
    %1298 = vmatprep.subr.bf16.mxu0 0
    %1299 = vmatpush1.bf16.msra.mxu0 0
    %1300 = vmatprep.subr.bf16.mxu0 0
    %1301 = vmatpush1.bf16.msra.mxu0 0
    %1302 = vmatprep.subr.bf16.mxu0 0
    %1303 = vmatpush1.bf16.msra.mxu0 0
    %1304 = vmatprep.subr.bf16.mxu0 0
    %1305 = vmatpush1.bf16.msra.mxu0 0
    %1306 = vmatprep.subr.bf16.mxu0 0
    %1307 = vmatpush1.bf16.msra.mxu0 0
    %1308 = vmatprep.subr.bf16.mxu0 0
    %1309 = vmatpush1.bf16.msra.mxu0 0
    %1310 = vmatprep.subr.bf16.mxu0 0
    %1311 = vmatpush1.bf16.msra.mxu0 0
    %1312 = vmatprep.mubr.bf16.mxu0 0
    %1313 = vmatmul.mubr.bf16.gmra.mrb[0].mxu0 %v1196
    %v1314 = vpop.f32.mrb[0].mxu0
    %v1315 = vadd.f32 %v1254, %v1314
    %v1316 = vpop.f32.mrb[0].mxu0
    %v1317 = vadd.f32 %v1256, %v1316
    %v1318 = vpop.f32.mrb[0].mxu0
    %v1319 = vadd.f32 %v1258, %v1318
    %v1320 = vpop.f32.mrb[0].mxu0
    %v1321 = vadd.f32 %v1260, %v1320
    %1322 = vmatprep.mubr.bf16.mxu0 0
    %1323 = vmatmul.mubr.bf16.gmra.mrb[0].mxu0 %v1199
    %v1324 = vpop.f32.mrb[0].mxu0
    %v1325 = vadd.f32 %v1264, %v1324
    %v1326 = vpop.f32.mrb[0].mxu0
    %v1327 = vadd.f32 %v1266, %v1326
    %v1328 = vpop.f32.mrb[0].mxu0
    %v1329 = vadd.f32 %v1268, %v1328
    %v1330 = vpop.f32.mrb[0].mxu0
    %v1331 = vadd.f32 %v1270, %v1330
    %1332 = vmatprep.mubr.bf16.mxu0 0
    %1333 = vmatmul.mubr.bf16.gmra.mrb[0].mxu0 %v1202
    %v1334 = vpop.f32.mrb[0].mxu0
    %v1335 = vadd.f32 %v1274, %v1334
    %v1336 = vpop.f32.mrb[0].mxu0
    %v1337 = vadd.f32 %v1276, %v1336
    %v1338 = vpop.f32.mrb[0].mxu0
    %v1339 = vpop.f32.mrb[0].mxu0
    %1340 = vdwg.mxu0
    %1341 = vmatprep.subr.bf16.mxu0 %v972
    %1342 = vmatpush1.bf16.msra.mxu0 %v971
    %1343 = vmatprep.subr.bf16.mxu0 %v977
    %1344 = vmatpush1.bf16.msra.mxu0 %v976
    %1345 = vmatprep.subr.bf16.mxu0 %v982
    %1346 = vmatpush1.bf16.msra.mxu0 %v981
    %1347 = vmatprep.subr.bf16.mxu0 %v987
    %1348 = vmatpush1.bf16.msra.mxu0 %v986
    %1349 = vmatprep.subr.bf16.mxu0 %v992
    %1350 = vmatpush1.bf16.msra.mxu0 %v991
    %1351 = vmatprep.subr.bf16.mxu0 %v997
    %1352 = vmatpush1.bf16.msra.mxu0 %v996
    %1353 = vmatprep.subr.bf16.mxu0 %v1002
    %1354 = vmatpush1.bf16.msra.mxu0 %v1001
    %1355 = vmatprep.subr.bf16.mxu0 %v1007
    %1356 = vmatpush1.bf16.msra.mxu0 %v1006
    %1357 = vmatprep.subr.bf16.mxu0 %v1012
    %1358 = vmatpush1.bf16.msra.mxu0 %v1011
    %1359 = vmatprep.subr.bf16.mxu0 %v1017
    %1360 = vmatpush1.bf16.msra.mxu0 %v1016
    %1361 = vmatprep.subr.bf16.mxu0 %v1022
    %1362 = vmatpush1.bf16.msra.mxu0 %v1021
    %1363 = vmatprep.subr.bf16.mxu0 %v1027
    %1364 = vmatpush1.bf16.msra.mxu0 %v1026
    %1365 = vmatprep.subr.bf16.mxu0 %v1032
    %1366 = vmatpush1.bf16.msra.mxu0 %v1031
    %1367 = vmatprep.subr.bf16.mxu0 %v1037
    %1368 = vmatpush1.bf16.msra.mxu0 %v1036
    %1369 = vmatprep.subr.bf16.mxu0 %v1042
    %1370 = vmatpush1.bf16.msra.mxu0 %v1041
    %1371 = vmatprep.subr.bf16.mxu0 %v1047
    %1372 = vmatpush1.bf16.msra.mxu0 %v1046
    %1373 = vmatprep.mubr.bf16.mxu0 %v439
    %1374 = vmatmul.mubr.bf16.gmra.mrb[0].mxu0 %v438
    %v1375 = vpop.f32.mrb[0].mxu0
    %v1376 = vadd.f32 %v595, %v1375
    %v1377 = vpop.f32.mrb[0].mxu0
    %v1378 = vadd.f32 %v599, %v1377
    %v1379 = vpop.f32.mrb[0].mxu0
    %v1380 = vadd.f32 %v595, %v1379
    %v1381 = vpop.f32.mrb[0].mxu0
    %v1382 = vadd.f32 %v599, %v1381
    %1383 = vmatprep.mubr.bf16.mxu0 %v442
    %1384 = vmatmul.mubr.bf16.gmra.mrb[0].mxu0 %v441
    %v1385 = vpop.f32.mrb[0].mxu0
    %v1386 = vadd.f32 %v595, %v1385
    %v1387 = vpop.f32.mrb[0].mxu0
    %v1388 = vadd.f32 %v599, %v1387
    %v1389 = vpop.f32.mrb[0].mxu0
    %v1390 = vadd.f32 %v595, %v1389
    %v1391 = vpop.f32.mrb[0].mxu0
    %v1392 = vadd.f32 %v599, %v1391
    %1393 = vmatprep.mubr.bf16.mxu0 %v445
    %1394 = vmatmul.mubr.bf16.gmra.mrb[0].mxu0 %v444
    %v1395 = vpop.f32.mrb[0].mxu0
    %v1396 = vadd.f32 %v595, %v1395
    %v1397 = vpop.f32.mrb[0].mxu0
    %v1398 = vadd.f32 %v599, %v1397
    %v1399 = vpop.f32.mrb[0].mxu0
    %v1400 = vpop.f32.mrb[0].mxu0
    %1401 = vdwg.mxu0
    %1402 = vmatprep.subr.bf16.mxu0 %v1052
    %1403 = vmatpush1.bf16.msra.mxu0 %v1051
    %1404 = vmatprep.subr.bf16.mxu0 %v1057
    %1405 = vmatpush1.bf16.msra.mxu0 %v1056
    %1406 = vmatprep.subr.bf16.mxu0 %v1062
    %1407 = vmatpush1.bf16.msra.mxu0 %v1061
    %1408 = vmatprep.subr.bf16.mxu0 %v1067
    %1409 = vmatpush1.bf16.msra.mxu0 %v1066
    %1410 = vmatprep.subr.bf16.mxu0 %v1072
    %1411 = vmatpush1.bf16.msra.mxu0 %v1071
    %1412 = vmatprep.subr.bf16.mxu0 %v1077
    %1413 = vmatpush1.bf16.msra.mxu0 %v1076
    %1414 = vmatprep.subr.bf16.mxu0 %v1214
    %1415 = vmatpush1.bf16.msra.mxu0 %v1211
    %1416 = vmatprep.subr.bf16.mxu0 0
    %1417 = vmatpush1.bf16.msra.mxu0 0
    %1418 = vmatprep.subr.bf16.mxu0 0
    %1419 = vmatpush1.bf16.msra.mxu0 0
    %1420 = vmatprep.subr.bf16.mxu0 0
    %1421 = vmatpush1.bf16.msra.mxu0 0
    %1422 = vmatprep.subr.bf16.mxu0 0
    %1423 = vmatpush1.bf16.msra.mxu0 0
    %1424 = vmatprep.subr.bf16.mxu0 0
    %1425 = vmatpush1.bf16.msra.mxu0 0
    %1426 = vmatprep.subr.bf16.mxu0 0
    %1427 = vmatpush1.bf16.msra.mxu0 0
    %1428 = vmatprep.subr.bf16.mxu0 0
    %1429 = vmatpush1.bf16.msra.mxu0 0
    %1430 = vmatprep.subr.bf16.mxu0 0
    %1431 = vmatpush1.bf16.msra.mxu0 0
    %1432 = vmatprep.subr.bf16.mxu0 0
    %1433 = vmatpush1.bf16.msra.mxu0 0
    %1434 = vmatprep.mubr.bf16.mxu0 0
    %1435 = vmatmul.mubr.bf16.gmra.mrb[0].mxu0 %v1196
    %v1436 = vpop.f32.mrb[0].mxu0
    %v1437 = vadd.f32 %v1376, %v1436
    %v1438 = vpop.f32.mrb[0].mxu0
    %v1439 = vadd.f32 %v1378, %v1438
    %v1440 = vpop.f32.mrb[0].mxu0
    %v1441 = vadd.f32 %v1380, %v1440
    %v1442 = vpop.f32.mrb[0].mxu0
    %v1443 = vadd.f32 %v1382, %v1442
    %1444 = vmatprep.mubr.bf16.mxu0 0
    %1445 = vmatmul.mubr.bf16.gmra.mrb[0].mxu0 %v1199
    %v1446 = vpop.f32.mrb[0].mxu0
    %v1447 = vadd.f32 %v1386, %v1446
    %v1448 = vpop.f32.mrb[0].mxu0
    %v1449 = vadd.f32 %v1388, %v1448
    %v1450 = vpop.f32.mrb[0].mxu0
    %v1451 = vadd.f32 %v1390, %v1450
    %v1452 = vpop.f32.mrb[0].mxu0
    %v1453 = vadd.f32 %v1392, %v1452
    %1454 = vmatprep.mubr.bf16.mxu0 0
    %1455 = vmatmul.mubr.bf16.gmra.mrb[0].mxu0 %v1202
    %v1456 = vpop.f32.mrb[0].mxu0
    %v1457 = vadd.f32 %v1396, %v1456
    %v1458 = vpop.f32.mrb[0].mxu0
    %v1459 = vadd.f32 %v1398, %v1458
    %v1460 = vpop.f32.mrb[0].mxu0
    %v1461 = vpop.f32.mrb[0].mxu0
    %1462 = vdwg.mxu0
    %1463 = vmatprep.subr.bf16.mxu0 0
    %1464 = vmatpush1.bf16.msra.mxu0 %v973
    %1465 = vmatprep.subr.bf16.mxu0 0
    %1466 = vmatpush1.bf16.msra.mxu0 %v978
    %1467 = vmatprep.subr.bf16.mxu0 0
    %1468 = vmatpush1.bf16.msra.mxu0 %v983
    %1469 = vmatprep.subr.bf16.mxu0 0
    %1470 = vmatpush1.bf16.msra.mxu0 %v988
    %1471 = vmatprep.subr.bf16.mxu0 0
    %1472 = vmatpush1.bf16.msra.mxu0 %v993
    %1473 = vmatprep.subr.bf16.mxu0 0
    %1474 = vmatpush1.bf16.msra.mxu0 %v998
    %1475 = vmatprep.subr.bf16.mxu0 0
    %1476 = vmatpush1.bf16.msra.mxu0 %v1003
    %1477 = vmatprep.subr.bf16.mxu0 0
    %1478 = vmatpush1.bf16.msra.mxu0 %v1008
    %1479 = vmatprep.subr.bf16.mxu0 0
    %1480 = vmatpush1.bf16.msra.mxu0 %v1013
    %1481 = vmatprep.subr.bf16.mxu0 0
    %1482 = vmatpush1.bf16.msra.mxu0 %v1018
    %1483 = vmatprep.subr.bf16.mxu0 0
    %1484 = vmatpush1.bf16.msra.mxu0 %v1023
    %1485 = vmatprep.subr.bf16.mxu0 0
    %1486 = vmatpush1.bf16.msra.mxu0 %v1028
    %1487 = vmatprep.subr.bf16.mxu0 0
    %1488 = vmatpush1.bf16.msra.mxu0 %v1033
    %1489 = vmatprep.subr.bf16.mxu0 0
    %1490 = vmatpush1.bf16.msra.mxu0 %v1038
    %1491 = vmatprep.subr.bf16.mxu0 0
    %1492 = vmatpush1.bf16.msra.mxu0 %v1043
    %1493 = vmatprep.subr.bf16.mxu0 0
    %1494 = vmatpush1.bf16.msra.mxu0 %v1048
    %1495 = vmatprep.mubr.bf16.mxu0 %v439
    %1496 = vmatmul.mubr.bf16.gmra.mrb[0].mxu0 %v438
    %v1497 = vpop.f32.mrb[0].mxu0
    %v1498 = vadd.f32 %v603, %v1497
    %v1499 = vpop.f32.mrb[0].mxu0
    %v1500 = vpop.f32.mrb[0].mxu0
    %v1501 = vadd.f32 %v603, %v1500
    %v1502 = vpop.f32.mrb[0].mxu0
    %1503 = vmatprep.mubr.bf16.mxu0 %v442
    %1504 = vmatmul.mubr.bf16.gmra.mrb[0].mxu0 %v441
    %v1505 = vpop.f32.mrb[0].mxu0
    %v1506 = vadd.f32 %v603, %v1505
    %v1507 = vpop.f32.mrb[0].mxu0
    %v1508 = vpop.f32.mrb[0].mxu0
    %v1509 = vadd.f32 %v603, %v1508
    %v1510 = vpop.f32.mrb[0].mxu0
    %1511 = vmatprep.mubr.bf16.mxu0 %v445
    %1512 = vmatmul.mubr.bf16.gmra.mrb[0].mxu0 %v444
    %v1513 = vpop.f32.mrb[0].mxu0
    %v1514 = vadd.f32 %v603, %v1513
    %v1515 = vpop.f32.mrb[0].mxu0
    %v1516 = vpop.f32.mrb[0].mxu0
    %v1517 = vpop.f32.mrb[0].mxu0
    %1518 = vdwg.mxu0
    %1519 = vmatprep.subr.bf16.mxu0 0
    %1520 = vmatpush1.bf16.msra.mxu0 %v1053
    %1521 = vmatprep.subr.bf16.mxu0 0
    %1522 = vmatpush1.bf16.msra.mxu0 %v1058
    %1523 = vmatprep.subr.bf16.mxu0 0
    %1524 = vmatpush1.bf16.msra.mxu0 %v1063
    %1525 = vmatprep.subr.bf16.mxu0 0
    %1526 = vmatpush1.bf16.msra.mxu0 %v1068
    %1527 = vmatprep.subr.bf16.mxu0 0
    %1528 = vmatpush1.bf16.msra.mxu0 %v1073
    %1529 = vmatprep.subr.bf16.mxu0 0
    %1530 = vmatpush1.bf16.msra.mxu0 %v1078
    %1531 = vmatprep.subr.bf16.mxu0 0
    %1532 = vmatpush1.bf16.msra.mxu0 %v1217
    %1533 = vmatprep.subr.bf16.mxu0 0
    %1534 = vmatpush1.bf16.msra.mxu0 0
    %1535 = vmatprep.subr.bf16.mxu0 0
    %1536 = vmatpush1.bf16.msra.mxu0 0
    %1537 = vmatprep.subr.bf16.mxu0 0
    %1538 = vmatpush1.bf16.msra.mxu0 0
    %1539 = vmatprep.subr.bf16.mxu0 0
    %1540 = vmatpush1.bf16.msra.mxu0 0
    %1541 = vmatprep.subr.bf16.mxu0 0
    %1542 = vmatpush1.bf16.msra.mxu0 0
    %1543 = vmatprep.subr.bf16.mxu0 0
    %1544 = vmatpush1.bf16.msra.mxu0 0
    %1545 = vmatprep.subr.bf16.mxu0 0
    %1546 = vmatpush1.bf16.msra.mxu0 0
    %1547 = vmatprep.subr.bf16.mxu0 0
    %1548 = vmatpush1.bf16.msra.mxu0 0
    %1549 = vmatprep.subr.bf16.mxu0 0
    %1550 = vmatpush1.bf16.msra.mxu0 0
    %1551 = vmatprep.mubr.bf16.mxu0 0
    %1552 = vmatmul.mubr.bf16.gmra.mrb[0].mxu0 %v1196
    %v1553 = vpop.f32.mrb[0].mxu0
    %v1554 = vadd.f32 %v1498, %v1553
    %v1555 = vpop.f32.mrb[0].mxu0
    %v1556 = vpop.f32.mrb[0].mxu0
    %v1557 = vadd.f32 %v1501, %v1556
    %v1558 = vpop.f32.mrb[0].mxu0
    %1559 = vmatprep.mubr.bf16.mxu0 0
    %1560 = vmatmul.mubr.bf16.gmra.mrb[0].mxu0 %v1199
    %v1561 = vpop.f32.mrb[0].mxu0
    %v1562 = vadd.f32 %v1506, %v1561
    %v1563 = vpop.f32.mrb[0].mxu0
    %v1564 = vpop.f32.mrb[0].mxu0
    %v1565 = vadd.f32 %v1509, %v1564
    %v1566 = vpop.f32.mrb[0].mxu0
    %1567 = vmatprep.mubr.bf16.mxu0 0
    %1568 = vmatmul.mubr.bf16.gmra.mrb[0].mxu0 %v1202
    %v1569 = vpop.f32.mrb[0].mxu0
    %v1570 = vadd.f32 %v1514, %v1569
    %v1571 = vpop.f32.mrb[0].mxu0
    %v1572 = vpop.f32.mrb[0].mxu0
    %v1573 = vpop.f32.mrb[0].mxu0
    %1574 = vdwg.mxu0
    %v1575 = vmax.f32 %v1315, 0.0
    %v1576 = vmax.f32 %v1317, 0.0
    %v1577 = vmax.f32 %v1437, 0.0
    %v1578 = vmax.f32 %v1439, 0.0
    %v1579 = vmax.f32 %v1554, 0.0
    %v1580 = vmax.f32 %v1319, 0.0
    %v1581 = vmax.f32 %v1321, 0.0
    %v1582 = vmax.f32 %v1441, 0.0
    %v1583 = vmax.f32 %v1443, 0.0
    %v1584 = vmax.f32 %v1557, 0.0
    %v1585 = vmax.f32 %v1325, 0.0
    %v1586 = vmax.f32 %v1327, 0.0
    %v1587 = vmax.f32 %v1447, 0.0
    %v1588 = vmax.f32 %v1449, 0.0
    %v1589 = vmax.f32 %v1562, 0.0
    %v1590 = vmax.f32 %v1329, 0.0
    %v1591 = vmax.f32 %v1331, 0.0
    %v1592 = vmax.f32 %v1451, 0.0
    %v1593 = vmax.f32 %v1453, 0.0
    %v1594 = vmax.f32 %v1565, 0.0
    %v1595 = vmax.f32 %v1335, 0.0
    %v1596 = vmax.f32 %v1337, 0.0
    %v1597 = vmax.f32 %v1457, 0.0
    %v1598 = vmax.f32 %v1459, 0.0
    %v1599 = vmax.f32 %v1570, 0.0
    %v1625 = vrot.slane %v1575, 2
    %v1626 = vrot.slane %v1580, 2
    %v1627 = vsel %vm318, %v1625, %v1626
    %v1628 = vrot.slane %v1576, 2
    %v1629 = vrot.slane %v1581, 2
    %v1630 = vsel %vm318, %v1628, %v1629
    %v1631 = vrot.slane %v1577, 2
    %v1632 = vrot.slane %v1582, 2
    %v1633 = vsel %vm318, %v1631, %v1632
    %v1634 = vrot.slane %v1578, 2
    %v1635 = vrot.slane %v1583, 2
    %v1636 = vsel %vm318, %v1634, %v1635
    %v1637 = vrot.slane %v1579, 2
    %v1638 = vrot.slane %v1584, 2
    %v1639 = vsel %vm318, %v1637, %v1638
    %v1640 = vrot.slane %v1585, 2
    %v1641 = vsel %vm318, %v1626, %v1640
    %v1642 = vrot.slane %v1586, 2
    %v1643 = vsel %vm318, %v1629, %v1642
    %v1644 = vrot.slane %v1587, 2
    %v1645 = vsel %vm318, %v1632, %v1644
    %v1646 = vrot.slane %v1588, 2
    %v1647 = vsel %vm318, %v1635, %v1646
    %v1648 = vrot.slane %v1589, 2
    %v1649 = vsel %vm318, %v1638, %v1648
    %v1650 = vrot.slane %v1590, 2
    %v1651 = vsel %vm318, %v1640, %v1650
    %v1652 = vrot.slane %v1591, 2
    %v1653 = vsel %vm318, %v1642, %v1652
    %v1654 = vrot.slane %v1592, 2
    %v1655 = vsel %vm318, %v1644, %v1654
    %v1656 = vrot.slane %v1593, 2
    %v1657 = vsel %vm318, %v1646, %v1656
    %v1658 = vrot.slane %v1594, 2
    %v1659 = vsel %vm318, %v1648, %v1658
    %v1660 = vrot.slane %v1595, 2
    %v1661 = vsel %vm318, %v1650, %v1660
    %v1662 = vrot.slane %v1596, 2
    %v1663 = vsel %vm318, %v1652, %v1662
    %v1664 = vrot.slane %v1597, 2
    %v1665 = vsel %vm318, %v1654, %v1664
    %v1666 = vrot.slane %v1598, 2
    %v1667 = vsel %vm318, %v1656, %v1666
    %v1668 = vrot.slane %v1599, 2
    %v1669 = vsel %vm318, %v1658, %v1668
    %v1690 = vrot.slane %v1575, 4
    %v1691 = vrot.slane %v1580, 4
    %v1692 = vsel %vm345, %v1690, %v1691
    %v1693 = vrot.slane %v1576, 4
    %v1694 = vrot.slane %v1581, 4
    %v1695 = vsel %vm345, %v1693, %v1694
    %v1696 = vrot.slane %v1577, 4
    %v1697 = vrot.slane %v1582, 4
    %v1698 = vsel %vm345, %v1696, %v1697
    %v1699 = vrot.slane %v1578, 4
    %v1700 = vrot.slane %v1583, 4
    %v1701 = vsel %vm345, %v1699, %v1700
    %v1702 = vrot.slane %v1579, 4
    %v1703 = vrot.slane %v1584, 4
    %v1704 = vsel %vm345, %v1702, %v1703
    %v1705 = vrot.slane %v1585, 4
    %v1706 = vsel %vm345, %v1691, %v1705
    %v1707 = vrot.slane %v1586, 4
    %v1708 = vsel %vm345, %v1694, %v1707
    %v1709 = vrot.slane %v1587, 4
    %v1710 = vsel %vm345, %v1697, %v1709
    %v1711 = vrot.slane %v1588, 4
    %v1712 = vsel %vm345, %v1700, %v1711
    %v1713 = vrot.slane %v1589, 4
    %v1714 = vsel %vm345, %v1703, %v1713
    %v1715 = vrot.slane %v1590, 4
    %v1716 = vsel %vm345, %v1705, %v1715
    %v1717 = vrot.slane %v1591, 4
    %v1718 = vsel %vm345, %v1707, %v1717
    %v1719 = vrot.slane %v1592, 4
    %v1720 = vsel %vm345, %v1709, %v1719
    %v1721 = vrot.slane %v1593, 4
    %v1722 = vsel %vm345, %v1711, %v1721
    %v1723 = vrot.slane %v1594, 4
    %v1724 = vsel %vm345, %v1713, %v1723
    %v1725 = vrot.slane %v1595, 4
    %v1726 = vsel %vm345, %v1715, %v1725
    %v1727 = vrot.slane %v1596, 4
    %v1728 = vsel %vm345, %v1717, %v1727
    %v1729 = vrot.slane %v1597, 4
    %v1730 = vsel %vm345, %v1719, %v1729
    %v1731 = vrot.slane %v1598, 4
    %v1732 = vsel %vm345, %v1721, %v1731
    %v1733 = vrot.slane %v1599, 4
    %v1734 = vsel %vm345, %v1723, %v1733
    %v1755 = vrot.slane %v1575, 6
    %v1756 = vrot.slane %v1580, 6
    %v1757 = vsel %vm372, %v1755, %v1756
    %v1758 = vrot.slane %v1576, 6
    %v1759 = vrot.slane %v1581, 6
    %v1760 = vsel %vm372, %v1758, %v1759
    %v1761 = vrot.slane %v1577, 6
    %v1762 = vrot.slane %v1582, 6
    %v1763 = vsel %vm372, %v1761, %v1762
    %v1764 = vrot.slane %v1578, 6
    %v1765 = vrot.slane %v1583, 6
    %v1766 = vsel %vm372, %v1764, %v1765
    %v1767 = vrot.slane %v1579, 6
    %v1768 = vrot.slane %v1584, 6
    %v1769 = vsel %vm372, %v1767, %v1768
    %v1770 = vrot.slane %v1585, 6
    %v1771 = vsel %vm372, %v1756, %v1770
    %v1772 = vrot.slane %v1586, 6
    %v1773 = vsel %vm372, %v1759, %v1772
    %v1774 = vrot.slane %v1587, 6
    %v1775 = vsel %vm372, %v1762, %v1774
    %v1776 = vrot.slane %v1588, 6
    %v1777 = vsel %vm372, %v1765, %v1776
    %v1778 = vrot.slane %v1589, 6
    %v1779 = vsel %vm372, %v1768, %v1778
    %v1780 = vrot.slane %v1590, 6
    %v1781 = vsel %vm372, %v1770, %v1780
    %v1782 = vrot.slane %v1591, 6
    %v1783 = vsel %vm372, %v1772, %v1782
    %v1784 = vrot.slane %v1592, 6
    %v1785 = vsel %vm372, %v1774, %v1784
    %v1786 = vrot.slane %v1593, 6
    %v1787 = vsel %vm372, %v1776, %v1786
    %v1788 = vrot.slane %v1594, 6
    %v1789 = vsel %vm372, %v1778, %v1788
    %v1790 = vrot.slane %v1595, 6
    %v1791 = vsel %vm372, %v1780, %v1790
    %v1792 = vrot.slane %v1596, 6
    %v1793 = vsel %vm372, %v1782, %v1792
    %v1794 = vrot.slane %v1597, 6
    %v1795 = vsel %vm372, %v1784, %v1794
    %v1796 = vrot.slane %v1598, 6
    %v1797 = vsel %vm372, %v1786, %v1796
    %v1798 = vrot.slane %v1599, 6
    %v1799 = vsel %vm372, %v1788, %v1798
    %v1820 = vpack.c.bf16 %v1580, %v1575
    %v1821 = vpack.c.bf16 %v1581, %v1576
    %v1822 = vpack.c.bf16 %v1582, %v1577
    %v1823 = vpack.c.bf16 %v1583, %v1578
    %v1824 = vpack.c.bf16 %v1584, %v1579
    %v1825 = vpack.c.bf16 %v1641, %v1627
    %v1826 = vpack.c.bf16 %v1643, %v1630
    %v1827 = vpack.c.bf16 %v1645, %v1633
    %v1828 = vpack.c.bf16 %v1647, %v1636
    %v1829 = vpack.c.bf16 %v1649, %v1639
    %v1830 = vpack.c.bf16 %v1706, %v1692
    %v1831 = vpack.c.bf16 %v1708, %v1695
    %v1832 = vpack.c.bf16 %v1710, %v1698
    %v1833 = vpack.c.bf16 %v1712, %v1701
    %v1834 = vpack.c.bf16 %v1714, %v1704
    %v1835 = vpack.c.bf16 %v1771, %v1757
    %v1836 = vpack.c.bf16 %v1773, %v1760
    %v1837 = vpack.c.bf16 %v1775, %v1763
    %v1838 = vpack.c.bf16 %v1777, %v1766
    %v1839 = vpack.c.bf16 %v1779, %v1769
    %v1840 = vpack.c.bf16 %v1585, %v1580
    %v1841 = vpack.c.bf16 %v1586, %v1581
    %v1842 = vpack.c.bf16 %v1587, %v1582
    %v1843 = vpack.c.bf16 %v1588, %v1583
    %v1844 = vpack.c.bf16 %v1589, %v1584
    %v1845 = vpack.c.bf16 %v1590, %v1585
    %v1846 = vpack.c.bf16 %v1591, %v1586
    %v1847 = vpack.c.bf16 %v1592, %v1587
    %v1848 = vpack.c.bf16 %v1593, %v1588
    %v1849 = vpack.c.bf16 %v1594, %v1589
    %v1850 = vpack.c.bf16 %v1661, %v1651
    %v1851 = vpack.c.bf16 %v1663, %v1653
    %v1852 = vpack.c.bf16 %v1665, %v1655
    %v1853 = vpack.c.bf16 %v1667, %v1657
    %v1854 = vpack.c.bf16 %v1669, %v1659
    %v1855 = vpack.c.bf16 %v1726, %v1716
    %v1856 = vpack.c.bf16 %v1728, %v1718
    %v1857 = vpack.c.bf16 %v1730, %v1720
    %v1858 = vpack.c.bf16 %v1732, %v1722
    %v1859 = vpack.c.bf16 %v1734, %v1724
    %v1860 = vpack.c.bf16 %v1791, %v1781
    %v1861 = vpack.c.bf16 %v1793, %v1783
    %v1862 = vpack.c.bf16 %v1795, %v1785
    %v1863 = vpack.c.bf16 %v1797, %v1787
    %v1864 = vpack.c.bf16 %v1799, %v1789
    %v1865 = vpack.c.bf16 %v1595, %v1590
    %v1866 = vpack.c.bf16 %v1596, %v1591
    %v1867 = vpack.c.bf16 %v1597, %v1592
    %v1868 = vpack.c.bf16 %v1598, %v1593
    %v1869 = vpack.c.bf16 %v1599, %v1594
    %v1870 = vld [vmem:[#allocation8] sm:$0xff]
    %v1871 = vld [vmem:[#allocation8 + $0x8] sm:$0xff]
    %v1872 = vld [vmem:[#allocation8 + $0x10] sm:$0xff]
    %v1873 = vld [vmem:[#allocation8 + $0x18] sm:$0xff]
    %v1874 = vld [vmem:[#allocation8 + $0x20] sm:$0xff]
    %v1875 = vld [vmem:[#allocation8 + $0x28] sm:$0xff]
    %v1876 = vld [vmem:[#allocation8 + $0x30] sm:$0xff]
    %v1877 = vld [vmem:[#allocation8 + $0x38] sm:$0xff]
    %v1878 = vld [vmem:[#allocation8 + $0x40] sm:$0xff]
    %v1879 = vld [vmem:[#allocation8 + $0x48] sm:$0xff]
    %v1880 = vld [vmem:[#allocation8 + $0x50] sm:$0xff]
    %v1881 = vld [vmem:[#allocation8 + $0x58] sm:$0xff]
    %v1882 = vld [vmem:[#allocation8 + $0x60] sm:$0xff]
    %v1883 = vld [vmem:[#allocation8 + $0x68] sm:$0xff]
    %v1884 = vld [vmem:[#allocation8 + $0x70] sm:$0xff]
    %v1885 = vld [vmem:[#allocation8 + $0x78] sm:$0xff]
    %v1886 = vld [vmem:[#allocation8 + $0x80] sm:$0xff]
    %v1887 = vld [vmem:[#allocation8 + $0x88] sm:$0xff]
    %v1888 = vld [vmem:[#allocation8 + $0x90] sm:$0xff]
    %v1889 = vld [vmem:[#allocation8 + $0x98] sm:$0xff]
    %v1890 = vld [vmem:[#allocation8 + $0xa0] sm:$0xff]
    %v1891 = vld [vmem:[#allocation8 + $0xa8] sm:$0xff]
    %v1892 = vld [vmem:[#allocation8 + $0xb0] sm:$0xff]
    %v1893 = vld [vmem:[#allocation8 + $0xb8] sm:$0xff]
    %v1894 = vld [vmem:[#allocation8 + $0xc0] sm:$0xff]
    %v1895 = vld [vmem:[#allocation8 + $0xc8] sm:$0xff]
    %v1896 = vld [vmem:[#allocation8 + $0xd0] sm:$0xff]
    %v1897 = vld [vmem:[#allocation8 + $0xd8] sm:$0xff]
    %v1898 = vld [vmem:[#allocation8 + $0xe0] sm:$0xff]
    %v1899 = vld [vmem:[#allocation8 + $0xe8] sm:$0xff]
    %v1900 = vld [vmem:[#allocation8 + $0xf0] sm:$0xff]
    %v1901 = vld [vmem:[#allocation8 + $0xf8] sm:$0xff]
    %v1902 = vld [vmem:[#allocation8 + $0x100] sm:$0xff]
    %v1903 = vld [vmem:[#allocation8 + $0x108] sm:$0xff]
    %v1904 = vld [vmem:[#allocation8 + $0x110] sm:$0xff]
    %v1905 = vld [vmem:[#allocation8 + $0x118] sm:$0xff]
    %v1906 = vld [vmem:[#allocation8 + $0x120] sm:$0xff]
    %v1907 = vld [vmem:[#allocation8 + $0x128] sm:$0xff]
    %v1908 = vld [vmem:[#allocation8 + $0x130] sm:$0xff]
    %v1909 = vld [vmem:[#allocation8 + $0x138] sm:$0xff]
    %v1910 = vld [vmem:[#allocation8 + $0x140] sm:$0xff]
    %v1911 = vld [vmem:[#allocation8 + $0x148] sm:$0xff]
    %v1912 = vld [vmem:[#allocation8 + $0x150] sm:$0xff]
    %v1913 = vld [vmem:[#allocation8 + $0x158] sm:$0xff]
    %v1914 = vld [vmem:[#allocation8 + $0x160] sm:$0xff]
    %v1915 = vld [vmem:[#allocation8 + $0x168] sm:$0xff]
    %v1916 = vld [vmem:[#allocation8 + $0x170] sm:$0xff]
    %v1917 = vld [vmem:[#allocation8 + $0x178] sm:$0xff]
    %v1918 = vld [vmem:[#allocation8 + $0x180] sm:$0xff]
    %v1919 = vld [vmem:[#allocation8 + $0x188] sm:$0xff]
    %v1920 = vld [vmem:[#allocation8 + $0x190] sm:$0xff]
    %v1921 = vld [vmem:[#allocation8 + $0x198] sm:$0xff]
    %v1922 = vld [vmem:[#allocation8 + $0x1a0] sm:$0xff]
    %v1923 = vld [vmem:[#allocation8 + $0x1a8] sm:$0xff]
    %v1924 = vld [vmem:[#allocation8 + $0x1b0] sm:$0xff]
    %v1925 = vld [vmem:[#allocation8 + $0x1b8] sm:$0xff]
    %v1926 = vld [vmem:[#allocation8 + $0x1c0] sm:$0xff]
    %v1927 = vld [vmem:[#allocation8 + $0x1c8] sm:$0xff]
    %v1928 = vld [vmem:[#allocation8 + $0x1d0] sm:$0xff]
    %v1929 = vld [vmem:[#allocation8 + $0x1d8] sm:$0xff]
    %v1930 = vld [vmem:[#allocation8 + $0x1e0] sm:$0xff]
    %v1931 = vld [vmem:[#allocation8 + $0x1e8] sm:$0xff]
    %v1932 = vld [vmem:[#allocation8 + $0x1f0] sm:$0xff]
    %v1933 = vld [vmem:[#allocation8 + $0x1f8] sm:$0xff]
    %v1934 = vld [vmem:[#allocation8 + $0x200] sm:$0xff]
    %v1935 = vld [vmem:[#allocation8 + $0x208] sm:$0xff]
    %v1936 = vld [vmem:[#allocation8 + $0x210] sm:$0xff]
    %v1937 = vld [vmem:[#allocation8 + $0x218] sm:$0xff]
    %v1938 = vld [vmem:[#allocation8 + $0x220] sm:$0xff]
    %v1939 = vld [vmem:[#allocation8 + $0x228] sm:$0xff]
    %v1940 = vld [vmem:[#allocation8 + $0x230] sm:$0xff]
    %v1941 = vld [vmem:[#allocation8 + $0x238] sm:$0xff]
    %v1942 = vld [vmem:[#allocation8 + $0x240] sm:$0xff]
    %v1943 = vld [vmem:[#allocation8 + $0x248] sm:$0xff]
    %v1944 = vld [vmem:[#allocation8 + $0x250] sm:$0xff]
    %v1945 = vld [vmem:[#allocation8 + $0x258] sm:$0xff]
    %v1946 = vld [vmem:[#allocation8 + $0x260] sm:$0xff]
    %v1947 = vld [vmem:[#allocation8 + $0x268] sm:$0xff]
    %v1948 = vld [vmem:[#allocation8 + $0x270] sm:$0xff]
    %v1949 = vld [vmem:[#allocation8 + $0x278] sm:$0xff]
    %v1950 = vld [vmem:[#allocation8 + $0x280] sm:$0xff]
    %v1951 = vld [vmem:[#allocation8 + $0x288] sm:$0xff]
    %v1952 = vld [vmem:[#allocation8 + $0x290] sm:$0xff]
    %v1953 = vld [vmem:[#allocation8 + $0x298] sm:$0xff]
    %v1954 = vld [vmem:[#allocation8 + $0x2a0] sm:$0xff]
    %v1955 = vld [vmem:[#allocation8 + $0x2a8] sm:$0xff]
    %v1956 = vld [vmem:[#allocation8 + $0x2b0] sm:$0xff]
    %v1957 = vld [vmem:[#allocation8 + $0x2b8] sm:$0xff]
    %v1958 = vld [vmem:[#allocation8 + $0x2c0] sm:$0xff]
    %v1959 = vld [vmem:[#allocation8 + $0x2c8] sm:$0xff]
    %v1960 = vld [vmem:[#allocation8 + $0x2d0] sm:$0xff]
    %v1961 = vld [vmem:[#allocation8 + $0x2d8] sm:$0xff]
    %v1962 = vld [vmem:[#allocation8 + $0x2e0] sm:$0xff]
    %v1963 = vld [vmem:[#allocation8 + $0x2e8] sm:$0xff]
    %v1964 = vld [vmem:[#allocation8 + $0x2f0] sm:$0xff]
    %v1965 = vld [vmem:[#allocation8 + $0x2f8] sm:$0xff]
    %v1966 = vld [vmem:[#allocation8 + $0x300] sm:$0xff]
    %v1967 = vld [vmem:[#allocation8 + $0x308] sm:$0xff]
    %v1968 = vld [vmem:[#allocation8 + $0x310] sm:$0xff]
    %v1969 = vld [vmem:[#allocation8 + $0x318] sm:$0xff]
    %v1970 = vld [vmem:[#allocation8 + $0x320] sm:$0xff]
    %v1971 = vld [vmem:[#allocation8 + $0x328] sm:$0xff]
    %v1972 = vld [vmem:[#allocation8 + $0x330] sm:$0xff]
    %v1973 = vld [vmem:[#allocation8 + $0x338] sm:$0xff]
    %v1974 = vld [vmem:[#allocation8 + $0x340] sm:$0xff]
    %v1975 = vld [vmem:[#allocation8 + $0x348] sm:$0xff]
    %v1976 = vld [vmem:[#allocation8 + $0x350] sm:$0xff]
    %v1977 = vld [vmem:[#allocation8 + $0x358] sm:$0xff]
    %v1978 = vld [vmem:[#allocation8 + $0x360] sm:$0xff]
    %v1979 = vld [vmem:[#allocation8 + $0x368] sm:$0xff]
    %v1980 = vld [vmem:[#allocation8 + $0x370] sm:$0xff]
    %v1981 = vld [vmem:[#allocation8 + $0x378] sm:$0xff]
    %v1982 = vld [vmem:[#allocation8 + $0x380] sm:$0xff]
    %v1983 = vld [vmem:[#allocation8 + $0x388] sm:$0xff]
    %v1984 = vld [vmem:[#allocation8 + $0x390] sm:$0xff]
    %v1985 = vld [vmem:[#allocation8 + $0x398] sm:$0xff]
    %v1986 = vld [vmem:[#allocation8 + $0x3a0] sm:$0xff]
    %v1987 = vld [vmem:[#allocation8 + $0x3a8] sm:$0xff]
    %v1988 = vld [vmem:[#allocation8 + $0x3b0] sm:$0xff]
    %v1989 = vld [vmem:[#allocation8 + $0x3b8] sm:$0xff]
    %v1990 = vld [vmem:[#allocation8 + $0x3c0] sm:$0xff]
    %v1991 = vld [vmem:[#allocation8 + $0x3c8] sm:$0xff]
    %v1992 = vld [vmem:[#allocation8 + $0x3d0] sm:$0xff]
    %v1993 = vld [vmem:[#allocation8 + $0x3d8] sm:$0xff]
    %v1994 = vld [vmem:[#allocation8 + $0x3e0] sm:$0xff]
    %v1995 = vld [vmem:[#allocation8 + $0x3e8] sm:$0xff]
    %v1996 = vld [vmem:[#allocation8 + $0x3f0] sm:$0xff]
    %v1997 = vld [vmem:[#allocation8 + $0x3f8] sm:$0xff]
    %v1998 = vld [vmem:[#allocation8 + $0x400] sm:$0xff]
    %v1999 = vld [vmem:[#allocation8 + $0x408] sm:$0xff]
    %v2000 = vld [vmem:[#allocation8 + $0x410] sm:$0xff]
    %v2001 = vld [vmem:[#allocation8 + $0x418] sm:$0xff]
    %v2002 = vld [vmem:[#allocation8 + $0x420] sm:$0xff]
    %v2003 = vld [vmem:[#allocation8 + $0x428] sm:$0xff]
    %v2004 = vld [vmem:[#allocation8 + $0x430] sm:$0xff]
    %v2005 = vld [vmem:[#allocation8 + $0x438] sm:$0xff]
    %v2006 = vld [vmem:[#allocation8 + $0x440] sm:$0xff]
    %v2007 = vld [vmem:[#allocation8 + $0x448] sm:$0xff]
    %v2008 = vld [vmem:[#allocation8 + $0x450] sm:$0xff]
    %v2009 = vld [vmem:[#allocation8 + $0x458] sm:$0xff]
    %v2010 = vld [vmem:[#allocation8 + $0x460] sm:$0xff]
    %v2011 = vld [vmem:[#allocation8 + $0x468] sm:$0xff]
    %v2012 = vld [vmem:[#allocation8 + $0x470] sm:$0xff]
    %v2013 = vld [vmem:[#allocation8 + $0x478] sm:$0xff]
    %v2014 = vld [vmem:[#allocation8 + $0x480] sm:$0xff]
    %v2015 = vld [vmem:[#allocation8 + $0x488] sm:$0xff]
    %v2016 = vld [vmem:[#allocation8 + $0x490] sm:$0xff]
    %v2017 = vld [vmem:[#allocation8 + $0x498] sm:$0xff]
    %v2018 = vld [vmem:[#allocation8 + $0x4a0] sm:$0xff]
    %v2019 = vld [vmem:[#allocation8 + $0x4a8] sm:$0xff]
    %v2020 = vld [vmem:[#allocation8 + $0x4b0] sm:$0xff]
    %v2021 = vld [vmem:[#allocation8 + $0x4b8] sm:$0xff]
    %v2022 = vld [vmem:[#allocation8 + $0x4c0] sm:$0xff]
    %v2023 = vld [vmem:[#allocation8 + $0x4c8] sm:$0xff]
    %v2024 = vld [vmem:[#allocation8 + $0x4d0] sm:$0xff]
    %v2025 = vld [vmem:[#allocation8 + $0x4d8] sm:$0xff]
    %v2026 = vld [vmem:[#allocation8 + $0x4e0] sm:$0xff]
    %v2027 = vld [vmem:[#allocation8 + $0x4e8] sm:$0xff]
    %v2028 = vld [vmem:[#allocation8 + $0x4f0] sm:$0xff]
    %v2029 = vld [vmem:[#allocation8 + $0x4f8] sm:$0xff]
    %v2030 = vld [vmem:[#allocation8 + $0x500] sm:$0xff]
    %v2031 = vld [vmem:[#allocation8 + $0x508] sm:$0xff]
    %v2032 = vld [vmem:[#allocation8 + $0x510] sm:$0xff]
    %v2033 = vld [vmem:[#allocation8 + $0x518] sm:$0xff]
    %v2034 = vld [vmem:[#allocation8 + $0x520] sm:$0xff]
    %v2035 = vld [vmem:[#allocation8 + $0x528] sm:$0xff]
    %v2036 = vld [vmem:[#allocation8 + $0x530] sm:$0xff]
    %v2037 = vld [vmem:[#allocation8 + $0x538] sm:$0xff]
    %v2038 = vld [vmem:[#allocation8 + $0x540] sm:$0xff]
    %v2039 = vld [vmem:[#allocation8 + $0x548] sm:$0xff]
    %v2040 = vld [vmem:[#allocation8 + $0x550] sm:$0xff]
    %v2041 = vld [vmem:[#allocation8 + $0x558] sm:$0xff]
    %v2042 = vld [vmem:[#allocation8 + $0x560] sm:$0xff]
    %v2043 = vld [vmem:[#allocation8 + $0x568] sm:$0xff]
    %v2044 = vld [vmem:[#allocation8 + $0x570] sm:$0xff]
    %v2045 = vld [vmem:[#allocation8 + $0x578] sm:$0xff]
    %v2046 = vld [vmem:[#allocation8 + $0x580] sm:$0xff]
    %v2047 = vld [vmem:[#allocation8 + $0x588] sm:$0xff]
    %v2048 = vld [vmem:[#allocation8 + $0x590] sm:$0xff]
    %v2049 = vld [vmem:[#allocation8 + $0x598] sm:$0xff]
    %v2050 = vld [vmem:[#allocation8 + $0x5a0] sm:$0xff]
    %v2051 = vld [vmem:[#allocation8 + $0x5a8] sm:$0xff]
    %v2052 = vld [vmem:[#allocation8 + $0x5b0] sm:$0xff]
    %v2053 = vld [vmem:[#allocation8 + $0x5b8] sm:$0xff]
    %v2054 = vld [vmem:[#allocation8 + $0x5c0] sm:$0xff]
    %v2055 = vld [vmem:[#allocation8 + $0x5c8] sm:$0xff]
    %v2056 = vld [vmem:[#allocation8 + $0x5d0] sm:$0xff]
    %v2057 = vld [vmem:[#allocation8 + $0x5d8] sm:$0xff]
    %v2058 = vld [vmem:[#allocation8 + $0x5e0] sm:$0xff]
    %v2059 = vld [vmem:[#allocation8 + $0x5e8] sm:$0xff]
    %v2060 = vld [vmem:[#allocation8 + $0x5f0] sm:$0xff]
    %v2061 = vld [vmem:[#allocation8 + $0x5f8] sm:$0xff]
    %v2062 = vld [vmem:[#allocation8 + $0x600] sm:$0xff]
    %v2063 = vld [vmem:[#allocation8 + $0x608] sm:$0xff]
    %v2064 = vld [vmem:[#allocation8 + $0x610] sm:$0xff]
    %v2065 = vld [vmem:[#allocation8 + $0x618] sm:$0xff]
    %v2066 = vld [vmem:[#allocation8 + $0x620] sm:$0xff]
    %v2067 = vld [vmem:[#allocation8 + $0x628] sm:$0xff]
    %v2068 = vld [vmem:[#allocation8 + $0x630] sm:$0xff]
    %v2069 = vld [vmem:[#allocation8 + $0x638] sm:$0xff]
    %v2070 = vld [vmem:[#allocation8 + $0x640] sm:$0xff]
    %v2071 = vld [vmem:[#allocation8 + $0x648] sm:$0xff]
    %v2072 = vld [vmem:[#allocation8 + $0x650] sm:$0xff]
    %v2073 = vld [vmem:[#allocation8 + $0x658] sm:$0xff]
    %v2074 = vld [vmem:[#allocation8 + $0x660] sm:$0xff]
    %v2075 = vld [vmem:[#allocation8 + $0x668] sm:$0xff]
    %v2076 = vld [vmem:[#allocation8 + $0x670] sm:$0xff]
    %v2077 = vld [vmem:[#allocation8 + $0x678] sm:$0xff]
    %v2078 = vld [vmem:[#allocation8 + $0x680] sm:$0xff]
    %v2079 = vld [vmem:[#allocation8 + $0x688] sm:$0xff]
    %v2080 = vld [vmem:[#allocation8 + $0x690] sm:$0xff]
    %v2081 = vld [vmem:[#allocation8 + $0x698] sm:$0xff]
    %v2082 = vld [vmem:[#allocation8 + $0x6a0] sm:$0xff]
    %v2083 = vld [vmem:[#allocation8 + $0x6a8] sm:$0xff]
    %v2084 = vld [vmem:[#allocation8 + $0x6b0] sm:$0xff]
    %v2085 = vld [vmem:[#allocation8 + $0x6b8] sm:$0xff]
    %v2086 = vld [vmem:[#allocation8 + $0x6c0] sm:$0xff]
    %v2087 = vld [vmem:[#allocation8 + $0x6c8] sm:$0xff]
    %v2088 = vld [vmem:[#allocation8 + $0x6d0] sm:$0xff]
    %v2089 = vld [vmem:[#allocation8 + $0x6d8] sm:$0xff]
    %v2090 = vld [vmem:[#allocation8 + $0x6e0] sm:$0xff]
    %v2091 = vld [vmem:[#allocation8 + $0x6e8] sm:$0xff]
    %v2092 = vld [vmem:[#allocation8 + $0x6f0] sm:$0xff]
    %v2093 = vld [vmem:[#allocation8 + $0x6f8] sm:$0xff]
    %v2094 = vld [vmem:[#allocation8 + $0x700] sm:$0xff]
    %v2095 = vld [vmem:[#allocation8 + $0x708] sm:$0xff]
    %v2096 = vld [vmem:[#allocation8 + $0x710] sm:$0xff]
    %v2097 = vld [vmem:[#allocation8 + $0x718] sm:$0xff]
    %v2098 = vld [vmem:[#allocation8 + $0x720] sm:$0xff]
    %v2099 = vld [vmem:[#allocation8 + $0x728] sm:$0xff]
    %v2100 = vld [vmem:[#allocation8 + $0x730] sm:$0xff]
    %v2101 = vld [vmem:[#allocation8 + $0x738] sm:$0xff]
    %v2102 = vld [vmem:[#allocation8 + $0x740] sm:$0xff]
    %v2103 = vld [vmem:[#allocation8 + $0x748] sm:$0xff]
    %v2104 = vld [vmem:[#allocation8 + $0x750] sm:$0xff]
    %v2105 = vld [vmem:[#allocation8 + $0x758] sm:$0xff]
    %v2106 = vld [vmem:[#allocation8 + $0x760] sm:$0xff]
    %v2107 = vld [vmem:[#allocation8 + $0x768] sm:$0xff]
    %v2108 = vld [vmem:[#allocation8 + $0x770] sm:$0xff]
    %v2109 = vld [vmem:[#allocation8 + $0x778] sm:$0xff]
    %v2110 = vld [vmem:[#allocation8 + $0x780] sm:$0xff]
    %v2111 = vld [vmem:[#allocation8 + $0x788] sm:$0xff]
    %v2112 = vld [vmem:[#allocation8 + $0x790] sm:$0xff]
    %v2113 = vld [vmem:[#allocation8 + $0x798] sm:$0xff]
    %v2114 = vld [vmem:[#allocation8 + $0x7a0] sm:$0xff]
    %v2115 = vld [vmem:[#allocation8 + $0x7a8] sm:$0xff]
    %v2116 = vld [vmem:[#allocation8 + $0x7b0] sm:$0xff]
    %v2117 = vld [vmem:[#allocation8 + $0x7b8] sm:$0xff]
    %v2118 = vld [vmem:[#allocation8 + $0x7c0] sm:$0xff]
    %v2119 = vld [vmem:[#allocation8 + $0x7c8] sm:$0xff]
    %v2120 = vld [vmem:[#allocation8 + $0x7d0] sm:$0xff]
    %v2121 = vld [vmem:[#allocation8 + $0x7d8] sm:$0xff]
    %v2122 = vld [vmem:[#allocation8 + $0x7e0] sm:$0xff]
    %v2123 = vld [vmem:[#allocation8 + $0x7e8] sm:$0xff]
    %v2124 = vld [vmem:[#allocation8 + $0x7f0] sm:$0xff]
    %v2125 = vld [vmem:[#allocation8 + $0x7f8] sm:$0xff]
    %v2126 = vld [vmem:[#allocation8 + $0x800] sm:$0xff]
    %v2127 = vld [vmem:[#allocation8 + $0x808] sm:$0xff]
    %v2128 = vld [vmem:[#allocation8 + $0x810] sm:$0xff]
    %v2129 = vld [vmem:[#allocation8 + $0x818] sm:$0xff]
    %v2130 = vld [vmem:[#allocation8 + $0x820] sm:$0xff]
    %v2131 = vld [vmem:[#allocation8 + $0x828] sm:$0xff]
    %v2132 = vld [vmem:[#allocation8 + $0x830] sm:$0xff]
    %v2133 = vld [vmem:[#allocation8 + $0x838] sm:$0xff]
    %v2134 = vld [vmem:[#allocation8 + $0x840] sm:$0xff]
    %v2135 = vld [vmem:[#allocation8 + $0x848] sm:$0xff]
    %v2136 = vld [vmem:[#allocation8 + $0x850] sm:$0xff]
    %v2137 = vld [vmem:[#allocation8 + $0x858] sm:$0xff]
    %v2138 = vld [vmem:[#allocation8 + $0x860] sm:$0xff]
    %v2139 = vld [vmem:[#allocation8 + $0x868] sm:$0xff]
    %v2140 = vld [vmem:[#allocation8 + $0x870] sm:$0xff]
    %v2141 = vld [vmem:[#allocation8 + $0x878] sm:$0xff]
    %v2142 = vld [vmem:[#allocation8 + $0x880] sm:$0xff]
    %v2143 = vld [vmem:[#allocation8 + $0x888] sm:$0xff]
    %v2144 = vld [vmem:[#allocation8 + $0x890] sm:$0xff]
    %v2145 = vld [vmem:[#allocation8 + $0x898] sm:$0xff]
    %v2146 = vld [vmem:[#allocation8 + $0x8a0] sm:$0xff]
    %v2147 = vld [vmem:[#allocation8 + $0x8a8] sm:$0xff]
    %v2148 = vld [vmem:[#allocation8 + $0x8b0] sm:$0xff]
    %v2149 = vld [vmem:[#allocation8 + $0x8b8] sm:$0xff]
    %v2150 = vld [vmem:[#allocation8 + $0x8c0] sm:$0xff]
    %v2151 = vld [vmem:[#allocation8 + $0x8c8] sm:$0xff]
    %v2152 = vld [vmem:[#allocation8 + $0x8d0] sm:$0xff]
    %v2153 = vld [vmem:[#allocation8 + $0x8d8] sm:$0xff]
    %v2154 = vld [vmem:[#allocation8 + $0x8e0] sm:$0xff]
    %v2155 = vld [vmem:[#allocation8 + $0x8e8] sm:$0xff]
    %v2156 = vld [vmem:[#allocation8 + $0x8f0] sm:$0xff]
    %v2157 = vld [vmem:[#allocation8 + $0x8f8] sm:$0xff]
    %v2158 = vld [vmem:[#allocation8 + $0x900] sm:$0xff]
    %v2159 = vld [vmem:[#allocation8 + $0x908] sm:$0xff]
    %v2160 = vld [vmem:[#allocation8 + $0x910] sm:$0xff]
    %v2161 = vld [vmem:[#allocation8 + $0x918] sm:$0xff]
    %v2162 = vld [vmem:[#allocation8 + $0x920] sm:$0xff]
    %v2163 = vld [vmem:[#allocation8 + $0x928] sm:$0xff]
    %v2164 = vld [vmem:[#allocation8 + $0x930] sm:$0xff]
    %v2165 = vld [vmem:[#allocation8 + $0x938] sm:$0xff]
    %v2166 = vld [vmem:[#allocation8 + $0x940] sm:$0xff]
    %v2167 = vld [vmem:[#allocation8 + $0x948] sm:$0xff]
    %v2168 = vld [vmem:[#allocation8 + $0x950] sm:$0xff]
    %v2169 = vld [vmem:[#allocation8 + $0x958] sm:$0xff]
    %v2170 = vld [vmem:[#allocation8 + $0x960] sm:$0xff]
    %v2171 = vld [vmem:[#allocation8 + $0x968] sm:$0xff]
    %v2172 = vld [vmem:[#allocation8 + $0x970] sm:$0xff]
    %v2173 = vld [vmem:[#allocation8 + $0x978] sm:$0xff]
    %v2174 = vld [vmem:[#allocation8 + $0x980] sm:$0xff]
    %v2175 = vld [vmem:[#allocation8 + $0x988] sm:$0xff]
    %v2176 = vld [vmem:[#allocation8 + $0x990] sm:$0xff]
    %v2177 = vld [vmem:[#allocation8 + $0x998] sm:$0xff]
    %v2178 = vld [vmem:[#allocation8 + $0x9a0] sm:$0xff]
    %v2179 = vld [vmem:[#allocation8 + $0x9a8] sm:$0xff]
    %v2180 = vld [vmem:[#allocation8 + $0x9b0] sm:$0xff]
    %v2181 = vld [vmem:[#allocation8 + $0x9b8] sm:$0xff]
    %v2182 = vld [vmem:[#allocation8 + $0x9c0] sm:$0xff]
    %v2183 = vld [vmem:[#allocation8 + $0x9c8] sm:$0xff]
    %v2184 = vld [vmem:[#allocation8 + $0x9d0] sm:$0xff]
    %v2185 = vld [vmem:[#allocation8 + $0x9d8] sm:$0xff]
    %v2186 = vld [vmem:[#allocation8 + $0x9e0] sm:$0xff]
    %v2187 = vld [vmem:[#allocation8 + $0x9e8] sm:$0xff]
    %v2188 = vld [vmem:[#allocation8 + $0x9f0] sm:$0xff]
    %v2189 = vld [vmem:[#allocation8 + $0x9f8] sm:$0xff]
    %v2190 = vld [vmem:[#allocation8 + $0xa00] sm:$0xff]
    %v2191 = vld [vmem:[#allocation8 + $0xa08] sm:$0xff]
    %v2192 = vld [vmem:[#allocation8 + $0xa10] sm:$0xff]
    %v2193 = vld [vmem:[#allocation8 + $0xa18] sm:$0xff]
    %v2194 = vld [vmem:[#allocation8 + $0xa20] sm:$0xff]
    %v2195 = vld [vmem:[#allocation8 + $0xa28] sm:$0xff]
    %v2196 = vld [vmem:[#allocation8 + $0xa30] sm:$0xff]
    %v2197 = vld [vmem:[#allocation8 + $0xa38] sm:$0xff]
    %v2198 = vld [vmem:[#allocation8 + $0xa40] sm:$0xff]
    %v2199 = vld [vmem:[#allocation8 + $0xa48] sm:$0xff]
    %v2200 = vld [vmem:[#allocation8 + $0xa50] sm:$0xff]
    %v2201 = vld [vmem:[#allocation8 + $0xa58] sm:$0xff]
    %v2202 = vld [vmem:[#allocation8 + $0xa60] sm:$0xff]
    %v2203 = vld [vmem:[#allocation8 + $0xa68] sm:$0xff]
    %v2204 = vld [vmem:[#allocation8 + $0xa70] sm:$0xff]
    %v2205 = vld [vmem:[#allocation8 + $0xa78] sm:$0xff]
    %v2206 = vld [vmem:[#allocation8 + $0xa80] sm:$0xff]
    %v2207 = vld [vmem:[#allocation8 + $0xa88] sm:$0xff]
    %v2208 = vld [vmem:[#allocation8 + $0xa90] sm:$0xff]
    %v2209 = vld [vmem:[#allocation8 + $0xa98] sm:$0xff]
    %v2210 = vld [vmem:[#allocation8 + $0xaa0] sm:$0xff]
    %v2211 = vld [vmem:[#allocation8 + $0xaa8] sm:$0xff]
    %v2212 = vld [vmem:[#allocation8 + $0xab0] sm:$0xff]
    %v2213 = vld [vmem:[#allocation8 + $0xab8] sm:$0xff]
    %v2214 = vld [vmem:[#allocation8 + $0xac0] sm:$0xff]
    %v2215 = vld [vmem:[#allocation8 + $0xac8] sm:$0xff]
    %v2216 = vld [vmem:[#allocation8 + $0xad0] sm:$0xff]
    %v2217 = vld [vmem:[#allocation8 + $0xad8] sm:$0xff]
    %v2218 = vld [vmem:[#allocation8 + $0xae0] sm:$0xff]
    %v2219 = vld [vmem:[#allocation8 + $0xae8] sm:$0xff]
    %v2220 = vld [vmem:[#allocation8 + $0xaf0] sm:$0xff]
    %v2221 = vld [vmem:[#allocation8 + $0xaf8] sm:$0xff]
    %v2222 = vld [vmem:[#allocation8 + $0xb00] sm:$0xff]
    %v2223 = vld [vmem:[#allocation8 + $0xb08] sm:$0xff]
    %v2224 = vld [vmem:[#allocation8 + $0xb10] sm:$0xff]
    %v2225 = vld [vmem:[#allocation8 + $0xb18] sm:$0xff]
    %v2226 = vld [vmem:[#allocation8 + $0xb20] sm:$0xff]
    %v2227 = vld [vmem:[#allocation8 + $0xb28] sm:$0xff]
    %v2228 = vld [vmem:[#allocation8 + $0xb30] sm:$0xff]
    %v2229 = vld [vmem:[#allocation8 + $0xb38] sm:$0xff]
    %v2230 = vld [vmem:[#allocation8 + $0xb40] sm:$0xff]
    %v2231 = vld [vmem:[#allocation8 + $0xb48] sm:$0xff]
    %v2232 = vld [vmem:[#allocation8 + $0xb50] sm:$0xff]
    %v2233 = vld [vmem:[#allocation8 + $0xb58] sm:$0xff]
    %v2234 = vld [vmem:[#allocation8 + $0xb60] sm:$0xff]
    %v2235 = vld [vmem:[#allocation8 + $0xb68] sm:$0xff]
    %v2236 = vld [vmem:[#allocation8 + $0xb70] sm:$0xff]
    %v2237 = vld [vmem:[#allocation8 + $0xb78] sm:$0xff]
    %v2238 = vld [vmem:[#allocation8 + $0xb80] sm:$0xff]
    %v2239 = vld [vmem:[#allocation8 + $0xb88] sm:$0xff]
    %v2240 = vld [vmem:[#allocation8 + $0xb90] sm:$0xff]
    %v2241 = vld [vmem:[#allocation8 + $0xb98] sm:$0xff]
    %v2242 = vld [vmem:[#allocation8 + $0xba0] sm:$0xff]
    %v2243 = vld [vmem:[#allocation8 + $0xba8] sm:$0xff]
    %v2244 = vld [vmem:[#allocation8 + $0xbb0] sm:$0xff]
    %v2245 = vld [vmem:[#allocation8 + $0xbb8] sm:$0xff]
    %v2246 = vld [vmem:[#allocation8 + $0xbc0] sm:$0xff]
    %v2247 = vld [vmem:[#allocation8 + $0xbc8] sm:$0xff]
    %v2248 = vld [vmem:[#allocation8 + $0xbd0] sm:$0xff]
    %v2249 = vld [vmem:[#allocation8 + $0xbd8] sm:$0xff]
    %v2250 = vld [vmem:[#allocation8 + $0xbe0] sm:$0xff]
    %v2251 = vld [vmem:[#allocation8 + $0xbe8] sm:$0xff]
    %v2252 = vld [vmem:[#allocation8 + $0xbf0] sm:$0xff]
    %v2253 = vld [vmem:[#allocation8 + $0xbf8] sm:$0xff]
    %v2254 = vld [vmem:[#allocation8 + $0xc00] sm:$0xff]
    %v2255 = vld [vmem:[#allocation8 + $0xc08] sm:$0xff]
    %v2256 = vld [vmem:[#allocation8 + $0xc10] sm:$0xff]
    %v2257 = vld [vmem:[#allocation8 + $0xc18] sm:$0xff]
    %v2258 = vld [vmem:[#allocation8 + $0xc20] sm:$0xff]
    %v2259 = vld [vmem:[#allocation8 + $0xc28] sm:$0xff]
    %v2260 = vld [vmem:[#allocation8 + $0xc30] sm:$0xff]
    %v2261 = vld [vmem:[#allocation8 + $0xc38] sm:$0xff]
    %v2262 = vld [vmem:[#allocation8 + $0xc40] sm:$0xff]
    %v2263 = vld [vmem:[#allocation8 + $0xc48] sm:$0xff]
    %v2264 = vld [vmem:[#allocation8 + $0xc50] sm:$0xff]
    %v2265 = vld [vmem:[#allocation8 + $0xc58] sm:$0xff]
    %v2266 = vld [vmem:[#allocation8 + $0xc60] sm:$0xff]
    %v2267 = vld [vmem:[#allocation8 + $0xc68] sm:$0xff]
    %v2268 = vld [vmem:[#allocation8 + $0xc70] sm:$0xff]
    %v2269 = vld [vmem:[#allocation8 + $0xc78] sm:$0xff]
    %v2270 = vld [vmem:[#allocation8 + $0xc80] sm:$0xff]
    %v2271 = vld [vmem:[#allocation8 + $0xc88] sm:$0xff]
    %v2272 = vld [vmem:[#allocation8 + $0xc90] sm:$0xff]
    %v2273 = vld [vmem:[#allocation8 + $0xc98] sm:$0xff]
    %v2274 = vld [vmem:[#allocation8 + $0xca0] sm:$0xff]
    %v2275 = vld [vmem:[#allocation8 + $0xca8] sm:$0xff]
    %v2276 = vld [vmem:[#allocation8 + $0xcb0] sm:$0xff]
    %v2277 = vld [vmem:[#allocation8 + $0xcb8] sm:$0xff]
    %v2278 = vld [vmem:[#allocation8 + $0xcc0] sm:$0xff]
    %v2279 = vld [vmem:[#allocation8 + $0xcc8] sm:$0xff]
    %v2280 = vld [vmem:[#allocation8 + $0xcd0] sm:$0xff]
    %v2281 = vld [vmem:[#allocation8 + $0xcd8] sm:$0xff]
    %v2282 = vld [vmem:[#allocation8 + $0xce0] sm:$0xff]
    %v2283 = vld [vmem:[#allocation8 + $0xce8] sm:$0xff]
    %v2284 = vld [vmem:[#allocation8 + $0xcf0] sm:$0xff]
    %v2285 = vld [vmem:[#allocation8 + $0xcf8] sm:$0xff]
    %v2286 = vld [vmem:[#allocation8 + $0xd00] sm:$0xff]
    %v2287 = vld [vmem:[#allocation8 + $0xd08] sm:$0xff]
    %v2288 = vld [vmem:[#allocation8 + $0xd10] sm:$0xff]
    %v2289 = vld [vmem:[#allocation8 + $0xd18] sm:$0xff]
    %v2290 = vld [vmem:[#allocation8 + $0xd20] sm:$0xff]
    %v2291 = vld [vmem:[#allocation8 + $0xd28] sm:$0xff]
    %v2292 = vld [vmem:[#allocation8 + $0xd30] sm:$0xff]
    %v2293 = vld [vmem:[#allocation8 + $0xd38] sm:$0xff]
    %v2294 = vld [vmem:[#allocation8 + $0xd40] sm:$0xff]
    %v2295 = vld [vmem:[#allocation8 + $0xd48] sm:$0xff]
    %v2296 = vld [vmem:[#allocation8 + $0xd50] sm:$0xff]
    %v2297 = vld [vmem:[#allocation8 + $0xd58] sm:$0xff]
    %v2298 = vld [vmem:[#allocation8 + $0xd60] sm:$0xff]
    %v2299 = vld [vmem:[#allocation8 + $0xd68] sm:$0xff]
    %v2300 = vld [vmem:[#allocation8 + $0xd70] sm:$0xff]
    %v2301 = vld [vmem:[#allocation8 + $0xd78] sm:$0xff]
    %v2302 = vld [vmem:[#allocation8 + $0xd80] sm:$0xff]
    %v2303 = vld [vmem:[#allocation8 + $0xd88] sm:$0xff]
    %v2304 = vld [vmem:[#allocation8 + $0xd90] sm:$0xff]
    %v2305 = vld [vmem:[#allocation8 + $0xd98] sm:$0xff]
    %v2306 = vld [vmem:[#allocation8 + $0xda0] sm:$0xff]
    %v2307 = vld [vmem:[#allocation8 + $0xda8] sm:$0xff]
    %v2308 = vld [vmem:[#allocation8 + $0xdb0] sm:$0xff]
    %v2309 = vld [vmem:[#allocation8 + $0xdb8] sm:$0xff]
    %v2310 = vld [vmem:[#allocation8 + $0xdc0] sm:$0xff]
    %v2311 = vld [vmem:[#allocation8 + $0xdc8] sm:$0xff]
    %v2312 = vld [vmem:[#allocation8 + $0xdd0] sm:$0xff]
    %v2313 = vld [vmem:[#allocation8 + $0xdd8] sm:$0xff]
    %v2314 = vld [vmem:[#allocation8 + $0xde0] sm:$0xff]
    %v2315 = vld [vmem:[#allocation8 + $0xde8] sm:$0xff]
    %v2316 = vld [vmem:[#allocation8 + $0xdf0] sm:$0xff]
    %v2317 = vld [vmem:[#allocation8 + $0xdf8] sm:$0xff]
    %v2318 = vld [vmem:[#allocation8 + $0xe00] sm:$0xff]
    %v2319 = vld [vmem:[#allocation8 + $0xe08] sm:$0xff]
    %v2320 = vld [vmem:[#allocation8 + $0xe10] sm:$0xff]
    %v2321 = vld [vmem:[#allocation8 + $0xe18] sm:$0xff]
    %v2322 = vld [vmem:[#allocation8 + $0xe20] sm:$0xff]
    %v2323 = vld [vmem:[#allocation8 + $0xe28] sm:$0xff]
    %v2324 = vld [vmem:[#allocation8 + $0xe30] sm:$0xff]
    %v2325 = vld [vmem:[#allocation8 + $0xe38] sm:$0xff]
    %v2326 = vld [vmem:[#allocation8 + $0xe40] sm:$0xff]
    %v2327 = vld [vmem:[#allocation8 + $0xe48] sm:$0xff]
    %v2328 = vld [vmem:[#allocation8 + $0xe50] sm:$0xff]
    %v2329 = vld [vmem:[#allocation8 + $0xe58] sm:$0xff]
    %v2330 = vld [vmem:[#allocation8 + $0xe60] sm:$0xff]
    %v2331 = vld [vmem:[#allocation8 + $0xe68] sm:$0xff]
    %v2332 = vld [vmem:[#allocation8 + $0xe70] sm:$0xff]
    %v2333 = vld [vmem:[#allocation8 + $0xe78] sm:$0xff]
    %v2334 = vld [vmem:[#allocation8 + $0xe80] sm:$0xff]
    %v2335 = vld [vmem:[#allocation8 + $0xe88] sm:$0xff]
    %v2336 = vld [vmem:[#allocation8 + $0xe90] sm:$0xff]
    %v2337 = vld [vmem:[#allocation8 + $0xe98] sm:$0xff]
    %v2338 = vld [vmem:[#allocation8 + $0xea0] sm:$0xff]
    %v2339 = vld [vmem:[#allocation8 + $0xea8] sm:$0xff]
    %v2340 = vld [vmem:[#allocation8 + $0xeb0] sm:$0xff]
    %v2341 = vld [vmem:[#allocation8 + $0xeb8] sm:$0xff]
    %v2342 = vld [vmem:[#allocation8 + $0xec0] sm:$0xff]
    %v2343 = vld [vmem:[#allocation8 + $0xec8] sm:$0xff]
    %v2344 = vld [vmem:[#allocation8 + $0xed0] sm:$0xff]
    %v2345 = vld [vmem:[#allocation8 + $0xed8] sm:$0xff]
    %v2346 = vld [vmem:[#allocation8 + $0xee0] sm:$0xff]
    %v2347 = vld [vmem:[#allocation8 + $0xee8] sm:$0xff]
    %v2348 = vld [vmem:[#allocation8 + $0xef0] sm:$0xff]
    %v2349 = vld [vmem:[#allocation8 + $0xef8] sm:$0xff]
    %v2350 = vld [vmem:[#allocation8 + $0xf00] sm:$0xff]
    %v2351 = vld [vmem:[#allocation8 + $0xf08] sm:$0xff]
    %v2352 = vld [vmem:[#allocation8 + $0xf10] sm:$0xff]
    %v2353 = vld [vmem:[#allocation8 + $0xf18] sm:$0xff]
    %v2354 = vld [vmem:[#allocation8 + $0xf20] sm:$0xff]
    %v2355 = vld [vmem:[#allocation8 + $0xf28] sm:$0xff]
    %v2356 = vld [vmem:[#allocation8 + $0xf30] sm:$0xff]
    %v2357 = vld [vmem:[#allocation8 + $0xf38] sm:$0xff]
    %v2358 = vld [vmem:[#allocation8 + $0xf40] sm:$0xff]
    %v2359 = vld [vmem:[#allocation8 + $0xf48] sm:$0xff]
    %v2360 = vld [vmem:[#allocation8 + $0xf50] sm:$0xff]
    %v2361 = vld [vmem:[#allocation8 + $0xf58] sm:$0xff]
    %v2362 = vld [vmem:[#allocation8 + $0xf60] sm:$0xff]
    %v2363 = vld [vmem:[#allocation8 + $0xf68] sm:$0xff]
    %v2364 = vld [vmem:[#allocation8 + $0xf70] sm:$0xff]
    %v2365 = vld [vmem:[#allocation8 + $0xf78] sm:$0xff]
    %v2366 = vld [vmem:[#allocation8 + $0xf80] sm:$0xff]
    %v2367 = vld [vmem:[#allocation8 + $0xf88] sm:$0xff]
    %v2368 = vld [vmem:[#allocation8 + $0xf90] sm:$0xff]
    %v2369 = vld [vmem:[#allocation8 + $0xf98] sm:$0xff]
    %v2370 = vld [vmem:[#allocation8 + $0xfa0] sm:$0xff]
    %v2371 = vld [vmem:[#allocation8 + $0xfa8] sm:$0xff]
    %v2372 = vld [vmem:[#allocation8 + $0xfb0] sm:$0xff]
    %v2373 = vld [vmem:[#allocation8 + $0xfb8] sm:$0xff]
    %v2374 = vld [vmem:[#allocation8 + $0xfc0] sm:$0xff]
    %v2375 = vld [vmem:[#allocation8 + $0xfc8] sm:$0xff]
    %v2376 = vld [vmem:[#allocation8 + $0xfd0] sm:$0xff]
    %v2377 = vld [vmem:[#allocation8 + $0xfd8] sm:$0xff]
    %v2378 = vld [vmem:[#allocation8 + $0xfe0] sm:$0xff]
    %v2379 = vld [vmem:[#allocation8 + $0xfe8] sm:$0xff]
    %v2380 = vld [vmem:[#allocation8 + $0xff0] sm:$0xff]
    %v2381 = vld [vmem:[#allocation8 + $0xff8] sm:$0xff]
    %v2382 = vld [vmem:[#allocation8 + $0x1000] sm:$0xff]
    %v2383 = vld [vmem:[#allocation8 + $0x1008] sm:$0xff]
    %v2384 = vld [vmem:[#allocation8 + $0x1010] sm:$0xff]
    %v2385 = vld [vmem:[#allocation8 + $0x1018] sm:$0xff]
    %v2386 = vld [vmem:[#allocation8 + $0x1020] sm:$0xff]
    %v2387 = vld [vmem:[#allocation8 + $0x1028] sm:$0xff]
    %v2388 = vld [vmem:[#allocation8 + $0x1030] sm:$0xff]
    %v2389 = vld [vmem:[#allocation8 + $0x1038] sm:$0xff]
    %v2390 = vld [vmem:[#allocation8 + $0x1040] sm:$0xff]
    %v2391 = vld [vmem:[#allocation8 + $0x1048] sm:$0xff]
    %v2392 = vld [vmem:[#allocation8 + $0x1050] sm:$0xff]
    %v2393 = vld [vmem:[#allocation8 + $0x1058] sm:$0xff]
    %v2394 = vld [vmem:[#allocation8 + $0x1060] sm:$0xff]
    %v2395 = vld [vmem:[#allocation8 + $0x1068] sm:$0xff]
    %v2396 = vld [vmem:[#allocation8 + $0x1070] sm:$0xff]
    %v2397 = vld [vmem:[#allocation8 + $0x1078] sm:$0xff]
    %v2398 = vld [vmem:[#allocation8 + $0x1080] sm:$0xff]
    %v2399 = vld [vmem:[#allocation8 + $0x1088] sm:$0xff]
    %v2400 = vld [vmem:[#allocation8 + $0x1090] sm:$0xff]
    %v2401 = vld [vmem:[#allocation8 + $0x1098] sm:$0xff]
    %v2402 = vld [vmem:[#allocation8 + $0x10a0] sm:$0xff]
    %v2403 = vld [vmem:[#allocation8 + $0x10a8] sm:$0xff]
    %v2404 = vld [vmem:[#allocation8 + $0x10b0] sm:$0xff]
    %v2405 = vld [vmem:[#allocation8 + $0x10b8] sm:$0xff]
    %v2406 = vld [vmem:[#allocation8 + $0x10c0] sm:$0xff]
    %v2407 = vld [vmem:[#allocation8 + $0x10c8] sm:$0xff]
    %v2408 = vld [vmem:[#allocation8 + $0x10d0] sm:$0xff]
    %v2409 = vld [vmem:[#allocation8 + $0x10d8] sm:$0xff]
    %v2410 = vld [vmem:[#allocation8 + $0x10e0] sm:$0xff]
    %v2411 = vld [vmem:[#allocation8 + $0x10e8] sm:$0xff]
    %v2412 = vld [vmem:[#allocation8 + $0x10f0] sm:$0xff]
    %v2413 = vld [vmem:[#allocation8 + $0x10f8] sm:$0xff]
    %v2414 = vld [vmem:[#allocation8 + $0x1100] sm:$0xff]
    %v2415 = vld [vmem:[#allocation8 + $0x1108] sm:$0xff]
    %v2416 = vld [vmem:[#allocation8 + $0x1110] sm:$0xff]
    %v2417 = vld [vmem:[#allocation8 + $0x1118] sm:$0xff]
    %v2418 = vld [vmem:[#allocation8 + $0x1120] sm:$0xff]
    %v2419 = vld [vmem:[#allocation8 + $0x1128] sm:$0xff]
    %v2420 = vld [vmem:[#allocation8 + $0x1130] sm:$0xff]
    %v2421 = vld [vmem:[#allocation8 + $0x1138] sm:$0xff]
    %v2422 = vld [vmem:[#allocation8 + $0x1140] sm:$0xff]
    %v2423 = vld [vmem:[#allocation8 + $0x1148] sm:$0xff]
    %v2424 = vld [vmem:[#allocation8 + $0x1150] sm:$0xff]
    %v2425 = vld [vmem:[#allocation8 + $0x1158] sm:$0xff]
    %v2426 = vld [vmem:[#allocation8 + $0x1160] sm:$0xff]
    %v2427 = vld [vmem:[#allocation8 + $0x1168] sm:$0xff]
    %v2428 = vld [vmem:[#allocation8 + $0x1170] sm:$0xff]
    %v2429 = vld [vmem:[#allocation8 + $0x1178] sm:$0xff]
    %v2430 = vld [vmem:[#allocation8 + $0x1180] sm:$0xff]
    %v2431 = vld [vmem:[#allocation8 + $0x1188] sm:$0xff]
    %v2432 = vld [vmem:[#allocation8 + $0x1190] sm:$0xff]
    %v2433 = vld [vmem:[#allocation8 + $0x1198] sm:$0xff]
    %v2434 = vld [vmem:[#allocation8 + $0x11a0] sm:$0xff]
    %v2435 = vld [vmem:[#allocation8 + $0x11a8] sm:$0xff]
    %v2436 = vld [vmem:[#allocation8 + $0x11b0] sm:$0xff]
    %v2437 = vld [vmem:[#allocation8 + $0x11b8] sm:$0xff]
    %v2438 = vld [vmem:[#allocation8 + $0x11c0] sm:$0xff]
    %v2439 = vld [vmem:[#allocation8 + $0x11c8] sm:$0xff]
    %v2440 = vld [vmem:[#allocation8 + $0x11d0] sm:$0xff]
    %v2441 = vld [vmem:[#allocation8 + $0x11d8] sm:$0xff]
    %v2442 = vld [vmem:[#allocation8 + $0x11e0] sm:$0xff]
    %v2443 = vld [vmem:[#allocation8 + $0x11e8] sm:$0xff]
    %v2444 = vld [vmem:[#allocation8 + $0x11f0] sm:$0xff]
    %v2445 = vld [vmem:[#allocation8 + $0x11f8] sm:$0xff]
    %v2446 = vld [vmem:[#allocation8 + $0x1200] sm:$0xff]
    %v2447 = vld [vmem:[#allocation8 + $0x1208] sm:$0xff]
    %v2448 = vld [vmem:[#allocation8 + $0x1210] sm:$0xff]
    %v2449 = vld [vmem:[#allocation8 + $0x1218] sm:$0xff]
    %v2450 = vld [vmem:[#allocation8 + $0x1220] sm:$0xff]
    %v2451 = vld [vmem:[#allocation8 + $0x1228] sm:$0xff]
    %v2452 = vld [vmem:[#allocation8 + $0x1230] sm:$0xff]
    %v2453 = vld [vmem:[#allocation8 + $0x1238] sm:$0xff]
    %v2454 = vld [vmem:[#allocation8 + $0x1240] sm:$0xff]
    %v2455 = vld [vmem:[#allocation8 + $0x1248] sm:$0xff]
    %v2456 = vld [vmem:[#allocation8 + $0x1250] sm:$0xff]
    %v2457 = vld [vmem:[#allocation8 + $0x1258] sm:$0xff]
    %v2458 = vld [vmem:[#allocation8 + $0x1260] sm:$0xff]
    %v2459 = vld [vmem:[#allocation8 + $0x1268] sm:$0xff]
    %v2460 = vld [vmem:[#allocation8 + $0x1270] sm:$0xff]
    %v2461 = vld [vmem:[#allocation8 + $0x1278] sm:$0xff]
    %v2462 = vld [vmem:[#allocation8 + $0x1280] sm:$0xff]
    %v2463 = vld [vmem:[#allocation8 + $0x1288] sm:$0xff]
    %v2464 = vld [vmem:[#allocation8 + $0x1290] sm:$0xff]
    %v2465 = vld [vmem:[#allocation8 + $0x1298] sm:$0xff]
    %v2466 = vld [vmem:[#allocation8 + $0x12a0] sm:$0xff]
    %v2467 = vld [vmem:[#allocation8 + $0x12a8] sm:$0xff]
    %v2468 = vld [vmem:[#allocation8 + $0x12b0] sm:$0xff]
    %v2469 = vld [vmem:[#allocation8 + $0x12b8] sm:$0xff]
    %v2470 = vld [vmem:[#allocation8 + $0x12c0] sm:$0xff]
    %v2471 = vld [vmem:[#allocation8 + $0x12c8] sm:$0xff]
    %v2472 = vld [vmem:[#allocation8 + $0x12d0] sm:$0xff]
    %v2473 = vld [vmem:[#allocation8 + $0x12d8] sm:$0xff]
    %v2474 = vld [vmem:[#allocation8 + $0x12e0] sm:$0xff]
    %v2475 = vld [vmem:[#allocation8 + $0x12e8] sm:$0xff]
    %v2476 = vld [vmem:[#allocation8 + $0x12f0] sm:$0xff]
    %v2477 = vld [vmem:[#allocation8 + $0x12f8] sm:$0xff]
    %v2478 = vld [vmem:[#allocation8 + $0x1300] sm:$0xff]
    %v2479 = vld [vmem:[#allocation8 + $0x1308] sm:$0xff]
    %v2480 = vld [vmem:[#allocation8 + $0x1310] sm:$0xff]
    %v2481 = vld [vmem:[#allocation8 + $0x1318] sm:$0xff]
    %v2482 = vld [vmem:[#allocation8 + $0x1320] sm:$0xff]
    %v2483 = vld [vmem:[#allocation8 + $0x1328] sm:$0xff]
    %v2484 = vld [vmem:[#allocation8 + $0x1330] sm:$0xff]
    %v2485 = vld [vmem:[#allocation8 + $0x1338] sm:$0xff]
    %v2486 = vld [vmem:[#allocation8 + $0x1340] sm:$0xff]
    %v2487 = vld [vmem:[#allocation8 + $0x1348] sm:$0xff]
    %v2488 = vld [vmem:[#allocation8 + $0x1350] sm:$0xff]
    %v2489 = vld [vmem:[#allocation8 + $0x1358] sm:$0xff]
    %v2490 = vld [vmem:[#allocation8 + $0x1360] sm:$0xff]
    %v2491 = vld [vmem:[#allocation8 + $0x1368] sm:$0xff]
    %v2492 = vld [vmem:[#allocation8 + $0x1370] sm:$0xff]
    %v2493 = vld [vmem:[#allocation8 + $0x1378] sm:$0xff]
    %v2494 = vld [vmem:[#allocation8 + $0x1380] sm:$0xff]
    %v2495 = vld [vmem:[#allocation8 + $0x1388] sm:$0xff]
    %v2496 = vld [vmem:[#allocation8 + $0x1390] sm:$0xff]
    %v2497 = vld [vmem:[#allocation8 + $0x1398] sm:$0xff]
    %v2498 = vld [vmem:[#allocation8 + $0x13a0] sm:$0xff]
    %v2499 = vld [vmem:[#allocation8 + $0x13a8] sm:$0xff]
    %v2500 = vld [vmem:[#allocation8 + $0x13b0] sm:$0xff]
    %v2501 = vld [vmem:[#allocation8 + $0x13b8] sm:$0xff]
    %v2502 = vld [vmem:[#allocation8 + $0x13c0] sm:$0xff]
    %v2503 = vld [vmem:[#allocation8 + $0x13c8] sm:$0xff]
    %v2504 = vld [vmem:[#allocation8 + $0x13d0] sm:$0xff]
    %v2505 = vld [vmem:[#allocation8 + $0x13d8] sm:$0xff]
    %v2506 = vld [vmem:[#allocation8 + $0x13e0] sm:$0xff]
    %v2507 = vld [vmem:[#allocation8 + $0x13e8] sm:$0xff]
    %v2508 = vld [vmem:[#allocation8 + $0x13f0] sm:$0xff]
    %v2509 = vld [vmem:[#allocation8 + $0x13f8] sm:$0xff]
    %v2510 = vld [vmem:[#allocation8 + $0x1400] sm:$0xff]
    %v2511 = vld [vmem:[#allocation8 + $0x1408] sm:$0xff]
    %v2512 = vld [vmem:[#allocation8 + $0x1410] sm:$0xff]
    %v2513 = vld [vmem:[#allocation8 + $0x1418] sm:$0xff]
    %v2514 = vld [vmem:[#allocation8 + $0x1420] sm:$0xff]
    %v2515 = vld [vmem:[#allocation8 + $0x1428] sm:$0xff]
    %v2516 = vld [vmem:[#allocation8 + $0x1430] sm:$0xff]
    %v2517 = vld [vmem:[#allocation8 + $0x1438] sm:$0xff]
    %v2518 = vld [vmem:[#allocation8 + $0x1440] sm:$0xff]
    %v2519 = vld [vmem:[#allocation8 + $0x1448] sm:$0xff]
    %v2520 = vld [vmem:[#allocation8 + $0x1450] sm:$0xff]
    %v2521 = vld [vmem:[#allocation8 + $0x1458] sm:$0xff]
    %v2522 = vld [vmem:[#allocation8 + $0x1460] sm:$0xff]
    %v2523 = vld [vmem:[#allocation8 + $0x1468] sm:$0xff]
    %v2524 = vld [vmem:[#allocation8 + $0x1470] sm:$0xff]
    %v2525 = vld [vmem:[#allocation8 + $0x1478] sm:$0xff]
    %v2526 = vld [vmem:[#allocation8 + $0x1480] sm:$0xff]
    %v2527 = vld [vmem:[#allocation8 + $0x1488] sm:$0xff]
    %v2528 = vld [vmem:[#allocation8 + $0x1490] sm:$0xff]
    %v2529 = vld [vmem:[#allocation8 + $0x1498] sm:$0xff]
    %v2530 = vld [vmem:[#allocation8 + $0x14a0] sm:$0xff]
    %v2531 = vld [vmem:[#allocation8 + $0x14a8] sm:$0xff]
    %v2532 = vld [vmem:[#allocation8 + $0x14b0] sm:$0xff]
    %v2533 = vld [vmem:[#allocation8 + $0x14b8] sm:$0xff]
    %v2534 = vld [vmem:[#allocation8 + $0x14c0] sm:$0xff]
    %v2535 = vld [vmem:[#allocation8 + $0x14c8] sm:$0xff]
    %v2536 = vld [vmem:[#allocation8 + $0x14d0] sm:$0xff]
    %v2537 = vld [vmem:[#allocation8 + $0x14d8] sm:$0xff]
    %v2538 = vld [vmem:[#allocation8 + $0x14e0] sm:$0xff]
    %v2539 = vld [vmem:[#allocation8 + $0x14e8] sm:$0xff]
    %v2540 = vld [vmem:[#allocation8 + $0x14f0] sm:$0xff]
    %v2541 = vld [vmem:[#allocation8 + $0x14f8] sm:$0xff]
    %v2542 = vld [vmem:[#allocation8 + $0x1500] sm:$0xff]
    %v2543 = vld [vmem:[#allocation8 + $0x1508] sm:$0xff]
    %v2544 = vld [vmem:[#allocation8 + $0x1510] sm:$0xff]
    %v2545 = vld [vmem:[#allocation8 + $0x1518] sm:$0xff]
    %v2546 = vld [vmem:[#allocation8 + $0x1520] sm:$0xff]
    %v2547 = vld [vmem:[#allocation8 + $0x1528] sm:$0xff]
    %v2548 = vld [vmem:[#allocation8 + $0x1530] sm:$0xff]
    %v2549 = vld [vmem:[#allocation8 + $0x1538] sm:$0xff]
    %v2550 = vld [vmem:[#allocation8 + $0x1540] sm:$0xff]
    %v2551 = vld [vmem:[#allocation8 + $0x1548] sm:$0xff]
    %v2552 = vld [vmem:[#allocation8 + $0x1550] sm:$0xff]
    %v2553 = vld [vmem:[#allocation8 + $0x1558] sm:$0xff]
    %v2554 = vld [vmem:[#allocation8 + $0x1560] sm:$0xff]
    %v2555 = vld [vmem:[#allocation8 + $0x1568] sm:$0xff]
    %v2556 = vld [vmem:[#allocation8 + $0x1570] sm:$0xff]
    %v2557 = vld [vmem:[#allocation8 + $0x1578] sm:$0xff]
    %v2558 = vld [vmem:[#allocation8 + $0x1580] sm:$0xff]
    %v2559 = vld [vmem:[#allocation8 + $0x1588] sm:$0xff]
    %v2560 = vld [vmem:[#allocation8 + $0x1590] sm:$0xff]
    %v2561 = vld [vmem:[#allocation8 + $0x1598] sm:$0xff]
    %v2562 = vld [vmem:[#allocation8 + $0x15a0] sm:$0xff]
    %v2563 = vld [vmem:[#allocation8 + $0x15a8] sm:$0xff]
    %v2564 = vld [vmem:[#allocation8 + $0x15b0] sm:$0xff]
    %v2565 = vld [vmem:[#allocation8 + $0x15b8] sm:$0xff]
    %v2566 = vld [vmem:[#allocation8 + $0x15c0] sm:$0xff]
    %v2567 = vld [vmem:[#allocation8 + $0x15c8] sm:$0xff]
    %v2568 = vld [vmem:[#allocation8 + $0x15d0] sm:$0xff]
    %v2569 = vld [vmem:[#allocation8 + $0x15d8] sm:$0xff]
    %v2570 = vld [vmem:[#allocation8 + $0x15e0] sm:$0xff]
    %v2571 = vld [vmem:[#allocation8 + $0x15e8] sm:$0xff]
    %v2572 = vld [vmem:[#allocation8 + $0x15f0] sm:$0xff]
    %v2573 = vld [vmem:[#allocation8 + $0x15f8] sm:$0xff]
    %v2574 = vld [vmem:[#allocation8 + $0x1600] sm:$0xff]
    %v2575 = vld [vmem:[#allocation8 + $0x1608] sm:$0xff]
    %v2576 = vld [vmem:[#allocation8 + $0x1610] sm:$0xff]
    %v2577 = vld [vmem:[#allocation8 + $0x1618] sm:$0xff]
    %v2578 = vld [vmem:[#allocation8 + $0x1620] sm:$0xff]
    %v2579 = vld [vmem:[#allocation8 + $0x1628] sm:$0xff]
    %v2580 = vld [vmem:[#allocation8 + $0x1630] sm:$0xff]
    %v2581 = vld [vmem:[#allocation8 + $0x1638] sm:$0xff]
    %v2582 = vld [vmem:[#allocation8 + $0x1640] sm:$0xff]
    %v2583 = vld [vmem:[#allocation8 + $0x1648] sm:$0xff]
    %v2584 = vld [vmem:[#allocation8 + $0x1650] sm:$0xff]
    %v2585 = vld [vmem:[#allocation8 + $0x1658] sm:$0xff]
    %v2586 = vld [vmem:[#allocation8 + $0x1660] sm:$0xff]
    %v2587 = vld [vmem:[#allocation8 + $0x1668] sm:$0xff]
    %v2588 = vld [vmem:[#allocation8 + $0x1670] sm:$0xff]
    %v2589 = vld [vmem:[#allocation8 + $0x1678] sm:$0xff]
    %v2590 = vld [vmem:[#allocation8 + $0x1680] sm:$0xff]
    %v2591 = vld [vmem:[#allocation8 + $0x1688] sm:$0xff]
    %v2592 = vld [vmem:[#allocation8 + $0x1690] sm:$0xff]
    %v2593 = vld [vmem:[#allocation8 + $0x1698] sm:$0xff]
    %v2594 = vld [vmem:[#allocation8 + $0x16a0] sm:$0xff]
    %v2595 = vld [vmem:[#allocation8 + $0x16a8] sm:$0xff]
    %v2596 = vld [vmem:[#allocation8 + $0x16b0] sm:$0xff]
    %v2597 = vld [vmem:[#allocation8 + $0x16b8] sm:$0xff]
    %v2598 = vld [vmem:[#allocation8 + $0x16c0] sm:$0xff]
    %v2599 = vld [vmem:[#allocation8 + $0x16c8] sm:$0xff]
    %v2600 = vld [vmem:[#allocation8 + $0x16d0] sm:$0xff]
    %v2601 = vld [vmem:[#allocation8 + $0x16d8] sm:$0xff]
    %v2602 = vld [vmem:[#allocation8 + $0x16e0] sm:$0xff]
    %v2603 = vld [vmem:[#allocation8 + $0x16e8] sm:$0xff]
    %v2604 = vld [vmem:[#allocation8 + $0x16f0] sm:$0xff]
    %v2605 = vld [vmem:[#allocation8 + $0x16f8] sm:$0xff]
    %v2606 = vld [vmem:[#allocation8 + $0x1700] sm:$0xff]
    %v2607 = vld [vmem:[#allocation8 + $0x1708] sm:$0xff]
    %v2608 = vld [vmem:[#allocation8 + $0x1710] sm:$0xff]
    %v2609 = vld [vmem:[#allocation8 + $0x1718] sm:$0xff]
    %v2610 = vld [vmem:[#allocation8 + $0x1720] sm:$0xff]
    %v2611 = vld [vmem:[#allocation8 + $0x1728] sm:$0xff]
    %v2612 = vld [vmem:[#allocation8 + $0x1730] sm:$0xff]
    %v2613 = vld [vmem:[#allocation8 + $0x1738] sm:$0xff]
    %v2614 = vld [vmem:[#allocation8 + $0x1740] sm:$0xff]
    %v2615 = vld [vmem:[#allocation8 + $0x1748] sm:$0xff]
    %v2616 = vld [vmem:[#allocation8 + $0x1750] sm:$0xff]
    %v2617 = vld [vmem:[#allocation8 + $0x1758] sm:$0xff]
    %v2618 = vld [vmem:[#allocation8 + $0x1760] sm:$0xff]
    %v2619 = vld [vmem:[#allocation8 + $0x1768] sm:$0xff]
    %v2620 = vld [vmem:[#allocation8 + $0x1770] sm:$0xff]
    %v2621 = vld [vmem:[#allocation8 + $0x1778] sm:$0xff]
    %v2622 = vld [vmem:[#allocation8 + $0x1780] sm:$0xff]
    %v2623 = vld [vmem:[#allocation8 + $0x1788] sm:$0xff]
    %v2624 = vld [vmem:[#allocation8 + $0x1790] sm:$0xff]
    %v2625 = vld [vmem:[#allocation8 + $0x1798] sm:$0xff]
    %v2626 = vld [vmem:[#allocation8 + $0x17a0] sm:$0xff]
    %v2627 = vld [vmem:[#allocation8 + $0x17a8] sm:$0xff]
    %v2628 = vld [vmem:[#allocation8 + $0x17b0] sm:$0xff]
    %v2629 = vld [vmem:[#allocation8 + $0x17b8] sm:$0xff]
    %v2630 = vld [vmem:[#allocation8 + $0x17c0] sm:$0xff]
    %v2631 = vld [vmem:[#allocation8 + $0x17c8] sm:$0xff]
    %v2632 = vld [vmem:[#allocation8 + $0x17d0] sm:$0xff]
    %v2633 = vld [vmem:[#allocation8 + $0x17d8] sm:$0xff]
    %v2634 = vld [vmem:[#allocation8 + $0x17e0] sm:$0xff]
    %v2635 = vld [vmem:[#allocation8 + $0x17e8] sm:$0xff]
    %v2636 = vld [vmem:[#allocation8 + $0x17f0] sm:$0xff]
    %v2637 = vld [vmem:[#allocation8 + $0x17f8] sm:$0xff]
    %v2638 = vld [vmem:[#allocation8 + $0x1800] sm:$0xff]
    %v2639 = vld [vmem:[#allocation8 + $0x1808] sm:$0xff]
    %v2640 = vld [vmem:[#allocation8 + $0x1810] sm:$0xff]
    %v2641 = vld [vmem:[#allocation8 + $0x1818] sm:$0xff]
    %v2642 = vld [vmem:[#allocation8 + $0x1820] sm:$0xff]
    %v2643 = vld [vmem:[#allocation8 + $0x1828] sm:$0xff]
    %v2644 = vld [vmem:[#allocation8 + $0x1830] sm:$0xff]
    %v2645 = vld [vmem:[#allocation8 + $0x1838] sm:$0xff]
    %v2646 = vld [vmem:[#allocation8 + $0x1840] sm:$0xff]
    %v2647 = vld [vmem:[#allocation8 + $0x1848] sm:$0xff]
    %v2648 = vld [vmem:[#allocation8 + $0x1850] sm:$0xff]
    %v2649 = vld [vmem:[#allocation8 + $0x1858] sm:$0xff]
    %v2650 = vld [vmem:[#allocation8 + $0x1860] sm:$0xff]
    %v2651 = vld [vmem:[#allocation8 + $0x1868] sm:$0xff]
    %v2652 = vld [vmem:[#allocation8 + $0x1870] sm:$0xff]
    %v2653 = vld [vmem:[#allocation8 + $0x1878] sm:$0xff]
    %v2654 = vld [vmem:[#allocation8 + $0x1880] sm:$0xff]
    %v2655 = vld [vmem:[#allocation8 + $0x1888] sm:$0xff]
    %v2656 = vld [vmem:[#allocation8 + $0x1890] sm:$0xff]
    %v2657 = vld [vmem:[#allocation8 + $0x1898] sm:$0xff]
    %v2658 = vld [vmem:[#allocation8 + $0x18a0] sm:$0xff]
    %v2659 = vld [vmem:[#allocation8 + $0x18a8] sm:$0xff]
    %v2660 = vld [vmem:[#allocation8 + $0x18b0] sm:$0xff]
    %v2661 = vld [vmem:[#allocation8 + $0x18b8] sm:$0xff]
    %v2662 = vld [vmem:[#allocation8 + $0x18c0] sm:$0xff]
    %v2663 = vld [vmem:[#allocation8 + $0x18c8] sm:$0xff]
    %v2664 = vld [vmem:[#allocation8 + $0x18d0] sm:$0xff]
    %v2665 = vld [vmem:[#allocation8 + $0x18d8] sm:$0xff]
    %v2666 = vld [vmem:[#allocation8 + $0x18e0] sm:$0xff]
    %v2667 = vld [vmem:[#allocation8 + $0x18e8] sm:$0xff]
    %v2668 = vld [vmem:[#allocation8 + $0x18f0] sm:$0xff]
    %v2669 = vld [vmem:[#allocation8 + $0x18f8] sm:$0xff]
    %v3470 = vunpack.c.l.b16 %v1870
    %v3471 = vunpack.c.h.b16 %v1870
    %v3472 = vunpack.c.l.b16 %v1871
    %v3473 = vunpack.c.h.b16 %v1871
    %v3474 = vunpack.c.l.b16 %v1872
    %v3475 = vunpack.c.h.b16 %v1872
    %v3476 = vunpack.c.l.b16 %v1873
    %v3477 = vunpack.c.h.b16 %v1873
    %v3478 = vunpack.c.l.b16 %v1874
    %v3479 = vunpack.c.h.b16 %v1874
    %v3480 = vunpack.c.l.b16 %v1875
    %v3481 = vunpack.c.h.b16 %v1875
    %v3482 = vunpack.c.l.b16 %v1876
    %v3483 = vunpack.c.h.b16 %v1876
    %v3484 = vunpack.c.l.b16 %v1877
    %v3485 = vunpack.c.h.b16 %v1877
    %v3486 = vunpack.c.l.b16 %v1878
    %v3487 = vunpack.c.h.b16 %v1878
    %v3488 = vunpack.c.l.b16 %v1879
    %v3489 = vunpack.c.h.b16 %v1879
    %v3490 = vunpack.c.l.b16 %v1880
    %v3491 = vunpack.c.h.b16 %v1880
    %v3492 = vunpack.c.l.b16 %v1881
    %v3493 = vunpack.c.h.b16 %v1881
    %v3494 = vunpack.c.l.b16 %v1882
    %v3495 = vunpack.c.h.b16 %v1882
    %v3496 = vunpack.c.l.b16 %v1883
    %v3497 = vunpack.c.h.b16 %v1883
    %v3498 = vunpack.c.l.b16 %v1884
    %v3499 = vunpack.c.h.b16 %v1884
    %v3500 = vunpack.c.l.b16 %v1885
    %v3501 = vunpack.c.h.b16 %v1885
    %v3502 = vunpack.c.l.b16 %v1886
    %v3503 = vunpack.c.h.b16 %v1886
    %v3504 = vunpack.c.l.b16 %v1887
    %v3505 = vunpack.c.h.b16 %v1887
    %v3506 = vunpack.c.l.b16 %v1888
    %v3507 = vunpack.c.h.b16 %v1888
    %v3508 = vunpack.c.l.b16 %v1889
    %v3509 = vunpack.c.h.b16 %v1889
    %v3510 = vunpack.c.l.b16 %v1890
    %v3511 = vunpack.c.h.b16 %v1890
    %v3512 = vunpack.c.l.b16 %v1891
    %v3513 = vunpack.c.h.b16 %v1891
    %v3514 = vunpack.c.l.b16 %v1892
    %v3515 = vunpack.c.h.b16 %v1892
    %v3516 = vunpack.c.l.b16 %v1893
    %v3517 = vunpack.c.h.b16 %v1893
    %v3518 = vunpack.c.l.b16 %v1894
    %v3519 = vunpack.c.h.b16 %v1894
    %v3520 = vunpack.c.l.b16 %v1895
    %v3521 = vunpack.c.h.b16 %v1895
    %v3522 = vunpack.c.l.b16 %v1896
    %v3523 = vunpack.c.h.b16 %v1896
    %v3524 = vunpack.c.l.b16 %v1897
    %v3525 = vunpack.c.h.b16 %v1897
    %v3526 = vunpack.c.l.b16 %v1898
    %v3527 = vunpack.c.h.b16 %v1898
    %v3528 = vunpack.c.l.b16 %v1899
    %v3529 = vunpack.c.h.b16 %v1899
    %v3530 = vunpack.c.l.b16 %v1900
    %v3531 = vunpack.c.h.b16 %v1900
    %v3532 = vunpack.c.l.b16 %v1901
    %v3533 = vunpack.c.h.b16 %v1901
    %v3534 = vunpack.c.l.b16 %v1902
    %v3535 = vunpack.c.h.b16 %v1902
    %v3536 = vunpack.c.l.b16 %v1903
    %v3537 = vunpack.c.h.b16 %v1903
    %v3538 = vunpack.c.l.b16 %v1904
    %v3539 = vunpack.c.h.b16 %v1904
    %v3540 = vunpack.c.l.b16 %v1905
    %v3541 = vunpack.c.h.b16 %v1905
    %v3542 = vunpack.c.l.b16 %v1906
    %v3543 = vunpack.c.h.b16 %v1906
    %v3544 = vunpack.c.l.b16 %v1907
    %v3545 = vunpack.c.h.b16 %v1907
    %v3546 = vunpack.c.l.b16 %v1908
    %v3547 = vunpack.c.h.b16 %v1908
    %v3548 = vunpack.c.l.b16 %v1909
    %v3549 = vunpack.c.h.b16 %v1909
    %v3550 = vunpack.c.l.b16 %v1910
    %v3551 = vunpack.c.h.b16 %v1910
    %v3552 = vunpack.c.l.b16 %v1911
    %v3553 = vunpack.c.h.b16 %v1911
    %v3554 = vunpack.c.l.b16 %v1912
    %v3555 = vunpack.c.h.b16 %v1912
    %v3556 = vunpack.c.l.b16 %v1913
    %v3557 = vunpack.c.h.b16 %v1913
    %v3558 = vunpack.c.l.b16 %v1914
    %v3559 = vunpack.c.h.b16 %v1914
    %v3560 = vunpack.c.l.b16 %v1915
    %v3561 = vunpack.c.h.b16 %v1915
    %v3562 = vunpack.c.l.b16 %v1916
    %v3563 = vunpack.c.h.b16 %v1916
    %v3564 = vunpack.c.l.b16 %v1917
    %v3565 = vunpack.c.h.b16 %v1917
    %v3566 = vunpack.c.l.b16 %v1918
    %v3567 = vunpack.c.h.b16 %v1918
    %v3568 = vunpack.c.l.b16 %v1919
    %v3569 = vunpack.c.h.b16 %v1919
    %v3570 = vunpack.c.l.b16 %v1920
    %v3571 = vunpack.c.h.b16 %v1920
    %v3572 = vunpack.c.l.b16 %v1921
    %v3573 = vunpack.c.h.b16 %v1921
    %v3574 = vunpack.c.l.b16 %v1922
    %v3575 = vunpack.c.h.b16 %v1922
    %v3576 = vunpack.c.l.b16 %v1923
    %v3577 = vunpack.c.h.b16 %v1923
    %v3578 = vunpack.c.l.b16 %v1924
    %v3579 = vunpack.c.h.b16 %v1924
    %v3580 = vunpack.c.l.b16 %v1925
    %v3581 = vunpack.c.h.b16 %v1925
    %v3582 = vunpack.c.l.b16 %v1926
    %v3583 = vunpack.c.h.b16 %v1926
    %v3584 = vunpack.c.l.b16 %v1927
    %v3585 = vunpack.c.h.b16 %v1927
    %v3586 = vunpack.c.l.b16 %v1928
    %v3587 = vunpack.c.h.b16 %v1928
    %v3588 = vunpack.c.l.b16 %v1929
    %v3589 = vunpack.c.h.b16 %v1929
    %v3590 = vunpack.c.l.b16 %v1930
    %v3591 = vunpack.c.h.b16 %v1930
    %v3592 = vunpack.c.l.b16 %v1931
    %v3593 = vunpack.c.h.b16 %v1931
    %v3594 = vunpack.c.l.b16 %v1932
    %v3595 = vunpack.c.h.b16 %v1932
    %v3596 = vunpack.c.l.b16 %v1933
    %v3597 = vunpack.c.h.b16 %v1933
    %v3598 = vunpack.c.l.b16 %v1934
    %v3599 = vunpack.c.h.b16 %v1934
    %v3600 = vunpack.c.l.b16 %v1935
    %v3601 = vunpack.c.h.b16 %v1935
    %v3602 = vunpack.c.l.b16 %v1936
    %v3603 = vunpack.c.h.b16 %v1936
    %v3604 = vunpack.c.l.b16 %v1937
    %v3605 = vunpack.c.h.b16 %v1937
    %v3606 = vunpack.c.l.b16 %v1938
    %v3607 = vunpack.c.h.b16 %v1938
    %v3608 = vunpack.c.l.b16 %v1939
    %v3609 = vunpack.c.h.b16 %v1939
    %v3610 = vunpack.c.l.b16 %v1940
    %v3611 = vunpack.c.h.b16 %v1940
    %v3612 = vunpack.c.l.b16 %v1941
    %v3613 = vunpack.c.h.b16 %v1941
    %v3614 = vunpack.c.l.b16 %v1942
    %v3615 = vunpack.c.h.b16 %v1942
    %v3616 = vunpack.c.l.b16 %v1943
    %v3617 = vunpack.c.h.b16 %v1943
    %v3618 = vunpack.c.l.b16 %v1944
    %v3619 = vunpack.c.h.b16 %v1944
    %v3620 = vunpack.c.l.b16 %v1945
    %v3621 = vunpack.c.h.b16 %v1945
    %v3622 = vunpack.c.l.b16 %v1946
    %v3623 = vunpack.c.h.b16 %v1946
    %v3624 = vunpack.c.l.b16 %v1947
    %v3625 = vunpack.c.h.b16 %v1947
    %v3626 = vunpack.c.l.b16 %v1948
    %v3627 = vunpack.c.h.b16 %v1948
    %v3628 = vunpack.c.l.b16 %v1949
    %v3629 = vunpack.c.h.b16 %v1949
    %v3630 = vunpack.c.l.b16 %v1950
    %v3631 = vunpack.c.h.b16 %v1950
    %v3632 = vunpack.c.l.b16 %v1951
    %v3633 = vunpack.c.h.b16 %v1951
    %v3634 = vunpack.c.l.b16 %v1952
    %v3635 = vunpack.c.h.b16 %v1952
    %v3636 = vunpack.c.l.b16 %v1953
    %v3637 = vunpack.c.h.b16 %v1953
    %v3638 = vunpack.c.l.b16 %v1954
    %v3639 = vunpack.c.h.b16 %v1954
    %v3640 = vunpack.c.l.b16 %v1955
    %v3641 = vunpack.c.h.b16 %v1955
    %v3642 = vunpack.c.l.b16 %v1956
    %v3643 = vunpack.c.h.b16 %v1956
    %v3644 = vunpack.c.l.b16 %v1957
    %v3645 = vunpack.c.h.b16 %v1957
    %v3646 = vunpack.c.l.b16 %v1958
    %v3647 = vunpack.c.h.b16 %v1958
    %v3648 = vunpack.c.l.b16 %v1959
    %v3649 = vunpack.c.h.b16 %v1959
    %v3650 = vunpack.c.l.b16 %v1960
    %v3651 = vunpack.c.h.b16 %v1960
    %v3652 = vunpack.c.l.b16 %v1961
    %v3653 = vunpack.c.h.b16 %v1961
    %v3654 = vunpack.c.l.b16 %v1962
    %v3655 = vunpack.c.h.b16 %v1962
    %v3656 = vunpack.c.l.b16 %v1963
    %v3657 = vunpack.c.h.b16 %v1963
    %v3658 = vunpack.c.l.b16 %v1964
    %v3659 = vunpack.c.h.b16 %v1964
    %v3660 = vunpack.c.l.b16 %v1965
    %v3661 = vunpack.c.h.b16 %v1965
    %v3662 = vunpack.c.l.b16 %v1966
    %v3663 = vunpack.c.h.b16 %v1966
    %v3664 = vunpack.c.l.b16 %v1967
    %v3665 = vunpack.c.h.b16 %v1967
    %v3666 = vunpack.c.l.b16 %v1968
    %v3667 = vunpack.c.h.b16 %v1968
    %v3668 = vunpack.c.l.b16 %v1969
    %v3669 = vunpack.c.h.b16 %v1969
    %v3670 = vunpack.c.l.b16 %v1970
    %v3671 = vunpack.c.h.b16 %v1970
    %v3672 = vunpack.c.l.b16 %v1971
    %v3673 = vunpack.c.h.b16 %v1971
    %v3674 = vunpack.c.l.b16 %v1972
    %v3675 = vunpack.c.h.b16 %v1972
    %v3676 = vunpack.c.l.b16 %v1973
    %v3677 = vunpack.c.h.b16 %v1973
    %v3678 = vunpack.c.l.b16 %v1974
    %v3679 = vunpack.c.h.b16 %v1974
    %v3680 = vunpack.c.l.b16 %v1975
    %v3681 = vunpack.c.h.b16 %v1975
    %v3682 = vunpack.c.l.b16 %v1976
    %v3683 = vunpack.c.h.b16 %v1976
    %v3684 = vunpack.c.l.b16 %v1977
    %v3685 = vunpack.c.h.b16 %v1977
    %v3686 = vunpack.c.l.b16 %v1978
    %v3687 = vunpack.c.h.b16 %v1978
    %v3688 = vunpack.c.l.b16 %v1979
    %v3689 = vunpack.c.h.b16 %v1979
    %v3690 = vunpack.c.l.b16 %v1980
    %v3691 = vunpack.c.h.b16 %v1980
    %v3692 = vunpack.c.l.b16 %v1981
    %v3693 = vunpack.c.h.b16 %v1981
    %v3694 = vunpack.c.l.b16 %v1982
    %v3695 = vunpack.c.h.b16 %v1982
    %v3696 = vunpack.c.l.b16 %v1983
    %v3697 = vunpack.c.h.b16 %v1983
    %v3698 = vunpack.c.l.b16 %v1984
    %v3699 = vunpack.c.h.b16 %v1984
    %v3700 = vunpack.c.l.b16 %v1985
    %v3701 = vunpack.c.h.b16 %v1985
    %v3702 = vunpack.c.l.b16 %v1986
    %v3703 = vunpack.c.h.b16 %v1986
    %v3704 = vunpack.c.l.b16 %v1987
    %v3705 = vunpack.c.h.b16 %v1987
    %v3706 = vunpack.c.l.b16 %v1988
    %v3707 = vunpack.c.h.b16 %v1988
    %v3708 = vunpack.c.l.b16 %v1989
    %v3709 = vunpack.c.h.b16 %v1989
    %v3710 = vunpack.c.l.b16 %v1990
    %v3711 = vunpack.c.h.b16 %v1990
    %v3712 = vunpack.c.l.b16 %v1991
    %v3713 = vunpack.c.h.b16 %v1991
    %v3714 = vunpack.c.l.b16 %v1992
    %v3715 = vunpack.c.h.b16 %v1992
    %v3716 = vunpack.c.l.b16 %v1993
    %v3717 = vunpack.c.h.b16 %v1993
    %v3718 = vunpack.c.l.b16 %v1994
    %v3719 = vunpack.c.h.b16 %v1994
    %v3720 = vunpack.c.l.b16 %v1995
    %v3721 = vunpack.c.h.b16 %v1995
    %v3722 = vunpack.c.l.b16 %v1996
    %v3723 = vunpack.c.h.b16 %v1996
    %v3724 = vunpack.c.l.b16 %v1997
    %v3725 = vunpack.c.h.b16 %v1997
    %v3726 = vunpack.c.l.b16 %v1998
    %v3727 = vunpack.c.h.b16 %v1998
    %v3728 = vunpack.c.l.b16 %v1999
    %v3729 = vunpack.c.h.b16 %v1999
    %v3730 = vunpack.c.l.b16 %v2000
    %v3731 = vunpack.c.h.b16 %v2000
    %v3732 = vunpack.c.l.b16 %v2001
    %v3733 = vunpack.c.h.b16 %v2001
    %v3734 = vunpack.c.l.b16 %v2002
    %v3735 = vunpack.c.h.b16 %v2002
    %v3736 = vunpack.c.l.b16 %v2003
    %v3737 = vunpack.c.h.b16 %v2003
    %v3738 = vunpack.c.l.b16 %v2004
    %v3739 = vunpack.c.h.b16 %v2004
    %v3740 = vunpack.c.l.b16 %v2005
    %v3741 = vunpack.c.h.b16 %v2005
    %v3742 = vunpack.c.l.b16 %v2006
    %v3743 = vunpack.c.h.b16 %v2006
    %v3744 = vunpack.c.l.b16 %v2007
    %v3745 = vunpack.c.h.b16 %v2007
    %v3746 = vunpack.c.l.b16 %v2008
    %v3747 = vunpack.c.h.b16 %v2008
    %v3748 = vunpack.c.l.b16 %v2009
    %v3749 = vunpack.c.h.b16 %v2009
    %v3750 = vunpack.c.l.b16 %v2010
    %v3751 = vunpack.c.h.b16 %v2010
    %v3752 = vunpack.c.l.b16 %v2011
    %v3753 = vunpack.c.h.b16 %v2011
    %v3754 = vunpack.c.l.b16 %v2012
    %v3755 = vunpack.c.h.b16 %v2012
    %v3756 = vunpack.c.l.b16 %v2013
    %v3757 = vunpack.c.h.b16 %v2013
    %v3758 = vunpack.c.l.b16 %v2014
    %v3759 = vunpack.c.h.b16 %v2014
    %v3760 = vunpack.c.l.b16 %v2015
    %v3761 = vunpack.c.h.b16 %v2015
    %v3762 = vunpack.c.l.b16 %v2016
    %v3763 = vunpack.c.h.b16 %v2016
    %v3764 = vunpack.c.l.b16 %v2017
    %v3765 = vunpack.c.h.b16 %v2017
    %v3766 = vunpack.c.l.b16 %v2018
    %v3767 = vunpack.c.h.b16 %v2018
    %v3768 = vunpack.c.l.b16 %v2019
    %v3769 = vunpack.c.h.b16 %v2019
    %v3770 = vunpack.c.l.b16 %v2020
    %v3771 = vunpack.c.h.b16 %v2020
    %v3772 = vunpack.c.l.b16 %v2021
    %v3773 = vunpack.c.h.b16 %v2021
    %v3774 = vunpack.c.l.b16 %v2022
    %v3775 = vunpack.c.h.b16 %v2022
    %v3776 = vunpack.c.l.b16 %v2023
    %v3777 = vunpack.c.h.b16 %v2023
    %v3778 = vunpack.c.l.b16 %v2024
    %v3779 = vunpack.c.h.b16 %v2024
    %v3780 = vunpack.c.l.b16 %v2025
    %v3781 = vunpack.c.h.b16 %v2025
    %v3782 = vunpack.c.l.b16 %v2026
    %v3783 = vunpack.c.h.b16 %v2026
    %v3784 = vunpack.c.l.b16 %v2027
    %v3785 = vunpack.c.h.b16 %v2027
    %v3786 = vunpack.c.l.b16 %v2028
    %v3787 = vunpack.c.h.b16 %v2028
    %v3788 = vunpack.c.l.b16 %v2029
    %v3789 = vunpack.c.h.b16 %v2029
    %v3790 = vunpack.c.l.b16 %v2030
    %v3791 = vunpack.c.h.b16 %v2030
    %v3792 = vunpack.c.l.b16 %v2031
    %v3793 = vunpack.c.h.b16 %v2031
    %v3794 = vunpack.c.l.b16 %v2032
    %v3795 = vunpack.c.h.b16 %v2032
    %v3796 = vunpack.c.l.b16 %v2033
    %v3797 = vunpack.c.h.b16 %v2033
    %v3798 = vunpack.c.l.b16 %v2034
    %v3799 = vunpack.c.h.b16 %v2034
    %v3800 = vunpack.c.l.b16 %v2035
    %v3801 = vunpack.c.h.b16 %v2035
    %v3802 = vunpack.c.l.b16 %v2036
    %v3803 = vunpack.c.h.b16 %v2036
    %v3804 = vunpack.c.l.b16 %v2037
    %v3805 = vunpack.c.h.b16 %v2037
    %v3806 = vunpack.c.l.b16 %v2038
    %v3807 = vunpack.c.h.b16 %v2038
    %v3808 = vunpack.c.l.b16 %v2039
    %v3809 = vunpack.c.h.b16 %v2039
    %v3810 = vunpack.c.l.b16 %v2040
    %v3811 = vunpack.c.h.b16 %v2040
    %v3812 = vunpack.c.l.b16 %v2041
    %v3813 = vunpack.c.h.b16 %v2041
    %v3814 = vunpack.c.l.b16 %v2042
    %v3815 = vunpack.c.h.b16 %v2042
    %v3816 = vunpack.c.l.b16 %v2043
    %v3817 = vunpack.c.h.b16 %v2043
    %v3818 = vunpack.c.l.b16 %v2044
    %v3819 = vunpack.c.h.b16 %v2044
    %v3820 = vunpack.c.l.b16 %v2045
    %v3821 = vunpack.c.h.b16 %v2045
    %v3822 = vunpack.c.l.b16 %v2046
    %v3823 = vunpack.c.h.b16 %v2046
    %v3824 = vunpack.c.l.b16 %v2047
    %v3825 = vunpack.c.h.b16 %v2047
    %v3826 = vunpack.c.l.b16 %v2048
    %v3827 = vunpack.c.h.b16 %v2048
    %v3828 = vunpack.c.l.b16 %v2049
    %v3829 = vunpack.c.h.b16 %v2049
    %v3830 = vunpack.c.l.b16 %v2050
    %v3831 = vunpack.c.h.b16 %v2050
    %v3832 = vunpack.c.l.b16 %v2051
    %v3833 = vunpack.c.h.b16 %v2051
    %v3834 = vunpack.c.l.b16 %v2052
    %v3835 = vunpack.c.h.b16 %v2052
    %v3836 = vunpack.c.l.b16 %v2053
    %v3837 = vunpack.c.h.b16 %v2053
    %v3838 = vunpack.c.l.b16 %v2054
    %v3839 = vunpack.c.h.b16 %v2054
    %v3840 = vunpack.c.l.b16 %v2055
    %v3841 = vunpack.c.h.b16 %v2055
    %v3842 = vunpack.c.l.b16 %v2056
    %v3843 = vunpack.c.h.b16 %v2056
    %v3844 = vunpack.c.l.b16 %v2057
    %v3845 = vunpack.c.h.b16 %v2057
    %v3846 = vunpack.c.l.b16 %v2058
    %v3847 = vunpack.c.h.b16 %v2058
    %v3848 = vunpack.c.l.b16 %v2059
    %v3849 = vunpack.c.h.b16 %v2059
    %v3850 = vunpack.c.l.b16 %v2060
    %v3851 = vunpack.c.h.b16 %v2060
    %v3852 = vunpack.c.l.b16 %v2061
    %v3853 = vunpack.c.h.b16 %v2061
    %v3854 = vunpack.c.l.b16 %v2062
    %v3855 = vunpack.c.h.b16 %v2062
    %v3856 = vunpack.c.l.b16 %v2063
    %v3857 = vunpack.c.h.b16 %v2063
    %v3858 = vunpack.c.l.b16 %v2064
    %v3859 = vunpack.c.h.b16 %v2064
    %v3860 = vunpack.c.l.b16 %v2065
    %v3861 = vunpack.c.h.b16 %v2065
    %v3862 = vunpack.c.l.b16 %v2066
    %v3863 = vunpack.c.h.b16 %v2066
    %v3864 = vunpack.c.l.b16 %v2067
    %v3865 = vunpack.c.h.b16 %v2067
    %v3866 = vunpack.c.l.b16 %v2068
    %v3867 = vunpack.c.h.b16 %v2068
    %v3868 = vunpack.c.l.b16 %v2069
    %v3869 = vunpack.c.h.b16 %v2069
    %v3870 = vunpack.c.l.b16 %v2070
    %v3871 = vunpack.c.h.b16 %v2070
    %v3872 = vunpack.c.l.b16 %v2071
    %v3873 = vunpack.c.h.b16 %v2071
    %v3874 = vunpack.c.l.b16 %v2072
    %v3875 = vunpack.c.h.b16 %v2072
    %v3876 = vunpack.c.l.b16 %v2073
    %v3877 = vunpack.c.h.b16 %v2073
    %v3878 = vunpack.c.l.b16 %v2074
    %v3879 = vunpack.c.h.b16 %v2074
    %v3880 = vunpack.c.l.b16 %v2075
    %v3881 = vunpack.c.h.b16 %v2075
    %v3882 = vunpack.c.l.b16 %v2076
    %v3883 = vunpack.c.h.b16 %v2076
    %v3884 = vunpack.c.l.b16 %v2077
    %v3885 = vunpack.c.h.b16 %v2077
    %v3886 = vunpack.c.l.b16 %v2078
    %v3887 = vunpack.c.h.b16 %v2078
    %v3888 = vunpack.c.l.b16 %v2079
    %v3889 = vunpack.c.h.b16 %v2079
    %v3890 = vunpack.c.l.b16 %v2080
    %v3891 = vunpack.c.h.b16 %v2080
    %v3892 = vunpack.c.l.b16 %v2081
    %v3893 = vunpack.c.h.b16 %v2081
    %v3894 = vunpack.c.l.b16 %v2082
    %v3895 = vunpack.c.h.b16 %v2082
    %v3896 = vunpack.c.l.b16 %v2083
    %v3897 = vunpack.c.h.b16 %v2083
    %v3898 = vunpack.c.l.b16 %v2084
    %v3899 = vunpack.c.h.b16 %v2084
    %v3900 = vunpack.c.l.b16 %v2085
    %v3901 = vunpack.c.h.b16 %v2085
    %v3902 = vunpack.c.l.b16 %v2086
    %v3903 = vunpack.c.h.b16 %v2086
    %v3904 = vunpack.c.l.b16 %v2087
    %v3905 = vunpack.c.h.b16 %v2087
    %v3906 = vunpack.c.l.b16 %v2088
    %v3907 = vunpack.c.h.b16 %v2088
    %v3908 = vunpack.c.l.b16 %v2089
    %v3909 = vunpack.c.h.b16 %v2089
    %v3910 = vunpack.c.l.b16 %v2090
    %v3911 = vunpack.c.h.b16 %v2090
    %v3912 = vunpack.c.l.b16 %v2091
    %v3913 = vunpack.c.h.b16 %v2091
    %v3914 = vunpack.c.l.b16 %v2092
    %v3915 = vunpack.c.h.b16 %v2092
    %v3916 = vunpack.c.l.b16 %v2093
    %v3917 = vunpack.c.h.b16 %v2093
    %v3918 = vunpack.c.l.b16 %v2094
    %v3919 = vunpack.c.h.b16 %v2094
    %v3920 = vunpack.c.l.b16 %v2095
    %v3921 = vunpack.c.h.b16 %v2095
    %v3922 = vunpack.c.l.b16 %v2096
    %v3923 = vunpack.c.h.b16 %v2096
    %v3924 = vunpack.c.l.b16 %v2097
    %v3925 = vunpack.c.h.b16 %v2097
    %v3926 = vunpack.c.l.b16 %v2098
    %v3927 = vunpack.c.h.b16 %v2098
    %v3928 = vunpack.c.l.b16 %v2099
    %v3929 = vunpack.c.h.b16 %v2099
    %v3930 = vunpack.c.l.b16 %v2100
    %v3931 = vunpack.c.h.b16 %v2100
    %v3932 = vunpack.c.l.b16 %v2101
    %v3933 = vunpack.c.h.b16 %v2101
    %v3934 = vunpack.c.l.b16 %v2102
    %v3935 = vunpack.c.h.b16 %v2102
    %v3936 = vunpack.c.l.b16 %v2103
    %v3937 = vunpack.c.h.b16 %v2103
    %v3938 = vunpack.c.l.b16 %v2104
    %v3939 = vunpack.c.h.b16 %v2104
    %v3940 = vunpack.c.l.b16 %v2105
    %v3941 = vunpack.c.h.b16 %v2105
    %v3942 = vunpack.c.l.b16 %v2106
    %v3943 = vunpack.c.h.b16 %v2106
    %v3944 = vunpack.c.l.b16 %v2107
    %v3945 = vunpack.c.h.b16 %v2107
    %v3946 = vunpack.c.l.b16 %v2108
    %v3947 = vunpack.c.h.b16 %v2108
    %v3948 = vunpack.c.l.b16 %v2109
    %v3949 = vunpack.c.h.b16 %v2109
    %v3950 = vunpack.c.l.b16 %v2110
    %v3951 = vunpack.c.h.b16 %v2110
    %v3952 = vunpack.c.l.b16 %v2111
    %v3953 = vunpack.c.h.b16 %v2111
    %v3954 = vunpack.c.l.b16 %v2112
    %v3955 = vunpack.c.h.b16 %v2112
    %v3956 = vunpack.c.l.b16 %v2113
    %v3957 = vunpack.c.h.b16 %v2113
    %v3958 = vunpack.c.l.b16 %v2114
    %v3959 = vunpack.c.h.b16 %v2114
    %v3960 = vunpack.c.l.b16 %v2115
    %v3961 = vunpack.c.h.b16 %v2115
    %v3962 = vunpack.c.l.b16 %v2116
    %v3963 = vunpack.c.h.b16 %v2116
    %v3964 = vunpack.c.l.b16 %v2117
    %v3965 = vunpack.c.h.b16 %v2117
    %v3966 = vunpack.c.l.b16 %v2118
    %v3967 = vunpack.c.h.b16 %v2118
    %v3968 = vunpack.c.l.b16 %v2119
    %v3969 = vunpack.c.h.b16 %v2119
    %v3970 = vunpack.c.l.b16 %v2120
    %v3971 = vunpack.c.h.b16 %v2120
    %v3972 = vunpack.c.l.b16 %v2121
    %v3973 = vunpack.c.h.b16 %v2121
    %v3974 = vunpack.c.l.b16 %v2122
    %v3975 = vunpack.c.h.b16 %v2122
    %v3976 = vunpack.c.l.b16 %v2123
    %v3977 = vunpack.c.h.b16 %v2123
    %v3978 = vunpack.c.l.b16 %v2124
    %v3979 = vunpack.c.h.b16 %v2124
    %v3980 = vunpack.c.l.b16 %v2125
    %v3981 = vunpack.c.h.b16 %v2125
    %v3982 = vunpack.c.l.b16 %v2126
    %v3983 = vunpack.c.h.b16 %v2126
    %v3984 = vunpack.c.l.b16 %v2127
    %v3985 = vunpack.c.h.b16 %v2127
    %v3986 = vunpack.c.l.b16 %v2128
    %v3987 = vunpack.c.h.b16 %v2128
    %v3988 = vunpack.c.l.b16 %v2129
    %v3989 = vunpack.c.h.b16 %v2129
    %v3990 = vunpack.c.l.b16 %v2130
    %v3991 = vunpack.c.h.b16 %v2130
    %v3992 = vunpack.c.l.b16 %v2131
    %v3993 = vunpack.c.h.b16 %v2131
    %v3994 = vunpack.c.l.b16 %v2132
    %v3995 = vunpack.c.h.b16 %v2132
    %v3996 = vunpack.c.l.b16 %v2133
    %v3997 = vunpack.c.h.b16 %v2133
    %v3998 = vunpack.c.l.b16 %v2134
    %v3999 = vunpack.c.h.b16 %v2134
    %v4000 = vunpack.c.l.b16 %v2135
    %v4001 = vunpack.c.h.b16 %v2135
    %v4002 = vunpack.c.l.b16 %v2136
    %v4003 = vunpack.c.h.b16 %v2136
    %v4004 = vunpack.c.l.b16 %v2137
    %v4005 = vunpack.c.h.b16 %v2137
    %v4006 = vunpack.c.l.b16 %v2138
    %v4007 = vunpack.c.h.b16 %v2138
    %v4008 = vunpack.c.l.b16 %v2139
    %v4009 = vunpack.c.h.b16 %v2139
    %v4010 = vunpack.c.l.b16 %v2140
    %v4011 = vunpack.c.h.b16 %v2140
    %v4012 = vunpack.c.l.b16 %v2141
    %v4013 = vunpack.c.h.b16 %v2141
    %v4014 = vunpack.c.l.b16 %v2142
    %v4015 = vunpack.c.h.b16 %v2142
    %v4016 = vunpack.c.l.b16 %v2143
    %v4017 = vunpack.c.h.b16 %v2143
    %v4018 = vunpack.c.l.b16 %v2144
    %v4019 = vunpack.c.h.b16 %v2144
    %v4020 = vunpack.c.l.b16 %v2145
    %v4021 = vunpack.c.h.b16 %v2145
    %v4022 = vunpack.c.l.b16 %v2146
    %v4023 = vunpack.c.h.b16 %v2146
    %v4024 = vunpack.c.l.b16 %v2147
    %v4025 = vunpack.c.h.b16 %v2147
    %v4026 = vunpack.c.l.b16 %v2148
    %v4027 = vunpack.c.h.b16 %v2148
    %v4028 = vunpack.c.l.b16 %v2149
    %v4029 = vunpack.c.h.b16 %v2149
    %v4030 = vunpack.c.l.b16 %v2150
    %v4031 = vunpack.c.h.b16 %v2150
    %v4032 = vunpack.c.l.b16 %v2151
    %v4033 = vunpack.c.h.b16 %v2151
    %v4034 = vunpack.c.l.b16 %v2152
    %v4035 = vunpack.c.h.b16 %v2152
    %v4036 = vunpack.c.l.b16 %v2153
    %v4037 = vunpack.c.h.b16 %v2153
    %v4038 = vunpack.c.l.b16 %v2154
    %v4039 = vunpack.c.h.b16 %v2154
    %v4040 = vunpack.c.l.b16 %v2155
    %v4041 = vunpack.c.h.b16 %v2155
    %v4042 = vunpack.c.l.b16 %v2156
    %v4043 = vunpack.c.h.b16 %v2156
    %v4044 = vunpack.c.l.b16 %v2157
    %v4045 = vunpack.c.h.b16 %v2157
    %v4046 = vunpack.c.l.b16 %v2158
    %v4047 = vunpack.c.h.b16 %v2158
    %v4048 = vunpack.c.l.b16 %v2159
    %v4049 = vunpack.c.h.b16 %v2159
    %v4050 = vunpack.c.l.b16 %v2160
    %v4051 = vunpack.c.h.b16 %v2160
    %v4052 = vunpack.c.l.b16 %v2161
    %v4053 = vunpack.c.h.b16 %v2161
    %v4054 = vunpack.c.l.b16 %v2162
    %v4055 = vunpack.c.h.b16 %v2162
    %v4056 = vunpack.c.l.b16 %v2163
    %v4057 = vunpack.c.h.b16 %v2163
    %v4058 = vunpack.c.l.b16 %v2164
    %v4059 = vunpack.c.h.b16 %v2164
    %v4060 = vunpack.c.l.b16 %v2165
    %v4061 = vunpack.c.h.b16 %v2165
    %v4062 = vunpack.c.l.b16 %v2166
    %v4063 = vunpack.c.h.b16 %v2166
    %v4064 = vunpack.c.l.b16 %v2167
    %v4065 = vunpack.c.h.b16 %v2167
    %v4066 = vunpack.c.l.b16 %v2168
    %v4067 = vunpack.c.h.b16 %v2168
    %v4068 = vunpack.c.l.b16 %v2169
    %v4069 = vunpack.c.h.b16 %v2169
    %v4070 = vunpack.c.l.b16 %v2170
    %v4071 = vunpack.c.h.b16 %v2170
    %v4072 = vunpack.c.l.b16 %v2171
    %v4073 = vunpack.c.h.b16 %v2171
    %v4074 = vunpack.c.l.b16 %v2172
    %v4075 = vunpack.c.h.b16 %v2172
    %v4076 = vunpack.c.l.b16 %v2173
    %v4077 = vunpack.c.h.b16 %v2173
    %v4078 = vunpack.c.l.b16 %v2174
    %v4079 = vunpack.c.h.b16 %v2174
    %v4080 = vunpack.c.l.b16 %v2175
    %v4081 = vunpack.c.h.b16 %v2175
    %v4082 = vunpack.c.l.b16 %v2176
    %v4083 = vunpack.c.h.b16 %v2176
    %v4084 = vunpack.c.l.b16 %v2177
    %v4085 = vunpack.c.h.b16 %v2177
    %v4086 = vunpack.c.l.b16 %v2178
    %v4087 = vunpack.c.h.b16 %v2178
    %v4088 = vunpack.c.l.b16 %v2179
    %v4089 = vunpack.c.h.b16 %v2179
    %v4090 = vunpack.c.l.b16 %v2180
    %v4091 = vunpack.c.h.b16 %v2180
    %v4092 = vunpack.c.l.b16 %v2181
    %v4093 = vunpack.c.h.b16 %v2181
    %v4094 = vunpack.c.l.b16 %v2182
    %v4095 = vunpack.c.h.b16 %v2182
    %v4096 = vunpack.c.l.b16 %v2183
    %v4097 = vunpack.c.h.b16 %v2183
    %v4098 = vunpack.c.l.b16 %v2184
    %v4099 = vunpack.c.h.b16 %v2184
    %v4100 = vunpack.c.l.b16 %v2185
    %v4101 = vunpack.c.h.b16 %v2185
    %v4102 = vunpack.c.l.b16 %v2186
    %v4103 = vunpack.c.h.b16 %v2186
    %v4104 = vunpack.c.l.b16 %v2187
    %v4105 = vunpack.c.h.b16 %v2187
    %v4106 = vunpack.c.l.b16 %v2188
    %v4107 = vunpack.c.h.b16 %v2188
    %v4108 = vunpack.c.l.b16 %v2189
    %v4109 = vunpack.c.h.b16 %v2189
    %v4110 = vunpack.c.l.b16 %v2190
    %v4111 = vunpack.c.h.b16 %v2190
    %v4112 = vunpack.c.l.b16 %v2191
    %v4113 = vunpack.c.h.b16 %v2191
    %v4114 = vunpack.c.l.b16 %v2192
    %v4115 = vunpack.c.h.b16 %v2192
    %v4116 = vunpack.c.l.b16 %v2193
    %v4117 = vunpack.c.h.b16 %v2193
    %v4118 = vunpack.c.l.b16 %v2194
    %v4119 = vunpack.c.h.b16 %v2194
    %v4120 = vunpack.c.l.b16 %v2195
    %v4121 = vunpack.c.h.b16 %v2195
    %v4122 = vunpack.c.l.b16 %v2196
    %v4123 = vunpack.c.h.b16 %v2196
    %v4124 = vunpack.c.l.b16 %v2197
    %v4125 = vunpack.c.h.b16 %v2197
    %v4126 = vunpack.c.l.b16 %v2198
    %v4127 = vunpack.c.h.b16 %v2198
    %v4128 = vunpack.c.l.b16 %v2199
    %v4129 = vunpack.c.h.b16 %v2199
    %v4130 = vunpack.c.l.b16 %v2200
    %v4131 = vunpack.c.h.b16 %v2200
    %v4132 = vunpack.c.l.b16 %v2201
    %v4133 = vunpack.c.h.b16 %v2201
    %v4134 = vunpack.c.l.b16 %v2202
    %v4135 = vunpack.c.h.b16 %v2202
    %v4136 = vunpack.c.l.b16 %v2203
    %v4137 = vunpack.c.h.b16 %v2203
    %v4138 = vunpack.c.l.b16 %v2204
    %v4139 = vunpack.c.h.b16 %v2204
    %v4140 = vunpack.c.l.b16 %v2205
    %v4141 = vunpack.c.h.b16 %v2205
    %v4142 = vunpack.c.l.b16 %v2206
    %v4143 = vunpack.c.h.b16 %v2206
    %v4144 = vunpack.c.l.b16 %v2207
    %v4145 = vunpack.c.h.b16 %v2207
    %v4146 = vunpack.c.l.b16 %v2208
    %v4147 = vunpack.c.h.b16 %v2208
    %v4148 = vunpack.c.l.b16 %v2209
    %v4149 = vunpack.c.h.b16 %v2209
    %v4150 = vunpack.c.l.b16 %v2210
    %v4151 = vunpack.c.h.b16 %v2210
    %v4152 = vunpack.c.l.b16 %v2211
    %v4153 = vunpack.c.h.b16 %v2211
    %v4154 = vunpack.c.l.b16 %v2212
    %v4155 = vunpack.c.h.b16 %v2212
    %v4156 = vunpack.c.l.b16 %v2213
    %v4157 = vunpack.c.h.b16 %v2213
    %v4158 = vunpack.c.l.b16 %v2214
    %v4159 = vunpack.c.h.b16 %v2214
    %v4160 = vunpack.c.l.b16 %v2215
    %v4161 = vunpack.c.h.b16 %v2215
    %v4162 = vunpack.c.l.b16 %v2216
    %v4163 = vunpack.c.h.b16 %v2216
    %v4164 = vunpack.c.l.b16 %v2217
    %v4165 = vunpack.c.h.b16 %v2217
    %v4166 = vunpack.c.l.b16 %v2218
    %v4167 = vunpack.c.h.b16 %v2218
    %v4168 = vunpack.c.l.b16 %v2219
    %v4169 = vunpack.c.h.b16 %v2219
    %v4170 = vunpack.c.l.b16 %v2220
    %v4171 = vunpack.c.h.b16 %v2220
    %v4172 = vunpack.c.l.b16 %v2221
    %v4173 = vunpack.c.h.b16 %v2221
    %v4174 = vunpack.c.l.b16 %v2222
    %v4175 = vunpack.c.h.b16 %v2222
    %v4176 = vunpack.c.l.b16 %v2223
    %v4177 = vunpack.c.h.b16 %v2223
    %v4178 = vunpack.c.l.b16 %v2224
    %v4179 = vunpack.c.h.b16 %v2224
    %v4180 = vunpack.c.l.b16 %v2225
    %v4181 = vunpack.c.h.b16 %v2225
    %v4182 = vunpack.c.l.b16 %v2226
    %v4183 = vunpack.c.h.b16 %v2226
    %v4184 = vunpack.c.l.b16 %v2227
    %v4185 = vunpack.c.h.b16 %v2227
    %v4186 = vunpack.c.l.b16 %v2228
    %v4187 = vunpack.c.h.b16 %v2228
    %v4188 = vunpack.c.l.b16 %v2229
    %v4189 = vunpack.c.h.b16 %v2229
    %v4190 = vunpack.c.l.b16 %v2230
    %v4191 = vunpack.c.h.b16 %v2230
    %v4192 = vunpack.c.l.b16 %v2231
    %v4193 = vunpack.c.h.b16 %v2231
    %v4194 = vunpack.c.l.b16 %v2232
    %v4195 = vunpack.c.h.b16 %v2232
    %v4196 = vunpack.c.l.b16 %v2233
    %v4197 = vunpack.c.h.b16 %v2233
    %v4198 = vunpack.c.l.b16 %v2234
    %v4199 = vunpack.c.h.b16 %v2234
    %v4200 = vunpack.c.l.b16 %v2235
    %v4201 = vunpack.c.h.b16 %v2235
    %v4202 = vunpack.c.l.b16 %v2236
    %v4203 = vunpack.c.h.b16 %v2236
    %v4204 = vunpack.c.l.b16 %v2237
    %v4205 = vunpack.c.h.b16 %v2237
    %v4206 = vunpack.c.l.b16 %v2238
    %v4207 = vunpack.c.h.b16 %v2238
    %v4208 = vunpack.c.l.b16 %v2239
    %v4209 = vunpack.c.h.b16 %v2239
    %v4210 = vunpack.c.l.b16 %v2240
    %v4211 = vunpack.c.h.b16 %v2240
    %v4212 = vunpack.c.l.b16 %v2241
    %v4213 = vunpack.c.h.b16 %v2241
    %v4214 = vunpack.c.l.b16 %v2242
    %v4215 = vunpack.c.h.b16 %v2242
    %v4216 = vunpack.c.l.b16 %v2243
    %v4217 = vunpack.c.h.b16 %v2243
    %v4218 = vunpack.c.l.b16 %v2244
    %v4219 = vunpack.c.h.b16 %v2244
    %v4220 = vunpack.c.l.b16 %v2245
    %v4221 = vunpack.c.h.b16 %v2245
    %v4222 = vunpack.c.l.b16 %v2246
    %v4223 = vunpack.c.h.b16 %v2246
    %v4224 = vunpack.c.l.b16 %v2247
    %v4225 = vunpack.c.h.b16 %v2247
    %v4226 = vunpack.c.l.b16 %v2248
    %v4227 = vunpack.c.h.b16 %v2248
    %v4228 = vunpack.c.l.b16 %v2249
    %v4229 = vunpack.c.h.b16 %v2249
    %v4230 = vunpack.c.l.b16 %v2250
    %v4231 = vunpack.c.h.b16 %v2250
    %v4232 = vunpack.c.l.b16 %v2251
    %v4233 = vunpack.c.h.b16 %v2251
    %v4234 = vunpack.c.l.b16 %v2252
    %v4235 = vunpack.c.h.b16 %v2252
    %v4236 = vunpack.c.l.b16 %v2253
    %v4237 = vunpack.c.h.b16 %v2253
    %v4238 = vunpack.c.l.b16 %v2254
    %v4239 = vunpack.c.h.b16 %v2254
    %v4240 = vunpack.c.l.b16 %v2255
    %v4241 = vunpack.c.h.b16 %v2255
    %v4242 = vunpack.c.l.b16 %v2256
    %v4243 = vunpack.c.h.b16 %v2256
    %v4244 = vunpack.c.l.b16 %v2257
    %v4245 = vunpack.c.h.b16 %v2257
    %v4246 = vunpack.c.l.b16 %v2258
    %v4247 = vunpack.c.h.b16 %v2258
    %v4248 = vunpack.c.l.b16 %v2259
    %v4249 = vunpack.c.h.b16 %v2259
    %v4250 = vunpack.c.l.b16 %v2260
    %v4251 = vunpack.c.h.b16 %v2260
    %v4252 = vunpack.c.l.b16 %v2261
    %v4253 = vunpack.c.h.b16 %v2261
    %v4254 = vunpack.c.l.b16 %v2262
    %v4255 = vunpack.c.h.b16 %v2262
    %v4256 = vunpack.c.l.b16 %v2263
    %v4257 = vunpack.c.h.b16 %v2263
    %v4258 = vunpack.c.l.b16 %v2264
    %v4259 = vunpack.c.h.b16 %v2264
    %v4260 = vunpack.c.l.b16 %v2265
    %v4261 = vunpack.c.h.b16 %v2265
    %v4262 = vunpack.c.l.b16 %v2266
    %v4263 = vunpack.c.h.b16 %v2266
    %v4264 = vunpack.c.l.b16 %v2267
    %v4265 = vunpack.c.h.b16 %v2267
    %v4266 = vunpack.c.l.b16 %v2268
    %v4267 = vunpack.c.h.b16 %v2268
    %v4268 = vunpack.c.l.b16 %v2269
    %v4269 = vunpack.c.h.b16 %v2269
    %v4270 = vunpack.c.l.b16 %v2270
    %v4271 = vunpack.c.h.b16 %v2270
    %v4272 = vunpack.c.l.b16 %v2271
    %v4273 = vunpack.c.h.b16 %v2271
    %v4274 = vunpack.c.l.b16 %v2272
    %v4275 = vunpack.c.h.b16 %v2272
    %v4276 = vunpack.c.l.b16 %v2273
    %v4277 = vunpack.c.h.b16 %v2273
    %v4278 = vunpack.c.l.b16 %v2274
    %v4279 = vunpack.c.h.b16 %v2274
    %v4280 = vunpack.c.l.b16 %v2275
    %v4281 = vunpack.c.h.b16 %v2275
    %v4282 = vunpack.c.l.b16 %v2276
    %v4283 = vunpack.c.h.b16 %v2276
    %v4284 = vunpack.c.l.b16 %v2277
    %v4285 = vunpack.c.h.b16 %v2277
    %v4286 = vunpack.c.l.b16 %v2278
    %v4287 = vunpack.c.h.b16 %v2278
    %v4288 = vunpack.c.l.b16 %v2279
    %v4289 = vunpack.c.h.b16 %v2279
    %v4290 = vunpack.c.l.b16 %v2280
    %v4291 = vunpack.c.h.b16 %v2280
    %v4292 = vunpack.c.l.b16 %v2281
    %v4293 = vunpack.c.h.b16 %v2281
    %v4294 = vunpack.c.l.b16 %v2282
    %v4295 = vunpack.c.h.b16 %v2282
    %v4296 = vunpack.c.l.b16 %v2283
    %v4297 = vunpack.c.h.b16 %v2283
    %v4298 = vunpack.c.l.b16 %v2284
    %v4299 = vunpack.c.h.b16 %v2284
    %v4300 = vunpack.c.l.b16 %v2285
    %v4301 = vunpack.c.h.b16 %v2285
    %v4302 = vunpack.c.l.b16 %v2286
    %v4303 = vunpack.c.h.b16 %v2286
    %v4304 = vunpack.c.l.b16 %v2287
    %v4305 = vunpack.c.h.b16 %v2287
    %v4306 = vunpack.c.l.b16 %v2288
    %v4307 = vunpack.c.h.b16 %v2288
    %v4308 = vunpack.c.l.b16 %v2289
    %v4309 = vunpack.c.h.b16 %v2289
    %v4310 = vunpack.c.l.b16 %v2290
    %v4311 = vunpack.c.h.b16 %v2290
    %v4312 = vunpack.c.l.b16 %v2291
    %v4313 = vunpack.c.h.b16 %v2291
    %v4314 = vunpack.c.l.b16 %v2292
    %v4315 = vunpack.c.h.b16 %v2292
    %v4316 = vunpack.c.l.b16 %v2293
    %v4317 = vunpack.c.h.b16 %v2293
    %v4318 = vunpack.c.l.b16 %v2294
    %v4319 = vunpack.c.h.b16 %v2294
    %v4320 = vunpack.c.l.b16 %v2295
    %v4321 = vunpack.c.h.b16 %v2295
    %v4322 = vunpack.c.l.b16 %v2296
    %v4323 = vunpack.c.h.b16 %v2296
    %v4324 = vunpack.c.l.b16 %v2297
    %v4325 = vunpack.c.h.b16 %v2297
    %v4326 = vunpack.c.l.b16 %v2298
    %v4327 = vunpack.c.h.b16 %v2298
    %v4328 = vunpack.c.l.b16 %v2299
    %v4329 = vunpack.c.h.b16 %v2299
    %v4330 = vunpack.c.l.b16 %v2300
    %v4331 = vunpack.c.h.b16 %v2300
    %v4332 = vunpack.c.l.b16 %v2301
    %v4333 = vunpack.c.h.b16 %v2301
    %v4334 = vunpack.c.l.b16 %v2302
    %v4335 = vunpack.c.h.b16 %v2302
    %v4336 = vunpack.c.l.b16 %v2303
    %v4337 = vunpack.c.h.b16 %v2303
    %v4338 = vunpack.c.l.b16 %v2304
    %v4339 = vunpack.c.h.b16 %v2304
    %v4340 = vunpack.c.l.b16 %v2305
    %v4341 = vunpack.c.h.b16 %v2305
    %v4342 = vunpack.c.l.b16 %v2306
    %v4343 = vunpack.c.h.b16 %v2306
    %v4344 = vunpack.c.l.b16 %v2307
    %v4345 = vunpack.c.h.b16 %v2307
    %v4346 = vunpack.c.l.b16 %v2308
    %v4347 = vunpack.c.h.b16 %v2308
    %v4348 = vunpack.c.l.b16 %v2309
    %v4349 = vunpack.c.h.b16 %v2309
    %v4350 = vunpack.c.l.b16 %v2310
    %v4351 = vunpack.c.h.b16 %v2310
    %v4352 = vunpack.c.l.b16 %v2311
    %v4353 = vunpack.c.h.b16 %v2311
    %v4354 = vunpack.c.l.b16 %v2312
    %v4355 = vunpack.c.h.b16 %v2312
    %v4356 = vunpack.c.l.b16 %v2313
    %v4357 = vunpack.c.h.b16 %v2313
    %v4358 = vunpack.c.l.b16 %v2314
    %v4359 = vunpack.c.h.b16 %v2314
    %v4360 = vunpack.c.l.b16 %v2315
    %v4361 = vunpack.c.h.b16 %v2315
    %v4362 = vunpack.c.l.b16 %v2316
    %v4363 = vunpack.c.h.b16 %v2316
    %v4364 = vunpack.c.l.b16 %v2317
    %v4365 = vunpack.c.h.b16 %v2317
    %v4366 = vunpack.c.l.b16 %v2318
    %v4367 = vunpack.c.h.b16 %v2318
    %v4368 = vunpack.c.l.b16 %v2319
    %v4369 = vunpack.c.h.b16 %v2319
    %v4370 = vunpack.c.l.b16 %v2320
    %v4371 = vunpack.c.h.b16 %v2320
    %v4372 = vunpack.c.l.b16 %v2321
    %v4373 = vunpack.c.h.b16 %v2321
    %v4374 = vunpack.c.l.b16 %v2322
    %v4375 = vunpack.c.h.b16 %v2322
    %v4376 = vunpack.c.l.b16 %v2323
    %v4377 = vunpack.c.h.b16 %v2323
    %v4378 = vunpack.c.l.b16 %v2324
    %v4379 = vunpack.c.h.b16 %v2324
    %v4380 = vunpack.c.l.b16 %v2325
    %v4381 = vunpack.c.h.b16 %v2325
    %v4382 = vunpack.c.l.b16 %v2326
    %v4383 = vunpack.c.h.b16 %v2326
    %v4384 = vunpack.c.l.b16 %v2327
    %v4385 = vunpack.c.h.b16 %v2327
    %v4386 = vunpack.c.l.b16 %v2328
    %v4387 = vunpack.c.h.b16 %v2328
    %v4388 = vunpack.c.l.b16 %v2329
    %v4389 = vunpack.c.h.b16 %v2329
    %v4390 = vunpack.c.l.b16 %v2330
    %v4391 = vunpack.c.h.b16 %v2330
    %v4392 = vunpack.c.l.b16 %v2331
    %v4393 = vunpack.c.h.b16 %v2331
    %v4394 = vunpack.c.l.b16 %v2332
    %v4395 = vunpack.c.h.b16 %v2332
    %v4396 = vunpack.c.l.b16 %v2333
    %v4397 = vunpack.c.h.b16 %v2333
    %v4398 = vunpack.c.l.b16 %v2334
    %v4399 = vunpack.c.h.b16 %v2334
    %v4400 = vunpack.c.l.b16 %v2335
    %v4401 = vunpack.c.h.b16 %v2335
    %v4402 = vunpack.c.l.b16 %v2336
    %v4403 = vunpack.c.h.b16 %v2336
    %v4404 = vunpack.c.l.b16 %v2337
    %v4405 = vunpack.c.h.b16 %v2337
    %v4406 = vunpack.c.l.b16 %v2338
    %v4407 = vunpack.c.h.b16 %v2338
    %v4408 = vunpack.c.l.b16 %v2339
    %v4409 = vunpack.c.h.b16 %v2339
    %v4410 = vunpack.c.l.b16 %v2340
    %v4411 = vunpack.c.h.b16 %v2340
    %v4412 = vunpack.c.l.b16 %v2341
    %v4413 = vunpack.c.h.b16 %v2341
    %v4414 = vunpack.c.l.b16 %v2342
    %v4415 = vunpack.c.h.b16 %v2342
    %v4416 = vunpack.c.l.b16 %v2343
    %v4417 = vunpack.c.h.b16 %v2343
    %v4418 = vunpack.c.l.b16 %v2344
    %v4419 = vunpack.c.h.b16 %v2344
    %v4420 = vunpack.c.l.b16 %v2345
    %v4421 = vunpack.c.h.b16 %v2345
    %v4422 = vunpack.c.l.b16 %v2346
    %v4423 = vunpack.c.h.b16 %v2346
    %v4424 = vunpack.c.l.b16 %v2347
    %v4425 = vunpack.c.h.b16 %v2347
    %v4426 = vunpack.c.l.b16 %v2348
    %v4427 = vunpack.c.h.b16 %v2348
    %v4428 = vunpack.c.l.b16 %v2349
    %v4429 = vunpack.c.h.b16 %v2349
    %v4430 = vunpack.c.l.b16 %v2350
    %v4431 = vunpack.c.h.b16 %v2350
    %v4432 = vunpack.c.l.b16 %v2351
    %v4433 = vunpack.c.h.b16 %v2351
    %v4434 = vunpack.c.l.b16 %v2352
    %v4435 = vunpack.c.h.b16 %v2352
    %v4436 = vunpack.c.l.b16 %v2353
    %v4437 = vunpack.c.h.b16 %v2353
    %v4438 = vunpack.c.l.b16 %v2354
    %v4439 = vunpack.c.h.b16 %v2354
    %v4440 = vunpack.c.l.b16 %v2355
    %v4441 = vunpack.c.h.b16 %v2355
    %v4442 = vunpack.c.l.b16 %v2356
    %v4443 = vunpack.c.h.b16 %v2356
    %v4444 = vunpack.c.l.b16 %v2357
    %v4445 = vunpack.c.h.b16 %v2357
    %v4446 = vunpack.c.l.b16 %v2358
    %v4447 = vunpack.c.h.b16 %v2358
    %v4448 = vunpack.c.l.b16 %v2359
    %v4449 = vunpack.c.h.b16 %v2359
    %v4450 = vunpack.c.l.b16 %v2360
    %v4451 = vunpack.c.h.b16 %v2360
    %v4452 = vunpack.c.l.b16 %v2361
    %v4453 = vunpack.c.h.b16 %v2361
    %v4454 = vunpack.c.l.b16 %v2362
    %v4455 = vunpack.c.h.b16 %v2362
    %v4456 = vunpack.c.l.b16 %v2363
    %v4457 = vunpack.c.h.b16 %v2363
    %v4458 = vunpack.c.l.b16 %v2364
    %v4459 = vunpack.c.h.b16 %v2364
    %v4460 = vunpack.c.l.b16 %v2365
    %v4461 = vunpack.c.h.b16 %v2365
    %v4462 = vunpack.c.l.b16 %v2366
    %v4463 = vunpack.c.h.b16 %v2366
    %v4464 = vunpack.c.l.b16 %v2367
    %v4465 = vunpack.c.h.b16 %v2367
    %v4466 = vunpack.c.l.b16 %v2368
    %v4467 = vunpack.c.h.b16 %v2368
    %v4468 = vunpack.c.l.b16 %v2369
    %v4469 = vunpack.c.h.b16 %v2369
    %v4470 = vunpack.c.l.b16 %v2370
    %v4471 = vunpack.c.h.b16 %v2370
    %v4472 = vunpack.c.l.b16 %v2371
    %v4473 = vunpack.c.h.b16 %v2371
    %v4474 = vunpack.c.l.b16 %v2372
    %v4475 = vunpack.c.h.b16 %v2372
    %v4476 = vunpack.c.l.b16 %v2373
    %v4477 = vunpack.c.h.b16 %v2373
    %v4478 = vunpack.c.l.b16 %v2374
    %v4479 = vunpack.c.h.b16 %v2374
    %v4480 = vunpack.c.l.b16 %v2375
    %v4481 = vunpack.c.h.b16 %v2375
    %v4482 = vunpack.c.l.b16 %v2376
    %v4483 = vunpack.c.h.b16 %v2376
    %v4484 = vunpack.c.l.b16 %v2377
    %v4485 = vunpack.c.h.b16 %v2377
    %v4486 = vunpack.c.l.b16 %v2378
    %v4487 = vunpack.c.h.b16 %v2378
    %v4488 = vunpack.c.l.b16 %v2379
    %v4489 = vunpack.c.h.b16 %v2379
    %v4490 = vunpack.c.l.b16 %v2380
    %v4491 = vunpack.c.h.b16 %v2380
    %v4492 = vunpack.c.l.b16 %v2381
    %v4493 = vunpack.c.h.b16 %v2381
    %v4494 = vunpack.c.l.b16 %v2382
    %v4495 = vunpack.c.h.b16 %v2382
    %v4496 = vunpack.c.l.b16 %v2383
    %v4497 = vunpack.c.h.b16 %v2383
    %v4498 = vunpack.c.l.b16 %v2384
    %v4499 = vunpack.c.h.b16 %v2384
    %v4500 = vunpack.c.l.b16 %v2385
    %v4501 = vunpack.c.h.b16 %v2385
    %v4502 = vunpack.c.l.b16 %v2386
    %v4503 = vunpack.c.h.b16 %v2386
    %v4504 = vunpack.c.l.b16 %v2387
    %v4505 = vunpack.c.h.b16 %v2387
    %v4506 = vunpack.c.l.b16 %v2388
    %v4507 = vunpack.c.h.b16 %v2388
    %v4508 = vunpack.c.l.b16 %v2389
    %v4509 = vunpack.c.h.b16 %v2389
    %v4510 = vunpack.c.l.b16 %v2390
    %v4511 = vunpack.c.h.b16 %v2390
    %v4512 = vunpack.c.l.b16 %v2391
    %v4513 = vunpack.c.h.b16 %v2391
    %v4514 = vunpack.c.l.b16 %v2392
    %v4515 = vunpack.c.h.b16 %v2392
    %v4516 = vunpack.c.l.b16 %v2393
    %v4517 = vunpack.c.h.b16 %v2393
    %v4518 = vunpack.c.l.b16 %v2394
    %v4519 = vunpack.c.h.b16 %v2394
    %v4520 = vunpack.c.l.b16 %v2395
    %v4521 = vunpack.c.h.b16 %v2395
    %v4522 = vunpack.c.l.b16 %v2396
    %v4523 = vunpack.c.h.b16 %v2396
    %v4524 = vunpack.c.l.b16 %v2397
    %v4525 = vunpack.c.h.b16 %v2397
    %v4526 = vunpack.c.l.b16 %v2398
    %v4527 = vunpack.c.h.b16 %v2398
    %v4528 = vunpack.c.l.b16 %v2399
    %v4529 = vunpack.c.h.b16 %v2399
    %v4530 = vunpack.c.l.b16 %v2400
    %v4531 = vunpack.c.h.b16 %v2400
    %v4532 = vunpack.c.l.b16 %v2401
    %v4533 = vunpack.c.h.b16 %v2401
    %v4534 = vunpack.c.l.b16 %v2402
    %v4535 = vunpack.c.h.b16 %v2402
    %v4536 = vunpack.c.l.b16 %v2403
    %v4537 = vunpack.c.h.b16 %v2403
    %v4538 = vunpack.c.l.b16 %v2404
    %v4539 = vunpack.c.h.b16 %v2404
    %v4540 = vunpack.c.l.b16 %v2405
    %v4541 = vunpack.c.h.b16 %v2405
    %v4542 = vunpack.c.l.b16 %v2406
    %v4543 = vunpack.c.h.b16 %v2406
    %v4544 = vunpack.c.l.b16 %v2407
    %v4545 = vunpack.c.h.b16 %v2407
    %v4546 = vunpack.c.l.b16 %v2408
    %v4547 = vunpack.c.h.b16 %v2408
    %v4548 = vunpack.c.l.b16 %v2409
    %v4549 = vunpack.c.h.b16 %v2409
    %v4550 = vunpack.c.l.b16 %v2410
    %v4551 = vunpack.c.h.b16 %v2410
    %v4552 = vunpack.c.l.b16 %v2411
    %v4553 = vunpack.c.h.b16 %v2411
    %v4554 = vunpack.c.l.b16 %v2412
    %v4555 = vunpack.c.h.b16 %v2412
    %v4556 = vunpack.c.l.b16 %v2413
    %v4557 = vunpack.c.h.b16 %v2413
    %v4558 = vunpack.c.l.b16 %v2414
    %v4559 = vunpack.c.h.b16 %v2414
    %v4560 = vunpack.c.l.b16 %v2415
    %v4561 = vunpack.c.h.b16 %v2415
    %v4562 = vunpack.c.l.b16 %v2416
    %v4563 = vunpack.c.h.b16 %v2416
    %v4564 = vunpack.c.l.b16 %v2417
    %v4565 = vunpack.c.h.b16 %v2417
    %v4566 = vunpack.c.l.b16 %v2418
    %v4567 = vunpack.c.h.b16 %v2418
    %v4568 = vunpack.c.l.b16 %v2419
    %v4569 = vunpack.c.h.b16 %v2419
    %v4570 = vunpack.c.l.b16 %v2420
    %v4571 = vunpack.c.h.b16 %v2420
    %v4572 = vunpack.c.l.b16 %v2421
    %v4573 = vunpack.c.h.b16 %v2421
    %v4574 = vunpack.c.l.b16 %v2422
    %v4575 = vunpack.c.h.b16 %v2422
    %v4576 = vunpack.c.l.b16 %v2423
    %v4577 = vunpack.c.h.b16 %v2423
    %v4578 = vunpack.c.l.b16 %v2424
    %v4579 = vunpack.c.h.b16 %v2424
    %v4580 = vunpack.c.l.b16 %v2425
    %v4581 = vunpack.c.h.b16 %v2425
    %v4582 = vunpack.c.l.b16 %v2426
    %v4583 = vunpack.c.h.b16 %v2426
    %v4584 = vunpack.c.l.b16 %v2427
    %v4585 = vunpack.c.h.b16 %v2427
    %v4586 = vunpack.c.l.b16 %v2428
    %v4587 = vunpack.c.h.b16 %v2428
    %v4588 = vunpack.c.l.b16 %v2429
    %v4589 = vunpack.c.h.b16 %v2429
    %v4590 = vunpack.c.l.b16 %v2430
    %v4591 = vunpack.c.h.b16 %v2430
    %v4592 = vunpack.c.l.b16 %v2431
    %v4593 = vunpack.c.h.b16 %v2431
    %v4594 = vunpack.c.l.b16 %v2432
    %v4595 = vunpack.c.h.b16 %v2432
    %v4596 = vunpack.c.l.b16 %v2433
    %v4597 = vunpack.c.h.b16 %v2433
    %v4598 = vunpack.c.l.b16 %v2434
    %v4599 = vunpack.c.h.b16 %v2434
    %v4600 = vunpack.c.l.b16 %v2435
    %v4601 = vunpack.c.h.b16 %v2435
    %v4602 = vunpack.c.l.b16 %v2436
    %v4603 = vunpack.c.h.b16 %v2436
    %v4604 = vunpack.c.l.b16 %v2437
    %v4605 = vunpack.c.h.b16 %v2437
    %v4606 = vunpack.c.l.b16 %v2438
    %v4607 = vunpack.c.h.b16 %v2438
    %v4608 = vunpack.c.l.b16 %v2439
    %v4609 = vunpack.c.h.b16 %v2439
    %v4610 = vunpack.c.l.b16 %v2440
    %v4611 = vunpack.c.h.b16 %v2440
    %v4612 = vunpack.c.l.b16 %v2441
    %v4613 = vunpack.c.h.b16 %v2441
    %v4614 = vunpack.c.l.b16 %v2442
    %v4615 = vunpack.c.h.b16 %v2442
    %v4616 = vunpack.c.l.b16 %v2443
    %v4617 = vunpack.c.h.b16 %v2443
    %v4618 = vunpack.c.l.b16 %v2444
    %v4619 = vunpack.c.h.b16 %v2444
    %v4620 = vunpack.c.l.b16 %v2445
    %v4621 = vunpack.c.h.b16 %v2445
    %v4622 = vunpack.c.l.b16 %v2446
    %v4623 = vunpack.c.h.b16 %v2446
    %v4624 = vunpack.c.l.b16 %v2447
    %v4625 = vunpack.c.h.b16 %v2447
    %v4626 = vunpack.c.l.b16 %v2448
    %v4627 = vunpack.c.h.b16 %v2448
    %v4628 = vunpack.c.l.b16 %v2449
    %v4629 = vunpack.c.h.b16 %v2449
    %v4630 = vunpack.c.l.b16 %v2450
    %v4631 = vunpack.c.h.b16 %v2450
    %v4632 = vunpack.c.l.b16 %v2451
    %v4633 = vunpack.c.h.b16 %v2451
    %v4634 = vunpack.c.l.b16 %v2452
    %v4635 = vunpack.c.h.b16 %v2452
    %v4636 = vunpack.c.l.b16 %v2453
    %v4637 = vunpack.c.h.b16 %v2453
    %v4638 = vunpack.c.l.b16 %v2454
    %v4639 = vunpack.c.h.b16 %v2454
    %v4640 = vunpack.c.l.b16 %v2455
    %v4641 = vunpack.c.h.b16 %v2455
    %v4642 = vunpack.c.l.b16 %v2456
    %v4643 = vunpack.c.h.b16 %v2456
    %v4644 = vunpack.c.l.b16 %v2457
    %v4645 = vunpack.c.h.b16 %v2457
    %v4646 = vunpack.c.l.b16 %v2458
    %v4647 = vunpack.c.h.b16 %v2458
    %v4648 = vunpack.c.l.b16 %v2459
    %v4649 = vunpack.c.h.b16 %v2459
    %v4650 = vunpack.c.l.b16 %v2460
    %v4651 = vunpack.c.h.b16 %v2460
    %v4652 = vunpack.c.l.b16 %v2461
    %v4653 = vunpack.c.h.b16 %v2461
    %v4654 = vunpack.c.l.b16 %v2462
    %v4655 = vunpack.c.h.b16 %v2462
    %v4656 = vunpack.c.l.b16 %v2463
    %v4657 = vunpack.c.h.b16 %v2463
    %v4658 = vunpack.c.l.b16 %v2464
    %v4659 = vunpack.c.h.b16 %v2464
    %v4660 = vunpack.c.l.b16 %v2465
    %v4661 = vunpack.c.h.b16 %v2465
    %v4662 = vunpack.c.l.b16 %v2466
    %v4663 = vunpack.c.h.b16 %v2466
    %v4664 = vunpack.c.l.b16 %v2467
    %v4665 = vunpack.c.h.b16 %v2467
    %v4666 = vunpack.c.l.b16 %v2468
    %v4667 = vunpack.c.h.b16 %v2468
    %v4668 = vunpack.c.l.b16 %v2469
    %v4669 = vunpack.c.h.b16 %v2469
    %v4670 = vunpack.c.l.b16 %v2470
    %v4671 = vunpack.c.h.b16 %v2470
    %v4672 = vunpack.c.l.b16 %v2471
    %v4673 = vunpack.c.h.b16 %v2471
    %v4674 = vunpack.c.l.b16 %v2472
    %v4675 = vunpack.c.h.b16 %v2472
    %v4676 = vunpack.c.l.b16 %v2473
    %v4677 = vunpack.c.h.b16 %v2473
    %v4678 = vunpack.c.l.b16 %v2474
    %v4679 = vunpack.c.h.b16 %v2474
    %v4680 = vunpack.c.l.b16 %v2475
    %v4681 = vunpack.c.h.b16 %v2475
    %v4682 = vunpack.c.l.b16 %v2476
    %v4683 = vunpack.c.h.b16 %v2476
    %v4684 = vunpack.c.l.b16 %v2477
    %v4685 = vunpack.c.h.b16 %v2477
    %v4686 = vunpack.c.l.b16 %v2478
    %v4687 = vunpack.c.h.b16 %v2478
    %v4688 = vunpack.c.l.b16 %v2479
    %v4689 = vunpack.c.h.b16 %v2479
    %v4690 = vunpack.c.l.b16 %v2480
    %v4691 = vunpack.c.h.b16 %v2480
    %v4692 = vunpack.c.l.b16 %v2481
    %v4693 = vunpack.c.h.b16 %v2481
    %v4694 = vunpack.c.l.b16 %v2482
    %v4695 = vunpack.c.h.b16 %v2482
    %v4696 = vunpack.c.l.b16 %v2483
    %v4697 = vunpack.c.h.b16 %v2483
    %v4698 = vunpack.c.l.b16 %v2484
    %v4699 = vunpack.c.h.b16 %v2484
    %v4700 = vunpack.c.l.b16 %v2485
    %v4701 = vunpack.c.h.b16 %v2485
    %v4702 = vunpack.c.l.b16 %v2486
    %v4703 = vunpack.c.h.b16 %v2486
    %v4704 = vunpack.c.l.b16 %v2487
    %v4705 = vunpack.c.h.b16 %v2487
    %v4706 = vunpack.c.l.b16 %v2488
    %v4707 = vunpack.c.h.b16 %v2488
    %v4708 = vunpack.c.l.b16 %v2489
    %v4709 = vunpack.c.h.b16 %v2489
    %v4710 = vunpack.c.l.b16 %v2490
    %v4711 = vunpack.c.h.b16 %v2490
    %v4712 = vunpack.c.l.b16 %v2491
    %v4713 = vunpack.c.h.b16 %v2491
    %v4714 = vunpack.c.l.b16 %v2492
    %v4715 = vunpack.c.h.b16 %v2492
    %v4716 = vunpack.c.l.b16 %v2493
    %v4717 = vunpack.c.h.b16 %v2493
    %v4718 = vunpack.c.l.b16 %v2494
    %v4719 = vunpack.c.h.b16 %v2494
    %v4720 = vunpack.c.l.b16 %v2495
    %v4721 = vunpack.c.h.b16 %v2495
    %v4722 = vunpack.c.l.b16 %v2496
    %v4723 = vunpack.c.h.b16 %v2496
    %v4724 = vunpack.c.l.b16 %v2497
    %v4725 = vunpack.c.h.b16 %v2497
    %v4726 = vunpack.c.l.b16 %v2498
    %v4727 = vunpack.c.h.b16 %v2498
    %v4728 = vunpack.c.l.b16 %v2499
    %v4729 = vunpack.c.h.b16 %v2499
    %v4730 = vunpack.c.l.b16 %v2500
    %v4731 = vunpack.c.h.b16 %v2500
    %v4732 = vunpack.c.l.b16 %v2501
    %v4733 = vunpack.c.h.b16 %v2501
    %v4734 = vunpack.c.l.b16 %v2502
    %v4735 = vunpack.c.h.b16 %v2502
    %v4736 = vunpack.c.l.b16 %v2503
    %v4737 = vunpack.c.h.b16 %v2503
    %v4738 = vunpack.c.l.b16 %v2504
    %v4739 = vunpack.c.h.b16 %v2504
    %v4740 = vunpack.c.l.b16 %v2505
    %v4741 = vunpack.c.h.b16 %v2505
    %v4742 = vunpack.c.l.b16 %v2506
    %v4743 = vunpack.c.h.b16 %v2506
    %v4744 = vunpack.c.l.b16 %v2507
    %v4745 = vunpack.c.h.b16 %v2507
    %v4746 = vunpack.c.l.b16 %v2508
    %v4747 = vunpack.c.h.b16 %v2508
    %v4748 = vunpack.c.l.b16 %v2509
    %v4749 = vunpack.c.h.b16 %v2509
    %v4750 = vunpack.c.l.b16 %v2510
    %v4751 = vunpack.c.h.b16 %v2510
    %v4752 = vunpack.c.l.b16 %v2511
    %v4753 = vunpack.c.h.b16 %v2511
    %v4754 = vunpack.c.l.b16 %v2512
    %v4755 = vunpack.c.h.b16 %v2512
    %v4756 = vunpack.c.l.b16 %v2513
    %v4757 = vunpack.c.h.b16 %v2513
    %v4758 = vunpack.c.l.b16 %v2514
    %v4759 = vunpack.c.h.b16 %v2514
    %v4760 = vunpack.c.l.b16 %v2515
    %v4761 = vunpack.c.h.b16 %v2515
    %v4762 = vunpack.c.l.b16 %v2516
    %v4763 = vunpack.c.h.b16 %v2516
    %v4764 = vunpack.c.l.b16 %v2517
    %v4765 = vunpack.c.h.b16 %v2517
    %v4766 = vunpack.c.l.b16 %v2518
    %v4767 = vunpack.c.h.b16 %v2518
    %v4768 = vunpack.c.l.b16 %v2519
    %v4769 = vunpack.c.h.b16 %v2519
    %v4770 = vunpack.c.l.b16 %v2520
    %v4771 = vunpack.c.h.b16 %v2520
    %v4772 = vunpack.c.l.b16 %v2521
    %v4773 = vunpack.c.h.b16 %v2521
    %v4774 = vunpack.c.l.b16 %v2522
    %v4775 = vunpack.c.h.b16 %v2522
    %v4776 = vunpack.c.l.b16 %v2523
    %v4777 = vunpack.c.h.b16 %v2523
    %v4778 = vunpack.c.l.b16 %v2524
    %v4779 = vunpack.c.h.b16 %v2524
    %v4780 = vunpack.c.l.b16 %v2525
    %v4781 = vunpack.c.h.b16 %v2525
    %v4782 = vunpack.c.l.b16 %v2526
    %v4783 = vunpack.c.h.b16 %v2526
    %v4784 = vunpack.c.l.b16 %v2527
    %v4785 = vunpack.c.h.b16 %v2527
    %v4786 = vunpack.c.l.b16 %v2528
    %v4787 = vunpack.c.h.b16 %v2528
    %v4788 = vunpack.c.l.b16 %v2529
    %v4789 = vunpack.c.h.b16 %v2529
    %v4790 = vunpack.c.l.b16 %v2530
    %v4791 = vunpack.c.h.b16 %v2530
    %v4792 = vunpack.c.l.b16 %v2531
    %v4793 = vunpack.c.h.b16 %v2531
    %v4794 = vunpack.c.l.b16 %v2532
    %v4795 = vunpack.c.h.b16 %v2532
    %v4796 = vunpack.c.l.b16 %v2533
    %v4797 = vunpack.c.h.b16 %v2533
    %v4798 = vunpack.c.l.b16 %v2534
    %v4799 = vunpack.c.h.b16 %v2534
    %v4800 = vunpack.c.l.b16 %v2535
    %v4801 = vunpack.c.h.b16 %v2535
    %v4802 = vunpack.c.l.b16 %v2536
    %v4803 = vunpack.c.h.b16 %v2536
    %v4804 = vunpack.c.l.b16 %v2537
    %v4805 = vunpack.c.h.b16 %v2537
    %v4806 = vunpack.c.l.b16 %v2538
    %v4807 = vunpack.c.h.b16 %v2538
    %v4808 = vunpack.c.l.b16 %v2539
    %v4809 = vunpack.c.h.b16 %v2539
    %v4810 = vunpack.c.l.b16 %v2540
    %v4811 = vunpack.c.h.b16 %v2540
    %v4812 = vunpack.c.l.b16 %v2541
    %v4813 = vunpack.c.h.b16 %v2541
    %v4814 = vunpack.c.l.b16 %v2542
    %v4815 = vunpack.c.h.b16 %v2542
    %v4816 = vunpack.c.l.b16 %v2543
    %v4817 = vunpack.c.h.b16 %v2543
    %v4818 = vunpack.c.l.b16 %v2544
    %v4819 = vunpack.c.h.b16 %v2544
    %v4820 = vunpack.c.l.b16 %v2545
    %v4821 = vunpack.c.h.b16 %v2545
    %v4822 = vunpack.c.l.b16 %v2546
    %v4823 = vunpack.c.h.b16 %v2546
    %v4824 = vunpack.c.l.b16 %v2547
    %v4825 = vunpack.c.h.b16 %v2547
    %v4826 = vunpack.c.l.b16 %v2548
    %v4827 = vunpack.c.h.b16 %v2548
    %v4828 = vunpack.c.l.b16 %v2549
    %v4829 = vunpack.c.h.b16 %v2549
    %v4830 = vunpack.c.l.b16 %v2550
    %v4831 = vunpack.c.h.b16 %v2550
    %v4832 = vunpack.c.l.b16 %v2551
    %v4833 = vunpack.c.h.b16 %v2551
    %v4834 = vunpack.c.l.b16 %v2552
    %v4835 = vunpack.c.h.b16 %v2552
    %v4836 = vunpack.c.l.b16 %v2553
    %v4837 = vunpack.c.h.b16 %v2553
    %v4838 = vunpack.c.l.b16 %v2554
    %v4839 = vunpack.c.h.b16 %v2554
    %v4840 = vunpack.c.l.b16 %v2555
    %v4841 = vunpack.c.h.b16 %v2555
    %v4842 = vunpack.c.l.b16 %v2556
    %v4843 = vunpack.c.h.b16 %v2556
    %v4844 = vunpack.c.l.b16 %v2557
    %v4845 = vunpack.c.h.b16 %v2557
    %v4846 = vunpack.c.l.b16 %v2558
    %v4847 = vunpack.c.h.b16 %v2558
    %v4848 = vunpack.c.l.b16 %v2559
    %v4849 = vunpack.c.h.b16 %v2559
    %v4850 = vunpack.c.l.b16 %v2560
    %v4851 = vunpack.c.h.b16 %v2560
    %v4852 = vunpack.c.l.b16 %v2561
    %v4853 = vunpack.c.h.b16 %v2561
    %v4854 = vunpack.c.l.b16 %v2562
    %v4855 = vunpack.c.h.b16 %v2562
    %v4856 = vunpack.c.l.b16 %v2563
    %v4857 = vunpack.c.h.b16 %v2563
    %v4858 = vunpack.c.l.b16 %v2564
    %v4859 = vunpack.c.h.b16 %v2564
    %v4860 = vunpack.c.l.b16 %v2565
    %v4861 = vunpack.c.h.b16 %v2565
    %v4862 = vunpack.c.l.b16 %v2566
    %v4863 = vunpack.c.h.b16 %v2566
    %v4864 = vunpack.c.l.b16 %v2567
    %v4865 = vunpack.c.h.b16 %v2567
    %v4866 = vunpack.c.l.b16 %v2568
    %v4867 = vunpack.c.h.b16 %v2568
    %v4868 = vunpack.c.l.b16 %v2569
    %v4869 = vunpack.c.h.b16 %v2569
    %v4870 = vunpack.c.l.b16 %v2570
    %v4871 = vunpack.c.h.b16 %v2570
    %v4872 = vunpack.c.l.b16 %v2571
    %v4873 = vunpack.c.h.b16 %v2571
    %v4874 = vunpack.c.l.b16 %v2572
    %v4875 = vunpack.c.h.b16 %v2572
    %v4876 = vunpack.c.l.b16 %v2573
    %v4877 = vunpack.c.h.b16 %v2573
    %v4878 = vunpack.c.l.b16 %v2574
    %v4879 = vunpack.c.h.b16 %v2574
    %v4880 = vunpack.c.l.b16 %v2575
    %v4881 = vunpack.c.h.b16 %v2575
    %v4882 = vunpack.c.l.b16 %v2576
    %v4883 = vunpack.c.h.b16 %v2576
    %v4884 = vunpack.c.l.b16 %v2577
    %v4885 = vunpack.c.h.b16 %v2577
    %v4886 = vunpack.c.l.b16 %v2578
    %v4887 = vunpack.c.h.b16 %v2578
    %v4888 = vunpack.c.l.b16 %v2579
    %v4889 = vunpack.c.h.b16 %v2579
    %v4890 = vunpack.c.l.b16 %v2580
    %v4891 = vunpack.c.h.b16 %v2580
    %v4892 = vunpack.c.l.b16 %v2581
    %v4893 = vunpack.c.h.b16 %v2581
    %v4894 = vunpack.c.l.b16 %v2582
    %v4895 = vunpack.c.h.b16 %v2582
    %v4896 = vunpack.c.l.b16 %v2583
    %v4897 = vunpack.c.h.b16 %v2583
    %v4898 = vunpack.c.l.b16 %v2584
    %v4899 = vunpack.c.h.b16 %v2584
    %v4900 = vunpack.c.l.b16 %v2585
    %v4901 = vunpack.c.h.b16 %v2585
    %v4902 = vunpack.c.l.b16 %v2586
    %v4903 = vunpack.c.h.b16 %v2586
    %v4904 = vunpack.c.l.b16 %v2587
    %v4905 = vunpack.c.h.b16 %v2587
    %v4906 = vunpack.c.l.b16 %v2588
    %v4907 = vunpack.c.h.b16 %v2588
    %v4908 = vunpack.c.l.b16 %v2589
    %v4909 = vunpack.c.h.b16 %v2589
    %v4910 = vunpack.c.l.b16 %v2590
    %v4911 = vunpack.c.h.b16 %v2590
    %v4912 = vunpack.c.l.b16 %v2591
    %v4913 = vunpack.c.h.b16 %v2591
    %v4914 = vunpack.c.l.b16 %v2592
    %v4915 = vunpack.c.h.b16 %v2592
    %v4916 = vunpack.c.l.b16 %v2593
    %v4917 = vunpack.c.h.b16 %v2593
    %v4918 = vunpack.c.l.b16 %v2594
    %v4919 = vunpack.c.h.b16 %v2594
    %v4920 = vunpack.c.l.b16 %v2595
    %v4921 = vunpack.c.h.b16 %v2595
    %v4922 = vunpack.c.l.b16 %v2596
    %v4923 = vunpack.c.h.b16 %v2596
    %v4924 = vunpack.c.l.b16 %v2597
    %v4925 = vunpack.c.h.b16 %v2597
    %v4926 = vunpack.c.l.b16 %v2598
    %v4927 = vunpack.c.h.b16 %v2598
    %v4928 = vunpack.c.l.b16 %v2599
    %v4929 = vunpack.c.h.b16 %v2599
    %v4930 = vunpack.c.l.b16 %v2600
    %v4931 = vunpack.c.h.b16 %v2600
    %v4932 = vunpack.c.l.b16 %v2601
    %v4933 = vunpack.c.h.b16 %v2601
    %v4934 = vunpack.c.l.b16 %v2602
    %v4935 = vunpack.c.h.b16 %v2602
    %v4936 = vunpack.c.l.b16 %v2603
    %v4937 = vunpack.c.h.b16 %v2603
    %v4938 = vunpack.c.l.b16 %v2604
    %v4939 = vunpack.c.h.b16 %v2604
    %v4940 = vunpack.c.l.b16 %v2605
    %v4941 = vunpack.c.h.b16 %v2605
    %v4942 = vunpack.c.l.b16 %v2606
    %v4943 = vunpack.c.h.b16 %v2606
    %v4944 = vunpack.c.l.b16 %v2607
    %v4945 = vunpack.c.h.b16 %v2607
    %v4946 = vunpack.c.l.b16 %v2608
    %v4947 = vunpack.c.h.b16 %v2608
    %v4948 = vunpack.c.l.b16 %v2609
    %v4949 = vunpack.c.h.b16 %v2609
    %v4950 = vunpack.c.l.b16 %v2610
    %v4951 = vunpack.c.h.b16 %v2610
    %v4952 = vunpack.c.l.b16 %v2611
    %v4953 = vunpack.c.h.b16 %v2611
    %v4954 = vunpack.c.l.b16 %v2612
    %v4955 = vunpack.c.h.b16 %v2612
    %v4956 = vunpack.c.l.b16 %v2613
    %v4957 = vunpack.c.h.b16 %v2613
    %v4958 = vunpack.c.l.b16 %v2614
    %v4959 = vunpack.c.h.b16 %v2614
    %v4960 = vunpack.c.l.b16 %v2615
    %v4961 = vunpack.c.h.b16 %v2615
    %v4962 = vunpack.c.l.b16 %v2616
    %v4963 = vunpack.c.h.b16 %v2616
    %v4964 = vunpack.c.l.b16 %v2617
    %v4965 = vunpack.c.h.b16 %v2617
    %v4966 = vunpack.c.l.b16 %v2618
    %v4967 = vunpack.c.h.b16 %v2618
    %v4968 = vunpack.c.l.b16 %v2619
    %v4969 = vunpack.c.h.b16 %v2619
    %v4970 = vunpack.c.l.b16 %v2620
    %v4971 = vunpack.c.h.b16 %v2620
    %v4972 = vunpack.c.l.b16 %v2621
    %v4973 = vunpack.c.h.b16 %v2621
    %v4974 = vunpack.c.l.b16 %v2622
    %v4975 = vunpack.c.h.b16 %v2622
    %v4976 = vunpack.c.l.b16 %v2623
    %v4977 = vunpack.c.h.b16 %v2623
    %v4978 = vunpack.c.l.b16 %v2624
    %v4979 = vunpack.c.h.b16 %v2624
    %v4980 = vunpack.c.l.b16 %v2625
    %v4981 = vunpack.c.h.b16 %v2625
    %v4982 = vunpack.c.l.b16 %v2626
    %v4983 = vunpack.c.h.b16 %v2626
    %v4984 = vunpack.c.l.b16 %v2627
    %v4985 = vunpack.c.h.b16 %v2627
    %v4986 = vunpack.c.l.b16 %v2628
    %v4987 = vunpack.c.h.b16 %v2628
    %v4988 = vunpack.c.l.b16 %v2629
    %v4989 = vunpack.c.h.b16 %v2629
    %v4990 = vunpack.c.l.b16 %v2630
    %v4991 = vunpack.c.h.b16 %v2630
    %v4992 = vunpack.c.l.b16 %v2631
    %v4993 = vunpack.c.h.b16 %v2631
    %v4994 = vunpack.c.l.b16 %v2632
    %v4995 = vunpack.c.h.b16 %v2632
    %v4996 = vunpack.c.l.b16 %v2633
    %v4997 = vunpack.c.h.b16 %v2633
    %v4998 = vunpack.c.l.b16 %v2634
    %v4999 = vunpack.c.h.b16 %v2634
    %v5000 = vunpack.c.l.b16 %v2635
    %v5001 = vunpack.c.h.b16 %v2635
    %v5002 = vunpack.c.l.b16 %v2636
    %v5003 = vunpack.c.h.b16 %v2636
    %v5004 = vunpack.c.l.b16 %v2637
    %v5005 = vunpack.c.h.b16 %v2637
    %v5006 = vunpack.c.l.b16 %v2638
    %v5007 = vunpack.c.h.b16 %v2638
    %v5008 = vunpack.c.l.b16 %v2639
    %v5009 = vunpack.c.h.b16 %v2639
    %v5010 = vunpack.c.l.b16 %v2640
    %v5011 = vunpack.c.h.b16 %v2640
    %v5012 = vunpack.c.l.b16 %v2641
    %v5013 = vunpack.c.h.b16 %v2641
    %v5014 = vunpack.c.l.b16 %v2642
    %v5015 = vunpack.c.h.b16 %v2642
    %v5016 = vunpack.c.l.b16 %v2643
    %v5017 = vunpack.c.h.b16 %v2643
    %v5018 = vunpack.c.l.b16 %v2644
    %v5019 = vunpack.c.h.b16 %v2644
    %v5020 = vunpack.c.l.b16 %v2645
    %v5021 = vunpack.c.h.b16 %v2645
    %v5022 = vunpack.c.l.b16 %v2646
    %v5023 = vunpack.c.h.b16 %v2646
    %v5024 = vunpack.c.l.b16 %v2647
    %v5025 = vunpack.c.h.b16 %v2647
    %v5026 = vunpack.c.l.b16 %v2648
    %v5027 = vunpack.c.h.b16 %v2648
    %v5028 = vunpack.c.l.b16 %v2649
    %v5029 = vunpack.c.h.b16 %v2649
    %v5030 = vunpack.c.l.b16 %v2650
    %v5031 = vunpack.c.h.b16 %v2650
    %v5032 = vunpack.c.l.b16 %v2651
    %v5033 = vunpack.c.h.b16 %v2651
    %v5034 = vunpack.c.l.b16 %v2652
    %v5035 = vunpack.c.h.b16 %v2652
    %v5036 = vunpack.c.l.b16 %v2653
    %v5037 = vunpack.c.h.b16 %v2653
    %v5038 = vunpack.c.l.b16 %v2654
    %v5039 = vunpack.c.h.b16 %v2654
    %v5040 = vunpack.c.l.b16 %v2655
    %v5041 = vunpack.c.h.b16 %v2655
    %v5042 = vunpack.c.l.b16 %v2656
    %v5043 = vunpack.c.h.b16 %v2656
    %v5044 = vunpack.c.l.b16 %v2657
    %v5045 = vunpack.c.h.b16 %v2657
    %v5046 = vunpack.c.l.b16 %v2658
    %v5047 = vunpack.c.h.b16 %v2658
    %v5048 = vunpack.c.l.b16 %v2659
    %v5049 = vunpack.c.h.b16 %v2659
    %v5050 = vunpack.c.l.b16 %v2660
    %v5051 = vunpack.c.h.b16 %v2660
    %v5052 = vunpack.c.l.b16 %v2661
    %v5053 = vunpack.c.h.b16 %v2661
    %v5054 = vunpack.c.l.b16 %v2662
    %v5055 = vunpack.c.h.b16 %v2662
    %v5056 = vunpack.c.l.b16 %v2663
    %v5057 = vunpack.c.h.b16 %v2663
    %v5058 = vunpack.c.l.b16 %v2664
    %v5059 = vunpack.c.h.b16 %v2664
    %v5060 = vunpack.c.l.b16 %v2665
    %v5061 = vunpack.c.h.b16 %v2665
    %v5062 = vunpack.c.l.b16 %v2666
    %v5063 = vunpack.c.h.b16 %v2666
    %v5064 = vunpack.c.l.b16 %v2667
    %v5065 = vunpack.c.h.b16 %v2667
    %v5066 = vunpack.c.l.b16 %v2668
    %v5067 = vunpack.c.h.b16 %v2668
    %v5068 = vunpack.c.l.b16 %v2669
    %v5069 = vunpack.c.h.b16 %v2669
    %v5070 = vpack.c.b16 %v3474, %v3470
    %v5071 = vpack.c.b16 %v3475, %v3471
    %v5072 = vpack.c.b16 %v3476, %v3472
    %v5073 = vpack.c.b16 %v3477, %v3473
    %v5074 = vpack.c.b16 %v3482, %v3478
    %v5075 = vpack.c.b16 %v3483, %v3479
    %v5076 = vpack.c.b16 %v3484, %v3480
    %v5077 = vpack.c.b16 %v3485, %v3481
    %v5078 = vpack.c.b16 %v3490, %v3486
    %v5079 = vpack.c.b16 %v3491, %v3487
    %v5080 = vpack.c.b16 %v3492, %v3488
    %v5081 = vpack.c.b16 %v3493, %v3489
    %v5082 = vpack.c.b16 %v3498, %v3494
    %v5083 = vpack.c.b16 %v3499, %v3495
    %v5084 = vpack.c.b16 %v3500, %v3496
    %v5085 = vpack.c.b16 %v3501, %v3497
    %v5086 = vpack.c.b16 %v3506, %v3502
    %v5087 = vpack.c.b16 %v3507, %v3503
    %v5088 = vpack.c.b16 %v3508, %v3504
    %v5089 = vpack.c.b16 %v3509, %v3505
    %v5090 = vpack.c.b16 %v3514, %v3510
    %v5091 = vpack.c.b16 %v3515, %v3511
    %v5092 = vpack.c.b16 %v3516, %v3512
    %v5093 = vpack.c.b16 %v3517, %v3513
    %v5094 = vpack.c.b16 %v3522, %v3518
    %v5095 = vpack.c.b16 %v3523, %v3519
    %v5096 = vpack.c.b16 %v3524, %v3520
    %v5097 = vpack.c.b16 %v3525, %v3521
    %v5098 = vpack.c.b16 %v3530, %v3526
    %v5099 = vpack.c.b16 %v3531, %v3527
    %v5100 = vpack.c.b16 %v3532, %v3528
    %v5101 = vpack.c.b16 %v3533, %v3529
    %v5102 = vpack.c.b16 %v3538, %v3534
    %v5103 = vpack.c.b16 %v3539, %v3535
    %v5104 = vpack.c.b16 %v3540, %v3536
    %v5105 = vpack.c.b16 %v3541, %v3537
    %v5106 = vpack.c.b16 %v3546, %v3542
    %v5107 = vpack.c.b16 %v3547, %v3543
    %v5108 = vpack.c.b16 %v3548, %v3544
    %v5109 = vpack.c.b16 %v3549, %v3545
    %v5110 = vpack.c.b16 %v3554, %v3550
    %v5111 = vpack.c.b16 %v3555, %v3551
    %v5112 = vpack.c.b16 %v3556, %v3552
    %v5113 = vpack.c.b16 %v3557, %v3553
    %v5114 = vpack.c.b16 %v3562, %v3558
    %v5115 = vpack.c.b16 %v3563, %v3559
    %v5116 = vpack.c.b16 %v3564, %v3560
    %v5117 = vpack.c.b16 %v3565, %v3561
    %v5118 = vpack.c.b16 %v3570, %v3566
    %v5119 = vpack.c.b16 %v3571, %v3567
    %v5120 = vpack.c.b16 %v3572, %v3568
    %v5121 = vpack.c.b16 %v3573, %v3569
    %v5122 = vpack.c.b16 %v3578, %v3574
    %v5123 = vpack.c.b16 %v3579, %v3575
    %v5124 = vpack.c.b16 %v3580, %v3576
    %v5125 = vpack.c.b16 %v3581, %v3577
    %v5126 = vpack.c.b16 %v3586, %v3582
    %v5127 = vpack.c.b16 %v3587, %v3583
    %v5128 = vpack.c.b16 %v3588, %v3584
    %v5129 = vpack.c.b16 %v3589, %v3585
    %v5130 = vpack.c.b16 %v3594, %v3590
    %v5131 = vpack.c.b16 %v3595, %v3591
    %v5132 = vpack.c.b16 %v3596, %v3592
    %v5133 = vpack.c.b16 %v3597, %v3593
    %v5134 = vpack.c.b16 %v3602, %v3598
    %v5135 = vpack.c.b16 %v3603, %v3599
    %v5136 = vpack.c.b16 %v3604, %v3600
    %v5137 = vpack.c.b16 %v3605, %v3601
    %v5138 = vpack.c.b16 %v3610, %v3606
    %v5139 = vpack.c.b16 %v3611, %v3607
    %v5140 = vpack.c.b16 %v3612, %v3608
    %v5141 = vpack.c.b16 %v3613, %v3609
    %v5142 = vpack.c.b16 %v3618, %v3614
    %v5143 = vpack.c.b16 %v3619, %v3615
    %v5144 = vpack.c.b16 %v3620, %v3616
    %v5145 = vpack.c.b16 %v3621, %v3617
    %v5146 = vpack.c.b16 %v3626, %v3622
    %v5147 = vpack.c.b16 %v3627, %v3623
    %v5148 = vpack.c.b16 %v3628, %v3624
    %v5149 = vpack.c.b16 %v3629, %v3625
    %v5150 = vpack.c.b16 %v3634, %v3630
    %v5151 = vpack.c.b16 %v3635, %v3631
    %v5152 = vpack.c.b16 %v3636, %v3632
    %v5153 = vpack.c.b16 %v3637, %v3633
    %v5154 = vpack.c.b16 %v3642, %v3638
    %v5155 = vpack.c.b16 %v3643, %v3639
    %v5156 = vpack.c.b16 %v3644, %v3640
    %v5157 = vpack.c.b16 %v3645, %v3641
    %v5158 = vpack.c.b16 %v3650, %v3646
    %v5159 = vpack.c.b16 %v3651, %v3647
    %v5160 = vpack.c.b16 %v3652, %v3648
    %v5161 = vpack.c.b16 %v3653, %v3649
    %v5162 = vpack.c.b16 %v3658, %v3654
    %v5163 = vpack.c.b16 %v3659, %v3655
    %v5164 = vpack.c.b16 %v3660, %v3656
    %v5165 = vpack.c.b16 %v3661, %v3657
    %v5166 = vpack.c.b16 %v3666, %v3662
    %v5167 = vpack.c.b16 %v3667, %v3663
    %v5168 = vpack.c.b16 %v3668, %v3664
    %v5169 = vpack.c.b16 %v3669, %v3665
    %v5170 = vpack.c.b16 %v3674, %v3670
    %v5171 = vpack.c.b16 %v3675, %v3671
    %v5172 = vpack.c.b16 %v3676, %v3672
    %v5173 = vpack.c.b16 %v3677, %v3673
    %v5174 = vpack.c.b16 %v3682, %v3678
    %v5175 = vpack.c.b16 %v3683, %v3679
    %v5176 = vpack.c.b16 %v3684, %v3680
    %v5177 = vpack.c.b16 %v3685, %v3681
    %v5178 = vpack.c.b16 %v3690, %v3686
    %v5179 = vpack.c.b16 %v3691, %v3687
    %v5180 = vpack.c.b16 %v3692, %v3688
    %v5181 = vpack.c.b16 %v3693, %v3689
    %v5182 = vpack.c.b16 %v3698, %v3694
    %v5183 = vpack.c.b16 %v3699, %v3695
    %v5184 = vpack.c.b16 %v3700, %v3696
    %v5185 = vpack.c.b16 %v3701, %v3697
    %v5186 = vpack.c.b16 %v3706, %v3702
    %v5187 = vpack.c.b16 %v3707, %v3703
    %v5188 = vpack.c.b16 %v3708, %v3704
    %v5189 = vpack.c.b16 %v3709, %v3705
    %v5190 = vpack.c.b16 %v3714, %v3710
    %v5191 = vpack.c.b16 %v3715, %v3711
    %v5192 = vpack.c.b16 %v3716, %v3712
    %v5193 = vpack.c.b16 %v3717, %v3713
    %v5194 = vpack.c.b16 %v3722, %v3718
    %v5195 = vpack.c.b16 %v3723, %v3719
    %v5196 = vpack.c.b16 %v3724, %v3720
    %v5197 = vpack.c.b16 %v3725, %v3721
    %v5198 = vpack.c.b16 %v3730, %v3726
    %v5199 = vpack.c.b16 %v3731, %v3727
    %v5200 = vpack.c.b16 %v3732, %v3728
    %v5201 = vpack.c.b16 %v3733, %v3729
    %v5202 = vpack.c.b16 %v3738, %v3734
    %v5203 = vpack.c.b16 %v3739, %v3735
    %v5204 = vpack.c.b16 %v3740, %v3736
    %v5205 = vpack.c.b16 %v3741, %v3737
    %v5206 = vpack.c.b16 %v3746, %v3742
    %v5207 = vpack.c.b16 %v3747, %v3743
    %v5208 = vpack.c.b16 %v3748, %v3744
    %v5209 = vpack.c.b16 %v3749, %v3745
    %v5210 = vpack.c.b16 %v3754, %v3750
    %v5211 = vpack.c.b16 %v3755, %v3751
    %v5212 = vpack.c.b16 %v3756, %v3752
    %v5213 = vpack.c.b16 %v3757, %v3753
    %v5214 = vpack.c.b16 %v3762, %v3758
    %v5215 = vpack.c.b16 %v3763, %v3759
    %v5216 = vpack.c.b16 %v3764, %v3760
    %v5217 = vpack.c.b16 %v3765, %v3761
    %v5218 = vpack.c.b16 %v3770, %v3766
    %v5219 = vpack.c.b16 %v3771, %v3767
    %v5220 = vpack.c.b16 %v3772, %v3768
    %v5221 = vpack.c.b16 %v3773, %v3769
    %v5222 = vpack.c.b16 %v3778, %v3774
    %v5223 = vpack.c.b16 %v3779, %v3775
    %v5224 = vpack.c.b16 %v3780, %v3776
    %v5225 = vpack.c.b16 %v3781, %v3777
    %v5226 = vpack.c.b16 %v3786, %v3782
    %v5227 = vpack.c.b16 %v3787, %v3783
    %v5228 = vpack.c.b16 %v3788, %v3784
    %v5229 = vpack.c.b16 %v3789, %v3785
    %v5230 = vpack.c.b16 %v3794, %v3790
    %v5231 = vpack.c.b16 %v3795, %v3791
    %v5232 = vpack.c.b16 %v3796, %v3792
    %v5233 = vpack.c.b16 %v3797, %v3793
    %v5234 = vpack.c.b16 %v3802, %v3798
    %v5235 = vpack.c.b16 %v3803, %v3799
    %v5236 = vpack.c.b16 %v3804, %v3800
    %v5237 = vpack.c.b16 %v3805, %v3801
    %v5238 = vpack.c.b16 %v3810, %v3806
    %v5239 = vpack.c.b16 %v3811, %v3807
    %v5240 = vpack.c.b16 %v3812, %v3808
    %v5241 = vpack.c.b16 %v3813, %v3809
    %v5242 = vpack.c.b16 %v3818, %v3814
    %v5243 = vpack.c.b16 %v3819, %v3815
    %v5244 = vpack.c.b16 %v3820, %v3816
    %v5245 = vpack.c.b16 %v3821, %v3817
    %v5246 = vpack.c.b16 %v3826, %v3822
    %v5247 = vpack.c.b16 %v3827, %v3823
    %v5248 = vpack.c.b16 %v3828, %v3824
    %v5249 = vpack.c.b16 %v3829, %v3825
    %v5250 = vpack.c.b16 %v3834, %v3830
    %v5251 = vpack.c.b16 %v3835, %v3831
    %v5252 = vpack.c.b16 %v3836, %v3832
    %v5253 = vpack.c.b16 %v3837, %v3833
    %v5254 = vpack.c.b16 %v3842, %v3838
    %v5255 = vpack.c.b16 %v3843, %v3839
    %v5256 = vpack.c.b16 %v3844, %v3840
    %v5257 = vpack.c.b16 %v3845, %v3841
    %v5258 = vpack.c.b16 %v3850, %v3846
    %v5259 = vpack.c.b16 %v3851, %v3847
    %v5260 = vpack.c.b16 %v3852, %v3848
    %v5261 = vpack.c.b16 %v3853, %v3849
    %v5262 = vpack.c.b16 %v3858, %v3854
    %v5263 = vpack.c.b16 %v3859, %v3855
    %v5264 = vpack.c.b16 %v3860, %v3856
    %v5265 = vpack.c.b16 %v3861, %v3857
    %v5266 = vpack.c.b16 %v3866, %v3862
    %v5267 = vpack.c.b16 %v3867, %v3863
    %v5268 = vpack.c.b16 %v3868, %v3864
    %v5269 = vpack.c.b16 %v3869, %v3865
    %v5270 = vpack.c.b16 %v3874, %v3870
    %v5271 = vpack.c.b16 %v3875, %v3871
    %v5272 = vpack.c.b16 %v3876, %v3872
    %v5273 = vpack.c.b16 %v3877, %v3873
    %v5274 = vpack.c.b16 %v3882, %v3878
    %v5275 = vpack.c.b16 %v3883, %v3879
    %v5276 = vpack.c.b16 %v3884, %v3880
    %v5277 = vpack.c.b16 %v3885, %v3881
    %v5278 = vpack.c.b16 %v3890, %v3886
    %v5279 = vpack.c.b16 %v3891, %v3887
    %v5280 = vpack.c.b16 %v3892, %v3888
    %v5281 = vpack.c.b16 %v3893, %v3889
    %v5282 = vpack.c.b16 %v3898, %v3894
    %v5283 = vpack.c.b16 %v3899, %v3895
    %v5284 = vpack.c.b16 %v3900, %v3896
    %v5285 = vpack.c.b16 %v3901, %v3897
    %v5286 = vpack.c.b16 %v3906, %v3902
    %v5287 = vpack.c.b16 %v3907, %v3903
    %v5288 = vpack.c.b16 %v3908, %v3904
    %v5289 = vpack.c.b16 %v3909, %v3905
    %v5290 = vpack.c.b16 %v3914, %v3910
    %v5291 = vpack.c.b16 %v3915, %v3911
    %v5292 = vpack.c.b16 %v3916, %v3912
    %v5293 = vpack.c.b16 %v3917, %v3913
    %v5294 = vpack.c.b16 %v3922, %v3918
    %v5295 = vpack.c.b16 %v3923, %v3919
    %v5296 = vpack.c.b16 %v3924, %v3920
    %v5297 = vpack.c.b16 %v3925, %v3921
    %v5298 = vpack.c.b16 %v3930, %v3926
    %v5299 = vpack.c.b16 %v3931, %v3927
    %v5300 = vpack.c.b16 %v3932, %v3928
    %v5301 = vpack.c.b16 %v3933, %v3929
    %v5302 = vpack.c.b16 %v3938, %v3934
    %v5303 = vpack.c.b16 %v3939, %v3935
    %v5304 = vpack.c.b16 %v3940, %v3936
    %v5305 = vpack.c.b16 %v3941, %v3937
    %v5306 = vpack.c.b16 %v3946, %v3942
    %v5307 = vpack.c.b16 %v3947, %v3943
    %v5308 = vpack.c.b16 %v3948, %v3944
    %v5309 = vpack.c.b16 %v3949, %v3945
    %v5310 = vpack.c.b16 %v3954, %v3950
    %v5311 = vpack.c.b16 %v3955, %v3951
    %v5312 = vpack.c.b16 %v3956, %v3952
    %v5313 = vpack.c.b16 %v3957, %v3953
    %v5314 = vpack.c.b16 %v3962, %v3958
    %v5315 = vpack.c.b16 %v3963, %v3959
    %v5316 = vpack.c.b16 %v3964, %v3960
    %v5317 = vpack.c.b16 %v3965, %v3961
    %v5318 = vpack.c.b16 %v3970, %v3966
    %v5319 = vpack.c.b16 %v3971, %v3967
    %v5320 = vpack.c.b16 %v3972, %v3968
    %v5321 = vpack.c.b16 %v3973, %v3969
    %v5322 = vpack.c.b16 %v3978, %v3974
    %v5323 = vpack.c.b16 %v3979, %v3975
    %v5324 = vpack.c.b16 %v3980, %v3976
    %v5325 = vpack.c.b16 %v3981, %v3977
    %v5326 = vpack.c.b16 %v3986, %v3982
    %v5327 = vpack.c.b16 %v3987, %v3983
    %v5328 = vpack.c.b16 %v3988, %v3984
    %v5329 = vpack.c.b16 %v3989, %v3985
    %v5330 = vpack.c.b16 %v3994, %v3990
    %v5331 = vpack.c.b16 %v3995, %v3991
    %v5332 = vpack.c.b16 %v3996, %v3992
    %v5333 = vpack.c.b16 %v3997, %v3993
    %v5334 = vpack.c.b16 %v4002, %v3998
    %v5335 = vpack.c.b16 %v4003, %v3999
    %v5336 = vpack.c.b16 %v4004, %v4000
    %v5337 = vpack.c.b16 %v4005, %v4001
    %v5338 = vpack.c.b16 %v4010, %v4006
    %v5339 = vpack.c.b16 %v4011, %v4007
    %v5340 = vpack.c.b16 %v4012, %v4008
    %v5341 = vpack.c.b16 %v4013, %v4009
    %v5342 = vpack.c.b16 %v4018, %v4014
    %v5343 = vpack.c.b16 %v4019, %v4015
    %v5344 = vpack.c.b16 %v4020, %v4016
    %v5345 = vpack.c.b16 %v4021, %v4017
    %v5346 = vpack.c.b16 %v4026, %v4022
    %v5347 = vpack.c.b16 %v4027, %v4023
    %v5348 = vpack.c.b16 %v4028, %v4024
    %v5349 = vpack.c.b16 %v4029, %v4025
    %v5350 = vpack.c.b16 %v4034, %v4030
    %v5351 = vpack.c.b16 %v4035, %v4031
    %v5352 = vpack.c.b16 %v4036, %v4032
    %v5353 = vpack.c.b16 %v4037, %v4033
    %v5354 = vpack.c.b16 %v4042, %v4038
    %v5355 = vpack.c.b16 %v4043, %v4039
    %v5356 = vpack.c.b16 %v4044, %v4040
    %v5357 = vpack.c.b16 %v4045, %v4041
    %v5358 = vpack.c.b16 %v4050, %v4046
    %v5359 = vpack.c.b16 %v4051, %v4047
    %v5360 = vpack.c.b16 %v4052, %v4048
    %v5361 = vpack.c.b16 %v4053, %v4049
    %v5362 = vpack.c.b16 %v4058, %v4054
    %v5363 = vpack.c.b16 %v4059, %v4055
    %v5364 = vpack.c.b16 %v4060, %v4056
    %v5365 = vpack.c.b16 %v4061, %v4057
    %v5366 = vpack.c.b16 %v4066, %v4062
    %v5367 = vpack.c.b16 %v4067, %v4063
    %v5368 = vpack.c.b16 %v4068, %v4064
    %v5369 = vpack.c.b16 %v4069, %v4065
    %v5370 = vpack.c.b16 %v4074, %v4070
    %v5371 = vpack.c.b16 %v4075, %v4071
    %v5372 = vpack.c.b16 %v4076, %v4072
    %v5373 = vpack.c.b16 %v4077, %v4073
    %v5374 = vpack.c.b16 %v4082, %v4078
    %v5375 = vpack.c.b16 %v4083, %v4079
    %v5376 = vpack.c.b16 %v4084, %v4080
    %v5377 = vpack.c.b16 %v4085, %v4081
    %v5378 = vpack.c.b16 %v4090, %v4086
    %v5379 = vpack.c.b16 %v4091, %v4087
    %v5380 = vpack.c.b16 %v4092, %v4088
    %v5381 = vpack.c.b16 %v4093, %v4089
    %v5382 = vpack.c.b16 %v4098, %v4094
    %v5383 = vpack.c.b16 %v4099, %v4095
    %v5384 = vpack.c.b16 %v4100, %v4096
    %v5385 = vpack.c.b16 %v4101, %v4097
    %v5386 = vpack.c.b16 %v4106, %v4102
    %v5387 = vpack.c.b16 %v4107, %v4103
    %v5388 = vpack.c.b16 %v4108, %v4104
    %v5389 = vpack.c.b16 %v4109, %v4105
    %v5390 = vpack.c.b16 %v4114, %v4110
    %v5391 = vpack.c.b16 %v4115, %v4111
    %v5392 = vpack.c.b16 %v4116, %v4112
    %v5393 = vpack.c.b16 %v4117, %v4113
    %v5394 = vpack.c.b16 %v4122, %v4118
    %v5395 = vpack.c.b16 %v4123, %v4119
    %v5396 = vpack.c.b16 %v4124, %v4120
    %v5397 = vpack.c.b16 %v4125, %v4121
    %v5398 = vpack.c.b16 %v4130, %v4126
    %v5399 = vpack.c.b16 %v4131, %v4127
    %v5400 = vpack.c.b16 %v4132, %v4128
    %v5401 = vpack.c.b16 %v4133, %v4129
    %v5402 = vpack.c.b16 %v4138, %v4134
    %v5403 = vpack.c.b16 %v4139, %v4135
    %v5404 = vpack.c.b16 %v4140, %v4136
    %v5405 = vpack.c.b16 %v4141, %v4137
    %v5406 = vpack.c.b16 %v4146, %v4142
    %v5407 = vpack.c.b16 %v4147, %v4143
    %v5408 = vpack.c.b16 %v4148, %v4144
    %v5409 = vpack.c.b16 %v4149, %v4145
    %v5410 = vpack.c.b16 %v4154, %v4150
    %v5411 = vpack.c.b16 %v4155, %v4151
    %v5412 = vpack.c.b16 %v4156, %v4152
    %v5413 = vpack.c.b16 %v4157, %v4153
    %v5414 = vpack.c.b16 %v4162, %v4158
    %v5415 = vpack.c.b16 %v4163, %v4159
    %v5416 = vpack.c.b16 %v4164, %v4160
    %v5417 = vpack.c.b16 %v4165, %v4161
    %v5418 = vpack.c.b16 %v4170, %v4166
    %v5419 = vpack.c.b16 %v4171, %v4167
    %v5420 = vpack.c.b16 %v4172, %v4168
    %v5421 = vpack.c.b16 %v4173, %v4169
    %v5422 = vpack.c.b16 %v4178, %v4174
    %v5423 = vpack.c.b16 %v4179, %v4175
    %v5424 = vpack.c.b16 %v4180, %v4176
    %v5425 = vpack.c.b16 %v4181, %v4177
    %v5426 = vpack.c.b16 %v4186, %v4182
    %v5427 = vpack.c.b16 %v4187, %v4183
    %v5428 = vpack.c.b16 %v4188, %v4184
    %v5429 = vpack.c.b16 %v4189, %v4185
    %v5430 = vpack.c.b16 %v4194, %v4190
    %v5431 = vpack.c.b16 %v4195, %v4191
    %v5432 = vpack.c.b16 %v4196, %v4192
    %v5433 = vpack.c.b16 %v4197, %v4193
    %v5434 = vpack.c.b16 %v4202, %v4198
    %v5435 = vpack.c.b16 %v4203, %v4199
    %v5436 = vpack.c.b16 %v4204, %v4200
    %v5437 = vpack.c.b16 %v4205, %v4201
    %v5438 = vpack.c.b16 %v4210, %v4206
    %v5439 = vpack.c.b16 %v4211, %v4207
    %v5440 = vpack.c.b16 %v4212, %v4208
    %v5441 = vpack.c.b16 %v4213, %v4209
    %v5442 = vpack.c.b16 %v4218, %v4214
    %v5443 = vpack.c.b16 %v4219, %v4215
    %v5444 = vpack.c.b16 %v4220, %v4216
    %v5445 = vpack.c.b16 %v4221, %v4217
    %v5446 = vpack.c.b16 %v4226, %v4222
    %v5447 = vpack.c.b16 %v4227, %v4223
    %v5448 = vpack.c.b16 %v4228, %v4224
    %v5449 = vpack.c.b16 %v4229, %v4225
    %v5450 = vpack.c.b16 %v4234, %v4230
    %v5451 = vpack.c.b16 %v4235, %v4231
    %v5452 = vpack.c.b16 %v4236, %v4232
    %v5453 = vpack.c.b16 %v4237, %v4233
    %v5454 = vpack.c.b16 %v4242, %v4238
    %v5455 = vpack.c.b16 %v4243, %v4239
    %v5456 = vpack.c.b16 %v4244, %v4240
    %v5457 = vpack.c.b16 %v4245, %v4241
    %v5458 = vpack.c.b16 %v4250, %v4246
    %v5459 = vpack.c.b16 %v4251, %v4247
    %v5460 = vpack.c.b16 %v4252, %v4248
    %v5461 = vpack.c.b16 %v4253, %v4249
    %v5462 = vpack.c.b16 %v4258, %v4254
    %v5463 = vpack.c.b16 %v4259, %v4255
    %v5464 = vpack.c.b16 %v4260, %v4256
    %v5465 = vpack.c.b16 %v4261, %v4257
    %v5466 = vpack.c.b16 %v4266, %v4262
    %v5467 = vpack.c.b16 %v4267, %v4263
    %v5468 = vpack.c.b16 %v4268, %v4264
    %v5469 = vpack.c.b16 %v4269, %v4265
    %v5470 = vpack.c.b16 %v4274, %v4270
    %v5471 = vpack.c.b16 %v4275, %v4271
    %v5472 = vpack.c.b16 %v4276, %v4272
    %v5473 = vpack.c.b16 %v4277, %v4273
    %v5474 = vpack.c.b16 %v4282, %v4278
    %v5475 = vpack.c.b16 %v4283, %v4279
    %v5476 = vpack.c.b16 %v4284, %v4280
    %v5477 = vpack.c.b16 %v4285, %v4281
    %v5478 = vpack.c.b16 %v4290, %v4286
    %v5479 = vpack.c.b16 %v4291, %v4287
    %v5480 = vpack.c.b16 %v4292, %v4288
    %v5481 = vpack.c.b16 %v4293, %v4289
    %v5482 = vpack.c.b16 %v4298, %v4294
    %v5483 = vpack.c.b16 %v4299, %v4295
    %v5484 = vpack.c.b16 %v4300, %v4296
    %v5485 = vpack.c.b16 %v4301, %v4297
    %v5486 = vpack.c.b16 %v4306, %v4302
    %v5487 = vpack.c.b16 %v4307, %v4303
    %v5488 = vpack.c.b16 %v4308, %v4304
    %v5489 = vpack.c.b16 %v4309, %v4305
    %v5490 = vpack.c.b16 %v4314, %v4310
    %v5491 = vpack.c.b16 %v4315, %v4311
    %v5492 = vpack.c.b16 %v4316, %v4312
    %v5493 = vpack.c.b16 %v4317, %v4313
    %v5494 = vpack.c.b16 %v4322, %v4318
    %v5495 = vpack.c.b16 %v4323, %v4319
    %v5496 = vpack.c.b16 %v4324, %v4320
    %v5497 = vpack.c.b16 %v4325, %v4321
    %v5498 = vpack.c.b16 %v4330, %v4326
    %v5499 = vpack.c.b16 %v4331, %v4327
    %v5500 = vpack.c.b16 %v4332, %v4328
    %v5501 = vpack.c.b16 %v4333, %v4329
    %v5502 = vpack.c.b16 %v4338, %v4334
    %v5503 = vpack.c.b16 %v4339, %v4335
    %v5504 = vpack.c.b16 %v4340, %v4336
    %v5505 = vpack.c.b16 %v4341, %v4337
    %v5506 = vpack.c.b16 %v4346, %v4342
    %v5507 = vpack.c.b16 %v4347, %v4343
    %v5508 = vpack.c.b16 %v4348, %v4344
    %v5509 = vpack.c.b16 %v4349, %v4345
    %v5510 = vpack.c.b16 %v4354, %v4350
    %v5511 = vpack.c.b16 %v4355, %v4351
    %v5512 = vpack.c.b16 %v4356, %v4352
    %v5513 = vpack.c.b16 %v4357, %v4353
    %v5514 = vpack.c.b16 %v4362, %v4358
    %v5515 = vpack.c.b16 %v4363, %v4359
    %v5516 = vpack.c.b16 %v4364, %v4360
    %v5517 = vpack.c.b16 %v4365, %v4361
    %v5518 = vpack.c.b16 %v4370, %v4366
    %v5519 = vpack.c.b16 %v4371, %v4367
    %v5520 = vpack.c.b16 %v4372, %v4368
    %v5521 = vpack.c.b16 %v4373, %v4369
    %v5522 = vpack.c.b16 %v4378, %v4374
    %v5523 = vpack.c.b16 %v4379, %v4375
    %v5524 = vpack.c.b16 %v4380, %v4376
    %v5525 = vpack.c.b16 %v4381, %v4377
    %v5526 = vpack.c.b16 %v4386, %v4382
    %v5527 = vpack.c.b16 %v4387, %v4383
    %v5528 = vpack.c.b16 %v4388, %v4384
    %v5529 = vpack.c.b16 %v4389, %v4385
    %v5530 = vpack.c.b16 %v4394, %v4390
    %v5531 = vpack.c.b16 %v4395, %v4391
    %v5532 = vpack.c.b16 %v4396, %v4392
    %v5533 = vpack.c.b16 %v4397, %v4393
    %v5534 = vpack.c.b16 %v4402, %v4398
    %v5535 = vpack.c.b16 %v4403, %v4399
    %v5536 = vpack.c.b16 %v4404, %v4400
    %v5537 = vpack.c.b16 %v4405, %v4401
    %v5538 = vpack.c.b16 %v4410, %v4406
    %v5539 = vpack.c.b16 %v4411, %v4407
    %v5540 = vpack.c.b16 %v4412, %v4408
    %v5541 = vpack.c.b16 %v4413, %v4409
    %v5542 = vpack.c.b16 %v4418, %v4414
    %v5543 = vpack.c.b16 %v4419, %v4415
    %v5544 = vpack.c.b16 %v4420, %v4416
    %v5545 = vpack.c.b16 %v4421, %v4417
    %v5546 = vpack.c.b16 %v4426, %v4422
    %v5547 = vpack.c.b16 %v4427, %v4423
    %v5548 = vpack.c.b16 %v4428, %v4424
    %v5549 = vpack.c.b16 %v4429, %v4425
    %v5550 = vpack.c.b16 %v4434, %v4430
    %v5551 = vpack.c.b16 %v4435, %v4431
    %v5552 = vpack.c.b16 %v4436, %v4432
    %v5553 = vpack.c.b16 %v4437, %v4433
    %v5554 = vpack.c.b16 %v4442, %v4438
    %v5555 = vpack.c.b16 %v4443, %v4439
    %v5556 = vpack.c.b16 %v4444, %v4440
    %v5557 = vpack.c.b16 %v4445, %v4441
    %v5558 = vpack.c.b16 %v4450, %v4446
    %v5559 = vpack.c.b16 %v4451, %v4447
    %v5560 = vpack.c.b16 %v4452, %v4448
    %v5561 = vpack.c.b16 %v4453, %v4449
    %v5562 = vpack.c.b16 %v4458, %v4454
    %v5563 = vpack.c.b16 %v4459, %v4455
    %v5564 = vpack.c.b16 %v4460, %v4456
    %v5565 = vpack.c.b16 %v4461, %v4457
    %v5566 = vpack.c.b16 %v4466, %v4462
    %v5567 = vpack.c.b16 %v4467, %v4463
    %v5568 = vpack.c.b16 %v4468, %v4464
    %v5569 = vpack.c.b16 %v4469, %v4465
    %v5570 = vpack.c.b16 %v4474, %v4470
    %v5571 = vpack.c.b16 %v4475, %v4471
    %v5572 = vpack.c.b16 %v4476, %v4472
    %v5573 = vpack.c.b16 %v4477, %v4473
    %v5574 = vpack.c.b16 %v4482, %v4478
    %v5575 = vpack.c.b16 %v4483, %v4479
    %v5576 = vpack.c.b16 %v4484, %v4480
    %v5577 = vpack.c.b16 %v4485, %v4481
    %v5578 = vpack.c.b16 %v4490, %v4486
    %v5579 = vpack.c.b16 %v4491, %v4487
    %v5580 = vpack.c.b16 %v4492, %v4488
    %v5581 = vpack.c.b16 %v4493, %v4489
    %v5582 = vpack.c.b16 %v4498, %v4494
    %v5583 = vpack.c.b16 %v4499, %v4495
    %v5584 = vpack.c.b16 %v4500, %v4496
    %v5585 = vpack.c.b16 %v4501, %v4497
    %v5586 = vpack.c.b16 %v4506, %v4502
    %v5587 = vpack.c.b16 %v4507, %v4503
    %v5588 = vpack.c.b16 %v4508, %v4504
    %v5589 = vpack.c.b16 %v4509, %v4505
    %v5590 = vpack.c.b16 %v4514, %v4510
    %v5591 = vpack.c.b16 %v4515, %v4511
    %v5592 = vpack.c.b16 %v4516, %v4512
    %v5593 = vpack.c.b16 %v4517, %v4513
    %v5594 = vpack.c.b16 %v4522, %v4518
    %v5595 = vpack.c.b16 %v4523, %v4519
    %v5596 = vpack.c.b16 %v4524, %v4520
    %v5597 = vpack.c.b16 %v4525, %v4521
    %v5598 = vpack.c.b16 %v4530, %v4526
    %v5599 = vpack.c.b16 %v4531, %v4527
    %v5600 = vpack.c.b16 %v4532, %v4528
    %v5601 = vpack.c.b16 %v4533, %v4529
    %v5602 = vpack.c.b16 %v4538, %v4534
    %v5603 = vpack.c.b16 %v4539, %v4535
    %v5604 = vpack.c.b16 %v4540, %v4536
    %v5605 = vpack.c.b16 %v4541, %v4537
    %v5606 = vpack.c.b16 %v4546, %v4542
    %v5607 = vpack.c.b16 %v4547, %v4543
    %v5608 = vpack.c.b16 %v4548, %v4544
    %v5609 = vpack.c.b16 %v4549, %v4545
    %v5610 = vpack.c.b16 %v4554, %v4550
    %v5611 = vpack.c.b16 %v4555, %v4551
    %v5612 = vpack.c.b16 %v4556, %v4552
    %v5613 = vpack.c.b16 %v4557, %v4553
    %v5614 = vpack.c.b16 %v4562, %v4558
    %v5615 = vpack.c.b16 %v4563, %v4559
    %v5616 = vpack.c.b16 %v4564, %v4560
    %v5617 = vpack.c.b16 %v4565, %v4561
    %v5618 = vpack.c.b16 %v4570, %v4566
    %v5619 = vpack.c.b16 %v4571, %v4567
    %v5620 = vpack.c.b16 %v4572, %v4568
    %v5621 = vpack.c.b16 %v4573, %v4569
    %v5622 = vpack.c.b16 %v4578, %v4574
    %v5623 = vpack.c.b16 %v4579, %v4575
    %v5624 = vpack.c.b16 %v4580, %v4576
    %v5625 = vpack.c.b16 %v4581, %v4577
    %v5626 = vpack.c.b16 %v4586, %v4582
    %v5627 = vpack.c.b16 %v4587, %v4583
    %v5628 = vpack.c.b16 %v4588, %v4584
    %v5629 = vpack.c.b16 %v4589, %v4585
    %v5630 = vpack.c.b16 %v4594, %v4590
    %v5631 = vpack.c.b16 %v4595, %v4591
    %v5632 = vpack.c.b16 %v4596, %v4592
    %v5633 = vpack.c.b16 %v4597, %v4593
    %v5634 = vpack.c.b16 %v4602, %v4598
    %v5635 = vpack.c.b16 %v4603, %v4599
    %v5636 = vpack.c.b16 %v4604, %v4600
    %v5637 = vpack.c.b16 %v4605, %v4601
    %v5638 = vpack.c.b16 %v4610, %v4606
    %v5639 = vpack.c.b16 %v4611, %v4607
    %v5640 = vpack.c.b16 %v4612, %v4608
    %v5641 = vpack.c.b16 %v4613, %v4609
    %v5642 = vpack.c.b16 %v4618, %v4614
    %v5643 = vpack.c.b16 %v4619, %v4615
    %v5644 = vpack.c.b16 %v4620, %v4616
    %v5645 = vpack.c.b16 %v4621, %v4617
    %v5646 = vpack.c.b16 %v4626, %v4622
    %v5647 = vpack.c.b16 %v4627, %v4623
    %v5648 = vpack.c.b16 %v4628, %v4624
    %v5649 = vpack.c.b16 %v4629, %v4625
    %v5650 = vpack.c.b16 %v4634, %v4630
    %v5651 = vpack.c.b16 %v4635, %v4631
    %v5652 = vpack.c.b16 %v4636, %v4632
    %v5653 = vpack.c.b16 %v4637, %v4633
    %v5654 = vpack.c.b16 %v4642, %v4638
    %v5655 = vpack.c.b16 %v4643, %v4639
    %v5656 = vpack.c.b16 %v4644, %v4640
    %v5657 = vpack.c.b16 %v4645, %v4641
    %v5658 = vpack.c.b16 %v4650, %v4646
    %v5659 = vpack.c.b16 %v4651, %v4647
    %v5660 = vpack.c.b16 %v4652, %v4648
    %v5661 = vpack.c.b16 %v4653, %v4649
    %v5662 = vpack.c.b16 %v4658, %v4654
    %v5663 = vpack.c.b16 %v4659, %v4655
    %v5664 = vpack.c.b16 %v4660, %v4656
    %v5665 = vpack.c.b16 %v4661, %v4657
    %v5666 = vpack.c.b16 %v4666, %v4662
    %v5667 = vpack.c.b16 %v4667, %v4663
    %v5668 = vpack.c.b16 %v4668, %v4664
    %v5669 = vpack.c.b16 %v4669, %v4665
    %v5670 = vpack.c.b16 %v4674, %v4670
    %v5671 = vpack.c.b16 %v4675, %v4671
    %v5672 = vpack.c.b16 %v4676, %v4672
    %v5673 = vpack.c.b16 %v4677, %v4673
    %v5674 = vpack.c.b16 %v4682, %v4678
    %v5675 = vpack.c.b16 %v4683, %v4679
    %v5676 = vpack.c.b16 %v4684, %v4680
    %v5677 = vpack.c.b16 %v4685, %v4681
    %v5678 = vpack.c.b16 %v4690, %v4686
    %v5679 = vpack.c.b16 %v4691, %v4687
    %v5680 = vpack.c.b16 %v4692, %v4688
    %v5681 = vpack.c.b16 %v4693, %v4689
    %v5682 = vpack.c.b16 %v4698, %v4694
    %v5683 = vpack.c.b16 %v4699, %v4695
    %v5684 = vpack.c.b16 %v4700, %v4696
    %v5685 = vpack.c.b16 %v4701, %v4697
    %v5686 = vpack.c.b16 %v4706, %v4702
    %v5687 = vpack.c.b16 %v4707, %v4703
    %v5688 = vpack.c.b16 %v4708, %v4704
    %v5689 = vpack.c.b16 %v4709, %v4705
    %v5690 = vpack.c.b16 %v4714, %v4710
    %v5691 = vpack.c.b16 %v4715, %v4711
    %v5692 = vpack.c.b16 %v4716, %v4712
    %v5693 = vpack.c.b16 %v4717, %v4713
    %v5694 = vpack.c.b16 %v4722, %v4718
    %v5695 = vpack.c.b16 %v4723, %v4719
    %v5696 = vpack.c.b16 %v4724, %v4720
    %v5697 = vpack.c.b16 %v4725, %v4721
    %v5698 = vpack.c.b16 %v4730, %v4726
    %v5699 = vpack.c.b16 %v4731, %v4727
    %v5700 = vpack.c.b16 %v4732, %v4728
    %v5701 = vpack.c.b16 %v4733, %v4729
    %v5702 = vpack.c.b16 %v4738, %v4734
    %v5703 = vpack.c.b16 %v4739, %v4735
    %v5704 = vpack.c.b16 %v4740, %v4736
    %v5705 = vpack.c.b16 %v4741, %v4737
    %v5706 = vpack.c.b16 %v4746, %v4742
    %v5707 = vpack.c.b16 %v4747, %v4743
    %v5708 = vpack.c.b16 %v4748, %v4744
    %v5709 = vpack.c.b16 %v4749, %v4745
    %v5710 = vpack.c.b16 %v4754, %v4750
    %v5711 = vpack.c.b16 %v4755, %v4751
    %v5712 = vpack.c.b16 %v4756, %v4752
    %v5713 = vpack.c.b16 %v4757, %v4753
    %v5714 = vpack.c.b16 %v4762, %v4758
    %v5715 = vpack.c.b16 %v4763, %v4759
    %v5716 = vpack.c.b16 %v4764, %v4760
    %v5717 = vpack.c.b16 %v4765, %v4761
    %v5718 = vpack.c.b16 %v4770, %v4766
    %v5719 = vpack.c.b16 %v4771, %v4767
    %v5720 = vpack.c.b16 %v4772, %v4768
    %v5721 = vpack.c.b16 %v4773, %v4769
    %v5722 = vpack.c.b16 %v4778, %v4774
    %v5723 = vpack.c.b16 %v4779, %v4775
    %v5724 = vpack.c.b16 %v4780, %v4776
    %v5725 = vpack.c.b16 %v4781, %v4777
    %v5726 = vpack.c.b16 %v4786, %v4782
    %v5727 = vpack.c.b16 %v4787, %v4783
    %v5728 = vpack.c.b16 %v4788, %v4784
    %v5729 = vpack.c.b16 %v4789, %v4785
    %v5730 = vpack.c.b16 %v4794, %v4790
    %v5731 = vpack.c.b16 %v4795, %v4791
    %v5732 = vpack.c.b16 %v4796, %v4792
    %v5733 = vpack.c.b16 %v4797, %v4793
    %v5734 = vpack.c.b16 %v4802, %v4798
    %v5735 = vpack.c.b16 %v4803, %v4799
    %v5736 = vpack.c.b16 %v4804, %v4800
    %v5737 = vpack.c.b16 %v4805, %v4801
    %v5738 = vpack.c.b16 %v4810, %v4806
    %v5739 = vpack.c.b16 %v4811, %v4807
    %v5740 = vpack.c.b16 %v4812, %v4808
    %v5741 = vpack.c.b16 %v4813, %v4809
    %v5742 = vpack.c.b16 %v4818, %v4814
    %v5743 = vpack.c.b16 %v4819, %v4815
    %v5744 = vpack.c.b16 %v4820, %v4816
    %v5745 = vpack.c.b16 %v4821, %v4817
    %v5746 = vpack.c.b16 %v4826, %v4822
    %v5747 = vpack.c.b16 %v4827, %v4823
    %v5748 = vpack.c.b16 %v4828, %v4824
    %v5749 = vpack.c.b16 %v4829, %v4825
    %v5750 = vpack.c.b16 %v4834, %v4830
    %v5751 = vpack.c.b16 %v4835, %v4831
    %v5752 = vpack.c.b16 %v4836, %v4832
    %v5753 = vpack.c.b16 %v4837, %v4833
    %v5754 = vpack.c.b16 %v4842, %v4838
    %v5755 = vpack.c.b16 %v4843, %v4839
    %v5756 = vpack.c.b16 %v4844, %v4840
    %v5757 = vpack.c.b16 %v4845, %v4841
    %v5758 = vpack.c.b16 %v4850, %v4846
    %v5759 = vpack.c.b16 %v4851, %v4847
    %v5760 = vpack.c.b16 %v4852, %v4848
    %v5761 = vpack.c.b16 %v4853, %v4849
    %v5762 = vpack.c.b16 %v4858, %v4854
    %v5763 = vpack.c.b16 %v4859, %v4855
    %v5764 = vpack.c.b16 %v4860, %v4856
    %v5765 = vpack.c.b16 %v4861, %v4857
    %v5766 = vpack.c.b16 %v4866, %v4862
    %v5767 = vpack.c.b16 %v4867, %v4863
    %v5768 = vpack.c.b16 %v4868, %v4864
    %v5769 = vpack.c.b16 %v4869, %v4865
    %v5770 = vpack.c.b16 %v4874, %v4870
    %v5771 = vpack.c.b16 %v4875, %v4871
    %v5772 = vpack.c.b16 %v4876, %v4872
    %v5773 = vpack.c.b16 %v4877, %v4873
    %v5774 = vpack.c.b16 %v4882, %v4878
    %v5775 = vpack.c.b16 %v4883, %v4879
    %v5776 = vpack.c.b16 %v4884, %v4880
    %v5777 = vpack.c.b16 %v4885, %v4881
    %v5778 = vpack.c.b16 %v4890, %v4886
    %v5779 = vpack.c.b16 %v4891, %v4887
    %v5780 = vpack.c.b16 %v4892, %v4888
    %v5781 = vpack.c.b16 %v4893, %v4889
    %v5782 = vpack.c.b16 %v4898, %v4894
    %v5783 = vpack.c.b16 %v4899, %v4895
    %v5784 = vpack.c.b16 %v4900, %v4896
    %v5785 = vpack.c.b16 %v4901, %v4897
    %v5786 = vpack.c.b16 %v4906, %v4902
    %v5787 = vpack.c.b16 %v4907, %v4903
    %v5788 = vpack.c.b16 %v4908, %v4904
    %v5789 = vpack.c.b16 %v4909, %v4905
    %v5790 = vpack.c.b16 %v4914, %v4910
    %v5791 = vpack.c.b16 %v4915, %v4911
    %v5792 = vpack.c.b16 %v4916, %v4912
    %v5793 = vpack.c.b16 %v4917, %v4913
    %v5794 = vpack.c.b16 %v4922, %v4918
    %v5795 = vpack.c.b16 %v4923, %v4919
    %v5796 = vpack.c.b16 %v4924, %v4920
    %v5797 = vpack.c.b16 %v4925, %v4921
    %v5798 = vpack.c.b16 %v4930, %v4926
    %v5799 = vpack.c.b16 %v4931, %v4927
    %v5800 = vpack.c.b16 %v4932, %v4928
    %v5801 = vpack.c.b16 %v4933, %v4929
    %v5802 = vpack.c.b16 %v4938, %v4934
    %v5803 = vpack.c.b16 %v4939, %v4935
    %v5804 = vpack.c.b16 %v4940, %v4936
    %v5805 = vpack.c.b16 %v4941, %v4937
    %v5806 = vpack.c.b16 %v4946, %v4942
    %v5807 = vpack.c.b16 %v4947, %v4943
    %v5808 = vpack.c.b16 %v4948, %v4944
    %v5809 = vpack.c.b16 %v4949, %v4945
    %v5810 = vpack.c.b16 %v4954, %v4950
    %v5811 = vpack.c.b16 %v4955, %v4951
    %v5812 = vpack.c.b16 %v4956, %v4952
    %v5813 = vpack.c.b16 %v4957, %v4953
    %v5814 = vpack.c.b16 %v4962, %v4958
    %v5815 = vpack.c.b16 %v4963, %v4959
    %v5816 = vpack.c.b16 %v4964, %v4960
    %v5817 = vpack.c.b16 %v4965, %v4961
    %v5818 = vpack.c.b16 %v4970, %v4966
    %v5819 = vpack.c.b16 %v4971, %v4967
    %v5820 = vpack.c.b16 %v4972, %v4968
    %v5821 = vpack.c.b16 %v4973, %v4969
    %v5822 = vpack.c.b16 %v4978, %v4974
    %v5823 = vpack.c.b16 %v4979, %v4975
    %v5824 = vpack.c.b16 %v4980, %v4976
    %v5825 = vpack.c.b16 %v4981, %v4977
    %v5826 = vpack.c.b16 %v4986, %v4982
    %v5827 = vpack.c.b16 %v4987, %v4983
    %v5828 = vpack.c.b16 %v4988, %v4984
    %v5829 = vpack.c.b16 %v4989, %v4985
    %v5830 = vpack.c.b16 %v4994, %v4990
    %v5831 = vpack.c.b16 %v4995, %v4991
    %v5832 = vpack.c.b16 %v4996, %v4992
    %v5833 = vpack.c.b16 %v4997, %v4993
    %v5834 = vpack.c.b16 %v5002, %v4998
    %v5835 = vpack.c.b16 %v5003, %v4999
    %v5836 = vpack.c.b16 %v5004, %v5000
    %v5837 = vpack.c.b16 %v5005, %v5001
    %v5838 = vpack.c.b16 %v5010, %v5006
    %v5839 = vpack.c.b16 %v5011, %v5007
    %v5840 = vpack.c.b16 %v5012, %v5008
    %v5841 = vpack.c.b16 %v5013, %v5009
    %v5842 = vpack.c.b16 %v5018, %v5014
    %v5843 = vpack.c.b16 %v5019, %v5015
    %v5844 = vpack.c.b16 %v5020, %v5016
    %v5845 = vpack.c.b16 %v5021, %v5017
    %v5846 = vpack.c.b16 %v5026, %v5022
    %v5847 = vpack.c.b16 %v5027, %v5023
    %v5848 = vpack.c.b16 %v5028, %v5024
    %v5849 = vpack.c.b16 %v5029, %v5025
    %v5850 = vpack.c.b16 %v5034, %v5030
    %v5851 = vpack.c.b16 %v5035, %v5031
    %v5852 = vpack.c.b16 %v5036, %v5032
    %v5853 = vpack.c.b16 %v5037, %v5033
    %v5854 = vpack.c.b16 %v5042, %v5038
    %v5855 = vpack.c.b16 %v5043, %v5039
    %v5856 = vpack.c.b16 %v5044, %v5040
    %v5857 = vpack.c.b16 %v5045, %v5041
    %v5858 = vpack.c.b16 %v5050, %v5046
    %v5859 = vpack.c.b16 %v5051, %v5047
    %v5860 = vpack.c.b16 %v5052, %v5048
    %v5861 = vpack.c.b16 %v5053, %v5049
    %v5862 = vpack.c.b16 %v5058, %v5054
    %v5863 = vpack.c.b16 %v5059, %v5055
    %v5864 = vpack.c.b16 %v5060, %v5056
    %v5865 = vpack.c.b16 %v5061, %v5057
    %v5866 = vpack.c.b16 %v5066, %v5062
    %v5867 = vpack.c.b16 %v5067, %v5063
    %v5868 = vpack.c.b16 %v5068, %v5064
    %v5869 = vpack.c.b16 %v5069, %v5065
    %6670 = vmatprep.subr.bf16.mxu0 %v5071
    %6671 = vmatpush1.bf16.msra.mxu0 %v5070
    %6672 = vmatprep.subr.bf16.mxu0 %v5075
    %6673 = vmatpush1.bf16.msra.mxu0 %v5074
    %6674 = vmatprep.subr.bf16.mxu0 %v5079
    %6675 = vmatpush1.bf16.msra.mxu0 %v5078
    %6676 = vmatprep.subr.bf16.mxu0 %v5083
    %6677 = vmatpush1.bf16.msra.mxu0 %v5082
    %6678 = vmatprep.subr.bf16.mxu0 %v5087
    %6679 = vmatpush1.bf16.msra.mxu0 %v5086
    %6680 = vmatprep.subr.bf16.mxu0 %v5091
    %6681 = vmatpush1.bf16.msra.mxu0 %v5090
    %6682 = vmatprep.subr.bf16.mxu0 %v5095
    %6683 = vmatpush1.bf16.msra.mxu0 %v5094
    %6684 = vmatprep.subr.bf16.mxu0 %v5099
    %6685 = vmatpush1.bf16.msra.mxu0 %v5098
    %6686 = vmatprep.subr.bf16.mxu0 %v5103
    %6687 = vmatpush1.bf16.msra.mxu0 %v5102
    %6688 = vmatprep.subr.bf16.mxu0 %v5107
    %6689 = vmatpush1.bf16.msra.mxu0 %v5106
    %6690 = vmatprep.subr.bf16.mxu0 %v5111
    %6691 = vmatpush1.bf16.msra.mxu0 %v5110
    %6692 = vmatprep.subr.bf16.mxu0 %v5115
    %6693 = vmatpush1.bf16.msra.mxu0 %v5114
    %6694 = vmatprep.subr.bf16.mxu0 %v5119
    %6695 = vmatpush1.bf16.msra.mxu0 %v5118
    %6696 = vmatprep.subr.bf16.mxu0 %v5123
    %6697 = vmatpush1.bf16.msra.mxu0 %v5122
    %6698 = vmatprep.subr.bf16.mxu0 %v5127
    %6699 = vmatpush1.bf16.msra.mxu0 %v5126
    %6700 = vmatprep.subr.bf16.mxu0 %v5131
    %6701 = vmatpush1.bf16.msra.mxu0 %v5130
    %6702 = vmatprep.mubr.bf16.mxu0 %v1821
    %6703 = vmatmul.mubr.bf16.gmra.mrb[0].mxu0 %v1820
    %v6704 = vpop.f32.mrb[0].mxu0
    %v6705 = vadd.f32 0.0, %v6704
    %v6706 = vpop.f32.mrb[0].mxu0
    %v6707 = vadd.f32 0.0, %v6706
    %v6708 = vpop.f32.mrb[0].mxu0
    %v6709 = vadd.f32 0.0, %v6708
    %v6710 = vpop.f32.mrb[0].mxu0
    %v6711 = vadd.f32 0.0, %v6710
    %6712 = vmatprep.mubr.bf16.mxu0 %v1846
    %6713 = vmatmul.mubr.bf16.gmra.mrb[0].mxu0 %v1845
    %v6714 = vpop.f32.mrb[0].mxu0
    %v6715 = vadd.f32 0.0, %v6714
    %v6716 = vpop.f32.mrb[0].mxu0
    %v6717 = vadd.f32 0.0, %v6716
    %v6718 = vpop.f32.mrb[0].mxu0
    %v6719 = vadd.f32 0.0, %v6718
    %v6720 = vpop.f32.mrb[0].mxu0
    %v6721 = vadd.f32 0.0, %v6720
    %6722 = vdwg.mxu0
    %6723 = vmatprep.subr.bf16.mxu0 %v5135
    %6724 = vmatpush1.bf16.msra.mxu0 %v5134
    %6725 = vmatprep.subr.bf16.mxu0 %v5139
    %6726 = vmatpush1.bf16.msra.mxu0 %v5138
    %6727 = vmatprep.subr.bf16.mxu0 %v5143
    %6728 = vmatpush1.bf16.msra.mxu0 %v5142
    %6729 = vmatprep.subr.bf16.mxu0 %v5147
    %6730 = vmatpush1.bf16.msra.mxu0 %v5146
    %6731 = vmatprep.subr.bf16.mxu0 %v5151
    %6732 = vmatpush1.bf16.msra.mxu0 %v5150
    %6733 = vmatprep.subr.bf16.mxu0 %v5155
    %6734 = vmatpush1.bf16.msra.mxu0 %v5154
    %6735 = vmatprep.subr.bf16.mxu0 %v5159
    %6736 = vmatpush1.bf16.msra.mxu0 %v5158
    %6737 = vmatprep.subr.bf16.mxu0 %v5163
    %6738 = vmatpush1.bf16.msra.mxu0 %v5162
    %6739 = vmatprep.subr.bf16.mxu0 %v5167
    %6740 = vmatpush1.bf16.msra.mxu0 %v5166
    %6741 = vmatprep.subr.bf16.mxu0 %v5171
    %6742 = vmatpush1.bf16.msra.mxu0 %v5170
    %6743 = vmatprep.subr.bf16.mxu0 %v5175
    %6744 = vmatpush1.bf16.msra.mxu0 %v5174
    %6745 = vmatprep.subr.bf16.mxu0 %v5179
    %6746 = vmatpush1.bf16.msra.mxu0 %v5178
    %6747 = vmatprep.subr.bf16.mxu0 %v5183
    %6748 = vmatpush1.bf16.msra.mxu0 %v5182
    %6749 = vmatprep.subr.bf16.mxu0 %v5187
    %6750 = vmatpush1.bf16.msra.mxu0 %v5186
    %6751 = vmatprep.subr.bf16.mxu0 %v5191
    %6752 = vmatpush1.bf16.msra.mxu0 %v5190
    %6753 = vmatprep.subr.bf16.mxu0 %v5195
    %6754 = vmatpush1.bf16.msra.mxu0 %v5194
    %6755 = vmatprep.mubr.bf16.mxu0 %v1823
    %6756 = vmatmul.mubr.bf16.gmra.mrb[0].mxu0 %v1822
    %v6757 = vpop.f32.mrb[0].mxu0
    %v6758 = vadd.f32 %v6705, %v6757
    %v6759 = vpop.f32.mrb[0].mxu0
    %v6760 = vadd.f32 %v6707, %v6759
    %v6761 = vpop.f32.mrb[0].mxu0
    %v6762 = vadd.f32 %v6709, %v6761
    %v6763 = vpop.f32.mrb[0].mxu0
    %v6764 = vadd.f32 %v6711, %v6763
    %6765 = vmatprep.mubr.bf16.mxu0 %v1848
    %6766 = vmatmul.mubr.bf16.gmra.mrb[0].mxu0 %v1847
    %v6767 = vpop.f32.mrb[0].mxu0
    %v6768 = vadd.f32 %v6715, %v6767
    %v6769 = vpop.f32.mrb[0].mxu0
    %v6770 = vadd.f32 %v6717, %v6769
    %v6771 = vpop.f32.mrb[0].mxu0
    %v6772 = vadd.f32 %v6719, %v6771
    %v6773 = vpop.f32.mrb[0].mxu0
    %v6774 = vadd.f32 %v6721, %v6773
    %6775 = vdwg.mxu0
    %6776 = vmatprep.subr.bf16.mxu0 %v5199
    %6777 = vmatpush1.bf16.msra.mxu0 %v5198
    %6778 = vmatprep.subr.bf16.mxu0 %v5203
    %6779 = vmatpush1.bf16.msra.mxu0 %v5202
    %6780 = vmatprep.subr.bf16.mxu0 %v5207
    %6781 = vmatpush1.bf16.msra.mxu0 %v5206
    %6782 = vmatprep.subr.bf16.mxu0 %v5211
    %6783 = vmatpush1.bf16.msra.mxu0 %v5210
    %6784 = vmatprep.subr.bf16.mxu0 %v5215
    %6785 = vmatpush1.bf16.msra.mxu0 %v5214
    %6786 = vmatprep.subr.bf16.mxu0 %v5219
    %6787 = vmatpush1.bf16.msra.mxu0 %v5218
    %6788 = vmatprep.subr.bf16.mxu0 %v5223
    %6789 = vmatpush1.bf16.msra.mxu0 %v5222
    %6790 = vmatprep.subr.bf16.mxu0 %v5227
    %6791 = vmatpush1.bf16.msra.mxu0 %v5226
    %6792 = vmatprep.subr.bf16.mxu0 %v5231
    %6793 = vmatpush1.bf16.msra.mxu0 %v5230
    %6794 = vmatprep.subr.bf16.mxu0 %v5235
    %6795 = vmatpush1.bf16.msra.mxu0 %v5234
    %6796 = vmatprep.subr.bf16.mxu0 %v5239
    %6797 = vmatpush1.bf16.msra.mxu0 %v5238
    %6798 = vmatprep.subr.bf16.mxu0 %v5243
    %6799 = vmatpush1.bf16.msra.mxu0 %v5242
    %6800 = vmatprep.subr.bf16.mxu0 %v5247
    %6801 = vmatpush1.bf16.msra.mxu0 %v5246
    %6802 = vmatprep.subr.bf16.mxu0 %v5251
    %6803 = vmatpush1.bf16.msra.mxu0 %v5250
    %6804 = vmatprep.subr.bf16.mxu0 %v5255
    %6805 = vmatpush1.bf16.msra.mxu0 %v5254
    %6806 = vmatprep.subr.bf16.mxu0 %v5259
    %6807 = vmatpush1.bf16.msra.mxu0 %v5258
    %6808 = vmatprep.mubr.bf16.mxu0 %v1825
    %6809 = vmatmul.mubr.bf16.gmra.mrb[0].mxu0 %v1824
    %v6810 = vpop.f32.mrb[0].mxu0
    %v6811 = vadd.f32 %v6758, %v6810
    %v6812 = vpop.f32.mrb[0].mxu0
    %v6813 = vadd.f32 %v6760, %v6812
    %v6814 = vpop.f32.mrb[0].mxu0
    %v6815 = vadd.f32 %v6762, %v6814
    %v6816 = vpop.f32.mrb[0].mxu0
    %v6817 = vadd.f32 %v6764, %v6816
    %6818 = vmatprep.mubr.bf16.mxu0 %v1850
    %6819 = vmatmul.mubr.bf16.gmra.mrb[0].mxu0 %v1849
    %v6820 = vpop.f32.mrb[0].mxu0
    %v6821 = vadd.f32 %v6768, %v6820
    %v6822 = vpop.f32.mrb[0].mxu0
    %v6823 = vadd.f32 %v6770, %v6822
    %v6824 = vpop.f32.mrb[0].mxu0
    %v6825 = vadd.f32 %v6772, %v6824
    %v6826 = vpop.f32.mrb[0].mxu0
    %v6827 = vadd.f32 %v6774, %v6826
    %6828 = vdwg.mxu0
    %6829 = vmatprep.subr.bf16.mxu0 %v5263
    %6830 = vmatpush1.bf16.msra.mxu0 %v5262
    %6831 = vmatprep.subr.bf16.mxu0 %v5267
    %6832 = vmatpush1.bf16.msra.mxu0 %v5266
    %6833 = vmatprep.subr.bf16.mxu0 %v5271
    %6834 = vmatpush1.bf16.msra.mxu0 %v5270
    %6835 = vmatprep.subr.bf16.mxu0 %v5275
    %6836 = vmatpush1.bf16.msra.mxu0 %v5274
    %6837 = vmatprep.subr.bf16.mxu0 %v5279
    %6838 = vmatpush1.bf16.msra.mxu0 %v5278
    %6839 = vmatprep.subr.bf16.mxu0 %v5283
    %6840 = vmatpush1.bf16.msra.mxu0 %v5282
    %6841 = vmatprep.subr.bf16.mxu0 %v5287
    %6842 = vmatpush1.bf16.msra.mxu0 %v5286
    %6843 = vmatprep.subr.bf16.mxu0 %v5291
    %6844 = vmatpush1.bf16.msra.mxu0 %v5290
    %6845 = vmatprep.subr.bf16.mxu0 %v5295
    %6846 = vmatpush1.bf16.msra.mxu0 %v5294
    %6847 = vmatprep.subr.bf16.mxu0 %v5299
    %6848 = vmatpush1.bf16.msra.mxu0 %v5298
    %6849 = vmatprep.subr.bf16.mxu0 %v5303
    %6850 = vmatpush1.bf16.msra.mxu0 %v5302
    %6851 = vmatprep.subr.bf16.mxu0 %v5307
    %6852 = vmatpush1.bf16.msra.mxu0 %v5306
    %6853 = vmatprep.subr.bf16.mxu0 %v5311
    %6854 = vmatpush1.bf16.msra.mxu0 %v5310
    %6855 = vmatprep.subr.bf16.mxu0 %v5315
    %6856 = vmatpush1.bf16.msra.mxu0 %v5314
    %6857 = vmatprep.subr.bf16.mxu0 %v5319
    %6858 = vmatpush1.bf16.msra.mxu0 %v5318
    %6859 = vmatprep.subr.bf16.mxu0 %v5323
    %6860 = vmatpush1.bf16.msra.mxu0 %v5322
    %6861 = vmatprep.mubr.bf16.mxu0 %v1827
    %6862 = vmatmul.mubr.bf16.gmra.mrb[0].mxu0 %v1826
    %v6863 = vpop.f32.mrb[0].mxu0
    %v6864 = vadd.f32 %v6811, %v6863
    %v6865 = vpop.f32.mrb[0].mxu0
    %v6866 = vadd.f32 %v6813, %v6865
    %v6867 = vpop.f32.mrb[0].mxu0
    %v6868 = vadd.f32 %v6815, %v6867
    %v6869 = vpop.f32.mrb[0].mxu0
    %v6870 = vadd.f32 %v6817, %v6869
    %6871 = vmatprep.mubr.bf16.mxu0 %v1852
    %6872 = vmatmul.mubr.bf16.gmra.mrb[0].mxu0 %v1851
    %v6873 = vpop.f32.mrb[0].mxu0
    %v6874 = vadd.f32 %v6821, %v6873
    %v6875 = vpop.f32.mrb[0].mxu0
    %v6876 = vadd.f32 %v6823, %v6875
    %v6877 = vpop.f32.mrb[0].mxu0
    %v6878 = vadd.f32 %v6825, %v6877
    %v6879 = vpop.f32.mrb[0].mxu0
    %v6880 = vadd.f32 %v6827, %v6879
    %6881 = vdwg.mxu0
    %6882 = vmatprep.subr.bf16.mxu0 %v5327
    %6883 = vmatpush1.bf16.msra.mxu0 %v5326
    %6884 = vmatprep.subr.bf16.mxu0 %v5331
    %6885 = vmatpush1.bf16.msra.mxu0 %v5330
    %6886 = vmatprep.subr.bf16.mxu0 %v5335
    %6887 = vmatpush1.bf16.msra.mxu0 %v5334
    %6888 = vmatprep.subr.bf16.mxu0 %v5339
    %6889 = vmatpush1.bf16.msra.mxu0 %v5338
    %6890 = vmatprep.subr.bf16.mxu0 %v5343
    %6891 = vmatpush1.bf16.msra.mxu0 %v5342
    %6892 = vmatprep.subr.bf16.mxu0 %v5347
    %6893 = vmatpush1.bf16.msra.mxu0 %v5346
    %6894 = vmatprep.subr.bf16.mxu0 %v5351
    %6895 = vmatpush1.bf16.msra.mxu0 %v5350
    %6896 = vmatprep.subr.bf16.mxu0 %v5355
    %6897 = vmatpush1.bf16.msra.mxu0 %v5354
    %6898 = vmatprep.subr.bf16.mxu0 %v5359
    %6899 = vmatpush1.bf16.msra.mxu0 %v5358
    %6900 = vmatprep.subr.bf16.mxu0 %v5363
    %6901 = vmatpush1.bf16.msra.mxu0 %v5362
    %6902 = vmatprep.subr.bf16.mxu0 %v5367
    %6903 = vmatpush1.bf16.msra.mxu0 %v5366
    %6904 = vmatprep.subr.bf16.mxu0 %v5371
    %6905 = vmatpush1.bf16.msra.mxu0 %v5370
    %6906 = vmatprep.subr.bf16.mxu0 %v5375
    %6907 = vmatpush1.bf16.msra.mxu0 %v5374
    %6908 = vmatprep.subr.bf16.mxu0 %v5379
    %6909 = vmatpush1.bf16.msra.mxu0 %v5378
    %6910 = vmatprep.subr.bf16.mxu0 %v5383
    %6911 = vmatpush1.bf16.msra.mxu0 %v5382
    %6912 = vmatprep.subr.bf16.mxu0 %v5387
    %6913 = vmatpush1.bf16.msra.mxu0 %v5386
    %6914 = vmatprep.mubr.bf16.mxu0 %v1829
    %6915 = vmatmul.mubr.bf16.gmra.mrb[0].mxu0 %v1828
    %v6916 = vpop.f32.mrb[0].mxu0
    %v6917 = vadd.f32 %v6864, %v6916
    %v6918 = vpop.f32.mrb[0].mxu0
    %v6919 = vadd.f32 %v6866, %v6918
    %v6920 = vpop.f32.mrb[0].mxu0
    %v6921 = vadd.f32 %v6868, %v6920
    %v6922 = vpop.f32.mrb[0].mxu0
    %v6923 = vadd.f32 %v6870, %v6922
    %6924 = vmatprep.mubr.bf16.mxu0 %v1854
    %6925 = vmatmul.mubr.bf16.gmra.mrb[0].mxu0 %v1853
    %v6926 = vpop.f32.mrb[0].mxu0
    %v6927 = vadd.f32 %v6874, %v6926
    %v6928 = vpop.f32.mrb[0].mxu0
    %v6929 = vadd.f32 %v6876, %v6928
    %v6930 = vpop.f32.mrb[0].mxu0
    %v6931 = vadd.f32 %v6878, %v6930
    %v6932 = vpop.f32.mrb[0].mxu0
    %v6933 = vadd.f32 %v6880, %v6932
    %6934 = vdwg.mxu0
    %6935 = vmatprep.subr.bf16.mxu0 %v5391
    %6936 = vmatpush1.bf16.msra.mxu0 %v5390
    %6937 = vmatprep.subr.bf16.mxu0 %v5395
    %6938 = vmatpush1.bf16.msra.mxu0 %v5394
    %6939 = vmatprep.subr.bf16.mxu0 %v5399
    %6940 = vmatpush1.bf16.msra.mxu0 %v5398
    %6941 = vmatprep.subr.bf16.mxu0 %v5403
    %6942 = vmatpush1.bf16.msra.mxu0 %v5402
    %6943 = vmatprep.subr.bf16.mxu0 %v5407
    %6944 = vmatpush1.bf16.msra.mxu0 %v5406
    %6945 = vmatprep.subr.bf16.mxu0 %v5411
    %6946 = vmatpush1.bf16.msra.mxu0 %v5410
    %6947 = vmatprep.subr.bf16.mxu0 %v5415
    %6948 = vmatpush1.bf16.msra.mxu0 %v5414
    %6949 = vmatprep.subr.bf16.mxu0 %v5419
    %6950 = vmatpush1.bf16.msra.mxu0 %v5418
    %6951 = vmatprep.subr.bf16.mxu0 %v5423
    %6952 = vmatpush1.bf16.msra.mxu0 %v5422
    %6953 = vmatprep.subr.bf16.mxu0 %v5427
    %6954 = vmatpush1.bf16.msra.mxu0 %v5426
    %6955 = vmatprep.subr.bf16.mxu0 %v5431
    %6956 = vmatpush1.bf16.msra.mxu0 %v5430
    %6957 = vmatprep.subr.bf16.mxu0 %v5435
    %6958 = vmatpush1.bf16.msra.mxu0 %v5434
    %6959 = vmatprep.subr.bf16.mxu0 %v5439
    %6960 = vmatpush1.bf16.msra.mxu0 %v5438
    %6961 = vmatprep.subr.bf16.mxu0 %v5443
    %6962 = vmatpush1.bf16.msra.mxu0 %v5442
    %6963 = vmatprep.subr.bf16.mxu0 %v5447
    %6964 = vmatpush1.bf16.msra.mxu0 %v5446
    %6965 = vmatprep.subr.bf16.mxu0 %v5451
    %6966 = vmatpush1.bf16.msra.mxu0 %v5450
    %6967 = vmatprep.mubr.bf16.mxu0 %v1831
    %6968 = vmatmul.mubr.bf16.gmra.mrb[0].mxu0 %v1830
    %v6969 = vpop.f32.mrb[0].mxu0
    %v6970 = vadd.f32 %v6917, %v6969
    %v6971 = vpop.f32.mrb[0].mxu0
    %v6972 = vadd.f32 %v6919, %v6971
    %v6973 = vpop.f32.mrb[0].mxu0
    %v6974 = vadd.f32 %v6921, %v6973
    %v6975 = vpop.f32.mrb[0].mxu0
    %v6976 = vadd.f32 %v6923, %v6975
    %6977 = vmatprep.mubr.bf16.mxu0 %v1856
    %6978 = vmatmul.mubr.bf16.gmra.mrb[0].mxu0 %v1855
    %v6979 = vpop.f32.mrb[0].mxu0
    %v6980 = vadd.f32 %v6927, %v6979
    %v6981 = vpop.f32.mrb[0].mxu0
    %v6982 = vadd.f32 %v6929, %v6981
    %v6983 = vpop.f32.mrb[0].mxu0
    %v6984 = vadd.f32 %v6931, %v6983
    %v6985 = vpop.f32.mrb[0].mxu0
    %v6986 = vadd.f32 %v6933, %v6985
    %6987 = vdwg.mxu0
    %6988 = vmatprep.subr.bf16.mxu0 %v5455
    %6989 = vmatpush1.bf16.msra.mxu0 %v5454
    %6990 = vmatprep.subr.bf16.mxu0 %v5459
    %6991 = vmatpush1.bf16.msra.mxu0 %v5458
    %6992 = vmatprep.subr.bf16.mxu0 %v5463
    %6993 = vmatpush1.bf16.msra.mxu0 %v5462
    %6994 = vmatprep.subr.bf16.mxu0 %v5467
    %6995 = vmatpush1.bf16.msra.mxu0 %v5466
    %6996 = vmatprep.subr.bf16.mxu0 %v5471
    %6997 = vmatpush1.bf16.msra.mxu0 %v5470
    %6998 = vmatprep.subr.bf16.mxu0 %v5475
    %6999 = vmatpush1.bf16.msra.mxu0 %v5474
    %7000 = vmatprep.subr.bf16.mxu0 %v5479
    %7001 = vmatpush1.bf16.msra.mxu0 %v5478
    %7002 = vmatprep.subr.bf16.mxu0 %v5483
    %7003 = vmatpush1.bf16.msra.mxu0 %v5482
    %7004 = vmatprep.subr.bf16.mxu0 %v5487
    %7005 = vmatpush1.bf16.msra.mxu0 %v5486
    %7006 = vmatprep.subr.bf16.mxu0 %v5491
    %7007 = vmatpush1.bf16.msra.mxu0 %v5490
    %7008 = vmatprep.subr.bf16.mxu0 %v5495
    %7009 = vmatpush1.bf16.msra.mxu0 %v5494
    %7010 = vmatprep.subr.bf16.mxu0 %v5499
    %7011 = vmatpush1.bf16.msra.mxu0 %v5498
    %7012 = vmatprep.subr.bf16.mxu0 %v5503
    %7013 = vmatpush1.bf16.msra.mxu0 %v5502
    %7014 = vmatprep.subr.bf16.mxu0 %v5507
    %7015 = vmatpush1.bf16.msra.mxu0 %v5506
    %7016 = vmatprep.subr.bf16.mxu0 %v5511
    %7017 = vmatpush1.bf16.msra.mxu0 %v5510
    %7018 = vmatprep.subr.bf16.mxu0 %v5515
    %7019 = vmatpush1.bf16.msra.mxu0 %v5514
    %7020 = vmatprep.mubr.bf16.mxu0 %v1833
    %7021 = vmatmul.mubr.bf16.gmra.mrb[0].mxu0 %v1832
    %v7022 = vpop.f32.mrb[0].mxu0
    %v7023 = vadd.f32 %v6970, %v7022
    %v7024 = vpop.f32.mrb[0].mxu0
    %v7025 = vadd.f32 %v6972, %v7024
    %v7026 = vpop.f32.mrb[0].mxu0
    %v7027 = vadd.f32 %v6974, %v7026
    %v7028 = vpop.f32.mrb[0].mxu0
    %v7029 = vadd.f32 %v6976, %v7028
    %7030 = vmatprep.mubr.bf16.mxu0 %v1858
    %7031 = vmatmul.mubr.bf16.gmra.mrb[0].mxu0 %v1857
    %v7032 = vpop.f32.mrb[0].mxu0
    %v7033 = vadd.f32 %v6980, %v7032
    %v7034 = vpop.f32.mrb[0].mxu0
    %v7035 = vadd.f32 %v6982, %v7034
    %v7036 = vpop.f32.mrb[0].mxu0
    %v7037 = vadd.f32 %v6984, %v7036
    %v7038 = vpop.f32.mrb[0].mxu0
    %v7039 = vadd.f32 %v6986, %v7038
    %7040 = vdwg.mxu0
    %7041 = vmatprep.subr.bf16.mxu0 %v5519
    %7042 = vmatpush1.bf16.msra.mxu0 %v5518
    %7043 = vmatprep.subr.bf16.mxu0 %v5523
    %7044 = vmatpush1.bf16.msra.mxu0 %v5522
    %7045 = vmatprep.subr.bf16.mxu0 %v5527
    %7046 = vmatpush1.bf16.msra.mxu0 %v5526
    %7047 = vmatprep.subr.bf16.mxu0 %v5531
    %7048 = vmatpush1.bf16.msra.mxu0 %v5530
    %7049 = vmatprep.subr.bf16.mxu0 %v5535
    %7050 = vmatpush1.bf16.msra.mxu0 %v5534
    %7051 = vmatprep.subr.bf16.mxu0 %v5539
    %7052 = vmatpush1.bf16.msra.mxu0 %v5538
    %7053 = vmatprep.subr.bf16.mxu0 %v5543
    %7054 = vmatpush1.bf16.msra.mxu0 %v5542
    %7055 = vmatprep.subr.bf16.mxu0 %v5547
    %7056 = vmatpush1.bf16.msra.mxu0 %v5546
    %7057 = vmatprep.subr.bf16.mxu0 %v5551
    %7058 = vmatpush1.bf16.msra.mxu0 %v5550
    %7059 = vmatprep.subr.bf16.mxu0 %v5555
    %7060 = vmatpush1.bf16.msra.mxu0 %v5554
    %7061 = vmatprep.subr.bf16.mxu0 %v5559
    %7062 = vmatpush1.bf16.msra.mxu0 %v5558
    %7063 = vmatprep.subr.bf16.mxu0 %v5563
    %7064 = vmatpush1.bf16.msra.mxu0 %v5562
    %7065 = vmatprep.subr.bf16.mxu0 %v5567
    %7066 = vmatpush1.bf16.msra.mxu0 %v5566
    %7067 = vmatprep.subr.bf16.mxu0 %v5571
    %7068 = vmatpush1.bf16.msra.mxu0 %v5570
    %7069 = vmatprep.subr.bf16.mxu0 %v5575
    %7070 = vmatpush1.bf16.msra.mxu0 %v5574
    %7071 = vmatprep.subr.bf16.mxu0 %v5579
    %7072 = vmatpush1.bf16.msra.mxu0 %v5578
    %7073 = vmatprep.mubr.bf16.mxu0 %v1835
    %7074 = vmatmul.mubr.bf16.gmra.mrb[0].mxu0 %v1834
    %v7075 = vpop.f32.mrb[0].mxu0
    %v7076 = vadd.f32 %v7023, %v7075
    %v7077 = vpop.f32.mrb[0].mxu0
    %v7078 = vadd.f32 %v7025, %v7077
    %v7079 = vpop.f32.mrb[0].mxu0
    %v7080 = vadd.f32 %v7027, %v7079
    %v7081 = vpop.f32.mrb[0].mxu0
    %v7082 = vadd.f32 %v7029, %v7081
    %7083 = vmatprep.mubr.bf16.mxu0 %v1860
    %7084 = vmatmul.mubr.bf16.gmra.mrb[0].mxu0 %v1859
    %v7085 = vpop.f32.mrb[0].mxu0
    %v7086 = vadd.f32 %v7033, %v7085
    %v7087 = vpop.f32.mrb[0].mxu0
    %v7088 = vadd.f32 %v7035, %v7087
    %v7089 = vpop.f32.mrb[0].mxu0
    %v7090 = vadd.f32 %v7037, %v7089
    %v7091 = vpop.f32.mrb[0].mxu0
    %v7092 = vadd.f32 %v7039, %v7091
    %7093 = vdwg.mxu0
    %7094 = vmatprep.subr.bf16.mxu0 %v5583
    %7095 = vmatpush1.bf16.msra.mxu0 %v5582
    %7096 = vmatprep.subr.bf16.mxu0 %v5587
    %7097 = vmatpush1.bf16.msra.mxu0 %v5586
    %7098 = vmatprep.subr.bf16.mxu0 %v5591
    %7099 = vmatpush1.bf16.msra.mxu0 %v5590
    %7100 = vmatprep.subr.bf16.mxu0 %v5595
    %7101 = vmatpush1.bf16.msra.mxu0 %v5594
    %7102 = vmatprep.subr.bf16.mxu0 %v5599
    %7103 = vmatpush1.bf16.msra.mxu0 %v5598
    %7104 = vmatprep.subr.bf16.mxu0 %v5603
    %7105 = vmatpush1.bf16.msra.mxu0 %v5602
    %7106 = vmatprep.subr.bf16.mxu0 %v5607
    %7107 = vmatpush1.bf16.msra.mxu0 %v5606
    %7108 = vmatprep.subr.bf16.mxu0 %v5611
    %7109 = vmatpush1.bf16.msra.mxu0 %v5610
    %7110 = vmatprep.subr.bf16.mxu0 %v5615
    %7111 = vmatpush1.bf16.msra.mxu0 %v5614
    %7112 = vmatprep.subr.bf16.mxu0 %v5619
    %7113 = vmatpush1.bf16.msra.mxu0 %v5618
    %7114 = vmatprep.subr.bf16.mxu0 %v5623
    %7115 = vmatpush1.bf16.msra.mxu0 %v5622
    %7116 = vmatprep.subr.bf16.mxu0 %v5627
    %7117 = vmatpush1.bf16.msra.mxu0 %v5626
    %7118 = vmatprep.subr.bf16.mxu0 %v5631
    %7119 = vmatpush1.bf16.msra.mxu0 %v5630
    %7120 = vmatprep.subr.bf16.mxu0 %v5635
    %7121 = vmatpush1.bf16.msra.mxu0 %v5634
    %7122 = vmatprep.subr.bf16.mxu0 %v5639
    %7123 = vmatpush1.bf16.msra.mxu0 %v5638
    %7124 = vmatprep.subr.bf16.mxu0 %v5643
    %7125 = vmatpush1.bf16.msra.mxu0 %v5642
    %7126 = vmatprep.mubr.bf16.mxu0 %v1837
    %7127 = vmatmul.mubr.bf16.gmra.mrb[0].mxu0 %v1836
    %v7128 = vpop.f32.mrb[0].mxu0
    %v7129 = vadd.f32 %v7076, %v7128
    %v7130 = vpop.f32.mrb[0].mxu0
    %v7131 = vadd.f32 %v7078, %v7130
    %v7132 = vpop.f32.mrb[0].mxu0
    %v7133 = vadd.f32 %v7080, %v7132
    %v7134 = vpop.f32.mrb[0].mxu0
    %v7135 = vadd.f32 %v7082, %v7134
    %7136 = vmatprep.mubr.bf16.mxu0 %v1862
    %7137 = vmatmul.mubr.bf16.gmra.mrb[0].mxu0 %v1861
    %v7138 = vpop.f32.mrb[0].mxu0
    %v7139 = vadd.f32 %v7086, %v7138
    %v7140 = vpop.f32.mrb[0].mxu0
    %v7141 = vadd.f32 %v7088, %v7140
    %v7142 = vpop.f32.mrb[0].mxu0
    %v7143 = vadd.f32 %v7090, %v7142
    %v7144 = vpop.f32.mrb[0].mxu0
    %v7145 = vadd.f32 %v7092, %v7144
    %7146 = vdwg.mxu0
    %7147 = vmatprep.subr.bf16.mxu0 %v5647
    %7148 = vmatpush1.bf16.msra.mxu0 %v5646
    %7149 = vmatprep.subr.bf16.mxu0 %v5651
    %7150 = vmatpush1.bf16.msra.mxu0 %v5650
    %7151 = vmatprep.subr.bf16.mxu0 %v5655
    %7152 = vmatpush1.bf16.msra.mxu0 %v5654
    %7153 = vmatprep.subr.bf16.mxu0 %v5659
    %7154 = vmatpush1.bf16.msra.mxu0 %v5658
    %7155 = vmatprep.subr.bf16.mxu0 %v5663
    %7156 = vmatpush1.bf16.msra.mxu0 %v5662
    %7157 = vmatprep.subr.bf16.mxu0 %v5667
    %7158 = vmatpush1.bf16.msra.mxu0 %v5666
    %7159 = vmatprep.subr.bf16.mxu0 %v5671
    %7160 = vmatpush1.bf16.msra.mxu0 %v5670
    %7161 = vmatprep.subr.bf16.mxu0 %v5675
    %7162 = vmatpush1.bf16.msra.mxu0 %v5674
    %7163 = vmatprep.subr.bf16.mxu0 %v5679
    %7164 = vmatpush1.bf16.msra.mxu0 %v5678
    %7165 = vmatprep.subr.bf16.mxu0 %v5683
    %7166 = vmatpush1.bf16.msra.mxu0 %v5682
    %7167 = vmatprep.subr.bf16.mxu0 %v5687
    %7168 = vmatpush1.bf16.msra.mxu0 %v5686
    %7169 = vmatprep.subr.bf16.mxu0 %v5691
    %7170 = vmatpush1.bf16.msra.mxu0 %v5690
    %7171 = vmatprep.subr.bf16.mxu0 %v5695
    %7172 = vmatpush1.bf16.msra.mxu0 %v5694
    %7173 = vmatprep.subr.bf16.mxu0 %v5699
    %7174 = vmatpush1.bf16.msra.mxu0 %v5698
    %7175 = vmatprep.subr.bf16.mxu0 %v5703
    %7176 = vmatpush1.bf16.msra.mxu0 %v5702
    %7177 = vmatprep.subr.bf16.mxu0 %v5707
    %7178 = vmatpush1.bf16.msra.mxu0 %v5706
    %7179 = vmatprep.mubr.bf16.mxu0 %v1839
    %7180 = vmatmul.mubr.bf16.gmra.mrb[0].mxu0 %v1838
    %v7181 = vpop.f32.mrb[0].mxu0
    %v7182 = vadd.f32 %v7129, %v7181
    %v7183 = vpop.f32.mrb[0].mxu0
    %v7184 = vadd.f32 %v7131, %v7183
    %v7185 = vpop.f32.mrb[0].mxu0
    %v7186 = vadd.f32 %v7133, %v7185
    %v7187 = vpop.f32.mrb[0].mxu0
    %v7188 = vadd.f32 %v7135, %v7187
    %7189 = vmatprep.mubr.bf16.mxu0 %v1864
    %7190 = vmatmul.mubr.bf16.gmra.mrb[0].mxu0 %v1863
    %v7191 = vpop.f32.mrb[0].mxu0
    %v7192 = vadd.f32 %v7139, %v7191
    %v7193 = vpop.f32.mrb[0].mxu0
    %v7194 = vadd.f32 %v7141, %v7193
    %v7195 = vpop.f32.mrb[0].mxu0
    %v7196 = vadd.f32 %v7143, %v7195
    %v7197 = vpop.f32.mrb[0].mxu0
    %v7198 = vadd.f32 %v7145, %v7197
    %7199 = vdwg.mxu0
    %7200 = vmatprep.subr.bf16.mxu0 %v5711
    %7201 = vmatpush1.bf16.msra.mxu0 %v5710
    %7202 = vmatprep.subr.bf16.mxu0 %v5715
    %7203 = vmatpush1.bf16.msra.mxu0 %v5714
    %7204 = vmatprep.subr.bf16.mxu0 %v5719
    %7205 = vmatpush1.bf16.msra.mxu0 %v5718
    %7206 = vmatprep.subr.bf16.mxu0 %v5723
    %7207 = vmatpush1.bf16.msra.mxu0 %v5722
    %7208 = vmatprep.subr.bf16.mxu0 %v5727
    %7209 = vmatpush1.bf16.msra.mxu0 %v5726
    %7210 = vmatprep.subr.bf16.mxu0 %v5731
    %7211 = vmatpush1.bf16.msra.mxu0 %v5730
    %7212 = vmatprep.subr.bf16.mxu0 %v5735
    %7213 = vmatpush1.bf16.msra.mxu0 %v5734
    %7214 = vmatprep.subr.bf16.mxu0 %v5739
    %7215 = vmatpush1.bf16.msra.mxu0 %v5738
    %7216 = vmatprep.subr.bf16.mxu0 %v5743
    %7217 = vmatpush1.bf16.msra.mxu0 %v5742
    %7218 = vmatprep.subr.bf16.mxu0 %v5747
    %7219 = vmatpush1.bf16.msra.mxu0 %v5746
    %7220 = vmatprep.subr.bf16.mxu0 %v5751
    %7221 = vmatpush1.bf16.msra.mxu0 %v5750
    %7222 = vmatprep.subr.bf16.mxu0 %v5755
    %7223 = vmatpush1.bf16.msra.mxu0 %v5754
    %7224 = vmatprep.subr.bf16.mxu0 %v5759
    %7225 = vmatpush1.bf16.msra.mxu0 %v5758
    %7226 = vmatprep.subr.bf16.mxu0 %v5763
    %7227 = vmatpush1.bf16.msra.mxu0 %v5762
    %7228 = vmatprep.subr.bf16.mxu0 %v5767
    %7229 = vmatpush1.bf16.msra.mxu0 %v5766
    %7230 = vmatprep.subr.bf16.mxu0 %v5771
    %7231 = vmatpush1.bf16.msra.mxu0 %v5770
    %7232 = vmatprep.mubr.bf16.mxu0 %v1841
    %7233 = vmatmul.mubr.bf16.gmra.mrb[0].mxu0 %v1840
    %v7234 = vpop.f32.mrb[0].mxu0
    %v7235 = vadd.f32 %v7182, %v7234
    %v7236 = vpop.f32.mrb[0].mxu0
    %v7237 = vadd.f32 %v7184, %v7236
    %v7238 = vpop.f32.mrb[0].mxu0
    %v7239 = vadd.f32 %v7186, %v7238
    %v7240 = vpop.f32.mrb[0].mxu0
    %v7241 = vadd.f32 %v7188, %v7240
    %7242 = vmatprep.mubr.bf16.mxu0 %v1866
    %7243 = vmatmul.mubr.bf16.gmra.mrb[0].mxu0 %v1865
    %v7244 = vpop.f32.mrb[0].mxu0
    %v7245 = vadd.f32 %v7192, %v7244
    %v7246 = vpop.f32.mrb[0].mxu0
    %v7247 = vadd.f32 %v7194, %v7246
    %v7248 = vpop.f32.mrb[0].mxu0
    %v7249 = vadd.f32 %v7196, %v7248
    %v7250 = vpop.f32.mrb[0].mxu0
    %v7251 = vadd.f32 %v7198, %v7250
    %7252 = vdwg.mxu0
    %7253 = vmatprep.subr.bf16.mxu0 %v5775
    %7254 = vmatpush1.bf16.msra.mxu0 %v5774
    %7255 = vmatprep.subr.bf16.mxu0 %v5779
    %7256 = vmatpush1.bf16.msra.mxu0 %v5778
    %7257 = vmatprep.subr.bf16.mxu0 %v5783
    %7258 = vmatpush1.bf16.msra.mxu0 %v5782
    %7259 = vmatprep.subr.bf16.mxu0 %v5787
    %7260 = vmatpush1.bf16.msra.mxu0 %v5786
    %7261 = vmatprep.subr.bf16.mxu0 %v5791
    %7262 = vmatpush1.bf16.msra.mxu0 %v5790
    %7263 = vmatprep.subr.bf16.mxu0 %v5795
    %7264 = vmatpush1.bf16.msra.mxu0 %v5794
    %7265 = vmatprep.subr.bf16.mxu0 %v5799
    %7266 = vmatpush1.bf16.msra.mxu0 %v5798
    %7267 = vmatprep.subr.bf16.mxu0 %v5803
    %7268 = vmatpush1.bf16.msra.mxu0 %v5802
    %7269 = vmatprep.subr.bf16.mxu0 %v5807
    %7270 = vmatpush1.bf16.msra.mxu0 %v5806
    %7271 = vmatprep.subr.bf16.mxu0 %v5811
    %7272 = vmatpush1.bf16.msra.mxu0 %v5810
    %7273 = vmatprep.subr.bf16.mxu0 %v5815
    %7274 = vmatpush1.bf16.msra.mxu0 %v5814
    %7275 = vmatprep.subr.bf16.mxu0 %v5819
    %7276 = vmatpush1.bf16.msra.mxu0 %v5818
    %7277 = vmatprep.subr.bf16.mxu0 %v5823
    %7278 = vmatpush1.bf16.msra.mxu0 %v5822
    %7279 = vmatprep.subr.bf16.mxu0 %v5827
    %7280 = vmatpush1.bf16.msra.mxu0 %v5826
    %7281 = vmatprep.subr.bf16.mxu0 %v5831
    %7282 = vmatpush1.bf16.msra.mxu0 %v5830
    %7283 = vmatprep.subr.bf16.mxu0 %v5835
    %7284 = vmatpush1.bf16.msra.mxu0 %v5834
    %7285 = vmatprep.mubr.bf16.mxu0 %v1843
    %7286 = vmatmul.mubr.bf16.gmra.mrb[0].mxu0 %v1842
    %v7287 = vpop.f32.mrb[0].mxu0
    %v7288 = vadd.f32 %v7235, %v7287
    %v7289 = vpop.f32.mrb[0].mxu0
    %v7290 = vadd.f32 %v7237, %v7289
    %v7291 = vpop.f32.mrb[0].mxu0
    %v7292 = vadd.f32 %v7239, %v7291
    %v7293 = vpop.f32.mrb[0].mxu0
    %v7294 = vadd.f32 %v7241, %v7293
    %7295 = vmatprep.mubr.bf16.mxu0 %v1868
    %7296 = vmatmul.mubr.bf16.gmra.mrb[0].mxu0 %v1867
    %v7297 = vpop.f32.mrb[0].mxu0
    %v7298 = vadd.f32 %v7245, %v7297
    %v7299 = vpop.f32.mrb[0].mxu0
    %v7300 = vadd.f32 %v7247, %v7299
    %v7301 = vpop.f32.mrb[0].mxu0
    %v7302 = vadd.f32 %v7249, %v7301
    %v7303 = vpop.f32.mrb[0].mxu0
    %v7304 = vadd.f32 %v7251, %v7303
    %7305 = vdwg.mxu0
    %7306 = vmatprep.subr.bf16.mxu0 %v5839
    %7307 = vmatpush1.bf16.msra.mxu0 %v5838
    %7308 = vmatprep.subr.bf16.mxu0 %v5843
    %7309 = vmatpush1.bf16.msra.mxu0 %v5842
    %7310 = vmatprep.subr.bf16.mxu0 %v5847
    %7311 = vmatpush1.bf16.msra.mxu0 %v5846
    %7312 = vmatprep.subr.bf16.mxu0 %v5851
    %7313 = vmatpush1.bf16.msra.mxu0 %v5850
    %7314 = vmatprep.subr.bf16.mxu0 %v5855
    %7315 = vmatpush1.bf16.msra.mxu0 %v5854
    %7316 = vmatprep.subr.bf16.mxu0 %v5859
    %7317 = vmatpush1.bf16.msra.mxu0 %v5858
    %7318 = vmatprep.subr.bf16.mxu0 %v5863
    %7319 = vmatpush1.bf16.msra.mxu0 %v5862
    %7320 = vmatprep.subr.bf16.mxu0 %v5867
    %7321 = vmatpush1.bf16.msra.mxu0 %v5866
    %7322 = vmatprep.subr.bf16.mxu0 0
    %7323 = vmatpush1.bf16.msra.mxu0 0
    %7324 = vmatprep.subr.bf16.mxu0 0
    %7325 = vmatpush1.bf16.msra.mxu0 0
    %7326 = vmatprep.subr.bf16.mxu0 0
    %7327 = vmatpush1.bf16.msra.mxu0 0
    %7328 = vmatprep.subr.bf16.mxu0 0
    %7329 = vmatpush1.bf16.msra.mxu0 0
    %7330 = vmatprep.subr.bf16.mxu0 0
    %7331 = vmatpush1.bf16.msra.mxu0 0
    %7332 = vmatprep.subr.bf16.mxu0 0
    %7333 = vmatpush1.bf16.msra.mxu0 0
    %7334 = vmatprep.subr.bf16.mxu0 0
    %7335 = vmatpush1.bf16.msra.mxu0 0
    %7336 = vmatprep.subr.bf16.mxu0 0
    %7337 = vmatpush1.bf16.msra.mxu0 0
    %7338 = vmatprep.mubr.bf16.mxu0 0
    %7339 = vmatmul.mubr.bf16.gmra.mrb[0].mxu0 %v1844
    %v7340 = vpop.f32.mrb[0].mxu0
    %v7341 = vadd.f32 %v7288, %v7340
    %v7342 = vpop.f32.mrb[0].mxu0
    %v7343 = vadd.f32 %v7290, %v7342
    %v7344 = vpop.f32.mrb[0].mxu0
    %v7345 = vadd.f32 %v7292, %v7344
    %v7346 = vpop.f32.mrb[0].mxu0
    %v7347 = vadd.f32 %v7294, %v7346
    %7348 = vmatprep.mubr.bf16.mxu0 0
    %7349 = vmatmul.mubr.bf16.gmra.mrb[0].mxu0 %v1869
    %v7350 = vpop.f32.mrb[0].mxu0
    %v7351 = vadd.f32 %v7298, %v7350
    %v7352 = vpop.f32.mrb[0].mxu0
    %v7353 = vadd.f32 %v7300, %v7352
    %v7354 = vpop.f32.mrb[0].mxu0
    %v7355 = vadd.f32 %v7302, %v7354
    %v7356 = vpop.f32.mrb[0].mxu0
    %v7357 = vadd.f32 %v7304, %v7356
    %7358 = vdwg.mxu0
    %7359 = vmatprep.subr.bf16.mxu0 %v5073
    %7360 = vmatpush1.bf16.msra.mxu0 %v5072
    %7361 = vmatprep.subr.bf16.mxu0 %v5077
    %7362 = vmatpush1.bf16.msra.mxu0 %v5076
    %7363 = vmatprep.subr.bf16.mxu0 %v5081
    %7364 = vmatpush1.bf16.msra.mxu0 %v5080
    %7365 = vmatprep.subr.bf16.mxu0 %v5085
    %7366 = vmatpush1.bf16.msra.mxu0 %v5084
    %7367 = vmatprep.subr.bf16.mxu0 %v5089
    %7368 = vmatpush1.bf16.msra.mxu0 %v5088
    %7369 = vmatprep.subr.bf16.mxu0 %v5093
    %7370 = vmatpush1.bf16.msra.mxu0 %v5092
    %7371 = vmatprep.subr.bf16.mxu0 %v5097
    %7372 = vmatpush1.bf16.msra.mxu0 %v5096
    %7373 = vmatprep.subr.bf16.mxu0 %v5101
    %7374 = vmatpush1.bf16.msra.mxu0 %v5100
    %7375 = vmatprep.subr.bf16.mxu0 %v5105
    %7376 = vmatpush1.bf16.msra.mxu0 %v5104
    %7377 = vmatprep.subr.bf16.mxu0 %v5109
    %7378 = vmatpush1.bf16.msra.mxu0 %v5108
    %7379 = vmatprep.subr.bf16.mxu0 %v5113
    %7380 = vmatpush1.bf16.msra.mxu0 %v5112
    %7381 = vmatprep.subr.bf16.mxu0 %v5117
    %7382 = vmatpush1.bf16.msra.mxu0 %v5116
    %7383 = vmatprep.subr.bf16.mxu0 %v5121
    %7384 = vmatpush1.bf16.msra.mxu0 %v5120
    %7385 = vmatprep.subr.bf16.mxu0 %v5125
    %7386 = vmatpush1.bf16.msra.mxu0 %v5124
    %7387 = vmatprep.subr.bf16.mxu0 %v5129
    %7388 = vmatpush1.bf16.msra.mxu0 %v5128
    %7389 = vmatprep.subr.bf16.mxu0 %v5133
    %7390 = vmatpush1.bf16.msra.mxu0 %v5132
    %7391 = vmatprep.mubr.bf16.mxu0 %v1821
    %7392 = vmatmul.mubr.bf16.gmra.mrb[0].mxu0 %v1820
    %v7393 = vpop.f32.mrb[0].mxu0
    %v7394 = vadd.f32 0.0, %v7393
    %v7395 = vpop.f32.mrb[0].mxu0
    %v7396 = vadd.f32 0.0, %v7395
    %v7397 = vpop.f32.mrb[0].mxu0
    %v7398 = vadd.f32 0.0, %v7397
    %v7399 = vpop.f32.mrb[0].mxu0
    %v7400 = vadd.f32 0.0, %v7399
    %7401 = vmatprep.mubr.bf16.mxu0 %v1846
    %7402 = vmatmul.mubr.bf16.gmra.mrb[0].mxu0 %v1845
    %v7403 = vpop.f32.mrb[0].mxu0
    %v7404 = vadd.f32 0.0, %v7403
    %v7405 = vpop.f32.mrb[0].mxu0
    %v7406 = vadd.f32 0.0, %v7405
    %v7407 = vpop.f32.mrb[0].mxu0
    %v7408 = vadd.f32 0.0, %v7407
    %v7409 = vpop.f32.mrb[0].mxu0
    %v7410 = vadd.f32 0.0, %v7409
    %7411 = vdwg.mxu0
    %7412 = vmatprep.subr.bf16.mxu0 %v5137
    %7413 = vmatpush1.bf16.msra.mxu0 %v5136
    %7414 = vmatprep.subr.bf16.mxu0 %v5141
    %7415 = vmatpush1.bf16.msra.mxu0 %v5140
    %7416 = vmatprep.subr.bf16.mxu0 %v5145
    %7417 = vmatpush1.bf16.msra.mxu0 %v5144
    %7418 = vmatprep.subr.bf16.mxu0 %v5149
    %7419 = vmatpush1.bf16.msra.mxu0 %v5148
    %7420 = vmatprep.subr.bf16.mxu0 %v5153
    %7421 = vmatpush1.bf16.msra.mxu0 %v5152
    %7422 = vmatprep.subr.bf16.mxu0 %v5157
    %7423 = vmatpush1.bf16.msra.mxu0 %v5156
    %7424 = vmatprep.subr.bf16.mxu0 %v5161
    %7425 = vmatpush1.bf16.msra.mxu0 %v5160
    %7426 = vmatprep.subr.bf16.mxu0 %v5165
    %7427 = vmatpush1.bf16.msra.mxu0 %v5164
    %7428 = vmatprep.subr.bf16.mxu0 %v5169
    %7429 = vmatpush1.bf16.msra.mxu0 %v5168
    %7430 = vmatprep.subr.bf16.mxu0 %v5173
    %7431 = vmatpush1.bf16.msra.mxu0 %v5172
    %7432 = vmatprep.subr.bf16.mxu0 %v5177
    %7433 = vmatpush1.bf16.msra.mxu0 %v5176
    %7434 = vmatprep.subr.bf16.mxu0 %v5181
    %7435 = vmatpush1.bf16.msra.mxu0 %v5180
    %7436 = vmatprep.subr.bf16.mxu0 %v5185
    %7437 = vmatpush1.bf16.msra.mxu0 %v5184
    %7438 = vmatprep.subr.bf16.mxu0 %v5189
    %7439 = vmatpush1.bf16.msra.mxu0 %v5188
    %7440 = vmatprep.subr.bf16.mxu0 %v5193
    %7441 = vmatpush1.bf16.msra.mxu0 %v5192
    %7442 = vmatprep.subr.bf16.mxu0 %v5197
    %7443 = vmatpush1.bf16.msra.mxu0 %v5196
    %7444 = vmatprep.mubr.bf16.mxu0 %v1823
    %7445 = vmatmul.mubr.bf16.gmra.mrb[0].mxu0 %v1822
    %v7446 = vpop.f32.mrb[0].mxu0
    %v7447 = vadd.f32 %v7394, %v7446
    %v7448 = vpop.f32.mrb[0].mxu0
    %v7449 = vadd.f32 %v7396, %v7448
    %v7450 = vpop.f32.mrb[0].mxu0
    %v7451 = vadd.f32 %v7398, %v7450
    %v7452 = vpop.f32.mrb[0].mxu0
    %v7453 = vadd.f32 %v7400, %v7452
    %7454 = vmatprep.mubr.bf16.mxu0 %v1848
    %7455 = vmatmul.mubr.bf16.gmra.mrb[0].mxu0 %v1847
    %v7456 = vpop.f32.mrb[0].mxu0
    %v7457 = vadd.f32 %v7404, %v7456
    %v7458 = vpop.f32.mrb[0].mxu0
    %v7459 = vadd.f32 %v7406, %v7458
    %v7460 = vpop.f32.mrb[0].mxu0
    %v7461 = vadd.f32 %v7408, %v7460
    %v7462 = vpop.f32.mrb[0].mxu0
    %v7463 = vadd.f32 %v7410, %v7462
    %7464 = vdwg.mxu0
    %7465 = vmatprep.subr.bf16.mxu0 %v5201
    %7466 = vmatpush1.bf16.msra.mxu0 %v5200
    %7467 = vmatprep.subr.bf16.mxu0 %v5205
    %7468 = vmatpush1.bf16.msra.mxu0 %v5204
    %7469 = vmatprep.subr.bf16.mxu0 %v5209
    %7470 = vmatpush1.bf16.msra.mxu0 %v5208
    %7471 = vmatprep.subr.bf16.mxu0 %v5213
    %7472 = vmatpush1.bf16.msra.mxu0 %v5212
    %7473 = vmatprep.subr.bf16.mxu0 %v5217
    %7474 = vmatpush1.bf16.msra.mxu0 %v5216
    %7475 = vmatprep.subr.bf16.mxu0 %v5221
    %7476 = vmatpush1.bf16.msra.mxu0 %v5220
    %7477 = vmatprep.subr.bf16.mxu0 %v5225
    %7478 = vmatpush1.bf16.msra.mxu0 %v5224
    %7479 = vmatprep.subr.bf16.mxu0 %v5229
    %7480 = vmatpush1.bf16.msra.mxu0 %v5228
    %7481 = vmatprep.subr.bf16.mxu0 %v5233
    %7482 = vmatpush1.bf16.msra.mxu0 %v5232
    %7483 = vmatprep.subr.bf16.mxu0 %v5237
    %7484 = vmatpush1.bf16.msra.mxu0 %v5236
    %7485 = vmatprep.subr.bf16.mxu0 %v5241
    %7486 = vmatpush1.bf16.msra.mxu0 %v5240
    %7487 = vmatprep.subr.bf16.mxu0 %v5245
    %7488 = vmatpush1.bf16.msra.mxu0 %v5244
    %7489 = vmatprep.subr.bf16.mxu0 %v5249
    %7490 = vmatpush1.bf16.msra.mxu0 %v5248
    %7491 = vmatprep.subr.bf16.mxu0 %v5253
    %7492 = vmatpush1.bf16.msra.mxu0 %v5252
    %7493 = vmatprep.subr.bf16.mxu0 %v5257
    %7494 = vmatpush1.bf16.msra.mxu0 %v5256
    %7495 = vmatprep.subr.bf16.mxu0 %v5261
    %7496 = vmatpush1.bf16.msra.mxu0 %v5260
    %7497 = vmatprep.mubr.bf16.mxu0 %v1825
    %7498 = vmatmul.mubr.bf16.gmra.mrb[0].mxu0 %v1824
    %v7499 = vpop.f32.mrb[0].mxu0
    %v7500 = vadd.f32 %v7447, %v7499
    %v7501 = vpop.f32.mrb[0].mxu0
    %v7502 = vadd.f32 %v7449, %v7501
    %v7503 = vpop.f32.mrb[0].mxu0
    %v7504 = vadd.f32 %v7451, %v7503
    %v7505 = vpop.f32.mrb[0].mxu0
    %v7506 = vadd.f32 %v7453, %v7505
    %7507 = vmatprep.mubr.bf16.mxu0 %v1850
    %7508 = vmatmul.mubr.bf16.gmra.mrb[0].mxu0 %v1849
    %v7509 = vpop.f32.mrb[0].mxu0
    %v7510 = vadd.f32 %v7457, %v7509
    %v7511 = vpop.f32.mrb[0].mxu0
    %v7512 = vadd.f32 %v7459, %v7511
    %v7513 = vpop.f32.mrb[0].mxu0
    %v7514 = vadd.f32 %v7461, %v7513
    %v7515 = vpop.f32.mrb[0].mxu0
    %v7516 = vadd.f32 %v7463, %v7515
    %7517 = vdwg.mxu0
    %7518 = vmatprep.subr.bf16.mxu0 %v5265
    %7519 = vmatpush1.bf16.msra.mxu0 %v5264
    %7520 = vmatprep.subr.bf16.mxu0 %v5269
    %7521 = vmatpush1.bf16.msra.mxu0 %v5268
    %7522 = vmatprep.subr.bf16.mxu0 %v5273
    %7523 = vmatpush1.bf16.msra.mxu0 %v5272
    %7524 = vmatprep.subr.bf16.mxu0 %v5277
    %7525 = vmatpush1.bf16.msra.mxu0 %v5276
    %7526 = vmatprep.subr.bf16.mxu0 %v5281
    %7527 = vmatpush1.bf16.msra.mxu0 %v5280
    %7528 = vmatprep.subr.bf16.mxu0 %v5285
    %7529 = vmatpush1.bf16.msra.mxu0 %v5284
    %7530 = vmatprep.subr.bf16.mxu0 %v5289
    %7531 = vmatpush1.bf16.msra.mxu0 %v5288
    %7532 = vmatprep.subr.bf16.mxu0 %v5293
    %7533 = vmatpush1.bf16.msra.mxu0 %v5292
    %7534 = vmatprep.subr.bf16.mxu0 %v5297
    %7535 = vmatpush1.bf16.msra.mxu0 %v5296
    %7536 = vmatprep.subr.bf16.mxu0 %v5301
    %7537 = vmatpush1.bf16.msra.mxu0 %v5300
    %7538 = vmatprep.subr.bf16.mxu0 %v5305
    %7539 = vmatpush1.bf16.msra.mxu0 %v5304
    %7540 = vmatprep.subr.bf16.mxu0 %v5309
    %7541 = vmatpush1.bf16.msra.mxu0 %v5308
    %7542 = vmatprep.subr.bf16.mxu0 %v5313
    %7543 = vmatpush1.bf16.msra.mxu0 %v5312
    %7544 = vmatprep.subr.bf16.mxu0 %v5317
    %7545 = vmatpush1.bf16.msra.mxu0 %v5316
    %7546 = vmatprep.subr.bf16.mxu0 %v5321
    %7547 = vmatpush1.bf16.msra.mxu0 %v5320
    %7548 = vmatprep.subr.bf16.mxu0 %v5325
    %7549 = vmatpush1.bf16.msra.mxu0 %v5324
    %7550 = vmatprep.mubr.bf16.mxu0 %v1827
    %7551 = vmatmul.mubr.bf16.gmra.mrb[0].mxu0 %v1826
    %v7552 = vpop.f32.mrb[0].mxu0
    %v7553 = vadd.f32 %v7500, %v7552
    %v7554 = vpop.f32.mrb[0].mxu0
    %v7555 = vadd.f32 %v7502, %v7554
    %v7556 = vpop.f32.mrb[0].mxu0
    %v7557 = vadd.f32 %v7504, %v7556
    %v7558 = vpop.f32.mrb[0].mxu0
    %v7559 = vadd.f32 %v7506, %v7558
    %7560 = vmatprep.mubr.bf16.mxu0 %v1852
    %7561 = vmatmul.mubr.bf16.gmra.mrb[0].mxu0 %v1851
    %v7562 = vpop.f32.mrb[0].mxu0
    %v7563 = vadd.f32 %v7510, %v7562
    %v7564 = vpop.f32.mrb[0].mxu0
    %v7565 = vadd.f32 %v7512, %v7564
    %v7566 = vpop.f32.mrb[0].mxu0
    %v7567 = vadd.f32 %v7514, %v7566
    %v7568 = vpop.f32.mrb[0].mxu0
    %v7569 = vadd.f32 %v7516, %v7568
    %7570 = vdwg.mxu0
    %7571 = vmatprep.subr.bf16.mxu0 %v5329
    %7572 = vmatpush1.bf16.msra.mxu0 %v5328
    %7573 = vmatprep.subr.bf16.mxu0 %v5333
    %7574 = vmatpush1.bf16.msra.mxu0 %v5332
    %7575 = vmatprep.subr.bf16.mxu0 %v5337
    %7576 = vmatpush1.bf16.msra.mxu0 %v5336
    %7577 = vmatprep.subr.bf16.mxu0 %v5341
    %7578 = vmatpush1.bf16.msra.mxu0 %v5340
    %7579 = vmatprep.subr.bf16.mxu0 %v5345
    %7580 = vmatpush1.bf16.msra.mxu0 %v5344
    %7581 = vmatprep.subr.bf16.mxu0 %v5349
    %7582 = vmatpush1.bf16.msra.mxu0 %v5348
    %7583 = vmatprep.subr.bf16.mxu0 %v5353
    %7584 = vmatpush1.bf16.msra.mxu0 %v5352
    %7585 = vmatprep.subr.bf16.mxu0 %v5357
    %7586 = vmatpush1.bf16.msra.mxu0 %v5356
    %7587 = vmatprep.subr.bf16.mxu0 %v5361
    %7588 = vmatpush1.bf16.msra.mxu0 %v5360
    %7589 = vmatprep.subr.bf16.mxu0 %v5365
    %7590 = vmatpush1.bf16.msra.mxu0 %v5364
    %7591 = vmatprep.subr.bf16.mxu0 %v5369
    %7592 = vmatpush1.bf16.msra.mxu0 %v5368
    %7593 = vmatprep.subr.bf16.mxu0 %v5373
    %7594 = vmatpush1.bf16.msra.mxu0 %v5372
    %7595 = vmatprep.subr.bf16.mxu0 %v5377
    %7596 = vmatpush1.bf16.msra.mxu0 %v5376
    %7597 = vmatprep.subr.bf16.mxu0 %v5381
    %7598 = vmatpush1.bf16.msra.mxu0 %v5380
    %7599 = vmatprep.subr.bf16.mxu0 %v5385
    %7600 = vmatpush1.bf16.msra.mxu0 %v5384
    %7601 = vmatprep.subr.bf16.mxu0 %v5389
    %7602 = vmatpush1.bf16.msra.mxu0 %v5388
    %7603 = vmatprep.mubr.bf16.mxu0 %v1829
    %7604 = vmatmul.mubr.bf16.gmra.mrb[0].mxu0 %v1828
    %v7605 = vpop.f32.mrb[0].mxu0
    %v7606 = vadd.f32 %v7553, %v7605
    %v7607 = vpop.f32.mrb[0].mxu0
    %v7608 = vadd.f32 %v7555, %v7607
    %v7609 = vpop.f32.mrb[0].mxu0
    %v7610 = vadd.f32 %v7557, %v7609
    %v7611 = vpop.f32.mrb[0].mxu0
    %v7612 = vadd.f32 %v7559, %v7611
    %7613 = vmatprep.mubr.bf16.mxu0 %v1854
    %7614 = vmatmul.mubr.bf16.gmra.mrb[0].mxu0 %v1853
    %v7615 = vpop.f32.mrb[0].mxu0
    %v7616 = vadd.f32 %v7563, %v7615
    %v7617 = vpop.f32.mrb[0].mxu0
    %v7618 = vadd.f32 %v7565, %v7617
    %v7619 = vpop.f32.mrb[0].mxu0
    %v7620 = vadd.f32 %v7567, %v7619
    %v7621 = vpop.f32.mrb[0].mxu0
    %v7622 = vadd.f32 %v7569, %v7621
    %7623 = vdwg.mxu0
    %7624 = vmatprep.subr.bf16.mxu0 %v5393
    %7625 = vmatpush1.bf16.msra.mxu0 %v5392
    %7626 = vmatprep.subr.bf16.mxu0 %v5397
    %7627 = vmatpush1.bf16.msra.mxu0 %v5396
    %7628 = vmatprep.subr.bf16.mxu0 %v5401
    %7629 = vmatpush1.bf16.msra.mxu0 %v5400
    %7630 = vmatprep.subr.bf16.mxu0 %v5405
    %7631 = vmatpush1.bf16.msra.mxu0 %v5404
    %7632 = vmatprep.subr.bf16.mxu0 %v5409
    %7633 = vmatpush1.bf16.msra.mxu0 %v5408
    %7634 = vmatprep.subr.bf16.mxu0 %v5413
    %7635 = vmatpush1.bf16.msra.mxu0 %v5412
    %7636 = vmatprep.subr.bf16.mxu0 %v5417
    %7637 = vmatpush1.bf16.msra.mxu0 %v5416
    %7638 = vmatprep.subr.bf16.mxu0 %v5421
    %7639 = vmatpush1.bf16.msra.mxu0 %v5420
    %7640 = vmatprep.subr.bf16.mxu0 %v5425
    %7641 = vmatpush1.bf16.msra.mxu0 %v5424
    %7642 = vmatprep.subr.bf16.mxu0 %v5429
    %7643 = vmatpush1.bf16.msra.mxu0 %v5428
    %7644 = vmatprep.subr.bf16.mxu0 %v5433
    %7645 = vmatpush1.bf16.msra.mxu0 %v5432
    %7646 = vmatprep.subr.bf16.mxu0 %v5437
    %7647 = vmatpush1.bf16.msra.mxu0 %v5436
    %7648 = vmatprep.subr.bf16.mxu0 %v5441
    %7649 = vmatpush1.bf16.msra.mxu0 %v5440
    %7650 = vmatprep.subr.bf16.mxu0 %v5445
    %7651 = vmatpush1.bf16.msra.mxu0 %v5444
    %7652 = vmatprep.subr.bf16.mxu0 %v5449
    %7653 = vmatpush1.bf16.msra.mxu0 %v5448
    %7654 = vmatprep.subr.bf16.mxu0 %v5453
    %7655 = vmatpush1.bf16.msra.mxu0 %v5452
    %7656 = vmatprep.mubr.bf16.mxu0 %v1831
    %7657 = vmatmul.mubr.bf16.gmra.mrb[0].mxu0 %v1830
    %v7658 = vpop.f32.mrb[0].mxu0
    %v7659 = vadd.f32 %v7606, %v7658
    %v7660 = vpop.f32.mrb[0].mxu0
    %v7661 = vadd.f32 %v7608, %v7660
    %v7662 = vpop.f32.mrb[0].mxu0
    %v7663 = vadd.f32 %v7610, %v7662
    %v7664 = vpop.f32.mrb[0].mxu0
    %v7665 = vadd.f32 %v7612, %v7664
    %7666 = vmatprep.mubr.bf16.mxu0 %v1856
    %7667 = vmatmul.mubr.bf16.gmra.mrb[0].mxu0 %v1855
    %v7668 = vpop.f32.mrb[0].mxu0
    %v7669 = vadd.f32 %v7616, %v7668
    %v7670 = vpop.f32.mrb[0].mxu0
    %v7671 = vadd.f32 %v7618, %v7670
    %v7672 = vpop.f32.mrb[0].mxu0
    %v7673 = vadd.f32 %v7620, %v7672
    %v7674 = vpop.f32.mrb[0].mxu0
    %v7675 = vadd.f32 %v7622, %v7674
    %7676 = vdwg.mxu0
    %7677 = vmatprep.subr.bf16.mxu0 %v5457
    %7678 = vmatpush1.bf16.msra.mxu0 %v5456
    %7679 = vmatprep.subr.bf16.mxu0 %v5461
    %7680 = vmatpush1.bf16.msra.mxu0 %v5460
    %7681 = vmatprep.subr.bf16.mxu0 %v5465
    %7682 = vmatpush1.bf16.msra.mxu0 %v5464
    %7683 = vmatprep.subr.bf16.mxu0 %v5469
    %7684 = vmatpush1.bf16.msra.mxu0 %v5468
    %7685 = vmatprep.subr.bf16.mxu0 %v5473
    %7686 = vmatpush1.bf16.msra.mxu0 %v5472
    %7687 = vmatprep.subr.bf16.mxu0 %v5477
    %7688 = vmatpush1.bf16.msra.mxu0 %v5476
    %7689 = vmatprep.subr.bf16.mxu0 %v5481
    %7690 = vmatpush1.bf16.msra.mxu0 %v5480
    %7691 = vmatprep.subr.bf16.mxu0 %v5485
    %7692 = vmatpush1.bf16.msra.mxu0 %v5484
    %7693 = vmatprep.subr.bf16.mxu0 %v5489
    %7694 = vmatpush1.bf16.msra.mxu0 %v5488
    %7695 = vmatprep.subr.bf16.mxu0 %v5493
    %7696 = vmatpush1.bf16.msra.mxu0 %v5492
    %7697 = vmatprep.subr.bf16.mxu0 %v5497
    %7698 = vmatpush1.bf16.msra.mxu0 %v5496
    %7699 = vmatprep.subr.bf16.mxu0 %v5501
    %7700 = vmatpush1.bf16.msra.mxu0 %v5500
    %7701 = vmatprep.subr.bf16.mxu0 %v5505
    %7702 = vmatpush1.bf16.msra.mxu0 %v5504
    %7703 = vmatprep.subr.bf16.mxu0 %v5509
    %7704 = vmatpush1.bf16.msra.mxu0 %v5508
    %7705 = vmatprep.subr.bf16.mxu0 %v5513
    %7706 = vmatpush1.bf16.msra.mxu0 %v5512
    %7707 = vmatprep.subr.bf16.mxu0 %v5517
    %7708 = vmatpush1.bf16.msra.mxu0 %v5516
    %7709 = vmatprep.mubr.bf16.mxu0 %v1833
    %7710 = vmatmul.mubr.bf16.gmra.mrb[0].mxu0 %v1832
    %v7711 = vpop.f32.mrb[0].mxu0
    %v7712 = vadd.f32 %v7659, %v7711
    %v7713 = vpop.f32.mrb[0].mxu0
    %v7714 = vadd.f32 %v7661, %v7713
    %v7715 = vpop.f32.mrb[0].mxu0
    %v7716 = vadd.f32 %v7663, %v7715
    %v7717 = vpop.f32.mrb[0].mxu0
    %v7718 = vadd.f32 %v7665, %v7717
    %7719 = vmatprep.mubr.bf16.mxu0 %v1858
    %7720 = vmatmul.mubr.bf16.gmra.mrb[0].mxu0 %v1857
    %v7721 = vpop.f32.mrb[0].mxu0
    %v7722 = vadd.f32 %v7669, %v7721
    %v7723 = vpop.f32.mrb[0].mxu0
    %v7724 = vadd.f32 %v7671, %v7723
    %v7725 = vpop.f32.mrb[0].mxu0
    %v7726 = vadd.f32 %v7673, %v7725
    %v7727 = vpop.f32.mrb[0].mxu0
    %v7728 = vadd.f32 %v7675, %v7727
    %7729 = vdwg.mxu0
    %7730 = vmatprep.subr.bf16.mxu0 %v5521
    %7731 = vmatpush1.bf16.msra.mxu0 %v5520
    %7732 = vmatprep.subr.bf16.mxu0 %v5525
    %7733 = vmatpush1.bf16.msra.mxu0 %v5524
    %7734 = vmatprep.subr.bf16.mxu0 %v5529
    %7735 = vmatpush1.bf16.msra.mxu0 %v5528
    %7736 = vmatprep.subr.bf16.mxu0 %v5533
    %7737 = vmatpush1.bf16.msra.mxu0 %v5532
    %7738 = vmatprep.subr.bf16.mxu0 %v5537
    %7739 = vmatpush1.bf16.msra.mxu0 %v5536
    %7740 = vmatprep.subr.bf16.mxu0 %v5541
    %7741 = vmatpush1.bf16.msra.mxu0 %v5540
    %7742 = vmatprep.subr.bf16.mxu0 %v5545
    %7743 = vmatpush1.bf16.msra.mxu0 %v5544
    %7744 = vmatprep.subr.bf16.mxu0 %v5549
    %7745 = vmatpush1.bf16.msra.mxu0 %v5548
    %7746 = vmatprep.subr.bf16.mxu0 %v5553
    %7747 = vmatpush1.bf16.msra.mxu0 %v5552
    %7748 = vmatprep.subr.bf16.mxu0 %v5557
    %7749 = vmatpush1.bf16.msra.mxu0 %v5556
    %7750 = vmatprep.subr.bf16.mxu0 %v5561
    %7751 = vmatpush1.bf16.msra.mxu0 %v5560
    %7752 = vmatprep.subr.bf16.mxu0 %v5565
    %7753 = vmatpush1.bf16.msra.mxu0 %v5564
    %7754 = vmatprep.subr.bf16.mxu0 %v5569
    %7755 = vmatpush1.bf16.msra.mxu0 %v5568
    %7756 = vmatprep.subr.bf16.mxu0 %v5573
    %7757 = vmatpush1.bf16.msra.mxu0 %v5572
    %7758 = vmatprep.subr.bf16.mxu0 %v5577
    %7759 = vmatpush1.bf16.msra.mxu0 %v5576
    %7760 = vmatprep.subr.bf16.mxu0 %v5581
    %7761 = vmatpush1.bf16.msra.mxu0 %v5580
    %7762 = vmatprep.mubr.bf16.mxu0 %v1835
    %7763 = vmatmul.mubr.bf16.gmra.mrb[0].mxu0 %v1834
    %v7764 = vpop.f32.mrb[0].mxu0
    %v7765 = vadd.f32 %v7712, %v7764
    %v7766 = vpop.f32.mrb[0].mxu0
    %v7767 = vadd.f32 %v7714, %v7766
    %v7768 = vpop.f32.mrb[0].mxu0
    %v7769 = vadd.f32 %v7716, %v7768
    %v7770 = vpop.f32.mrb[0].mxu0
    %v7771 = vadd.f32 %v7718, %v7770
    %7772 = vmatprep.mubr.bf16.mxu0 %v1860
    %7773 = vmatmul.mubr.bf16.gmra.mrb[0].mxu0 %v1859
    %v7774 = vpop.f32.mrb[0].mxu0
    %v7775 = vadd.f32 %v7722, %v7774
    %v7776 = vpop.f32.mrb[0].mxu0
    %v7777 = vadd.f32 %v7724, %v7776
    %v7778 = vpop.f32.mrb[0].mxu0
    %v7779 = vadd.f32 %v7726, %v7778
    %v7780 = vpop.f32.mrb[0].mxu0
    %v7781 = vadd.f32 %v7728, %v7780
    %7782 = vdwg.mxu0
    %7783 = vmatprep.subr.bf16.mxu0 %v5585
    %7784 = vmatpush1.bf16.msra.mxu0 %v5584
    %7785 = vmatprep.subr.bf16.mxu0 %v5589
    %7786 = vmatpush1.bf16.msra.mxu0 %v5588
    %7787 = vmatprep.subr.bf16.mxu0 %v5593
    %7788 = vmatpush1.bf16.msra.mxu0 %v5592
    %7789 = vmatprep.subr.bf16.mxu0 %v5597
    %7790 = vmatpush1.bf16.msra.mxu0 %v5596
    %7791 = vmatprep.subr.bf16.mxu0 %v5601
    %7792 = vmatpush1.bf16.msra.mxu0 %v5600
    %7793 = vmatprep.subr.bf16.mxu0 %v5605
    %7794 = vmatpush1.bf16.msra.mxu0 %v5604
    %7795 = vmatprep.subr.bf16.mxu0 %v5609
    %7796 = vmatpush1.bf16.msra.mxu0 %v5608
    %7797 = vmatprep.subr.bf16.mxu0 %v5613
    %7798 = vmatpush1.bf16.msra.mxu0 %v5612
    %7799 = vmatprep.subr.bf16.mxu0 %v5617
    %7800 = vmatpush1.bf16.msra.mxu0 %v5616
    %7801 = vmatprep.subr.bf16.mxu0 %v5621
    %7802 = vmatpush1.bf16.msra.mxu0 %v5620
    %7803 = vmatprep.subr.bf16.mxu0 %v5625
    %7804 = vmatpush1.bf16.msra.mxu0 %v5624
    %7805 = vmatprep.subr.bf16.mxu0 %v5629
    %7806 = vmatpush1.bf16.msra.mxu0 %v5628
    %7807 = vmatprep.subr.bf16.mxu0 %v5633
    %7808 = vmatpush1.bf16.msra.mxu0 %v5632
    %7809 = vmatprep.subr.bf16.mxu0 %v5637
    %7810 = vmatpush1.bf16.msra.mxu0 %v5636
    %7811 = vmatprep.subr.bf16.mxu0 %v5641
    %7812 = vmatpush1.bf16.msra.mxu0 %v5640
    %7813 = vmatprep.subr.bf16.mxu0 %v5645
    %7814 = vmatpush1.bf16.msra.mxu0 %v5644
    %7815 = vmatprep.mubr.bf16.mxu0 %v1837
    %7816 = vmatmul.mubr.bf16.gmra.mrb[0].mxu0 %v1836
    %v7817 = vpop.f32.mrb[0].mxu0
    %v7818 = vadd.f32 %v7765, %v7817
    %v7819 = vpop.f32.mrb[0].mxu0
    %v7820 = vadd.f32 %v7767, %v7819
    %v7821 = vpop.f32.mrb[0].mxu0
    %v7822 = vadd.f32 %v7769, %v7821
    %v7823 = vpop.f32.mrb[0].mxu0
    %v7824 = vadd.f32 %v7771, %v7823
    %7825 = vmatprep.mubr.bf16.mxu0 %v1862
    %7826 = vmatmul.mubr.bf16.gmra.mrb[0].mxu0 %v1861
    %v7827 = vpop.f32.mrb[0].mxu0
    %v7828 = vadd.f32 %v7775, %v7827
    %v7829 = vpop.f32.mrb[0].mxu0
    %v7830 = vadd.f32 %v7777, %v7829
    %v7831 = vpop.f32.mrb[0].mxu0
    %v7832 = vadd.f32 %v7779, %v7831
    %v7833 = vpop.f32.mrb[0].mxu0
    %v7834 = vadd.f32 %v7781, %v7833
    %7835 = vdwg.mxu0
    %7836 = vmatprep.subr.bf16.mxu0 %v5649
    %7837 = vmatpush1.bf16.msra.mxu0 %v5648
    %7838 = vmatprep.subr.bf16.mxu0 %v5653
    %7839 = vmatpush1.bf16.msra.mxu0 %v5652
    %7840 = vmatprep.subr.bf16.mxu0 %v5657
    %7841 = vmatpush1.bf16.msra.mxu0 %v5656
    %7842 = vmatprep.subr.bf16.mxu0 %v5661
    %7843 = vmatpush1.bf16.msra.mxu0 %v5660
    %7844 = vmatprep.subr.bf16.mxu0 %v5665
    %7845 = vmatpush1.bf16.msra.mxu0 %v5664
    %7846 = vmatprep.subr.bf16.mxu0 %v5669
    %7847 = vmatpush1.bf16.msra.mxu0 %v5668
    %7848 = vmatprep.subr.bf16.mxu0 %v5673
    %7849 = vmatpush1.bf16.msra.mxu0 %v5672
    %7850 = vmatprep.subr.bf16.mxu0 %v5677
    %7851 = vmatpush1.bf16.msra.mxu0 %v5676
    %7852 = vmatprep.subr.bf16.mxu0 %v5681
    %7853 = vmatpush1.bf16.msra.mxu0 %v5680
    %7854 = vmatprep.subr.bf16.mxu0 %v5685
    %7855 = vmatpush1.bf16.msra.mxu0 %v5684
    %7856 = vmatprep.subr.bf16.mxu0 %v5689
    %7857 = vmatpush1.bf16.msra.mxu0 %v5688
    %7858 = vmatprep.subr.bf16.mxu0 %v5693
    %7859 = vmatpush1.bf16.msra.mxu0 %v5692
    %7860 = vmatprep.subr.bf16.mxu0 %v5697
    %7861 = vmatpush1.bf16.msra.mxu0 %v5696
    %7862 = vmatprep.subr.bf16.mxu0 %v5701
    %7863 = vmatpush1.bf16.msra.mxu0 %v5700
    %7864 = vmatprep.subr.bf16.mxu0 %v5705
    %7865 = vmatpush1.bf16.msra.mxu0 %v5704
    %7866 = vmatprep.subr.bf16.mxu0 %v5709
    %7867 = vmatpush1.bf16.msra.mxu0 %v5708
    %7868 = vmatprep.mubr.bf16.mxu0 %v1839
    %7869 = vmatmul.mubr.bf16.gmra.mrb[0].mxu0 %v1838
    %v7870 = vpop.f32.mrb[0].mxu0
    %v7871 = vadd.f32 %v7818, %v7870
    %v7872 = vpop.f32.mrb[0].mxu0
    %v7873 = vadd.f32 %v7820, %v7872
    %v7874 = vpop.f32.mrb[0].mxu0
    %v7875 = vadd.f32 %v7822, %v7874
    %v7876 = vpop.f32.mrb[0].mxu0
    %v7877 = vadd.f32 %v7824, %v7876
    %7878 = vmatprep.mubr.bf16.mxu0 %v1864
    %7879 = vmatmul.mubr.bf16.gmra.mrb[0].mxu0 %v1863
    %v7880 = vpop.f32.mrb[0].mxu0
    %v7881 = vadd.f32 %v7828, %v7880
    %v7882 = vpop.f32.mrb[0].mxu0
    %v7883 = vadd.f32 %v7830, %v7882
    %v7884 = vpop.f32.mrb[0].mxu0
    %v7885 = vadd.f32 %v7832, %v7884
    %v7886 = vpop.f32.mrb[0].mxu0
    %v7887 = vadd.f32 %v7834, %v7886
    %7888 = vdwg.mxu0
    %7889 = vmatprep.subr.bf16.mxu0 %v5713
    %7890 = vmatpush1.bf16.msra.mxu0 %v5712
    %7891 = vmatprep.subr.bf16.mxu0 %v5717
    %7892 = vmatpush1.bf16.msra.mxu0 %v5716
    %7893 = vmatprep.subr.bf16.mxu0 %v5721
    %7894 = vmatpush1.bf16.msra.mxu0 %v5720
    %7895 = vmatprep.subr.bf16.mxu0 %v5725
    %7896 = vmatpush1.bf16.msra.mxu0 %v5724
    %7897 = vmatprep.subr.bf16.mxu0 %v5729
    %7898 = vmatpush1.bf16.msra.mxu0 %v5728
    %7899 = vmatprep.subr.bf16.mxu0 %v5733
    %7900 = vmatpush1.bf16.msra.mxu0 %v5732
    %7901 = vmatprep.subr.bf16.mxu0 %v5737
    %7902 = vmatpush1.bf16.msra.mxu0 %v5736
    %7903 = vmatprep.subr.bf16.mxu0 %v5741
    %7904 = vmatpush1.bf16.msra.mxu0 %v5740
    %7905 = vmatprep.subr.bf16.mxu0 %v5745
    %7906 = vmatpush1.bf16.msra.mxu0 %v5744
    %7907 = vmatprep.subr.bf16.mxu0 %v5749
    %7908 = vmatpush1.bf16.msra.mxu0 %v5748
    %7909 = vmatprep.subr.bf16.mxu0 %v5753
    %7910 = vmatpush1.bf16.msra.mxu0 %v5752
    %7911 = vmatprep.subr.bf16.mxu0 %v5757
    %7912 = vmatpush1.bf16.msra.mxu0 %v5756
    %7913 = vmatprep.subr.bf16.mxu0 %v5761
    %7914 = vmatpush1.bf16.msra.mxu0 %v5760
    %7915 = vmatprep.subr.bf16.mxu0 %v5765
    %7916 = vmatpush1.bf16.msra.mxu0 %v5764
    %7917 = vmatprep.subr.bf16.mxu0 %v5769
    %7918 = vmatpush1.bf16.msra.mxu0 %v5768
    %7919 = vmatprep.subr.bf16.mxu0 %v5773
    %7920 = vmatpush1.bf16.msra.mxu0 %v5772
    %7921 = vmatprep.mubr.bf16.mxu0 %v1841
    %7922 = vmatmul.mubr.bf16.gmra.mrb[0].mxu0 %v1840
    %v7923 = vpop.f32.mrb[0].mxu0
    %v7924 = vadd.f32 %v7871, %v7923
    %v7925 = vpop.f32.mrb[0].mxu0
    %v7926 = vadd.f32 %v7873, %v7925
    %v7927 = vpop.f32.mrb[0].mxu0
    %v7928 = vadd.f32 %v7875, %v7927
    %v7929 = vpop.f32.mrb[0].mxu0
    %v7930 = vadd.f32 %v7877, %v7929
    %7931 = vmatprep.mubr.bf16.mxu0 %v1866
    %7932 = vmatmul.mubr.bf16.gmra.mrb[0].mxu0 %v1865
    %v7933 = vpop.f32.mrb[0].mxu0
    %v7934 = vadd.f32 %v7881, %v7933
    %v7935 = vpop.f32.mrb[0].mxu0
    %v7936 = vadd.f32 %v7883, %v7935
    %v7937 = vpop.f32.mrb[0].mxu0
    %v7938 = vadd.f32 %v7885, %v7937
    %v7939 = vpop.f32.mrb[0].mxu0
    %v7940 = vadd.f32 %v7887, %v7939
    %7941 = vdwg.mxu0
    %7942 = vmatprep.subr.bf16.mxu0 %v5777
    %7943 = vmatpush1.bf16.msra.mxu0 %v5776
    %7944 = vmatprep.subr.bf16.mxu0 %v5781
    %7945 = vmatpush1.bf16.msra.mxu0 %v5780
    %7946 = vmatprep.subr.bf16.mxu0 %v5785
    %7947 = vmatpush1.bf16.msra.mxu0 %v5784
    %7948 = vmatprep.subr.bf16.mxu0 %v5789
    %7949 = vmatpush1.bf16.msra.mxu0 %v5788
    %7950 = vmatprep.subr.bf16.mxu0 %v5793
    %7951 = vmatpush1.bf16.msra.mxu0 %v5792
    %7952 = vmatprep.subr.bf16.mxu0 %v5797
    %7953 = vmatpush1.bf16.msra.mxu0 %v5796
    %7954 = vmatprep.subr.bf16.mxu0 %v5801
    %7955 = vmatpush1.bf16.msra.mxu0 %v5800
    %7956 = vmatprep.subr.bf16.mxu0 %v5805
    %7957 = vmatpush1.bf16.msra.mxu0 %v5804
    %7958 = vmatprep.subr.bf16.mxu0 %v5809
    %7959 = vmatpush1.bf16.msra.mxu0 %v5808
    %7960 = vmatprep.subr.bf16.mxu0 %v5813
    %7961 = vmatpush1.bf16.msra.mxu0 %v5812
    %7962 = vmatprep.subr.bf16.mxu0 %v5817
    %7963 = vmatpush1.bf16.msra.mxu0 %v5816
    %7964 = vmatprep.subr.bf16.mxu0 %v5821
    %7965 = vmatpush1.bf16.msra.mxu0 %v5820
    %7966 = vmatprep.subr.bf16.mxu0 %v5825
    %7967 = vmatpush1.bf16.msra.mxu0 %v5824
    %7968 = vmatprep.subr.bf16.mxu0 %v5829
    %7969 = vmatpush1.bf16.msra.mxu0 %v5828
    %7970 = vmatprep.subr.bf16.mxu0 %v5833
    %7971 = vmatpush1.bf16.msra.mxu0 %v5832
    %7972 = vmatprep.subr.bf16.mxu0 %v5837
    %7973 = vmatpush1.bf16.msra.mxu0 %v5836
    %7974 = vmatprep.mubr.bf16.mxu0 %v1843
    %7975 = vmatmul.mubr.bf16.gmra.mrb[0].mxu0 %v1842
    %v7976 = vpop.f32.mrb[0].mxu0
    %v7977 = vadd.f32 %v7924, %v7976
    %v7978 = vpop.f32.mrb[0].mxu0
    %v7979 = vadd.f32 %v7926, %v7978
    %v7980 = vpop.f32.mrb[0].mxu0
    %v7981 = vadd.f32 %v7928, %v7980
    %v7982 = vpop.f32.mrb[0].mxu0
    %v7983 = vadd.f32 %v7930, %v7982
    %7984 = vmatprep.mubr.bf16.mxu0 %v1868
    %7985 = vmatmul.mubr.bf16.gmra.mrb[0].mxu0 %v1867
    %v7986 = vpop.f32.mrb[0].mxu0
    %v7987 = vadd.f32 %v7934, %v7986
    %v7988 = vpop.f32.mrb[0].mxu0
    %v7989 = vadd.f32 %v7936, %v7988
    %v7990 = vpop.f32.mrb[0].mxu0
    %v7991 = vadd.f32 %v7938, %v7990
    %v7992 = vpop.f32.mrb[0].mxu0
    %v7993 = vadd.f32 %v7940, %v7992
    %7994 = vdwg.mxu0
    %7995 = vmatprep.subr.bf16.mxu0 %v5841
    %7996 = vmatpush1.bf16.msra.mxu0 %v5840
    %7997 = vmatprep.subr.bf16.mxu0 %v5845
    %7998 = vmatpush1.bf16.msra.mxu0 %v5844
    %7999 = vmatprep.subr.bf16.mxu0 %v5849
    %8000 = vmatpush1.bf16.msra.mxu0 %v5848
    %8001 = vmatprep.subr.bf16.mxu0 %v5853
    %8002 = vmatpush1.bf16.msra.mxu0 %v5852
    %8003 = vmatprep.subr.bf16.mxu0 %v5857
    %8004 = vmatpush1.bf16.msra.mxu0 %v5856
    %8005 = vmatprep.subr.bf16.mxu0 %v5861
    %8006 = vmatpush1.bf16.msra.mxu0 %v5860
    %8007 = vmatprep.subr.bf16.mxu0 %v5865
    %8008 = vmatpush1.bf16.msra.mxu0 %v5864
    %8009 = vmatprep.subr.bf16.mxu0 %v5869
    %8010 = vmatpush1.bf16.msra.mxu0 %v5868
    %8011 = vmatprep.subr.bf16.mxu0 0
    %8012 = vmatpush1.bf16.msra.mxu0 0
    %8013 = vmatprep.subr.bf16.mxu0 0
    %8014 = vmatpush1.bf16.msra.mxu0 0
    %8015 = vmatprep.subr.bf16.mxu0 0
    %8016 = vmatpush1.bf16.msra.mxu0 0
    %8017 = vmatprep.subr.bf16.mxu0 0
    %8018 = vmatpush1.bf16.msra.mxu0 0
    %8019 = vmatprep.subr.bf16.mxu0 0
    %8020 = vmatpush1.bf16.msra.mxu0 0
    %8021 = vmatprep.subr.bf16.mxu0 0
    %8022 = vmatpush1.bf16.msra.mxu0 0
    %8023 = vmatprep.subr.bf16.mxu0 0
    %8024 = vmatpush1.bf16.msra.mxu0 0
    %8025 = vmatprep.subr.bf16.mxu0 0
    %8026 = vmatpush1.bf16.msra.mxu0 0
    %8027 = vmatprep.mubr.bf16.mxu0 0
    %8028 = vmatmul.mubr.bf16.gmra.mrb[0].mxu0 %v1844
    %v8029 = vpop.f32.mrb[0].mxu0
    %v8030 = vadd.f32 %v7977, %v8029
    %v8031 = vpop.f32.mrb[0].mxu0
    %v8032 = vadd.f32 %v7979, %v8031
    %v8033 = vpop.f32.mrb[0].mxu0
    %v8034 = vadd.f32 %v7981, %v8033
    %v8035 = vpop.f32.mrb[0].mxu0
    %v8036 = vadd.f32 %v7983, %v8035
    %8037 = vmatprep.mubr.bf16.mxu0 0
    %8038 = vmatmul.mubr.bf16.gmra.mrb[0].mxu0 %v1869
    %v8039 = vpop.f32.mrb[0].mxu0
    %v8040 = vadd.f32 %v7987, %v8039
    %v8041 = vpop.f32.mrb[0].mxu0
    %v8042 = vadd.f32 %v7989, %v8041
    %v8043 = vpop.f32.mrb[0].mxu0
    %v8044 = vadd.f32 %v7991, %v8043
    %v8045 = vpop.f32.mrb[0].mxu0
    %v8046 = vadd.f32 %v7993, %v8045
    %8047 = vdwg.mxu0
    %v8048 = vld [vmem:[#allocation10] sm:$0xf]
    %v8050 = vlaneseq
    %v8051 = vshrl.u32 %v8050, 7
    %v8052 = vsub.s32 0, %v8051
    %v8053 = vrot.slane %v8048, %v8052
    %v8054 = vlaneseq
    %v8055 = vshrl.u32 %v8054, 7
    %v8056 = vsub.s32 1, %v8055
    %v8057 = vrot.slane %v8048, %v8056
    %v8058 = vlaneseq
    %v8059 = vshrl.u32 %v8058, 7
    %v8060 = vsub.s32 2, %v8059
    %v8061 = vrot.slane %v8048, %v8060
    %v8062 = vlaneseq
    %v8063 = vshrl.u32 %v8062, 7
    %v8064 = vsub.s32 3, %v8063
    %v8065 = vrot.slane %v8048, %v8064
    %v8070 = vmul.f32 %v7341, %v8053
    %v8071 = vmul.f32 %v7343, %v8057
    %v8072 = vmul.f32 %v8030, %v8061
    %v8073 = vmul.f32 %v8032, %v8065
    %v8074 = vmul.f32 %v7345, %v8053
    %v8075 = vmul.f32 %v7347, %v8057
    %v8076 = vmul.f32 %v8034, %v8061
    %v8077 = vmul.f32 %v8036, %v8065
    %v8078 = vmul.f32 %v7351, %v8053
    %v8079 = vmul.f32 %v7353, %v8057
    %v8080 = vmul.f32 %v8040, %v8061
    %v8081 = vmul.f32 %v8042, %v8065
    %v8082 = vmul.f32 %v7355, %v8053
    %v8083 = vmul.f32 %v7357, %v8057
    %v8084 = vmul.f32 %v8044, %v8061
    %v8085 = vmul.f32 %v8046, %v8065
    %v8086 = vld [vmem:[#allocation11] sm:$0xf]
    %v8088 = vlaneseq
    %v8089 = vshrl.u32 %v8088, 7
    %v8090 = vsub.s32 0, %v8089
    %v8091 = vrot.slane %v8086, %v8090
    %v8092 = vlaneseq
    %v8093 = vshrl.u32 %v8092, 7
    %v8094 = vsub.s32 1, %v8093
    %v8095 = vrot.slane %v8086, %v8094
    %v8096 = vlaneseq
    %v8097 = vshrl.u32 %v8096, 7
    %v8098 = vsub.s32 2, %v8097
    %v8099 = vrot.slane %v8086, %v8098
    %v8100 = vlaneseq
    %v8101 = vshrl.u32 %v8100, 7
    %v8102 = vsub.s32 3, %v8101
    %v8103 = vrot.slane %v8086, %v8102
    %v8108 = vadd.f32 %v8070, %v8091
    %v8109 = vadd.f32 %v8071, %v8095
    %v8110 = vadd.f32 %v8072, %v8099
    %v8111 = vadd.f32 %v8073, %v8103
    %v8112 = vadd.f32 %v8074, %v8091
    %v8113 = vadd.f32 %v8075, %v8095
    %v8114 = vadd.f32 %v8076, %v8099
    %v8115 = vadd.f32 %v8077, %v8103
    %v8116 = vadd.f32 %v8078, %v8091
    %v8117 = vadd.f32 %v8079, %v8095
    %v8118 = vadd.f32 %v8080, %v8099
    %v8119 = vadd.f32 %v8081, %v8103
    %v8120 = vadd.f32 %v8082, %v8091
    %v8121 = vadd.f32 %v8083, %v8095
    %v8122 = vadd.f32 %v8084, %v8099
    %v8123 = vadd.f32 %v8085, %v8103
    %v8124 = vmax.f32 %v8108, 0.0
    %v8125 = vmax.f32 %v8109, 0.0
    %v8126 = vmax.f32 %v8110, 0.0
    %v8127 = vmax.f32 %v8111, 0.0
    %v8128 = vmax.f32 %v8112, 0.0
    %v8129 = vmax.f32 %v8113, 0.0
    %v8130 = vmax.f32 %v8114, 0.0
    %v8131 = vmax.f32 %v8115, 0.0
    %v8132 = vmax.f32 %v8116, 0.0
    %v8133 = vmax.f32 %v8117, 0.0
    %v8134 = vmax.f32 %v8118, 0.0
    %v8135 = vmax.f32 %v8119, 0.0
    %v8136 = vmax.f32 %v8120, 0.0
    %v8137 = vmax.f32 %v8121, 0.0
    %v8138 = vmax.f32 %v8122, 0.0
    %v8139 = vmax.f32 %v8123, 0.0
    %v8140 = vld [vmem:[#allocation13] sm:$0xf]
    %v8141 = vld [vmem:[#allocation13 + $0x4] sm:$0xf]
    %v8142 = vld [vmem:[#allocation13 + $0x8] sm:$0xf]
    %v8143 = vld [vmem:[#allocation13 + $0xc] sm:$0xf]
    %v8144 = vpack.c.bf16 %v8128, %v8124
    %v8145 = vpack.c.bf16 %v8129, %v8125
    %v8146 = vpack.c.bf16 %v8130, %v8126
    %v8147 = vpack.c.bf16 %v8131, %v8127
    %v8148 = vpack.c.bf16 %v8136, %v8132
    %v8149 = vpack.c.bf16 %v8137, %v8133
    %v8150 = vpack.c.bf16 %v8138, %v8134
    %v8151 = vpack.c.bf16 %v8139, %v8135
    %v8156 = vunpack.c.l.b16 %v8140
    %v8157 = vunpack.c.l.b16 %v8141
    %v8158 = vunpack.c.l.b16 %v8142
    %v8159 = vunpack.c.l.b16 %v8143
    %v8160 = vpack.c.b16 %v8157, %v8156
    %v8161 = vpack.c.b16 %v8159, %v8158
    %v8163 = vsel %vm432, %v8160, 0
    %v8166 = vsel %vm432, %v8161, 0
    %8168 = vmatprep.subr.bf16.mxu0 %v8145
    %8169 = vmatpush1.bf16.msra.mxu0 %v8144
    %8170 = vmatprep.subr.bf16.mxu0 %v8149
    %8171 = vmatpush1.bf16.msra.mxu0 %v8148
    %8172 = vmatprep.subr.bf16.mxu0 0
    %8173 = vmatpush1.bf16.msra.mxu0 0
    %8174 = vmatprep.subr.bf16.mxu0 0
    %8175 = vmatpush1.bf16.msra.mxu0 0
    %8176 = vmatprep.subr.bf16.mxu0 0
    %8177 = vmatpush1.bf16.msra.mxu0 0
    %8178 = vmatprep.subr.bf16.mxu0 0
    %8179 = vmatpush1.bf16.msra.mxu0 0
    %8180 = vmatprep.subr.bf16.mxu0 0
    %8181 = vmatpush1.bf16.msra.mxu0 0
    %8182 = vmatprep.subr.bf16.mxu0 0
    %8183 = vmatpush1.bf16.msra.mxu0 0
    %8184 = vmatprep.subr.bf16.mxu0 0
    %8185 = vmatpush1.bf16.msra.mxu0 0
    %8186 = vmatprep.subr.bf16.mxu0 0
    %8187 = vmatpush1.bf16.msra.mxu0 0
    %8188 = vmatprep.subr.bf16.mxu0 0
    %8189 = vmatpush1.bf16.msra.mxu0 0
    %8190 = vmatprep.subr.bf16.mxu0 0
    %8191 = vmatpush1.bf16.msra.mxu0 0
    %8192 = vmatprep.subr.bf16.mxu0 0
    %8193 = vmatpush1.bf16.msra.mxu0 0
    %8194 = vmatprep.subr.bf16.mxu0 0
    %8195 = vmatpush1.bf16.msra.mxu0 0
    %8196 = vmatprep.subr.bf16.mxu0 0
    %8197 = vmatpush1.bf16.msra.mxu0 0
    %8198 = vmatprep.subr.bf16.mxu0 0
    %8199 = vmatpush1.bf16.msra.mxu0 0
    %8200 = vmatprep.mubr.bf16.mxu0 0
    %8201 = vmatmul.mubr.bf16.gmra.mrb[0].mxu0 %v8163
    %v8202 = vpop.f32.mrb[0].mxu0
    %v8203 = vadd.f32 0.0, %v8202
    %v8204 = vpop.f32.mrb[0].mxu0
    %v8205 = vadd.f32 0.0, %v8204
    %v8206 = vpop.f32.mrb[0].mxu0
    %v8207 = vadd.f32 0.0, %v8206
    %v8208 = vpop.f32.mrb[0].mxu0
    %v8209 = vadd.f32 0.0, %v8208
    %8210 = vmatprep.mubr.bf16.mxu0 0
    %8211 = vmatmul.mubr.bf16.gmra.mrb[0].mxu0 %v8166
    %v8212 = vpop.f32.mrb[0].mxu0
    %v8213 = vadd.f32 0.0, %v8212
    %v8214 = vpop.f32.mrb[0].mxu0
    %v8215 = vadd.f32 0.0, %v8214
    %v8216 = vpop.f32.mrb[0].mxu0
    %v8217 = vadd.f32 0.0, %v8216
    %v8218 = vpop.f32.mrb[0].mxu0
    %v8219 = vadd.f32 0.0, %v8218
    %8220 = vdwg.mxu0
    %8221 = vmatprep.subr.bf16.mxu0 %v8147
    %8222 = vmatpush1.bf16.msra.mxu0 %v8146
    %8223 = vmatprep.subr.bf16.mxu0 %v8151
    %8224 = vmatpush1.bf16.msra.mxu0 %v8150
    %8225 = vmatprep.subr.bf16.mxu0 0
    %8226 = vmatpush1.bf16.msra.mxu0 0
    %8227 = vmatprep.subr.bf16.mxu0 0
    %8228 = vmatpush1.bf16.msra.mxu0 0
    %8229 = vmatprep.subr.bf16.mxu0 0
    %8230 = vmatpush1.bf16.msra.mxu0 0
    %8231 = vmatprep.subr.bf16.mxu0 0
    %8232 = vmatpush1.bf16.msra.mxu0 0
    %8233 = vmatprep.subr.bf16.mxu0 0
    %8234 = vmatpush1.bf16.msra.mxu0 0
    %8235 = vmatprep.subr.bf16.mxu0 0
    %8236 = vmatpush1.bf16.msra.mxu0 0
    %8237 = vmatprep.subr.bf16.mxu0 0
    %8238 = vmatpush1.bf16.msra.mxu0 0
    %8239 = vmatprep.subr.bf16.mxu0 0
    %8240 = vmatpush1.bf16.msra.mxu0 0
    %8241 = vmatprep.subr.bf16.mxu0 0
    %8242 = vmatpush1.bf16.msra.mxu0 0
    %8243 = vmatprep.subr.bf16.mxu0 0
    %8244 = vmatpush1.bf16.msra.mxu0 0
    %8245 = vmatprep.subr.bf16.mxu0 0
    %8246 = vmatpush1.bf16.msra.mxu0 0
    %8247 = vmatprep.subr.bf16.mxu0 0
    %8248 = vmatpush1.bf16.msra.mxu0 0
    %8249 = vmatprep.subr.bf16.mxu0 0
    %8250 = vmatpush1.bf16.msra.mxu0 0
    %8251 = vmatprep.subr.bf16.mxu0 0
    %8252 = vmatpush1.bf16.msra.mxu0 0
    %8253 = vmatprep.mubr.bf16.mxu0 0
    %8254 = vmatmul.mubr.bf16.gmra.mrb[0].mxu0 %v8163
    %v8255 = vpop.f32.mrb[0].mxu0
    %v8256 = vadd.f32 0.0, %v8255
    %v8257 = vpop.f32.mrb[0].mxu0
    %v8258 = vadd.f32 0.0, %v8257
    %v8259 = vpop.f32.mrb[0].mxu0
    %v8260 = vadd.f32 0.0, %v8259
    %v8261 = vpop.f32.mrb[0].mxu0
    %v8262 = vadd.f32 0.0, %v8261
    %8263 = vmatprep.mubr.bf16.mxu0 0
    %8264 = vmatmul.mubr.bf16.gmra.mrb[0].mxu0 %v8166
    %v8265 = vpop.f32.mrb[0].mxu0
    %v8266 = vadd.f32 0.0, %v8265
    %v8267 = vpop.f32.mrb[0].mxu0
    %v8268 = vadd.f32 0.0, %v8267
    %v8269 = vpop.f32.mrb[0].mxu0
    %v8270 = vadd.f32 0.0, %v8269
    %v8271 = vpop.f32.mrb[0].mxu0
    %v8272 = vadd.f32 0.0, %v8271
    %8273 = vdwg.mxu0
    %v8274 = vmax.f32 %v8203, %v8213
    %v8275 = vmax.f32 %v8205, %v8215
    %v8276 = vmax.f32 %v8256, %v8266
    %v8277 = vmax.f32 %v8258, %v8268
    %v8278 = vmax.f32 %v8207, %v8217
    %v8279 = vmax.f32 %v8209, %v8219
    %v8280 = vmax.f32 %v8260, %v8270
    %v8281 = vmax.f32 %v8262, %v8272
    %v8282 = vpack.c.bf16 %v8278, %v8274
    %v8283 = vpack.c.bf16 %v8279, %v8275
    %v8284 = vpack.c.bf16 %v8280, %v8276
    %v8285 = vpack.c.bf16 %v8281, %v8277
    %v8286 = vld [vmem:[#allocation14] sm:$0xff]
    %v8287 = vld [vmem:[#allocation14 + $0x8] sm:$0xff]
    %v8288 = vld [vmem:[#allocation14 + $0x10] sm:$0xff]
    %v8289 = vld [vmem:[#allocation14 + $0x18] sm:$0xff]
    %v8290 = vld [vmem:[#allocation14 + $0x20] sm:$0xff]
    %v8291 = vld [vmem:[#allocation14 + $0x28] sm:$0xff]
    %v8292 = vld [vmem:[#allocation14 + $0x30] sm:$0xff]
    %v8293 = vld [vmem:[#allocation14 + $0x38] sm:$0xff]
    %v8294 = vld [vmem:[#allocation14 + $0x40] sm:$0xff]
    %v8295 = vld [vmem:[#allocation14 + $0x48] sm:$0xff]
    %v8296 = vld [vmem:[#allocation14 + $0x50] sm:$0xff]
    %v8297 = vld [vmem:[#allocation14 + $0x58] sm:$0xff]
    %v8298 = vld [vmem:[#allocation14 + $0x60] sm:$0xff]
    %v8299 = vld [vmem:[#allocation14 + $0x68] sm:$0xff]
    %v8300 = vld [vmem:[#allocation14 + $0x70] sm:$0xff]
    %v8301 = vld [vmem:[#allocation14 + $0x78] sm:$0xff]
    %v8302 = vld [vmem:[#allocation14 + $0x80] sm:$0xff]
    %v8303 = vld [vmem:[#allocation14 + $0x88] sm:$0xff]
    %v8304 = vld [vmem:[#allocation14 + $0x90] sm:$0xff]
    %v8305 = vld [vmem:[#allocation14 + $0x98] sm:$0xff]
    %v8306 = vld [vmem:[#allocation14 + $0xa0] sm:$0xff]
    %v8307 = vld [vmem:[#allocation14 + $0xa8] sm:$0xff]
    %v8308 = vld [vmem:[#allocation14 + $0xb0] sm:$0xff]
    %v8309 = vld [vmem:[#allocation14 + $0xb8] sm:$0xff]
    %v8310 = vld [vmem:[#allocation14 + $0xc0] sm:$0xff]
    %v8311 = vld [vmem:[#allocation14 + $0xc8] sm:$0xff]
    %v8312 = vld [vmem:[#allocation14 + $0xd0] sm:$0xff]
    %v8313 = vld [vmem:[#allocation14 + $0xd8] sm:$0xff]
    %v8314 = vld [vmem:[#allocation14 + $0xe0] sm:$0xff]
    %v8315 = vld [vmem:[#allocation14 + $0xe8] sm:$0xff]
    %v8316 = vld [vmem:[#allocation14 + $0xf0] sm:$0xff]
    %v8317 = vld [vmem:[#allocation14 + $0xf8] sm:$0xff]
    %v8318 = vld [vmem:[#allocation14 + $0x100] sm:$0xff]
    %v8319 = vld [vmem:[#allocation14 + $0x108] sm:$0xff]
    %v8320 = vld [vmem:[#allocation14 + $0x110] sm:$0xff]
    %v8321 = vld [vmem:[#allocation14 + $0x118] sm:$0xff]
    %v8322 = vld [vmem:[#allocation14 + $0x120] sm:$0xff]
    %v8323 = vld [vmem:[#allocation14 + $0x128] sm:$0xff]
    %v8324 = vld [vmem:[#allocation14 + $0x130] sm:$0xff]
    %v8325 = vld [vmem:[#allocation14 + $0x138] sm:$0xff]
    %v8326 = vld [vmem:[#allocation14 + $0x140] sm:$0xff]
    %v8327 = vld [vmem:[#allocation14 + $0x148] sm:$0xff]
    %v8328 = vld [vmem:[#allocation14 + $0x150] sm:$0xff]
    %v8329 = vld [vmem:[#allocation14 + $0x158] sm:$0xff]
    %v8330 = vld [vmem:[#allocation14 + $0x160] sm:$0xff]
    %v8331 = vld [vmem:[#allocation14 + $0x168] sm:$0xff]
    %v8332 = vld [vmem:[#allocation14 + $0x170] sm:$0xff]
    %v8333 = vld [vmem:[#allocation14 + $0x178] sm:$0xff]
    %v8334 = vld [vmem:[#allocation14 + $0x180] sm:$0xff]
    %v8335 = vld [vmem:[#allocation14 + $0x188] sm:$0xff]
    %v8336 = vld [vmem:[#allocation14 + $0x190] sm:$0xff]
    %v8337 = vld [vmem:[#allocation14 + $0x198] sm:$0xff]
    %v8338 = vld [vmem:[#allocation14 + $0x1a0] sm:$0xff]
    %v8339 = vld [vmem:[#allocation14 + $0x1a8] sm:$0xff]
    %v8340 = vld [vmem:[#allocation14 + $0x1b0] sm:$0xff]
    %v8341 = vld [vmem:[#allocation14 + $0x1b8] sm:$0xff]
    %v8342 = vld [vmem:[#allocation14 + $0x1c0] sm:$0xff]
    %v8343 = vld [vmem:[#allocation14 + $0x1c8] sm:$0xff]
    %v8344 = vld [vmem:[#allocation14 + $0x1d0] sm:$0xff]
    %v8345 = vld [vmem:[#allocation14 + $0x1d8] sm:$0xff]
    %v8346 = vld [vmem:[#allocation14 + $0x1e0] sm:$0xff]
    %v8347 = vld [vmem:[#allocation14 + $0x1e8] sm:$0xff]
    %v8348 = vld [vmem:[#allocation14 + $0x1f0] sm:$0xff]
    %v8349 = vld [vmem:[#allocation14 + $0x1f8] sm:$0xff]
    %v8350 = vld [vmem:[#allocation14 + $0x200] sm:$0xff]
    %v8351 = vld [vmem:[#allocation14 + $0x208] sm:$0xff]
    %v8352 = vld [vmem:[#allocation14 + $0x210] sm:$0xff]
    %v8353 = vld [vmem:[#allocation14 + $0x218] sm:$0xff]
    %v8354 = vld [vmem:[#allocation14 + $0x220] sm:$0xff]
    %v8355 = vld [vmem:[#allocation14 + $0x228] sm:$0xff]
    %v8356 = vld [vmem:[#allocation14 + $0x230] sm:$0xff]
    %v8357 = vld [vmem:[#allocation14 + $0x238] sm:$0xff]
    %v8358 = vld [vmem:[#allocation14 + $0x240] sm:$0xff]
    %v8359 = vld [vmem:[#allocation14 + $0x248] sm:$0xff]
    %v8360 = vld [vmem:[#allocation14 + $0x250] sm:$0xff]
    %v8361 = vld [vmem:[#allocation14 + $0x258] sm:$0xff]
    %v8362 = vld [vmem:[#allocation14 + $0x260] sm:$0xff]
    %v8363 = vld [vmem:[#allocation14 + $0x268] sm:$0xff]
    %v8364 = vld [vmem:[#allocation14 + $0x270] sm:$0xff]
    %v8365 = vld [vmem:[#allocation14 + $0x278] sm:$0xff]
    %v8366 = vld [vmem:[#allocation14 + $0x280] sm:$0xff]
    %v8367 = vld [vmem:[#allocation14 + $0x288] sm:$0xff]
    %v8368 = vld [vmem:[#allocation14 + $0x290] sm:$0xff]
    %v8369 = vld [vmem:[#allocation14 + $0x298] sm:$0xff]
    %v8370 = vld [vmem:[#allocation14 + $0x2a0] sm:$0xff]
    %v8371 = vld [vmem:[#allocation14 + $0x2a8] sm:$0xff]
    %v8372 = vld [vmem:[#allocation14 + $0x2b0] sm:$0xff]
    %v8373 = vld [vmem:[#allocation14 + $0x2b8] sm:$0xff]
    %v8374 = vld [vmem:[#allocation14 + $0x2c0] sm:$0xff]
    %v8375 = vld [vmem:[#allocation14 + $0x2c8] sm:$0xff]
    %v8376 = vld [vmem:[#allocation14 + $0x2d0] sm:$0xff]
    %v8377 = vld [vmem:[#allocation14 + $0x2d8] sm:$0xff]
    %v8378 = vld [vmem:[#allocation14 + $0x2e0] sm:$0xff]
    %v8379 = vld [vmem:[#allocation14 + $0x2e8] sm:$0xff]
    %v8380 = vld [vmem:[#allocation14 + $0x2f0] sm:$0xff]
    %v8381 = vld [vmem:[#allocation14 + $0x2f8] sm:$0xff]
    %v8382 = vld [vmem:[#allocation14 + $0x300] sm:$0xff]
    %v8383 = vld [vmem:[#allocation14 + $0x308] sm:$0xff]
    %v8384 = vld [vmem:[#allocation14 + $0x310] sm:$0xff]
    %v8385 = vld [vmem:[#allocation14 + $0x318] sm:$0xff]
    %v8386 = vld [vmem:[#allocation14 + $0x320] sm:$0xff]
    %v8387 = vld [vmem:[#allocation14 + $0x328] sm:$0xff]
    %v8388 = vld [vmem:[#allocation14 + $0x330] sm:$0xff]
    %v8389 = vld [vmem:[#allocation14 + $0x338] sm:$0xff]
    %v8390 = vld [vmem:[#allocation14 + $0x340] sm:$0xff]
    %v8391 = vld [vmem:[#allocation14 + $0x348] sm:$0xff]
    %v8392 = vld [vmem:[#allocation14 + $0x350] sm:$0xff]
    %v8393 = vld [vmem:[#allocation14 + $0x358] sm:$0xff]
    %v8394 = vld [vmem:[#allocation14 + $0x360] sm:$0xff]
    %v8395 = vld [vmem:[#allocation14 + $0x368] sm:$0xff]
    %v8396 = vld [vmem:[#allocation14 + $0x370] sm:$0xff]
    %v8397 = vld [vmem:[#allocation14 + $0x378] sm:$0xff]
    %v8398 = vld [vmem:[#allocation14 + $0x380] sm:$0xff]
    %v8399 = vld [vmem:[#allocation14 + $0x388] sm:$0xff]
    %v8400 = vld [vmem:[#allocation14 + $0x390] sm:$0xff]
    %v8401 = vld [vmem:[#allocation14 + $0x398] sm:$0xff]
    %v8402 = vld [vmem:[#allocation14 + $0x3a0] sm:$0xff]
    %v8403 = vld [vmem:[#allocation14 + $0x3a8] sm:$0xff]
    %v8404 = vld [vmem:[#allocation14 + $0x3b0] sm:$0xff]
    %v8405 = vld [vmem:[#allocation14 + $0x3b8] sm:$0xff]
    %v8406 = vld [vmem:[#allocation14 + $0x3c0] sm:$0xff]
    %v8407 = vld [vmem:[#allocation14 + $0x3c8] sm:$0xff]
    %v8408 = vld [vmem:[#allocation14 + $0x3d0] sm:$0xff]
    %v8409 = vld [vmem:[#allocation14 + $0x3d8] sm:$0xff]
    %v8410 = vld [vmem:[#allocation14 + $0x3e0] sm:$0xff]
    %v8411 = vld [vmem:[#allocation14 + $0x3e8] sm:$0xff]
    %v8412 = vld [vmem:[#allocation14 + $0x3f0] sm:$0xff]
    %v8413 = vld [vmem:[#allocation14 + $0x3f8] sm:$0xff]
    %v8542 = vunpack.c.l.b16 %v8286
    %v8543 = vunpack.c.h.b16 %v8286
    %v8544 = vunpack.c.l.b16 %v8287
    %v8545 = vunpack.c.h.b16 %v8287
    %v8546 = vunpack.c.l.b16 %v8288
    %v8547 = vunpack.c.h.b16 %v8288
    %v8548 = vunpack.c.l.b16 %v8289
    %v8549 = vunpack.c.h.b16 %v8289
    %v8550 = vunpack.c.l.b16 %v8290
    %v8551 = vunpack.c.h.b16 %v8290
    %v8552 = vunpack.c.l.b16 %v8291
    %v8553 = vunpack.c.h.b16 %v8291
    %v8554 = vunpack.c.l.b16 %v8292
    %v8555 = vunpack.c.h.b16 %v8292
    %v8556 = vunpack.c.l.b16 %v8293
    %v8557 = vunpack.c.h.b16 %v8293
    %v8558 = vunpack.c.l.b16 %v8294
    %v8559 = vunpack.c.h.b16 %v8294
    %v8560 = vunpack.c.l.b16 %v8295
    %v8561 = vunpack.c.h.b16 %v8295
    %v8562 = vunpack.c.l.b16 %v8296
    %v8563 = vunpack.c.h.b16 %v8296
    %v8564 = vunpack.c.l.b16 %v8297
    %v8565 = vunpack.c.h.b16 %v8297
    %v8566 = vunpack.c.l.b16 %v8298
    %v8567 = vunpack.c.h.b16 %v8298
    %v8568 = vunpack.c.l.b16 %v8299
    %v8569 = vunpack.c.h.b16 %v8299
    %v8570 = vunpack.c.l.b16 %v8300
    %v8571 = vunpack.c.h.b16 %v8300
    %v8572 = vunpack.c.l.b16 %v8301
    %v8573 = vunpack.c.h.b16 %v8301
    %v8574 = vunpack.c.l.b16 %v8302
    %v8575 = vunpack.c.h.b16 %v8302
    %v8576 = vunpack.c.l.b16 %v8303
    %v8577 = vunpack.c.h.b16 %v8303
    %v8578 = vunpack.c.l.b16 %v8304
    %v8579 = vunpack.c.h.b16 %v8304
    %v8580 = vunpack.c.l.b16 %v8305
    %v8581 = vunpack.c.h.b16 %v8305
    %v8582 = vunpack.c.l.b16 %v8306
    %v8583 = vunpack.c.h.b16 %v8306
    %v8584 = vunpack.c.l.b16 %v8307
    %v8585 = vunpack.c.h.b16 %v8307
    %v8586 = vunpack.c.l.b16 %v8308
    %v8587 = vunpack.c.h.b16 %v8308
    %v8588 = vunpack.c.l.b16 %v8309
    %v8589 = vunpack.c.h.b16 %v8309
    %v8590 = vunpack.c.l.b16 %v8310
    %v8591 = vunpack.c.h.b16 %v8310
    %v8592 = vunpack.c.l.b16 %v8311
    %v8593 = vunpack.c.h.b16 %v8311
    %v8594 = vunpack.c.l.b16 %v8312
    %v8595 = vunpack.c.h.b16 %v8312
    %v8596 = vunpack.c.l.b16 %v8313
    %v8597 = vunpack.c.h.b16 %v8313
    %v8598 = vunpack.c.l.b16 %v8314
    %v8599 = vunpack.c.h.b16 %v8314
    %v8600 = vunpack.c.l.b16 %v8315
    %v8601 = vunpack.c.h.b16 %v8315
    %v8602 = vunpack.c.l.b16 %v8316
    %v8603 = vunpack.c.h.b16 %v8316
    %v8604 = vunpack.c.l.b16 %v8317
    %v8605 = vunpack.c.h.b16 %v8317
    %v8606 = vunpack.c.l.b16 %v8318
    %v8607 = vunpack.c.h.b16 %v8318
    %v8608 = vunpack.c.l.b16 %v8319
    %v8609 = vunpack.c.h.b16 %v8319
    %v8610 = vunpack.c.l.b16 %v8320
    %v8611 = vunpack.c.h.b16 %v8320
    %v8612 = vunpack.c.l.b16 %v8321
    %v8613 = vunpack.c.h.b16 %v8321
    %v8614 = vunpack.c.l.b16 %v8322
    %v8615 = vunpack.c.h.b16 %v8322
    %v8616 = vunpack.c.l.b16 %v8323
    %v8617 = vunpack.c.h.b16 %v8323
    %v8618 = vunpack.c.l.b16 %v8324
    %v8619 = vunpack.c.h.b16 %v8324
    %v8620 = vunpack.c.l.b16 %v8325
    %v8621 = vunpack.c.h.b16 %v8325
    %v8622 = vunpack.c.l.b16 %v8326
    %v8623 = vunpack.c.h.b16 %v8326
    %v8624 = vunpack.c.l.b16 %v8327
    %v8625 = vunpack.c.h.b16 %v8327
    %v8626 = vunpack.c.l.b16 %v8328
    %v8627 = vunpack.c.h.b16 %v8328
    %v8628 = vunpack.c.l.b16 %v8329
    %v8629 = vunpack.c.h.b16 %v8329
    %v8630 = vunpack.c.l.b16 %v8330
    %v8631 = vunpack.c.h.b16 %v8330
    %v8632 = vunpack.c.l.b16 %v8331
    %v8633 = vunpack.c.h.b16 %v8331
    %v8634 = vunpack.c.l.b16 %v8332
    %v8635 = vunpack.c.h.b16 %v8332
    %v8636 = vunpack.c.l.b16 %v8333
    %v8637 = vunpack.c.h.b16 %v8333
    %v8638 = vunpack.c.l.b16 %v8334
    %v8639 = vunpack.c.h.b16 %v8334
    %v8640 = vunpack.c.l.b16 %v8335
    %v8641 = vunpack.c.h.b16 %v8335
    %v8642 = vunpack.c.l.b16 %v8336
    %v8643 = vunpack.c.h.b16 %v8336
    %v8644 = vunpack.c.l.b16 %v8337
    %v8645 = vunpack.c.h.b16 %v8337
    %v8646 = vunpack.c.l.b16 %v8338
    %v8647 = vunpack.c.h.b16 %v8338
    %v8648 = vunpack.c.l.b16 %v8339
    %v8649 = vunpack.c.h.b16 %v8339
    %v8650 = vunpack.c.l.b16 %v8340
    %v8651 = vunpack.c.h.b16 %v8340
    %v8652 = vunpack.c.l.b16 %v8341
    %v8653 = vunpack.c.h.b16 %v8341
    %v8654 = vunpack.c.l.b16 %v8342
    %v8655 = vunpack.c.h.b16 %v8342
    %v8656 = vunpack.c.l.b16 %v8343
    %v8657 = vunpack.c.h.b16 %v8343
    %v8658 = vunpack.c.l.b16 %v8344
    %v8659 = vunpack.c.h.b16 %v8344
    %v8660 = vunpack.c.l.b16 %v8345
    %v8661 = vunpack.c.h.b16 %v8345
    %v8662 = vunpack.c.l.b16 %v8346
    %v8663 = vunpack.c.h.b16 %v8346
    %v8664 = vunpack.c.l.b16 %v8347
    %v8665 = vunpack.c.h.b16 %v8347
    %v8666 = vunpack.c.l.b16 %v8348
    %v8667 = vunpack.c.h.b16 %v8348
    %v8668 = vunpack.c.l.b16 %v8349
    %v8669 = vunpack.c.h.b16 %v8349
    %v8670 = vunpack.c.l.b16 %v8350
    %v8671 = vunpack.c.h.b16 %v8350
    %v8672 = vunpack.c.l.b16 %v8351
    %v8673 = vunpack.c.h.b16 %v8351
    %v8674 = vunpack.c.l.b16 %v8352
    %v8675 = vunpack.c.h.b16 %v8352
    %v8676 = vunpack.c.l.b16 %v8353
    %v8677 = vunpack.c.h.b16 %v8353
    %v8678 = vunpack.c.l.b16 %v8354
    %v8679 = vunpack.c.h.b16 %v8354
    %v8680 = vunpack.c.l.b16 %v8355
    %v8681 = vunpack.c.h.b16 %v8355
    %v8682 = vunpack.c.l.b16 %v8356
    %v8683 = vunpack.c.h.b16 %v8356
    %v8684 = vunpack.c.l.b16 %v8357
    %v8685 = vunpack.c.h.b16 %v8357
    %v8686 = vunpack.c.l.b16 %v8358
    %v8687 = vunpack.c.h.b16 %v8358
    %v8688 = vunpack.c.l.b16 %v8359
    %v8689 = vunpack.c.h.b16 %v8359
    %v8690 = vunpack.c.l.b16 %v8360
    %v8691 = vunpack.c.h.b16 %v8360
    %v8692 = vunpack.c.l.b16 %v8361
    %v8693 = vunpack.c.h.b16 %v8361
    %v8694 = vunpack.c.l.b16 %v8362
    %v8695 = vunpack.c.h.b16 %v8362
    %v8696 = vunpack.c.l.b16 %v8363
    %v8697 = vunpack.c.h.b16 %v8363
    %v8698 = vunpack.c.l.b16 %v8364
    %v8699 = vunpack.c.h.b16 %v8364
    %v8700 = vunpack.c.l.b16 %v8365
    %v8701 = vunpack.c.h.b16 %v8365
    %v8702 = vunpack.c.l.b16 %v8366
    %v8703 = vunpack.c.h.b16 %v8366
    %v8704 = vunpack.c.l.b16 %v8367
    %v8705 = vunpack.c.h.b16 %v8367
    %v8706 = vunpack.c.l.b16 %v8368
    %v8707 = vunpack.c.h.b16 %v8368
    %v8708 = vunpack.c.l.b16 %v8369
    %v8709 = vunpack.c.h.b16 %v8369
    %v8710 = vunpack.c.l.b16 %v8370
    %v8711 = vunpack.c.h.b16 %v8370
    %v8712 = vunpack.c.l.b16 %v8371
    %v8713 = vunpack.c.h.b16 %v8371
    %v8714 = vunpack.c.l.b16 %v8372
    %v8715 = vunpack.c.h.b16 %v8372
    %v8716 = vunpack.c.l.b16 %v8373
    %v8717 = vunpack.c.h.b16 %v8373
    %v8718 = vunpack.c.l.b16 %v8374
    %v8719 = vunpack.c.h.b16 %v8374
    %v8720 = vunpack.c.l.b16 %v8375
    %v8721 = vunpack.c.h.b16 %v8375
    %v8722 = vunpack.c.l.b16 %v8376
    %v8723 = vunpack.c.h.b16 %v8376
    %v8724 = vunpack.c.l.b16 %v8377
    %v8725 = vunpack.c.h.b16 %v8377
    %v8726 = vunpack.c.l.b16 %v8378
    %v8727 = vunpack.c.h.b16 %v8378
    %v8728 = vunpack.c.l.b16 %v8379
    %v8729 = vunpack.c.h.b16 %v8379
    %v8730 = vunpack.c.l.b16 %v8380
    %v8731 = vunpack.c.h.b16 %v8380
    %v8732 = vunpack.c.l.b16 %v8381
    %v8733 = vunpack.c.h.b16 %v8381
    %v8734 = vunpack.c.l.b16 %v8382
    %v8735 = vunpack.c.h.b16 %v8382
    %v8736 = vunpack.c.l.b16 %v8383
    %v8737 = vunpack.c.h.b16 %v8383
    %v8738 = vunpack.c.l.b16 %v8384
    %v8739 = vunpack.c.h.b16 %v8384
    %v8740 = vunpack.c.l.b16 %v8385
    %v8741 = vunpack.c.h.b16 %v8385
    %v8742 = vunpack.c.l.b16 %v8386
    %v8743 = vunpack.c.h.b16 %v8386
    %v8744 = vunpack.c.l.b16 %v8387
    %v8745 = vunpack.c.h.b16 %v8387
    %v8746 = vunpack.c.l.b16 %v8388
    %v8747 = vunpack.c.h.b16 %v8388
    %v8748 = vunpack.c.l.b16 %v8389
    %v8749 = vunpack.c.h.b16 %v8389
    %v8750 = vunpack.c.l.b16 %v8390
    %v8751 = vunpack.c.h.b16 %v8390
    %v8752 = vunpack.c.l.b16 %v8391
    %v8753 = vunpack.c.h.b16 %v8391
    %v8754 = vunpack.c.l.b16 %v8392
    %v8755 = vunpack.c.h.b16 %v8392
    %v8756 = vunpack.c.l.b16 %v8393
    %v8757 = vunpack.c.h.b16 %v8393
    %v8758 = vunpack.c.l.b16 %v8394
    %v8759 = vunpack.c.h.b16 %v8394
    %v8760 = vunpack.c.l.b16 %v8395
    %v8761 = vunpack.c.h.b16 %v8395
    %v8762 = vunpack.c.l.b16 %v8396
    %v8763 = vunpack.c.h.b16 %v8396
    %v8764 = vunpack.c.l.b16 %v8397
    %v8765 = vunpack.c.h.b16 %v8397
    %v8766 = vunpack.c.l.b16 %v8398
    %v8767 = vunpack.c.h.b16 %v8398
    %v8768 = vunpack.c.l.b16 %v8399
    %v8769 = vunpack.c.h.b16 %v8399
    %v8770 = vunpack.c.l.b16 %v8400
    %v8771 = vunpack.c.h.b16 %v8400
    %v8772 = vunpack.c.l.b16 %v8401
    %v8773 = vunpack.c.h.b16 %v8401
    %v8774 = vunpack.c.l.b16 %v8402
    %v8775 = vunpack.c.h.b16 %v8402
    %v8776 = vunpack.c.l.b16 %v8403
    %v8777 = vunpack.c.h.b16 %v8403
    %v8778 = vunpack.c.l.b16 %v8404
    %v8779 = vunpack.c.h.b16 %v8404
    %v8780 = vunpack.c.l.b16 %v8405
    %v8781 = vunpack.c.h.b16 %v8405
    %v8782 = vunpack.c.l.b16 %v8406
    %v8783 = vunpack.c.h.b16 %v8406
    %v8784 = vunpack.c.l.b16 %v8407
    %v8785 = vunpack.c.h.b16 %v8407
    %v8786 = vunpack.c.l.b16 %v8408
    %v8787 = vunpack.c.h.b16 %v8408
    %v8788 = vunpack.c.l.b16 %v8409
    %v8789 = vunpack.c.h.b16 %v8409
    %v8790 = vunpack.c.l.b16 %v8410
    %v8791 = vunpack.c.h.b16 %v8410
    %v8792 = vunpack.c.l.b16 %v8411
    %v8793 = vunpack.c.h.b16 %v8411
    %v8794 = vunpack.c.l.b16 %v8412
    %v8795 = vunpack.c.h.b16 %v8412
    %v8796 = vunpack.c.l.b16 %v8413
    %v8797 = vunpack.c.h.b16 %v8413
    %v8798 = vpack.c.b16 %v8546, %v8542
    %v8799 = vpack.c.b16 %v8547, %v8543
    %v8800 = vpack.c.b16 %v8548, %v8544
    %v8801 = vpack.c.b16 %v8549, %v8545
    %v8802 = vpack.c.b16 %v8554, %v8550
    %v8803 = vpack.c.b16 %v8555, %v8551
    %v8804 = vpack.c.b16 %v8556, %v8552
    %v8805 = vpack.c.b16 %v8557, %v8553
    %v8806 = vpack.c.b16 %v8562, %v8558
    %v8807 = vpack.c.b16 %v8563, %v8559
    %v8808 = vpack.c.b16 %v8564, %v8560
    %v8809 = vpack.c.b16 %v8565, %v8561
    %v8810 = vpack.c.b16 %v8570, %v8566
    %v8811 = vpack.c.b16 %v8571, %v8567
    %v8812 = vpack.c.b16 %v8572, %v8568
    %v8813 = vpack.c.b16 %v8573, %v8569
    %v8814 = vpack.c.b16 %v8578, %v8574
    %v8815 = vpack.c.b16 %v8579, %v8575
    %v8816 = vpack.c.b16 %v8580, %v8576
    %v8817 = vpack.c.b16 %v8581, %v8577
    %v8818 = vpack.c.b16 %v8586, %v8582
    %v8819 = vpack.c.b16 %v8587, %v8583
    %v8820 = vpack.c.b16 %v8588, %v8584
    %v8821 = vpack.c.b16 %v8589, %v8585
    %v8822 = vpack.c.b16 %v8594, %v8590
    %v8823 = vpack.c.b16 %v8595, %v8591
    %v8824 = vpack.c.b16 %v8596, %v8592
    %v8825 = vpack.c.b16 %v8597, %v8593
    %v8826 = vpack.c.b16 %v8602, %v8598
    %v8827 = vpack.c.b16 %v8603, %v8599
    %v8828 = vpack.c.b16 %v8604, %v8600
    %v8829 = vpack.c.b16 %v8605, %v8601
    %v8830 = vpack.c.b16 %v8610, %v8606
    %v8831 = vpack.c.b16 %v8611, %v8607
    %v8832 = vpack.c.b16 %v8612, %v8608
    %v8833 = vpack.c.b16 %v8613, %v8609
    %v8834 = vpack.c.b16 %v8618, %v8614
    %v8835 = vpack.c.b16 %v8619, %v8615
    %v8836 = vpack.c.b16 %v8620, %v8616
    %v8837 = vpack.c.b16 %v8621, %v8617
    %v8838 = vpack.c.b16 %v8626, %v8622
    %v8839 = vpack.c.b16 %v8627, %v8623
    %v8840 = vpack.c.b16 %v8628, %v8624
    %v8841 = vpack.c.b16 %v8629, %v8625
    %v8842 = vpack.c.b16 %v8634, %v8630
    %v8843 = vpack.c.b16 %v8635, %v8631
    %v8844 = vpack.c.b16 %v8636, %v8632
    %v8845 = vpack.c.b16 %v8637, %v8633
    %v8846 = vpack.c.b16 %v8642, %v8638
    %v8847 = vpack.c.b16 %v8643, %v8639
    %v8848 = vpack.c.b16 %v8644, %v8640
    %v8849 = vpack.c.b16 %v8645, %v8641
    %v8850 = vpack.c.b16 %v8650, %v8646
    %v8851 = vpack.c.b16 %v8651, %v8647
    %v8852 = vpack.c.b16 %v8652, %v8648
    %v8853 = vpack.c.b16 %v8653, %v8649
    %v8854 = vpack.c.b16 %v8658, %v8654
    %v8855 = vpack.c.b16 %v8659, %v8655
    %v8856 = vpack.c.b16 %v8660, %v8656
    %v8857 = vpack.c.b16 %v8661, %v8657
    %v8858 = vpack.c.b16 %v8666, %v8662
    %v8859 = vpack.c.b16 %v8667, %v8663
    %v8860 = vpack.c.b16 %v8668, %v8664
    %v8861 = vpack.c.b16 %v8669, %v8665
    %v8862 = vpack.c.b16 %v8674, %v8670
    %v8863 = vpack.c.b16 %v8675, %v8671
    %v8864 = vpack.c.b16 %v8676, %v8672
    %v8865 = vpack.c.b16 %v8677, %v8673
    %v8866 = vpack.c.b16 %v8682, %v8678
    %v8867 = vpack.c.b16 %v8683, %v8679
    %v8868 = vpack.c.b16 %v8684, %v8680
    %v8869 = vpack.c.b16 %v8685, %v8681
    %v8870 = vpack.c.b16 %v8690, %v8686
    %v8871 = vpack.c.b16 %v8691, %v8687
    %v8872 = vpack.c.b16 %v8692, %v8688
    %v8873 = vpack.c.b16 %v8693, %v8689
    %v8874 = vpack.c.b16 %v8698, %v8694
    %v8875 = vpack.c.b16 %v8699, %v8695
    %v8876 = vpack.c.b16 %v8700, %v8696
    %v8877 = vpack.c.b16 %v8701, %v8697
    %v8878 = vpack.c.b16 %v8706, %v8702
    %v8879 = vpack.c.b16 %v8707, %v8703
    %v8880 = vpack.c.b16 %v8708, %v8704
    %v8881 = vpack.c.b16 %v8709, %v8705
    %v8882 = vpack.c.b16 %v8714, %v8710
    %v8883 = vpack.c.b16 %v8715, %v8711
    %v8884 = vpack.c.b16 %v8716, %v8712
    %v8885 = vpack.c.b16 %v8717, %v8713
    %v8886 = vpack.c.b16 %v8722, %v8718
    %v8887 = vpack.c.b16 %v8723, %v8719
    %v8888 = vpack.c.b16 %v8724, %v8720
    %v8889 = vpack.c.b16 %v8725, %v8721
    %v8890 = vpack.c.b16 %v8730, %v8726
    %v8891 = vpack.c.b16 %v8731, %v8727
    %v8892 = vpack.c.b16 %v8732, %v8728
    %v8893 = vpack.c.b16 %v8733, %v8729
    %v8894 = vpack.c.b16 %v8738, %v8734
    %v8895 = vpack.c.b16 %v8739, %v8735
    %v8896 = vpack.c.b16 %v8740, %v8736
    %v8897 = vpack.c.b16 %v8741, %v8737
    %v8898 = vpack.c.b16 %v8746, %v8742
    %v8899 = vpack.c.b16 %v8747, %v8743
    %v8900 = vpack.c.b16 %v8748, %v8744
    %v8901 = vpack.c.b16 %v8749, %v8745
    %v8902 = vpack.c.b16 %v8754, %v8750
    %v8903 = vpack.c.b16 %v8755, %v8751
    %v8904 = vpack.c.b16 %v8756, %v8752
    %v8905 = vpack.c.b16 %v8757, %v8753
    %v8906 = vpack.c.b16 %v8762, %v8758
    %v8907 = vpack.c.b16 %v8763, %v8759
    %v8908 = vpack.c.b16 %v8764, %v8760
    %v8909 = vpack.c.b16 %v8765, %v8761
    %v8910 = vpack.c.b16 %v8770, %v8766
    %v8911 = vpack.c.b16 %v8771, %v8767
    %v8912 = vpack.c.b16 %v8772, %v8768
    %v8913 = vpack.c.b16 %v8773, %v8769
    %v8914 = vpack.c.b16 %v8778, %v8774
    %v8915 = vpack.c.b16 %v8779, %v8775
    %v8916 = vpack.c.b16 %v8780, %v8776
    %v8917 = vpack.c.b16 %v8781, %v8777
    %v8918 = vpack.c.b16 %v8786, %v8782
    %v8919 = vpack.c.b16 %v8787, %v8783
    %v8920 = vpack.c.b16 %v8788, %v8784
    %v8921 = vpack.c.b16 %v8789, %v8785
    %v8922 = vpack.c.b16 %v8794, %v8790
    %v8923 = vpack.c.b16 %v8795, %v8791
    %v8924 = vpack.c.b16 %v8796, %v8792
    %v8925 = vpack.c.b16 %v8797, %v8793
    %9054 = vmatprep.subr.bf16.mxu0 %v8799
    %9055 = vmatpush1.bf16.msra.mxu0 %v8798
    %9056 = vmatprep.subr.bf16.mxu0 %v8803
    %9057 = vmatpush1.bf16.msra.mxu0 %v8802
    %9058 = vmatprep.subr.bf16.mxu0 %v8807
    %9059 = vmatpush1.bf16.msra.mxu0 %v8806
    %9060 = vmatprep.subr.bf16.mxu0 %v8811
    %9061 = vmatpush1.bf16.msra.mxu0 %v8810
    %9062 = vmatprep.subr.bf16.mxu0 %v8815
    %9063 = vmatpush1.bf16.msra.mxu0 %v8814
    %9064 = vmatprep.subr.bf16.mxu0 %v8819
    %9065 = vmatpush1.bf16.msra.mxu0 %v8818
    %9066 = vmatprep.subr.bf16.mxu0 %v8823
    %9067 = vmatpush1.bf16.msra.mxu0 %v8822
    %9068 = vmatprep.subr.bf16.mxu0 %v8827
    %9069 = vmatpush1.bf16.msra.mxu0 %v8826
    %9070 = vmatprep.subr.bf16.mxu0 %v8831
    %9071 = vmatpush1.bf16.msra.mxu0 %v8830
    %9072 = vmatprep.subr.bf16.mxu0 %v8835
    %9073 = vmatpush1.bf16.msra.mxu0 %v8834
    %9074 = vmatprep.subr.bf16.mxu0 %v8839
    %9075 = vmatpush1.bf16.msra.mxu0 %v8838
    %9076 = vmatprep.subr.bf16.mxu0 %v8843
    %9077 = vmatpush1.bf16.msra.mxu0 %v8842
    %9078 = vmatprep.subr.bf16.mxu0 %v8847
    %9079 = vmatpush1.bf16.msra.mxu0 %v8846
    %9080 = vmatprep.subr.bf16.mxu0 %v8851
    %9081 = vmatpush1.bf16.msra.mxu0 %v8850
    %9082 = vmatprep.subr.bf16.mxu0 %v8855
    %9083 = vmatpush1.bf16.msra.mxu0 %v8854
    %9084 = vmatprep.subr.bf16.mxu0 %v8859
    %9085 = vmatpush1.bf16.msra.mxu0 %v8858
    %9086 = vmatprep.mubr.bf16.mxu0 %v8283
    %9087 = vmatmul.mubr.bf16.gmra.mrb[0].mxu0 %v8282
    %v9088 = vpop.f32.mrb[0].mxu0
    %v9089 = vadd.f32 0.0, %v9088
    %v9090 = vpop.f32.mrb[0].mxu0
    %v9091 = vadd.f32 0.0, %v9090
    %v9092 = vpop.f32.mrb[0].mxu0
    %v9093 = vadd.f32 0.0, %v9092
    %v9094 = vpop.f32.mrb[0].mxu0
    %v9095 = vadd.f32 0.0, %v9094
    %9096 = vdwg.mxu0
    %9097 = vmatprep.subr.bf16.mxu0 %v8863
    %9098 = vmatpush1.bf16.msra.mxu0 %v8862
    %9099 = vmatprep.subr.bf16.mxu0 %v8867
    %9100 = vmatpush1.bf16.msra.mxu0 %v8866
    %9101 = vmatprep.subr.bf16.mxu0 %v8871
    %9102 = vmatpush1.bf16.msra.mxu0 %v8870
    %9103 = vmatprep.subr.bf16.mxu0 %v8875
    %9104 = vmatpush1.bf16.msra.mxu0 %v8874
    %9105 = vmatprep.subr.bf16.mxu0 %v8879
    %9106 = vmatpush1.bf16.msra.mxu0 %v8878
    %9107 = vmatprep.subr.bf16.mxu0 %v8883
    %9108 = vmatpush1.bf16.msra.mxu0 %v8882
    %9109 = vmatprep.subr.bf16.mxu0 %v8887
    %9110 = vmatpush1.bf16.msra.mxu0 %v8886
    %9111 = vmatprep.subr.bf16.mxu0 %v8891
    %9112 = vmatpush1.bf16.msra.mxu0 %v8890
    %9113 = vmatprep.subr.bf16.mxu0 %v8895
    %9114 = vmatpush1.bf16.msra.mxu0 %v8894
    %9115 = vmatprep.subr.bf16.mxu0 %v8899
    %9116 = vmatpush1.bf16.msra.mxu0 %v8898
    %9117 = vmatprep.subr.bf16.mxu0 %v8903
    %9118 = vmatpush1.bf16.msra.mxu0 %v8902
    %9119 = vmatprep.subr.bf16.mxu0 %v8907
    %9120 = vmatpush1.bf16.msra.mxu0 %v8906
    %9121 = vmatprep.subr.bf16.mxu0 %v8911
    %9122 = vmatpush1.bf16.msra.mxu0 %v8910
    %9123 = vmatprep.subr.bf16.mxu0 %v8915
    %9124 = vmatpush1.bf16.msra.mxu0 %v8914
    %9125 = vmatprep.subr.bf16.mxu0 %v8919
    %9126 = vmatpush1.bf16.msra.mxu0 %v8918
    %9127 = vmatprep.subr.bf16.mxu0 %v8923
    %9128 = vmatpush1.bf16.msra.mxu0 %v8922
    %9129 = vmatprep.mubr.bf16.mxu0 %v8285
    %9130 = vmatmul.mubr.bf16.gmra.mrb[0].mxu0 %v8284
    %v9131 = vpop.f32.mrb[0].mxu0
    %v9132 = vadd.f32 %v9089, %v9131
    %v9133 = vpop.f32.mrb[0].mxu0
    %v9134 = vadd.f32 %v9091, %v9133
    %v9135 = vpop.f32.mrb[0].mxu0
    %v9136 = vadd.f32 %v9093, %v9135
    %v9137 = vpop.f32.mrb[0].mxu0
    %v9138 = vadd.f32 %v9095, %v9137
    %9139 = vdwg.mxu0
    %9140 = vmatprep.subr.bf16.mxu0 %v8801
    %9141 = vmatpush1.bf16.msra.mxu0 %v8800
    %9142 = vmatprep.subr.bf16.mxu0 %v8805
    %9143 = vmatpush1.bf16.msra.mxu0 %v8804
    %9144 = vmatprep.subr.bf16.mxu0 %v8809
    %9145 = vmatpush1.bf16.msra.mxu0 %v8808
    %9146 = vmatprep.subr.bf16.mxu0 %v8813
    %9147 = vmatpush1.bf16.msra.mxu0 %v8812
    %9148 = vmatprep.subr.bf16.mxu0 %v8817
    %9149 = vmatpush1.bf16.msra.mxu0 %v8816
    %9150 = vmatprep.subr.bf16.mxu0 %v8821
    %9151 = vmatpush1.bf16.msra.mxu0 %v8820
    %9152 = vmatprep.subr.bf16.mxu0 %v8825
    %9153 = vmatpush1.bf16.msra.mxu0 %v8824
    %9154 = vmatprep.subr.bf16.mxu0 %v8829
    %9155 = vmatpush1.bf16.msra.mxu0 %v8828
    %9156 = vmatprep.subr.bf16.mxu0 %v8833
    %9157 = vmatpush1.bf16.msra.mxu0 %v8832
    %9158 = vmatprep.subr.bf16.mxu0 %v8837
    %9159 = vmatpush1.bf16.msra.mxu0 %v8836
    %9160 = vmatprep.subr.bf16.mxu0 %v8841
    %9161 = vmatpush1.bf16.msra.mxu0 %v8840
    %9162 = vmatprep.subr.bf16.mxu0 %v8845
    %9163 = vmatpush1.bf16.msra.mxu0 %v8844
    %9164 = vmatprep.subr.bf16.mxu0 %v8849
    %9165 = vmatpush1.bf16.msra.mxu0 %v8848
    %9166 = vmatprep.subr.bf16.mxu0 %v8853
    %9167 = vmatpush1.bf16.msra.mxu0 %v8852
    %9168 = vmatprep.subr.bf16.mxu0 %v8857
    %9169 = vmatpush1.bf16.msra.mxu0 %v8856
    %9170 = vmatprep.subr.bf16.mxu0 %v8861
    %9171 = vmatpush1.bf16.msra.mxu0 %v8860
    %9172 = vmatprep.mubr.bf16.mxu0 %v8283
    %9173 = vmatmul.mubr.bf16.gmra.mrb[0].mxu0 %v8282
    %v9174 = vpop.f32.mrb[0].mxu0
    %v9175 = vadd.f32 0.0, %v9174
    %v9176 = vpop.f32.mrb[0].mxu0
    %v9177 = vadd.f32 0.0, %v9176
    %v9178 = vpop.f32.mrb[0].mxu0
    %v9179 = vadd.f32 0.0, %v9178
    %v9180 = vpop.f32.mrb[0].mxu0
    %v9181 = vadd.f32 0.0, %v9180
    %9182 = vdwg.mxu0
    %9183 = vmatprep.subr.bf16.mxu0 %v8865
    %9184 = vmatpush1.bf16.msra.mxu0 %v8864
    %9185 = vmatprep.subr.bf16.mxu0 %v8869
    %9186 = vmatpush1.bf16.msra.mxu0 %v8868
    %9187 = vmatprep.subr.bf16.mxu0 %v8873
    %9188 = vmatpush1.bf16.msra.mxu0 %v8872
    %9189 = vmatprep.subr.bf16.mxu0 %v8877
    %9190 = vmatpush1.bf16.msra.mxu0 %v8876
    %9191 = vmatprep.subr.bf16.mxu0 %v8881
    %9192 = vmatpush1.bf16.msra.mxu0 %v8880
    %9193 = vmatprep.subr.bf16.mxu0 %v8885
    %9194 = vmatpush1.bf16.msra.mxu0 %v8884
    %9195 = vmatprep.subr.bf16.mxu0 %v8889
    %9196 = vmatpush1.bf16.msra.mxu0 %v8888
    %9197 = vmatprep.subr.bf16.mxu0 %v8893
    %9198 = vmatpush1.bf16.msra.mxu0 %v8892
    %9199 = vmatprep.subr.bf16.mxu0 %v8897
    %9200 = vmatpush1.bf16.msra.mxu0 %v8896
    %9201 = vmatprep.subr.bf16.mxu0 %v8901
    %9202 = vmatpush1.bf16.msra.mxu0 %v8900
    %9203 = vmatprep.subr.bf16.mxu0 %v8905
    %9204 = vmatpush1.bf16.msra.mxu0 %v8904
    %9205 = vmatprep.subr.bf16.mxu0 %v8909
    %9206 = vmatpush1.bf16.msra.mxu0 %v8908
    %9207 = vmatprep.subr.bf16.mxu0 %v8913
    %9208 = vmatpush1.bf16.msra.mxu0 %v8912
    %9209 = vmatprep.subr.bf16.mxu0 %v8917
    %9210 = vmatpush1.bf16.msra.mxu0 %v8916
    %9211 = vmatprep.subr.bf16.mxu0 %v8921
    %9212 = vmatpush1.bf16.msra.mxu0 %v8920
    %9213 = vmatprep.subr.bf16.mxu0 %v8925
    %9214 = vmatpush1.bf16.msra.mxu0 %v8924
    %9215 = vmatprep.mubr.bf16.mxu0 %v8285
    %9216 = vmatmul.mubr.bf16.gmra.mrb[0].mxu0 %v8284
    %v9217 = vpop.f32.mrb[0].mxu0
    %v9218 = vadd.f32 %v9175, %v9217
    %v9219 = vpop.f32.mrb[0].mxu0
    %v9220 = vadd.f32 %v9177, %v9219
    %v9221 = vpop.f32.mrb[0].mxu0
    %v9222 = vadd.f32 %v9179, %v9221
    %v9223 = vpop.f32.mrb[0].mxu0
    %v9224 = vadd.f32 %v9181, %v9223
    %9225 = vdwg.mxu0
    %v9226 = vmax.f32 %v9132, %v9218
    %v9227 = vmax.f32 %v9134, %v9220
    %v9228 = vmax.f32 %v9136, %v9222
    %v9229 = vmax.f32 %v9138, %v9224
    %v9234 = vrot.slane %v9226, 2
    %v9235 = vrot.slane %v9228, 2
    %v9236 = vsel %vm318, %v9234, %v9235
    %v9237 = vrot.slane %v9227, 2
    %v9238 = vrot.slane %v9229, 2
    %v9239 = vsel %vm318, %v9237, %v9238
    %v9244 = vrot.slane %v9226, 4
    %v9245 = vrot.slane %v9228, 4
    %v9246 = vsel %vm345, %v9244, %v9245
    %v9247 = vrot.slane %v9227, 4
    %v9248 = vrot.slane %v9229, 4
    %v9249 = vsel %vm345, %v9247, %v9248
    %v9254 = vpack.c.bf16 %v9228, %v9226
    %v9255 = vpack.c.bf16 %v9229, %v9227
    %v9256 = vpack.c.bf16 %v9235, %v9236
    %v9257 = vpack.c.bf16 %v9238, %v9239
    %v9258 = vpack.c.bf16 %v9245, %v9246
    %v9259 = vpack.c.bf16 %v9248, %v9249
    %v9260 = vld [vmem:[%s8] sm:$0xff]
    %v9261 = vld [vmem:[%s8 + $0x8] sm:$0xff]
    %v9262 = vld [vmem:[%s8 + $0x10] sm:$0xff]
    %v9263 = vld [vmem:[%s8 + $0x18] sm:$0xff]
    %v9264 = vld [vmem:[%s8 + $0x20] sm:$0xff]
    %v9265 = vld [vmem:[%s8 + $0x28] sm:$0xff]
    %v9266 = vld [vmem:[%s8 + $0x30] sm:$0xff]
    %v9267 = vld [vmem:[%s8 + $0x38] sm:$0xff]
    %v9268 = vld [vmem:[%s8 + $0x40] sm:$0xff]
    %v9269 = vld [vmem:[%s8 + $0x48] sm:$0xff]
    %v9270 = vld [vmem:[%s8 + $0x50] sm:$0xff]
    %v9271 = vld [vmem:[%s8 + $0x58] sm:$0xff]
    %v9272 = vld [vmem:[%s8 + $0x60] sm:$0xff]
    %v9273 = vld [vmem:[%s8 + $0x68] sm:$0xff]
    %v9274 = vld [vmem:[%s8 + $0x70] sm:$0xff]
    %v9275 = vld [vmem:[%s8 + $0x78] sm:$0xff]
    %v9276 = vld [vmem:[%s8 + $0x80] sm:$0xff]
    %v9277 = vld [vmem:[%s8 + $0x88] sm:$0xff]
    %v9278 = vld [vmem:[%s8 + $0x90] sm:$0xff]
    %v9279 = vld [vmem:[%s8 + $0x98] sm:$0xff]
    %v9280 = vld [vmem:[%s8 + $0xa0] sm:$0xff]
    %v9281 = vld [vmem:[%s8 + $0xa8] sm:$0xff]
    %v9282 = vld [vmem:[%s8 + $0xb0] sm:$0xff]
    %v9283 = vld [vmem:[%s8 + $0xb8] sm:$0xff]
    %v9284 = vld [vmem:[%s8 + $0xc0] sm:$0xff]
    %v9285 = vld [vmem:[%s8 + $0xc8] sm:$0xff]
    %v9286 = vld [vmem:[%s8 + $0xd0] sm:$0xff]
    %v9287 = vld [vmem:[%s8 + $0xd8] sm:$0xff]
    %v9288 = vld [vmem:[%s8 + $0xe0] sm:$0xff]
    %v9289 = vld [vmem:[%s8 + $0xe8] sm:$0xff]
    %v9290 = vld [vmem:[%s8 + $0xf0] sm:$0xff]
    %v9291 = vld [vmem:[%s8 + $0xf8] sm:$0xff]
    %v9292 = vld [vmem:[%s8 + $0x100] sm:$0xff]
    %v9293 = vld [vmem:[%s8 + $0x108] sm:$0xff]
    %v9294 = vld [vmem:[%s8 + $0x110] sm:$0xff]
    %v9295 = vld [vmem:[%s8 + $0x118] sm:$0xff]
    %v9296 = vld [vmem:[%s8 + $0x120] sm:$0xff]
    %v9297 = vld [vmem:[%s8 + $0x128] sm:$0xff]
    %v9298 = vld [vmem:[%s8 + $0x130] sm:$0xff]
    %v9299 = vld [vmem:[%s8 + $0x138] sm:$0xff]
    %v9300 = vld [vmem:[%s8 + $0x140] sm:$0xff]
    %v9301 = vld [vmem:[%s8 + $0x148] sm:$0xff]
    %v9302 = vld [vmem:[%s8 + $0x150] sm:$0xff]
    %v9303 = vld [vmem:[%s8 + $0x158] sm:$0xff]
    %v9304 = vld [vmem:[%s8 + $0x160] sm:$0xff]
    %v9305 = vld [vmem:[%s8 + $0x168] sm:$0xff]
    %v9306 = vld [vmem:[%s8 + $0x170] sm:$0xff]
    %v9307 = vld [vmem:[%s8 + $0x178] sm:$0xff]
    %v9308 = vld [vmem:[%s8 + $0x180] sm:$0xff]
    %v9309 = vld [vmem:[%s8 + $0x188] sm:$0xff]
    %v9310 = vld [vmem:[%s8 + $0x190] sm:$0xff]
    %v9311 = vld [vmem:[%s8 + $0x198] sm:$0xff]
    %v9312 = vld [vmem:[%s8 + $0x1a0] sm:$0xff]
    %v9313 = vld [vmem:[%s8 + $0x1a8] sm:$0xff]
    %v9314 = vld [vmem:[%s8 + $0x1b0] sm:$0xff]
    %v9315 = vld [vmem:[%s8 + $0x1b8] sm:$0xff]
    %v9316 = vld [vmem:[%s8 + $0x1c0] sm:$0xff]
    %v9317 = vld [vmem:[%s8 + $0x1c8] sm:$0xff]
    %v9318 = vld [vmem:[%s8 + $0x1d0] sm:$0xff]
    %v9319 = vld [vmem:[%s8 + $0x1d8] sm:$0xff]
    %v9320 = vld [vmem:[%s8 + $0x1e0] sm:$0xff]
    %v9321 = vld [vmem:[%s8 + $0x1e8] sm:$0xff]
    %v9322 = vld [vmem:[%s8 + $0x1f0] sm:$0xff]
    %v9323 = vld [vmem:[%s8 + $0x1f8] sm:$0xff]
    %v9324 = vld [vmem:[%s8 + $0x200] sm:$0xff]
    %v9325 = vld [vmem:[%s8 + $0x208] sm:$0xff]
    %v9326 = vld [vmem:[%s8 + $0x210] sm:$0xff]
    %v9327 = vld [vmem:[%s8 + $0x218] sm:$0xff]
    %v9328 = vld [vmem:[%s8 + $0x220] sm:$0xff]
    %v9329 = vld [vmem:[%s8 + $0x228] sm:$0xff]
    %v9330 = vld [vmem:[%s8 + $0x230] sm:$0xff]
    %v9331 = vld [vmem:[%s8 + $0x238] sm:$0xff]
    %v9332 = vld [vmem:[%s8 + $0x240] sm:$0xff]
    %v9333 = vld [vmem:[%s8 + $0x248] sm:$0xff]
    %v9334 = vld [vmem:[%s8 + $0x250] sm:$0xff]
    %v9335 = vld [vmem:[%s8 + $0x258] sm:$0xff]
    %v9336 = vld [vmem:[%s8 + $0x260] sm:$0xff]
    %v9337 = vld [vmem:[%s8 + $0x268] sm:$0xff]
    %v9338 = vld [vmem:[%s8 + $0x270] sm:$0xff]
    %v9339 = vld [vmem:[%s8 + $0x278] sm:$0xff]
    %v9340 = vld [vmem:[%s8 + $0x280] sm:$0xff]
    %v9341 = vld [vmem:[%s8 + $0x288] sm:$0xff]
    %v9342 = vld [vmem:[%s8 + $0x290] sm:$0xff]
    %v9343 = vld [vmem:[%s8 + $0x298] sm:$0xff]
    %v9344 = vld [vmem:[%s8 + $0x2a0] sm:$0xff]
    %v9345 = vld [vmem:[%s8 + $0x2a8] sm:$0xff]
    %v9346 = vld [vmem:[%s8 + $0x2b0] sm:$0xff]
    %v9347 = vld [vmem:[%s8 + $0x2b8] sm:$0xff]
    %v9348 = vld [vmem:[%s8 + $0x2c0] sm:$0xff]
    %v9349 = vld [vmem:[%s8 + $0x2c8] sm:$0xff]
    %v9350 = vld [vmem:[%s8 + $0x2d0] sm:$0xff]
    %v9351 = vld [vmem:[%s8 + $0x2d8] sm:$0xff]
    %v9352 = vld [vmem:[%s8 + $0x2e0] sm:$0xff]
    %v9353 = vld [vmem:[%s8 + $0x2e8] sm:$0xff]
    %v9354 = vld [vmem:[%s8 + $0x2f0] sm:$0xff]
    %v9355 = vld [vmem:[%s8 + $0x2f8] sm:$0xff]
    %v9356 = vld [vmem:[#allocation16] sm:$0x3]
    %v9358 = vlaneseq
    %v9359 = vshrl.u32 %v9358, 7
    %v9360 = vsub.s32 0, %v9359
    %v9361 = vrot.slane %v9356, %v9360
    %v9362 = vlaneseq
    %v9363 = vshrl.u32 %v9362, 7
    %v9364 = vsub.s32 1, %v9363
    %v9365 = vrot.slane %v9356, %v9364
    %v9464 = vunpack.c.l.b16 %v9260
    %v9465 = vunpack.c.h.b16 %v9260
    %v9466 = vunpack.c.l.b16 %v9261
    %v9467 = vunpack.c.h.b16 %v9261
    %v9468 = vunpack.c.l.b16 %v9262
    %v9469 = vunpack.c.h.b16 %v9262
    %v9470 = vunpack.c.l.b16 %v9263
    %v9471 = vunpack.c.h.b16 %v9263
    %v9472 = vunpack.c.l.b16 %v9264
    %v9473 = vunpack.c.h.b16 %v9264
    %v9474 = vunpack.c.l.b16 %v9265
    %v9475 = vunpack.c.h.b16 %v9265
    %v9476 = vunpack.c.l.b16 %v9266
    %v9477 = vunpack.c.h.b16 %v9266
    %v9478 = vunpack.c.l.b16 %v9267
    %v9479 = vunpack.c.h.b16 %v9267
    %v9480 = vunpack.c.l.b16 %v9268
    %v9481 = vunpack.c.h.b16 %v9268
    %v9482 = vunpack.c.l.b16 %v9269
    %v9483 = vunpack.c.h.b16 %v9269
    %v9484 = vunpack.c.l.b16 %v9270
    %v9485 = vunpack.c.h.b16 %v9270
    %v9486 = vunpack.c.l.b16 %v9271
    %v9487 = vunpack.c.h.b16 %v9271
    %v9488 = vunpack.c.l.b16 %v9272
    %v9489 = vunpack.c.h.b16 %v9272
    %v9490 = vunpack.c.l.b16 %v9273
    %v9491 = vunpack.c.h.b16 %v9273
    %v9492 = vunpack.c.l.b16 %v9274
    %v9493 = vunpack.c.h.b16 %v9274
    %v9494 = vunpack.c.l.b16 %v9275
    %v9495 = vunpack.c.h.b16 %v9275
    %v9496 = vunpack.c.l.b16 %v9276
    %v9497 = vunpack.c.h.b16 %v9276
    %v9498 = vunpack.c.l.b16 %v9277
    %v9499 = vunpack.c.h.b16 %v9277
    %v9500 = vunpack.c.l.b16 %v9278
    %v9501 = vunpack.c.h.b16 %v9278
    %v9502 = vunpack.c.l.b16 %v9279
    %v9503 = vunpack.c.h.b16 %v9279
    %v9504 = vunpack.c.l.b16 %v9280
    %v9505 = vunpack.c.h.b16 %v9280
    %v9506 = vunpack.c.l.b16 %v9281
    %v9507 = vunpack.c.h.b16 %v9281
    %v9508 = vunpack.c.l.b16 %v9282
    %v9509 = vunpack.c.h.b16 %v9282
    %v9510 = vunpack.c.l.b16 %v9283
    %v9511 = vunpack.c.h.b16 %v9283
    %v9512 = vunpack.c.l.b16 %v9284
    %v9513 = vunpack.c.h.b16 %v9284
    %v9514 = vunpack.c.l.b16 %v9285
    %v9515 = vunpack.c.h.b16 %v9285
    %v9516 = vunpack.c.l.b16 %v9286
    %v9517 = vunpack.c.h.b16 %v9286
    %v9518 = vunpack.c.l.b16 %v9287
    %v9519 = vunpack.c.h.b16 %v9287
    %v9520 = vunpack.c.l.b16 %v9288
    %v9521 = vunpack.c.h.b16 %v9288
    %v9522 = vunpack.c.l.b16 %v9289
    %v9523 = vunpack.c.h.b16 %v9289
    %v9524 = vunpack.c.l.b16 %v9290
    %v9525 = vunpack.c.h.b16 %v9290
    %v9526 = vunpack.c.l.b16 %v9291
    %v9527 = vunpack.c.h.b16 %v9291
    %v9528 = vunpack.c.l.b16 %v9292
    %v9529 = vunpack.c.h.b16 %v9292
    %v9530 = vunpack.c.l.b16 %v9293
    %v9531 = vunpack.c.h.b16 %v9293
    %v9532 = vunpack.c.l.b16 %v9294
    %v9533 = vunpack.c.h.b16 %v9294
    %v9534 = vunpack.c.l.b16 %v9295
    %v9535 = vunpack.c.h.b16 %v9295
    %v9536 = vunpack.c.l.b16 %v9296
    %v9537 = vunpack.c.h.b16 %v9296
    %v9538 = vunpack.c.l.b16 %v9297
    %v9539 = vunpack.c.h.b16 %v9297
    %v9540 = vunpack.c.l.b16 %v9298
    %v9541 = vunpack.c.h.b16 %v9298
    %v9542 = vunpack.c.l.b16 %v9299
    %v9543 = vunpack.c.h.b16 %v9299
    %v9544 = vunpack.c.l.b16 %v9300
    %v9545 = vunpack.c.h.b16 %v9300
    %v9546 = vunpack.c.l.b16 %v9301
    %v9547 = vunpack.c.h.b16 %v9301
    %v9548 = vunpack.c.l.b16 %v9302
    %v9549 = vunpack.c.h.b16 %v9302
    %v9550 = vunpack.c.l.b16 %v9303
    %v9551 = vunpack.c.h.b16 %v9303
    %v9552 = vunpack.c.l.b16 %v9304
    %v9553 = vunpack.c.h.b16 %v9304
    %v9554 = vunpack.c.l.b16 %v9305
    %v9555 = vunpack.c.h.b16 %v9305
    %v9556 = vunpack.c.l.b16 %v9306
    %v9557 = vunpack.c.h.b16 %v9306
    %v9558 = vunpack.c.l.b16 %v9307
    %v9559 = vunpack.c.h.b16 %v9307
    %v9560 = vunpack.c.l.b16 %v9308
    %v9561 = vunpack.c.h.b16 %v9308
    %v9562 = vunpack.c.l.b16 %v9309
    %v9563 = vunpack.c.h.b16 %v9309
    %v9564 = vunpack.c.l.b16 %v9310
    %v9565 = vunpack.c.h.b16 %v9310
    %v9566 = vunpack.c.l.b16 %v9311
    %v9567 = vunpack.c.h.b16 %v9311
    %v9568 = vunpack.c.l.b16 %v9312
    %v9569 = vunpack.c.h.b16 %v9312
    %v9570 = vunpack.c.l.b16 %v9313
    %v9571 = vunpack.c.h.b16 %v9313
    %v9572 = vunpack.c.l.b16 %v9314
    %v9573 = vunpack.c.h.b16 %v9314
    %v9574 = vunpack.c.l.b16 %v9315
    %v9575 = vunpack.c.h.b16 %v9315
    %v9576 = vunpack.c.l.b16 %v9316
    %v9577 = vunpack.c.h.b16 %v9316
    %v9578 = vunpack.c.l.b16 %v9317
    %v9579 = vunpack.c.h.b16 %v9317
    %v9580 = vunpack.c.l.b16 %v9318
    %v9581 = vunpack.c.h.b16 %v9318
    %v9582 = vunpack.c.l.b16 %v9319
    %v9583 = vunpack.c.h.b16 %v9319
    %v9584 = vunpack.c.l.b16 %v9320
    %v9585 = vunpack.c.h.b16 %v9320
    %v9586 = vunpack.c.l.b16 %v9321
    %v9587 = vunpack.c.h.b16 %v9321
    %v9588 = vunpack.c.l.b16 %v9322
    %v9589 = vunpack.c.h.b16 %v9322
    %v9590 = vunpack.c.l.b16 %v9323
    %v9591 = vunpack.c.h.b16 %v9323
    %v9592 = vunpack.c.l.b16 %v9324
    %v9593 = vunpack.c.h.b16 %v9324
    %v9594 = vunpack.c.l.b16 %v9325
    %v9595 = vunpack.c.h.b16 %v9325
    %v9596 = vunpack.c.l.b16 %v9326
    %v9597 = vunpack.c.h.b16 %v9326
    %v9598 = vunpack.c.l.b16 %v9327
    %v9599 = vunpack.c.h.b16 %v9327
    %v9600 = vunpack.c.l.b16 %v9328
    %v9601 = vunpack.c.h.b16 %v9328
    %v9602 = vunpack.c.l.b16 %v9329
    %v9603 = vunpack.c.h.b16 %v9329
    %v9604 = vunpack.c.l.b16 %v9330
    %v9605 = vunpack.c.h.b16 %v9330
    %v9606 = vunpack.c.l.b16 %v9331
    %v9607 = vunpack.c.h.b16 %v9331
    %v9608 = vunpack.c.l.b16 %v9332
    %v9609 = vunpack.c.h.b16 %v9332
    %v9610 = vunpack.c.l.b16 %v9333
    %v9611 = vunpack.c.h.b16 %v9333
    %v9612 = vunpack.c.l.b16 %v9334
    %v9613 = vunpack.c.h.b16 %v9334
    %v9614 = vunpack.c.l.b16 %v9335
    %v9615 = vunpack.c.h.b16 %v9335
    %v9616 = vunpack.c.l.b16 %v9336
    %v9617 = vunpack.c.h.b16 %v9336
    %v9618 = vunpack.c.l.b16 %v9337
    %v9619 = vunpack.c.h.b16 %v9337
    %v9620 = vunpack.c.l.b16 %v9338
    %v9621 = vunpack.c.h.b16 %v9338
    %v9622 = vunpack.c.l.b16 %v9339
    %v9623 = vunpack.c.h.b16 %v9339
    %v9624 = vunpack.c.l.b16 %v9340
    %v9625 = vunpack.c.h.b16 %v9340
    %v9626 = vunpack.c.l.b16 %v9341
    %v9627 = vunpack.c.h.b16 %v9341
    %v9628 = vunpack.c.l.b16 %v9342
    %v9629 = vunpack.c.h.b16 %v9342
    %v9630 = vunpack.c.l.b16 %v9343
    %v9631 = vunpack.c.h.b16 %v9343
    %v9632 = vunpack.c.l.b16 %v9344
    %v9633 = vunpack.c.h.b16 %v9344
    %v9634 = vunpack.c.l.b16 %v9345
    %v9635 = vunpack.c.h.b16 %v9345
    %v9636 = vunpack.c.l.b16 %v9346
    %v9637 = vunpack.c.h.b16 %v9346
    %v9638 = vunpack.c.l.b16 %v9347
    %v9639 = vunpack.c.h.b16 %v9347
    %v9640 = vunpack.c.l.b16 %v9348
    %v9641 = vunpack.c.h.b16 %v9348
    %v9642 = vunpack.c.l.b16 %v9349
    %v9643 = vunpack.c.h.b16 %v9349
    %v9644 = vunpack.c.l.b16 %v9350
    %v9645 = vunpack.c.h.b16 %v9350
    %v9646 = vunpack.c.l.b16 %v9351
    %v9647 = vunpack.c.h.b16 %v9351
    %v9648 = vunpack.c.l.b16 %v9352
    %v9649 = vunpack.c.h.b16 %v9352
    %v9650 = vunpack.c.l.b16 %v9353
    %v9651 = vunpack.c.h.b16 %v9353
    %v9652 = vunpack.c.l.b16 %v9354
    %v9653 = vunpack.c.h.b16 %v9354
    %v9654 = vunpack.c.l.b16 %v9355
    %v9655 = vunpack.c.h.b16 %v9355
    %v9656 = vpack.c.b16 %v9466, %v9464
    %v9657 = vpack.c.b16 %v9467, %v9465
    %v9658 = vpack.c.b16 %v9470, %v9468
    %v9659 = vpack.c.b16 %v9471, %v9469
    %v9660 = vpack.c.b16 %v9474, %v9472
    %v9661 = vpack.c.b16 %v9475, %v9473
    %v9662 = vpack.c.b16 %v9478, %v9476
    %v9663 = vpack.c.b16 %v9479, %v9477
    %v9664 = vpack.c.b16 %v9482, %v9480
    %v9665 = vpack.c.b16 %v9483, %v9481
    %v9666 = vpack.c.b16 %v9486, %v9484
    %v9667 = vpack.c.b16 %v9487, %v9485
    %v9668 = vpack.c.b16 %v9490, %v9488
    %v9669 = vpack.c.b16 %v9491, %v9489
    %v9670 = vpack.c.b16 %v9494, %v9492
    %v9671 = vpack.c.b16 %v9495, %v9493
    %v9672 = vpack.c.b16 %v9498, %v9496
    %v9673 = vpack.c.b16 %v9499, %v9497
    %v9674 = vpack.c.b16 %v9502, %v9500
    %v9675 = vpack.c.b16 %v9503, %v9501
    %v9676 = vpack.c.b16 %v9506, %v9504
    %v9677 = vpack.c.b16 %v9507, %v9505
    %v9678 = vpack.c.b16 %v9510, %v9508
    %v9679 = vpack.c.b16 %v9511, %v9509
    %v9680 = vpack.c.b16 %v9514, %v9512
    %v9681 = vpack.c.b16 %v9515, %v9513
    %v9682 = vpack.c.b16 %v9518, %v9516
    %v9683 = vpack.c.b16 %v9519, %v9517
    %v9684 = vpack.c.b16 %v9522, %v9520
    %v9685 = vpack.c.b16 %v9523, %v9521
    %v9686 = vpack.c.b16 %v9526, %v9524
    %v9687 = vpack.c.b16 %v9527, %v9525
    %v9688 = vpack.c.b16 %v9530, %v9528
    %v9689 = vpack.c.b16 %v9531, %v9529
    %v9690 = vpack.c.b16 %v9534, %v9532
    %v9691 = vpack.c.b16 %v9535, %v9533
    %v9692 = vpack.c.b16 %v9538, %v9536
    %v9693 = vpack.c.b16 %v9539, %v9537
    %v9694 = vpack.c.b16 %v9542, %v9540
    %v9695 = vpack.c.b16 %v9543, %v9541
    %v9696 = vpack.c.b16 %v9546, %v9544
    %v9697 = vpack.c.b16 %v9547, %v9545
    %v9698 = vpack.c.b16 %v9550, %v9548
    %v9699 = vpack.c.b16 %v9551, %v9549
    %v9700 = vpack.c.b16 %v9554, %v9552
    %v9701 = vpack.c.b16 %v9555, %v9553
    %v9702 = vpack.c.b16 %v9558, %v9556
    %v9703 = vpack.c.b16 %v9559, %v9557
    %v9704 = vpack.c.b16 %v9562, %v9560
    %v9705 = vpack.c.b16 %v9563, %v9561
    %v9706 = vpack.c.b16 %v9566, %v9564
    %v9707 = vpack.c.b16 %v9567, %v9565
    %v9708 = vpack.c.b16 %v9570, %v9568
    %v9709 = vpack.c.b16 %v9571, %v9569
    %v9710 = vpack.c.b16 %v9574, %v9572
    %v9711 = vpack.c.b16 %v9575, %v9573
    %v9712 = vpack.c.b16 %v9578, %v9576
    %v9713 = vpack.c.b16 %v9579, %v9577
    %v9714 = vpack.c.b16 %v9582, %v9580
    %v9715 = vpack.c.b16 %v9583, %v9581
    %v9716 = vpack.c.b16 %v9586, %v9584
    %v9717 = vpack.c.b16 %v9587, %v9585
    %v9718 = vpack.c.b16 %v9590, %v9588
    %v9719 = vpack.c.b16 %v9591, %v9589
    %v9720 = vpack.c.b16 %v9594, %v9592
    %v9721 = vpack.c.b16 %v9595, %v9593
    %v9722 = vpack.c.b16 %v9598, %v9596
    %v9723 = vpack.c.b16 %v9599, %v9597
    %v9724 = vpack.c.b16 %v9602, %v9600
    %v9725 = vpack.c.b16 %v9603, %v9601
    %v9726 = vpack.c.b16 %v9606, %v9604
    %v9727 = vpack.c.b16 %v9607, %v9605
    %v9728 = vpack.c.b16 %v9610, %v9608
    %v9729 = vpack.c.b16 %v9611, %v9609
    %v9730 = vpack.c.b16 %v9614, %v9612
    %v9731 = vpack.c.b16 %v9615, %v9613
    %v9732 = vpack.c.b16 %v9618, %v9616
    %v9733 = vpack.c.b16 %v9619, %v9617
    %v9734 = vpack.c.b16 %v9622, %v9620
    %v9735 = vpack.c.b16 %v9623, %v9621
    %v9736 = vpack.c.b16 %v9626, %v9624
    %v9737 = vpack.c.b16 %v9627, %v9625
    %v9738 = vpack.c.b16 %v9630, %v9628
    %v9739 = vpack.c.b16 %v9631, %v9629
    %v9740 = vpack.c.b16 %v9634, %v9632
    %v9741 = vpack.c.b16 %v9635, %v9633
    %v9742 = vpack.c.b16 %v9638, %v9636
    %v9743 = vpack.c.b16 %v9639, %v9637
    %v9744 = vpack.c.b16 %v9642, %v9640
    %v9745 = vpack.c.b16 %v9643, %v9641
    %v9746 = vpack.c.b16 %v9646, %v9644
    %v9747 = vpack.c.b16 %v9647, %v9645
    %v9748 = vpack.c.b16 %v9650, %v9648
    %v9749 = vpack.c.b16 %v9651, %v9649
    %v9750 = vpack.c.b16 %v9654, %v9652
    %v9751 = vpack.c.b16 %v9655, %v9653
    %9848 = vmatprep.subr.bf16.mxu0 %v9657
    %9849 = vmatpush1.bf16.msra.mxu0 %v9656
    %9850 = vmatprep.subr.bf16.mxu0 %v9659
    %9851 = vmatpush1.bf16.msra.mxu0 %v9658
    %9852 = vmatprep.subr.bf16.mxu0 %v9661
    %9853 = vmatpush1.bf16.msra.mxu0 %v9660
    %9854 = vmatprep.subr.bf16.mxu0 %v9663
    %9855 = vmatpush1.bf16.msra.mxu0 %v9662
    %9856 = vmatprep.subr.bf16.mxu0 %v9665
    %9857 = vmatpush1.bf16.msra.mxu0 %v9664
    %9858 = vmatprep.subr.bf16.mxu0 %v9667
    %9859 = vmatpush1.bf16.msra.mxu0 %v9666
    %9860 = vmatprep.subr.bf16.mxu0 %v9669
    %9861 = vmatpush1.bf16.msra.mxu0 %v9668
    %9862 = vmatprep.subr.bf16.mxu0 %v9671
    %9863 = vmatpush1.bf16.msra.mxu0 %v9670
    %9864 = vmatprep.subr.bf16.mxu0 %v9673
    %9865 = vmatpush1.bf16.msra.mxu0 %v9672
    %9866 = vmatprep.subr.bf16.mxu0 %v9675
    %9867 = vmatpush1.bf16.msra.mxu0 %v9674
    %9868 = vmatprep.subr.bf16.mxu0 %v9677
    %9869 = vmatpush1.bf16.msra.mxu0 %v9676
    %9870 = vmatprep.subr.bf16.mxu0 %v9679
    %9871 = vmatpush1.bf16.msra.mxu0 %v9678
    %9872 = vmatprep.subr.bf16.mxu0 %v9681
    %9873 = vmatpush1.bf16.msra.mxu0 %v9680
    %9874 = vmatprep.subr.bf16.mxu0 %v9683
    %9875 = vmatpush1.bf16.msra.mxu0 %v9682
    %9876 = vmatprep.subr.bf16.mxu0 %v9685
    %9877 = vmatpush1.bf16.msra.mxu0 %v9684
    %9878 = vmatprep.subr.bf16.mxu0 %v9687
    %9879 = vmatpush1.bf16.msra.mxu0 %v9686
    %9880 = vmatprep.mubr.bf16.mxu0 %v9255
    %9881 = vmatmul.mubr.bf16.gmra.mrb[0].mxu0 %v9254
    %v9882 = vpop.f32.mrb[0].mxu0
    %v9883 = vadd.f32 %v9361, %v9882
    %v9884 = vpop.f32.mrb[0].mxu0
    %v9885 = vadd.f32 %v9365, %v9884
    %v9886 = vpop.f32.mrb[0].mxu0
    %v9887 = vadd.f32 %v9361, %v9886
    %v9888 = vpop.f32.mrb[0].mxu0
    %v9889 = vadd.f32 %v9365, %v9888
    %9890 = vdwg.mxu0
    %9891 = vmatprep.subr.bf16.mxu0 %v9689
    %9892 = vmatpush1.bf16.msra.mxu0 %v9688
    %9893 = vmatprep.subr.bf16.mxu0 %v9691
    %9894 = vmatpush1.bf16.msra.mxu0 %v9690
    %9895 = vmatprep.subr.bf16.mxu0 %v9693
    %9896 = vmatpush1.bf16.msra.mxu0 %v9692
    %9897 = vmatprep.subr.bf16.mxu0 %v9695
    %9898 = vmatpush1.bf16.msra.mxu0 %v9694
    %9899 = vmatprep.subr.bf16.mxu0 %v9697
    %9900 = vmatpush1.bf16.msra.mxu0 %v9696
    %9901 = vmatprep.subr.bf16.mxu0 %v9699
    %9902 = vmatpush1.bf16.msra.mxu0 %v9698
    %9903 = vmatprep.subr.bf16.mxu0 %v9701
    %9904 = vmatpush1.bf16.msra.mxu0 %v9700
    %9905 = vmatprep.subr.bf16.mxu0 %v9703
    %9906 = vmatpush1.bf16.msra.mxu0 %v9702
    %9907 = vmatprep.subr.bf16.mxu0 %v9705
    %9908 = vmatpush1.bf16.msra.mxu0 %v9704
    %9909 = vmatprep.subr.bf16.mxu0 %v9707
    %9910 = vmatpush1.bf16.msra.mxu0 %v9706
    %9911 = vmatprep.subr.bf16.mxu0 %v9709
    %9912 = vmatpush1.bf16.msra.mxu0 %v9708
    %9913 = vmatprep.subr.bf16.mxu0 %v9711
    %9914 = vmatpush1.bf16.msra.mxu0 %v9710
    %9915 = vmatprep.subr.bf16.mxu0 %v9713
    %9916 = vmatpush1.bf16.msra.mxu0 %v9712
    %9917 = vmatprep.subr.bf16.mxu0 %v9715
    %9918 = vmatpush1.bf16.msra.mxu0 %v9714
    %9919 = vmatprep.subr.bf16.mxu0 %v9717
    %9920 = vmatpush1.bf16.msra.mxu0 %v9716
    %9921 = vmatprep.subr.bf16.mxu0 %v9719
    %9922 = vmatpush1.bf16.msra.mxu0 %v9718
    %9923 = vmatprep.mubr.bf16.mxu0 %v9257
    %9924 = vmatmul.mubr.bf16.gmra.mrb[0].mxu0 %v9256
    %v9925 = vpop.f32.mrb[0].mxu0
    %v9926 = vadd.f32 %v9883, %v9925
    %v9927 = vpop.f32.mrb[0].mxu0
    %v9928 = vadd.f32 %v9885, %v9927
    %v9929 = vpop.f32.mrb[0].mxu0
    %v9930 = vadd.f32 %v9887, %v9929
    %v9931 = vpop.f32.mrb[0].mxu0
    %v9932 = vadd.f32 %v9889, %v9931
    %9933 = vdwg.mxu0
    %9934 = vmatprep.subr.bf16.mxu0 %v9721
    %9935 = vmatpush1.bf16.msra.mxu0 %v9720
    %9936 = vmatprep.subr.bf16.mxu0 %v9723
    %9937 = vmatpush1.bf16.msra.mxu0 %v9722
    %9938 = vmatprep.subr.bf16.mxu0 %v9725
    %9939 = vmatpush1.bf16.msra.mxu0 %v9724
    %9940 = vmatprep.subr.bf16.mxu0 %v9727
    %9941 = vmatpush1.bf16.msra.mxu0 %v9726
    %9942 = vmatprep.subr.bf16.mxu0 %v9729
    %9943 = vmatpush1.bf16.msra.mxu0 %v9728
    %9944 = vmatprep.subr.bf16.mxu0 %v9731
    %9945 = vmatpush1.bf16.msra.mxu0 %v9730
    %9946 = vmatprep.subr.bf16.mxu0 %v9733
    %9947 = vmatpush1.bf16.msra.mxu0 %v9732
    %9948 = vmatprep.subr.bf16.mxu0 %v9735
    %9949 = vmatpush1.bf16.msra.mxu0 %v9734
    %9950 = vmatprep.subr.bf16.mxu0 %v9737
    %9951 = vmatpush1.bf16.msra.mxu0 %v9736
    %9952 = vmatprep.subr.bf16.mxu0 %v9739
    %9953 = vmatpush1.bf16.msra.mxu0 %v9738
    %9954 = vmatprep.subr.bf16.mxu0 %v9741
    %9955 = vmatpush1.bf16.msra.mxu0 %v9740
    %9956 = vmatprep.subr.bf16.mxu0 %v9743
    %9957 = vmatpush1.bf16.msra.mxu0 %v9742
    %9958 = vmatprep.subr.bf16.mxu0 %v9745
    %9959 = vmatpush1.bf16.msra.mxu0 %v9744
    %9960 = vmatprep.subr.bf16.mxu0 %v9747
    %9961 = vmatpush1.bf16.msra.mxu0 %v9746
    %9962 = vmatprep.subr.bf16.mxu0 %v9749
    %9963 = vmatpush1.bf16.msra.mxu0 %v9748
    %9964 = vmatprep.subr.bf16.mxu0 %v9751
    %9965 = vmatpush1.bf16.msra.mxu0 %v9750
    %9966 = vmatprep.mubr.bf16.mxu0 %v9259
    %9967 = vmatmul.mubr.bf16.gmra.mrb[0].mxu0 %v9258
    %v9968 = vpop.f32.mrb[0].mxu0
    %v9969 = vadd.f32 %v9926, %v9968
    %v9970 = vpop.f32.mrb[0].mxu0
    %v9971 = vadd.f32 %v9928, %v9970
    %v9972 = vpop.f32.mrb[0].mxu0
    %v9973 = vadd.f32 %v9930, %v9972
    %v9974 = vpop.f32.mrb[0].mxu0
    %v9975 = vadd.f32 %v9932, %v9974
    %9976 = vdwg.mxu0
    %v9977 = vmax.f32 %v9969, 0.0
    %v9978 = vmax.f32 %v9971, 0.0
    %v9979 = vmax.f32 %v9973, 0.0
    %v9980 = vmax.f32 %v9975, 0.0
    %v9985 = vrot.slane %v9977, 2
    %v9986 = vrot.slane %v9979, 2
    %v9987 = vsel %vm318, %v9985, %v9986
    %v9988 = vrot.slane %v9978, 2
    %v9989 = vrot.slane %v9980, 2
    %v9990 = vsel %vm318, %v9988, %v9989
    %9991 = vrot.lane.b32.xlu0 %v9987, 64
    %v9992 = vpop.permute.xlu0 %9991
    %9993 = vrot.lane.b32.xlu0 %v9990, 64
    %v9994 = vpop.permute.xlu0 %9993
    %vm9995 = vcmask 523264
    %v9996 = vsel %vm9995, %v9992, %v9994
    %v9999 = vrot.slane %v9977, 4
    %v10000 = vrot.slane %v9979, 4
    %v10001 = vsel %vm345, %v9999, %v10000
    %v10002 = vrot.slane %v9978, 4
    %v10003 = vrot.slane %v9980, 4
    %v10004 = vsel %vm345, %v10002, %v10003
    %v10007 = vsel %vm9995, %v9978, %v9992
    %v10008 = vpack.c.bf16 %v9977, %v9977
    %v10009 = vpack.c.bf16 %v10007, %v10007
    %v10010 = vpack.c.bf16 %v9996, %v9996
    %v10011 = vpack.c.bf16 %v10001, %v10001
    %v10012 = vpack.c.bf16 %v10004, %v10004
    %v10013 = vld [vmem:[#allocation17] sm:$0xf]
    %v10014 = vld [vmem:[#allocation17 + $0x4] sm:$0xf]
    %v10015 = vld [vmem:[#allocation17 + $0x8] sm:$0xf]
    %v10016 = vld [vmem:[#allocation17 + $0xc] sm:$0xf]
    %v10017 = vld [vmem:[#allocation17 + $0x10] sm:$0xf]
    %v10018 = vld [vmem:[#allocation17 + $0x14] sm:$0xf]
    %v10019 = vld [vmem:[#allocation17 + $0x18] sm:$0xf]
    %v10020 = vld [vmem:[#allocation17 + $0x1c] sm:$0xf]
    %v10021 = vld [vmem:[#allocation17 + $0x20] sm:$0xf]
    %v10022 = vld [vmem:[#allocation17 + $0x24] sm:$0xf]
    %v10023 = vld [vmem:[#allocation17 + $0x28] sm:$0xf]
    %v10024 = vld [vmem:[#allocation17 + $0x2c] sm:$0xf]
    %v10025 = vld [vmem:[#allocation17 + $0x30] sm:$0xf]
    %v10026 = vld [vmem:[#allocation17 + $0x34] sm:$0xf]
    %v10027 = vld [vmem:[#allocation17 + $0x38] sm:$0xf]
    %v10028 = vld [vmem:[#allocation17 + $0x3c] sm:$0xf]
    %v10029 = vld [vmem:[#allocation17 + $0x40] sm:$0xf]
    %v10030 = vld [vmem:[#allocation17 + $0x44] sm:$0xf]
    %v10031 = vld [vmem:[#allocation17 + $0x48] sm:$0xf]
    %v10032 = vld [vmem:[#allocation17 + $0x4c] sm:$0xf]
    %v10033 = vld [vmem:[#allocation17 + $0x50] sm:$0xf]
    %v10034 = vld [vmem:[#allocation17 + $0x54] sm:$0xf]
    %v10035 = vld [vmem:[#allocation17 + $0x58] sm:$0xf]
    %v10036 = vld [vmem:[#allocation17 + $0x5c] sm:$0xf]
    %v10037 = vld [vmem:[#allocation17 + $0x60] sm:$0xf]
    %v10038 = vld [vmem:[#allocation17 + $0x64] sm:$0xf]
    %v10039 = vld [vmem:[#allocation17 + $0x68] sm:$0xf]
    %v10040 = vld [vmem:[#allocation17 + $0x6c] sm:$0xf]
    %v10041 = vld [vmem:[#allocation17 + $0x70] sm:$0xf]
    %v10042 = vld [vmem:[#allocation17 + $0x74] sm:$0xf]
    %v10043 = vld [vmem:[#allocation17 + $0x78] sm:$0xf]
    %v10044 = vld [vmem:[#allocation17 + $0x7c] sm:$0xf]
    %v10045 = vld [vmem:[#allocation17 + $0x80] sm:$0xf]
    %v10046 = vld [vmem:[#allocation17 + $0x84] sm:$0xf]
    %v10047 = vld [vmem:[#allocation17 + $0x88] sm:$0xf]
    %v10048 = vld [vmem:[#allocation17 + $0x8c] sm:$0xf]
    %v10049 = vld [vmem:[#allocation17 + $0x90] sm:$0xf]
    %v10050 = vld [vmem:[#allocation17 + $0x94] sm:$0xf]
    %v10051 = vld [vmem:[#allocation17 + $0x98] sm:$0xf]
    %v10052 = vld [vmem:[#allocation17 + $0x9c] sm:$0xf]
    %v10053 = vld [vmem:[#allocation17 + $0xa0] sm:$0xf]
    %v10054 = vld [vmem:[#allocation17 + $0xa4] sm:$0xf]
    %v10055 = vld [vmem:[#allocation17 + $0xa8] sm:$0xf]
    %v10056 = vld [vmem:[#allocation17 + $0xac] sm:$0xf]
    %v10057 = vld [vmem:[#allocation17 + $0xb0] sm:$0xf]
    %v10058 = vld [vmem:[#allocation17 + $0xb4] sm:$0xf]
    %v10059 = vld [vmem:[#allocation17 + $0xb8] sm:$0xf]
    %v10060 = vld [vmem:[#allocation17 + $0xbc] sm:$0xf]
    %v10061 = vld [vmem:[#allocation17 + $0xc0] sm:$0xf]
    %v10062 = vld [vmem:[#allocation17 + $0xc4] sm:$0xf]
    %v10063 = vld [vmem:[#allocation17 + $0xc8] sm:$0xf]
    %v10064 = vld [vmem:[#allocation17 + $0xcc] sm:$0xf]
    %v10065 = vld [vmem:[#allocation17 + $0xd0] sm:$0xf]
    %v10066 = vld [vmem:[#allocation17 + $0xd4] sm:$0xf]
    %v10067 = vld [vmem:[#allocation17 + $0xd8] sm:$0xf]
    %v10068 = vld [vmem:[#allocation17 + $0xdc] sm:$0xf]
    %v10069 = vld [vmem:[#allocation17 + $0xe0] sm:$0xf]
    %v10070 = vld [vmem:[#allocation17 + $0xe4] sm:$0xf]
    %v10071 = vld [vmem:[#allocation17 + $0xe8] sm:$0xf]
    %v10072 = vld [vmem:[#allocation17 + $0xec] sm:$0xf]
    %v10073 = vld [vmem:[#allocation17 + $0xf0] sm:$0xf]
    %v10074 = vld [vmem:[#allocation17 + $0xf4] sm:$0xf]
    %v10075 = vld [vmem:[#allocation17 + $0xf8] sm:$0xf]
    %v10076 = vld [vmem:[#allocation17 + $0xfc] sm:$0xf]
    %v10077 = vld [vmem:[#allocation17 + $0x100] sm:$0xf]
    %v10078 = vld [vmem:[#allocation17 + $0x104] sm:$0xf]
    %v10079 = vld [vmem:[#allocation17 + $0x108] sm:$0xf]
    %v10080 = vld [vmem:[#allocation17 + $0x10c] sm:$0xf]
    %v10081 = vld [vmem:[#allocation17 + $0x110] sm:$0xf]
    %v10082 = vld [vmem:[#allocation17 + $0x114] sm:$0xf]
    %v10083 = vld [vmem:[#allocation17 + $0x118] sm:$0xf]
    %v10084 = vld [vmem:[#allocation17 + $0x11c] sm:$0xf]
    %v10085 = vld [vmem:[#allocation19] sm:$0x1]
    %v10087 = vlaneseq
    %v10088 = vshrl.u32 %v10087, 7
    %v10089 = vsub.s32 0, %v10088
    %v10090 = vrot.slane %v10085, %v10089
    %v10164 = vunpack.c.l.b16 %v10013
    %v10165 = vunpack.c.l.b16 %v10014
    %v10166 = vunpack.c.l.b16 %v10015
    %v10167 = vunpack.c.l.b16 %v10016
    %v10168 = vunpack.c.l.b16 %v10017
    %v10169 = vunpack.c.l.b16 %v10018
    %v10170 = vunpack.c.l.b16 %v10019
    %v10171 = vunpack.c.l.b16 %v10020
    %v10172 = vunpack.c.l.b16 %v10021
    %v10173 = vunpack.c.l.b16 %v10022
    %v10174 = vunpack.c.l.b16 %v10023
    %v10175 = vunpack.c.l.b16 %v10024
    %v10176 = vunpack.c.l.b16 %v10025
    %v10177 = vunpack.c.l.b16 %v10026
    %v10178 = vunpack.c.l.b16 %v10027
    %v10179 = vunpack.c.l.b16 %v10028
    %v10180 = vunpack.c.l.b16 %v10029
    %v10181 = vunpack.c.l.b16 %v10030
    %v10182 = vunpack.c.l.b16 %v10031
    %v10183 = vunpack.c.l.b16 %v10032
    %v10184 = vunpack.c.l.b16 %v10033
    %v10185 = vunpack.c.l.b16 %v10034
    %v10186 = vunpack.c.l.b16 %v10035
    %v10187 = vunpack.c.l.b16 %v10036
    %v10188 = vunpack.c.l.b16 %v10037
    %v10189 = vunpack.c.l.b16 %v10038
    %v10190 = vunpack.c.l.b16 %v10039
    %v10191 = vunpack.c.l.b16 %v10040
    %v10192 = vunpack.c.l.b16 %v10041
    %v10193 = vunpack.c.l.b16 %v10042
    %v10194 = vunpack.c.l.b16 %v10043
    %v10195 = vunpack.c.l.b16 %v10044
    %v10196 = vunpack.c.l.b16 %v10045
    %v10197 = vunpack.c.l.b16 %v10046
    %v10198 = vunpack.c.l.b16 %v10047
    %v10199 = vunpack.c.l.b16 %v10048
    %v10200 = vunpack.c.l.b16 %v10049
    %v10201 = vunpack.c.l.b16 %v10050
    %v10202 = vunpack.c.l.b16 %v10051
    %v10203 = vunpack.c.l.b16 %v10052
    %v10204 = vunpack.c.l.b16 %v10053
    %v10205 = vunpack.c.l.b16 %v10054
    %v10206 = vunpack.c.l.b16 %v10055
    %v10207 = vunpack.c.l.b16 %v10056
    %v10208 = vunpack.c.l.b16 %v10057
    %v10209 = vunpack.c.l.b16 %v10058
    %v10210 = vunpack.c.l.b16 %v10059
    %v10211 = vunpack.c.l.b16 %v10060
    %v10212 = vunpack.c.l.b16 %v10061
    %v10213 = vunpack.c.l.b16 %v10062
    %v10214 = vunpack.c.l.b16 %v10063
    %v10215 = vunpack.c.l.b16 %v10064
    %v10216 = vunpack.c.l.b16 %v10065
    %v10217 = vunpack.c.l.b16 %v10066
    %v10218 = vunpack.c.l.b16 %v10067
    %v10219 = vunpack.c.l.b16 %v10068
    %v10220 = vunpack.c.l.b16 %v10069
    %v10221 = vunpack.c.l.b16 %v10070
    %v10222 = vunpack.c.l.b16 %v10071
    %v10223 = vunpack.c.l.b16 %v10072
    %v10224 = vunpack.c.l.b16 %v10073
    %v10225 = vunpack.c.l.b16 %v10074
    %v10226 = vunpack.c.l.b16 %v10075
    %v10227 = vunpack.c.l.b16 %v10076
    %v10228 = vunpack.c.l.b16 %v10077
    %v10229 = vunpack.c.l.b16 %v10078
    %v10230 = vunpack.c.l.b16 %v10079
    %v10231 = vunpack.c.l.b16 %v10080
    %v10232 = vunpack.c.l.b16 %v10081
    %v10233 = vunpack.c.l.b16 %v10082
    %v10234 = vunpack.c.l.b16 %v10083
    %v10235 = vunpack.c.l.b16 %v10084
    %v10236 = vpack.c.b16 %v10165, %v10164
    %v10237 = vpack.c.b16 %v10167, %v10166
    %v10238 = vpack.c.b16 %v10169, %v10168
    %v10239 = vpack.c.b16 %v10171, %v10170
    %v10240 = vpack.c.b16 %v10173, %v10172
    %v10241 = vpack.c.b16 %v10175, %v10174
    %v10242 = vpack.c.b16 %v10177, %v10176
    %v10243 = vpack.c.b16 %v10179, %v10178
    %v10244 = vpack.c.b16 %v10181, %v10180
    %v10245 = vpack.c.b16 %v10183, %v10182
    %v10246 = vpack.c.b16 %v10185, %v10184
    %v10247 = vpack.c.b16 %v10187, %v10186
    %v10248 = vpack.c.b16 %v10189, %v10188
    %v10249 = vpack.c.b16 %v10191, %v10190
    %v10250 = vpack.c.b16 %v10193, %v10192
    %v10251 = vpack.c.b16 %v10195, %v10194
    %v10252 = vpack.c.b16 %v10197, %v10196
    %v10253 = vpack.c.b16 %v10199, %v10198
    %v10254 = vpack.c.b16 %v10201, %v10200
    %v10255 = vpack.c.b16 %v10203, %v10202
    %v10256 = vpack.c.b16 %v10205, %v10204
    %v10257 = vpack.c.b16 %v10207, %v10206
    %v10258 = vpack.c.b16 %v10209, %v10208
    %v10259 = vpack.c.b16 %v10211, %v10210
    %v10260 = vpack.c.b16 %v10213, %v10212
    %v10261 = vpack.c.b16 %v10215, %v10214
    %v10262 = vpack.c.b16 %v10217, %v10216
    %v10263 = vpack.c.b16 %v10219, %v10218
    %v10264 = vpack.c.b16 %v10221, %v10220
    %v10265 = vpack.c.b16 %v10223, %v10222
    %v10266 = vpack.c.b16 %v10225, %v10224
    %v10267 = vpack.c.b16 %v10227, %v10226
    %v10268 = vpack.c.b16 %v10229, %v10228
    %v10269 = vpack.c.b16 %v10231, %v10230
    %v10270 = vpack.c.b16 %v10233, %v10232
    %v10271 = vpack.c.b16 %v10235, %v10234
    %v10309 = vsel %vm9995, %v10012, 0
    %10311 = vmatprep.subr.bf16.mxu0 0
    %10312 = vmatpush1.bf16.msra.mxu0 %v10236
    %10313 = vmatprep.subr.bf16.mxu0 0
    %10314 = vmatpush1.bf16.msra.mxu0 %v10237
    %10315 = vmatprep.subr.bf16.mxu0 0
    %10316 = vmatpush1.bf16.msra.mxu0 %v10238
    %10317 = vmatprep.subr.bf16.mxu0 0
    %10318 = vmatpush1.bf16.msra.mxu0 %v10239
    %10319 = vmatprep.subr.bf16.mxu0 0
    %10320 = vmatpush1.bf16.msra.mxu0 %v10240
    %10321 = vmatprep.subr.bf16.mxu0 0
    %10322 = vmatpush1.bf16.msra.mxu0 %v10241
    %10323 = vmatprep.subr.bf16.mxu0 0
    %10324 = vmatpush1.bf16.msra.mxu0 %v10242
    %10325 = vmatprep.subr.bf16.mxu0 0
    %10326 = vmatpush1.bf16.msra.mxu0 %v10243
    %10327 = vmatprep.subr.bf16.mxu0 0
    %10328 = vmatpush1.bf16.msra.mxu0 %v10244
    %10329 = vmatprep.subr.bf16.mxu0 0
    %10330 = vmatpush1.bf16.msra.mxu0 %v10245
    %10331 = vmatprep.subr.bf16.mxu0 0
    %10332 = vmatpush1.bf16.msra.mxu0 %v10246
    %10333 = vmatprep.subr.bf16.mxu0 0
    %10334 = vmatpush1.bf16.msra.mxu0 %v10247
    %10335 = vmatprep.subr.bf16.mxu0 0
    %10336 = vmatpush1.bf16.msra.mxu0 %v10248
    %10337 = vmatprep.subr.bf16.mxu0 0
    %10338 = vmatpush1.bf16.msra.mxu0 %v10249
    %10339 = vmatprep.subr.bf16.mxu0 0
    %10340 = vmatpush1.bf16.msra.mxu0 %v10250
    %10341 = vmatprep.subr.bf16.mxu0 0
    %10342 = vmatpush1.bf16.msra.mxu0 %v10251
    %10343 = vmatprep.mubr.bf16.mxu0 %v10009
    %10344 = vmatmul.mubr.bf16.gmra.mrb[0].mxu0 %v10008
    %v10345 = vpop.f32.mrb[0].mxu0
    %v10346 = vadd.f32 %v10090, %v10345
    %v10347 = vpop.f32.mrb[0].mxu0
    %v10348 = vpop.f32.mrb[0].mxu0
    %v10349 = vpop.f32.mrb[0].mxu0
    %10350 = vdwg.mxu0
    %10351 = vmatprep.subr.bf16.mxu0 0
    %10352 = vmatpush1.bf16.msra.mxu0 %v10252
    %10353 = vmatprep.subr.bf16.mxu0 0
    %10354 = vmatpush1.bf16.msra.mxu0 %v10253
    %10355 = vmatprep.subr.bf16.mxu0 0
    %10356 = vmatpush1.bf16.msra.mxu0 %v10254
    %10357 = vmatprep.subr.bf16.mxu0 0
    %10358 = vmatpush1.bf16.msra.mxu0 %v10255
    %10359 = vmatprep.subr.bf16.mxu0 0
    %10360 = vmatpush1.bf16.msra.mxu0 %v10256
    %10361 = vmatprep.subr.bf16.mxu0 0
    %10362 = vmatpush1.bf16.msra.mxu0 %v10257
    %10363 = vmatprep.subr.bf16.mxu0 0
    %10364 = vmatpush1.bf16.msra.mxu0 %v10258
    %10365 = vmatprep.subr.bf16.mxu0 0
    %10366 = vmatpush1.bf16.msra.mxu0 %v10259
    %10367 = vmatprep.subr.bf16.mxu0 0
    %10368 = vmatpush1.bf16.msra.mxu0 %v10260
    %10369 = vmatprep.subr.bf16.mxu0 0
    %10370 = vmatpush1.bf16.msra.mxu0 %v10261
    %10371 = vmatprep.subr.bf16.mxu0 0
    %10372 = vmatpush1.bf16.msra.mxu0 %v10262
    %10373 = vmatprep.subr.bf16.mxu0 0
    %10374 = vmatpush1.bf16.msra.mxu0 %v10263
    %10375 = vmatprep.subr.bf16.mxu0 0
    %10376 = vmatpush1.bf16.msra.mxu0 %v10264
    %10377 = vmatprep.subr.bf16.mxu0 0
    %10378 = vmatpush1.bf16.msra.mxu0 %v10265
    %10379 = vmatprep.subr.bf16.mxu0 0
    %10380 = vmatpush1.bf16.msra.mxu0 %v10266
    %10381 = vmatprep.subr.bf16.mxu0 0
    %10382 = vmatpush1.bf16.msra.mxu0 %v10267
    %10383 = vmatprep.mubr.bf16.mxu0 %v10011
    %10384 = vmatmul.mubr.bf16.gmra.mrb[0].mxu0 %v10010
    %v10385 = vpop.f32.mrb[0].mxu0
    %v10386 = vadd.f32 %v10346, %v10385
    %v10387 = vpop.f32.mrb[0].mxu0
    %v10388 = vpop.f32.mrb[0].mxu0
    %v10389 = vpop.f32.mrb[0].mxu0
    %10390 = vdwg.mxu0
    %10391 = vmatprep.subr.bf16.mxu0 0
    %10392 = vmatpush1.bf16.msra.mxu0 %v10268
    %10393 = vmatprep.subr.bf16.mxu0 0
    %10394 = vmatpush1.bf16.msra.mxu0 %v10269
    %10395 = vmatprep.subr.bf16.mxu0 0
    %10396 = vmatpush1.bf16.msra.mxu0 %v10270
    %10397 = vmatprep.subr.bf16.mxu0 0
    %10398 = vmatpush1.bf16.msra.mxu0 %v10271
    %10399 = vmatprep.subr.bf16.mxu0 0
    %10400 = vmatpush1.bf16.msra.mxu0 0
    %10401 = vmatprep.subr.bf16.mxu0 0
    %10402 = vmatpush1.bf16.msra.mxu0 0
    %10403 = vmatprep.subr.bf16.mxu0 0
    %10404 = vmatpush1.bf16.msra.mxu0 0
    %10405 = vmatprep.subr.bf16.mxu0 0
    %10406 = vmatpush1.bf16.msra.mxu0 0
    %10407 = vmatprep.subr.bf16.mxu0 0
    %10408 = vmatpush1.bf16.msra.mxu0 0
    %10409 = vmatprep.subr.bf16.mxu0 0
    %10410 = vmatpush1.bf16.msra.mxu0 0
    %10411 = vmatprep.subr.bf16.mxu0 0
    %10412 = vmatpush1.bf16.msra.mxu0 0
    %10413 = vmatprep.subr.bf16.mxu0 0
    %10414 = vmatpush1.bf16.msra.mxu0 0
    %10415 = vmatprep.subr.bf16.mxu0 0
    %10416 = vmatpush1.bf16.msra.mxu0 0
    %10417 = vmatprep.subr.bf16.mxu0 0
    %10418 = vmatpush1.bf16.msra.mxu0 0
    %10419 = vmatprep.subr.bf16.mxu0 0
    %10420 = vmatpush1.bf16.msra.mxu0 0
    %10421 = vmatprep.subr.bf16.mxu0 0
    %10422 = vmatpush1.bf16.msra.mxu0 0
    %10423 = vmatprep.mubr.bf16.mxu0 0
    %10424 = vmatmul.mubr.bf16.gmra.mrb[0].mxu0 %v10309
    %v10425 = vpop.f32.mrb[0].mxu0
    %v10426 = vadd.f32 %v10386, %v10425
    %v10427 = vpop.f32.mrb[0].mxu0
    %v10428 = vpop.f32.mrb[0].mxu0
    %v10429 = vpop.f32.mrb[0].mxu0
    %10430 = vdwg.mxu0
    %10432 = vrot.lane.b32.xlu0 %v10426, 96
    %v10433 = vpop.permute.xlu0 %10432
    %v10435 = vadd.f32 %v10426, %v10433
    %10436 = vrot.lane.b32.xlu0 %v10426, 64
    %v10437 = vpop.permute.xlu0 %10436
    %v10439 = vadd.f32 %v10435, %v10437
    %10440 = vrot.lane.b32.xlu0 %v10426, 32
    %v10441 = vpop.permute.xlu0 %10440
    %v10443 = vadd.f32 %v10439, %v10441
    %v10444 = vmax.f32 %v10426, %v10433
    %v10445 = vmax.f32 %v10444, %v10437
    %v10446 = vmax.f32 %v10445, %v10441
    %v10448 = vrot.slane %v10443, 2
    %v10450 = vadd.f32 %v10443, %v10448
    %v10451 = vrot.slane %v10443, 4
    %v10453 = vadd.f32 %v10450, %v10451
    %v10454 = vrot.slane %v10443, 6
    %v10456 = vadd.f32 %v10453, %v10454
    %v10457 = vmul.f32 %v10456, 0.0625
    %v10459 = vrot.slane %v10446, 2
    %v10461 = vmax.f32 %v10446, %v10459
    %v10462 = vrot.slane %v10446, 4
    %v10464 = vmax.f32 %v10461, %v10462
    %v10465 = vrot.slane %v10446, 6
    %v10467 = vmax.f32 %v10464, %v10465
    %v10469 = vrot.slane %v10467, 6
    %v10471 = vsel %vm372, %v10457, %v10469
    %v10472 = vpack.c.bf16 %v10471, %v10471
    %v10473 = vld [vmem:[%s12] sm:$0xf]
    %v10474 = vld [vmem:[%s12 + $0x4] sm:$0xf]
    %v10475 = vld [vmem:[%s12 + $0x8] sm:$0xf]
    %v10476 = vld [vmem:[%s12 + $0xc] sm:$0xf]
    %v10477 = vld [vmem:[#allocation20] sm:$0x1]
    %v10479 = vlaneseq
    %v10480 = vshrl.u32 %v10479, 7
    %v10481 = vsub.s32 0, %v10480
    %v10482 = vrot.slane %v10477, %v10481
    %v10488 = vunpack.c.l.b16 %v10473
    %v10489 = vunpack.c.l.b16 %v10474
    %v10490 = vunpack.c.l.b16 %v10475
    %v10491 = vunpack.c.l.b16 %v10476
    %v10492 = vpack.c.b16 %v10489, %v10488
    %v10493 = vpack.c.b16 %v10491, %v10490
    %v10497 = vsel %vm432, %v10472, 0
    %10499 = vmatprep.subr.bf16.mxu0 0
    %10500 = vmatpush1.bf16.msra.mxu0 %v10492
    %10501 = vmatprep.subr.bf16.mxu0 0
    %10502 = vmatpush1.bf16.msra.mxu0 %v10493
    %10503 = vmatprep.subr.bf16.mxu0 0
    %10504 = vmatpush1.bf16.msra.mxu0 0
    %10505 = vmatprep.subr.bf16.mxu0 0
    %10506 = vmatpush1.bf16.msra.mxu0 0
    %10507 = vmatprep.subr.bf16.mxu0 0
    %10508 = vmatpush1.bf16.msra.mxu0 0
    %10509 = vmatprep.subr.bf16.mxu0 0
    %10510 = vmatpush1.bf16.msra.mxu0 0
    %10511 = vmatprep.subr.bf16.mxu0 0
    %10512 = vmatpush1.bf16.msra.mxu0 0
    %10513 = vmatprep.subr.bf16.mxu0 0
    %10514 = vmatpush1.bf16.msra.mxu0 0
    %10515 = vmatprep.subr.bf16.mxu0 0
    %10516 = vmatpush1.bf16.msra.mxu0 0
    %10517 = vmatprep.subr.bf16.mxu0 0
    %10518 = vmatpush1.bf16.msra.mxu0 0
    %10519 = vmatprep.subr.bf16.mxu0 0
    %10520 = vmatpush1.bf16.msra.mxu0 0
    %10521 = vmatprep.subr.bf16.mxu0 0
    %10522 = vmatpush1.bf16.msra.mxu0 0
    %10523 = vmatprep.subr.bf16.mxu0 0
    %10524 = vmatpush1.bf16.msra.mxu0 0
    %10525 = vmatprep.subr.bf16.mxu0 0
    %10526 = vmatpush1.bf16.msra.mxu0 0
    %10527 = vmatprep.subr.bf16.mxu0 0
    %10528 = vmatpush1.bf16.msra.mxu0 0
    %10529 = vmatprep.subr.bf16.mxu0 0
    %10530 = vmatpush1.bf16.msra.mxu0 0
    %10531 = vmatprep.mubr.bf16.mxu0 0
    %10532 = vmatmul.mubr.bf16.gmra.mrb[0].mxu0 %v10497
    %v10533 = vpop.f32.mrb[0].mxu0
    %v10534 = vadd.f32 %v10482, %v10533
    %v10535 = vpop.f32.mrb[0].mxu0
    %v10536 = vpop.f32.mrb[0].mxu0
    %v10537 = vpop.f32.mrb[0].mxu0
    %10538 = vdwg.mxu0
    %v10539 = vmax.f32 %v10534, 0.0
    %v10540 = vpack.c.bf16 %v10539, %v10539
    %v10541 = vld [vmem:[#allocation22] sm:$0xf]
    %v10542 = vld [vmem:[#allocation23] sm:$0x1]
    %v10544 = vlaneseq
    %v10545 = vshrl.u32 %v10544, 7
    %v10546 = vsub.s32 0, %v10545
    %v10547 = vrot.slane %v10542, %v10546
    %vm10549 = vcmask 64512
    %v10551 = vsel %vm10549, %v10540, 0
    %v10554 = vsel %vm345, %v10541, 0
    %10556 = vmatprep.subr.bf16.mxu0 0
    %10557 = vmatpush1.bf16.msra.mxu0 %v10554
    %10558 = vmatprep.subr.bf16.mxu0 0
    %10559 = vmatpush1.bf16.msra.mxu0 0
    %10560 = vmatprep.subr.bf16.mxu0 0
    %10561 = vmatpush1.bf16.msra.mxu0 0
    %10562 = vmatprep.subr.bf16.mxu0 0
    %10563 = vmatpush1.bf16.msra.mxu0 0
    %10564 = vmatprep.subr.bf16.mxu0 0
    %10565 = vmatpush1.bf16.msra.mxu0 0
    %10566 = vmatprep.subr.bf16.mxu0 0
    %10567 = vmatpush1.bf16.msra.mxu0 0
    %10568 = vmatprep.subr.bf16.mxu0 0
    %10569 = vmatpush1.bf16.msra.mxu0 0
    %10570 = vmatprep.subr.bf16.mxu0 0
    %10571 = vmatpush1.bf16.msra.mxu0 0
    %10572 = vmatprep.subr.bf16.mxu0 0
    %10573 = vmatpush1.bf16.msra.mxu0 0
    %10574 = vmatprep.subr.bf16.mxu0 0
    %10575 = vmatpush1.bf16.msra.mxu0 0
    %10576 = vmatprep.subr.bf16.mxu0 0
    %10577 = vmatpush1.bf16.msra.mxu0 0
    %10578 = vmatprep.subr.bf16.mxu0 0
    %10579 = vmatpush1.bf16.msra.mxu0 0
    %10580 = vmatprep.subr.bf16.mxu0 0
    %10581 = vmatpush1.bf16.msra.mxu0 0
    %10582 = vmatprep.subr.bf16.mxu0 0
    %10583 = vmatpush1.bf16.msra.mxu0 0
    %10584 = vmatprep.subr.bf16.mxu0 0
    %10585 = vmatpush1.bf16.msra.mxu0 0
    %10586 = vmatprep.subr.bf16.mxu0 0
    %10587 = vmatpush1.bf16.msra.mxu0 0
    %10588 = vmatprep.mubr.bf16.mxu0 0
    %10589 = vmatmul.mubr.bf16.gmra.mrb[0].mxu0 %v10551
    %v10590 = vpop.f32.mrb[0].mxu0
    %v10591 = vadd.f32 %v10547, %v10590
    %v10592 = vpop.f32.mrb[0].mxu0
    %v10593 = vpop.f32.mrb[0].mxu0
    %v10594 = vpop.f32.mrb[0].mxu0
    %10595 = vdwg.mxu0
    %v10597 = vrot.slane %v10591, 2
    %v10599 = vadd.f32 %v10591, %v10597
    %v10600 = vsub.f32 0.0, %v10599
    %v10601 = vmul.f32 %v10600, 1.442695
    %v10602 = vpow.pop %v10601
    %v10603 = vadd.f32 %v10602, 1.0
    %v10604 = vrcp.pop %v10603
    %v10605 = vmul.f32 1.0, %v10604
    %10607 = vrot.lane.b32.xlu0 %v10605, 32
    %v10608 = vpop.permute.xlu0 %10607
    %10610 = vrot.lane.b32.xlu0 %v10605, 64
    %v10611 = vpop.permute.xlu0 %10610
    %10613 = vrot.lane.b32.xlu0 %v10605, 96
    %v10614 = vpop.permute.xlu0 %10613
    %v10616 = vsel %vm432, %v10605, %v10608
    %v10617 = vsel %vm9995, %v10616, %v10611
    %vm10618 = vcmask 785408
    %v10619 = vsel %vm10618, %v10617, %v10614
    %v10621 = vrot.slane %v10619, 6
    %v10623 = vrot.slane %v10619, 4
    %v10625 = vrot.slane %v10619, 2
    %v10627 = vsel %vm372, %v10619, %v10621
    %v10628 = vsel %vm345, %v10627, %v10623
    %v10629 = vsel %vm318, %v10628, %v10625
    %v10630 = vmul.f32 %v10426, %v10629
    %v10631 = vsel %vm432, %v10630, 0.0
    %10632 = vadd.xlane.f32.xlu0 %v10631
    %v10633 = vpop.xlane.xlu0 %10632
    %v10634 = vmul.f32 %v10633, 0.03125
    %v10635 = vsel %vm432, %v10630, -inf
    %10636 = vmax.xlane.f32.xlu0 %v10635
    %v10637 = vpop.xlane.xlu0 %10636
    %10639 = vrot.lane.b32.xlu0 %v10630, 96
    %v10640 = vpop.permute.xlu0 %10639
    %v10642 = vsel %vm432, %v10640, 0.0
    %10643 = vadd.xlane.f32.xlu0 %v10642
    %v10644 = vpop.xlane.xlu0 %10643
    %v10645 = vmul.f32 %v10644, 0.03125
    %vm10646 = vcmask 523520
    %v10647 = vsel %vm10646, %v10630, -inf
    %10648 = vmax.xlane.f32.xlu0 %v10647
    %v10649 = vpop.xlane.xlu0 %10648
    %10650 = vrot.lane.b32.xlu0 %v10630, 64
    %v10651 = vpop.permute.xlu0 %10650
    %v10653 = vsel %vm432, %v10651, 0.0
    %10654 = vadd.xlane.f32.xlu0 %v10653
    %v10655 = vpop.xlane.xlu0 %10654
    %v10656 = vmul.f32 %v10655, 0.03125
    %vm10657 = vcmask 785920
    %v10658 = vsel %vm10657, %v10630, -inf
    %10659 = vmax.xlane.f32.xlu0 %v10658
    %v10660 = vpop.xlane.xlu0 %10659
    %10661 = vrot.lane.b32.xlu0 %v10630, 32
    %v10662 = vpop.permute.xlu0 %10661
    %v10664 = vsel %vm432, %v10662, 0.0
    %10665 = vadd.xlane.f32.xlu0 %v10664
    %v10666 = vpop.xlane.xlu0 %10665
    %v10667 = vmul.f32 %v10666, 0.03125
    %vm10668 = vcmask 1048320
    %v10669 = vsel %vm10668, %v10630, -inf
    %10670 = vmax.xlane.f32.xlu0 %v10669
    %v10671 = vpop.xlane.xlu0 %10670
    %vm10672 = vcmask 7168
    %v10673 = vsel %vm10672, %v10634, %v10645
    %vm10674 = vcmask 15360
    %v10675 = vsel %vm10674, %v10673, %v10656
    %vm10676 = vcmask 23552
    %v10677 = vsel %vm10676, %v10675, %v10667
    %v10678 = vsel %vm10672, %v10637, %v10649
    %v10679 = vsel %vm10674, %v10678, %v10660
    %v10680 = vsel %vm10676, %v10679, %v10671
    %10682 = vrot.lane.b32.xlu0 %v10680, 4
    %v10683 = vpop.permute.xlu0 %10682
    %vm10685 = vcmask 31744
    %v10686 = vsel %vm10685, %v10677, %v10683
    %v10688 = vrot.slane %v10686, 2
    %10689 = vrot.lane.b32.xlu0 %v10688, 8
    %v10690 = vpop.permute.xlu0 %10689
    %v10692 = vrot.slane %v10686, 4
    %10693 = vrot.lane.b32.xlu0 %v10692, 16
    %v10694 = vpop.permute.xlu0 %10693
    %v10696 = vrot.slane %v10686, 6
    %10697 = vrot.lane.b32.xlu0 %v10696, 24
    %v10698 = vpop.permute.xlu0 %10697
    %v10700 = vsel %vm10549, %v10686, %v10690
    %v10701 = vsel %vm420, %v10700, %v10694
    %vm10702 = vcmask 195584
    %v10703 = vsel %vm10702, %v10701, %v10698
    %v10704 = vpack.c.bf16 %v10703, %v10703
    %v10705 = vld [vmem:[%s16] sm:$0xf]
    %v10706 = vld [vmem:[%s16 + $0x4] sm:$0xf]
    %v10707 = vld [vmem:[%s16 + $0x8] sm:$0xf]
    %v10708 = vld [vmem:[%s16 + $0xc] sm:$0xf]
    %v10709 = vld [vmem:[#allocation25] sm:$0x1]
    %v10711 = vlaneseq
    %v10712 = vshrl.u32 %v10711, 7
    %v10713 = vsub.s32 0, %v10712
    %v10714 = vrot.slane %v10709, %v10713
    %v10720 = vunpack.c.l.b16 %v10705
    %v10721 = vunpack.c.l.b16 %v10706
    %v10722 = vunpack.c.l.b16 %v10707
    %v10723 = vunpack.c.l.b16 %v10708
    %v10724 = vpack.c.b16 %v10721, %v10720
    %v10725 = vpack.c.b16 %v10723, %v10722
    %v10729 = vsel %vm432, %v10704, 0
    %10731 = vmatprep.subr.bf16.mxu0 0
    %10732 = vmatpush1.bf16.msra.mxu0 %v10724
    %10733 = vmatprep.subr.bf16.mxu0 0
    %10734 = vmatpush1.bf16.msra.mxu0 %v10725
    %10735 = vmatprep.subr.bf16.mxu0 0
    %10736 = vmatpush1.bf16.msra.mxu0 0
    %10737 = vmatprep.subr.bf16.mxu0 0
    %10738 = vmatpush1.bf16.msra.mxu0 0
    %10739 = vmatprep.subr.bf16.mxu0 0
    %10740 = vmatpush1.bf16.msra.mxu0 0
    %10741 = vmatprep.subr.bf16.mxu0 0
    %10742 = vmatpush1.bf16.msra.mxu0 0
    %10743 = vmatprep.subr.bf16.mxu0 0
    %10744 = vmatpush1.bf16.msra.mxu0 0
    %10745 = vmatprep.subr.bf16.mxu0 0
    %10746 = vmatpush1.bf16.msra.mxu0 0
    %10747 = vmatprep.subr.bf16.mxu0 0
    %10748 = vmatpush1.bf16.msra.mxu0 0
    %10749 = vmatprep.subr.bf16.mxu0 0
    %10750 = vmatpush1.bf16.msra.mxu0 0
    %10751 = vmatprep.subr.bf16.mxu0 0
    %10752 = vmatpush1.bf16.msra.mxu0 0
    %10753 = vmatprep.subr.bf16.mxu0 0
    %10754 = vmatpush1.bf16.msra.mxu0 0
    %10755 = vmatprep.subr.bf16.mxu0 0
    %10756 = vmatpush1.bf16.msra.mxu0 0
    %10757 = vmatprep.subr.bf16.mxu0 0
    %10758 = vmatpush1.bf16.msra.mxu0 0
    %10759 = vmatprep.subr.bf16.mxu0 0
    %10760 = vmatpush1.bf16.msra.mxu0 0
    %10761 = vmatprep.subr.bf16.mxu0 0
    %10762 = vmatpush1.bf16.msra.mxu0 0
    %10763 = vmatprep.mubr.bf16.mxu0 0
    %10764 = vmatmul.mubr.bf16.gmra.mrb[0].mxu0 %v10729
    %v10765 = vpop.f32.mrb[0].mxu0
    %v10766 = vadd.f32 %v10714, %v10765
    %v10767 = vpop.f32.mrb[0].mxu0
    %v10768 = vpop.f32.mrb[0].mxu0
    %v10769 = vpop.f32.mrb[0].mxu0
    %10770 = vdwg.mxu0
    %v10771 = vsub.f32 0.0, %v10766
    %v10772 = vmul.f32 %v10771, 1.442695
    %v10773 = vpow.pop %v10772
    %v10774 = vadd.f32 %v10773, 1.0
    %v10775 = vrcp.pop %v10774
    %v10776 = vmul.f32 1.0, %v10775
    %10778 = vset.pattern.permute.xlu0 0
    %10779 = vperm.xlu0 %10778, %v10776
    %v10780 = vpop.permute.xlu0 %10779
    %10782 = vset.pattern.permute.xlu0 1
    %10783 = vperm.xlu0 %10782, %v10776
    %v10784 = vpop.permute.xlu0 %10783
    %10786 = vset.pattern.permute.xlu0 2
    %10787 = vperm.xlu0 %10786, %v10776
    %v10788 = vpop.permute.xlu0 %10787
    %10790 = vset.pattern.permute.xlu0 3
    %10791 = vperm.xlu0 %10790, %v10776
    %v10792 = vpop.permute.xlu0 %10791
    %v10794 = vsel %vm432, %v10780, %v10784
    %v10795 = vsel %vm9995, %v10794, %v10788
    %v10796 = vsel %vm10618, %v10795, %v10792
    %10797 = vset.pattern.permute.xlu0 4
    %10798 = vperm.xlu0 %10797, %v10776
    %v10799 = vpop.permute.xlu0 %10798
    %10801 = vset.pattern.permute.xlu0 5
    %10802 = vperm.xlu0 %10801, %v10776
    %v10803 = vpop.permute.xlu0 %10802
    %10805 = vset.pattern.permute.xlu0 6
    %10806 = vperm.xlu0 %10805, %v10776
    %v10807 = vpop.permute.xlu0 %10806
    %10809 = vset.pattern.permute.xlu0 7
    %10810 = vperm.xlu0 %10809, %v10776
    %v10811 = vpop.permute.xlu0 %10810
    %v10813 = vsel %vm432, %v10799, %v10803
    %v10814 = vsel %vm9995, %v10813, %v10807
    %v10815 = vsel %vm10618, %v10814, %v10811
    %10816 = vset.pattern.permute.xlu0 8
    %10817 = vperm.xlu0 %10816, %v10776
    %v10818 = vpop.permute.xlu0 %10817
    %10820 = vset.pattern.permute.xlu0 9
    %10821 = vperm.xlu0 %10820, %v10776
    %v10822 = vpop.permute.xlu0 %10821
    %10824 = vset.pattern.permute.xlu0 10
    %10825 = vperm.xlu0 %10824, %v10776
    %v10826 = vpop.permute.xlu0 %10825
    %10828 = vset.pattern.permute.xlu0 11
    %10829 = vperm.xlu0 %10828, %v10776
    %v10830 = vpop.permute.xlu0 %10829
    %v10832 = vsel %vm432, %v10818, %v10822
    %v10833 = vsel %vm9995, %v10832, %v10826
    %v10834 = vsel %vm10618, %v10833, %v10830
    %10835 = vset.pattern.permute.xlu0 12
    %10836 = vperm.xlu0 %10835, %v10776
    %v10837 = vpop.permute.xlu0 %10836
    %10839 = vset.pattern.permute.xlu0 13
    %10840 = vperm.xlu0 %10839, %v10776
    %v10841 = vpop.permute.xlu0 %10840
    %10843 = vset.pattern.permute.xlu0 14
    %10844 = vperm.xlu0 %10843, %v10776
    %v10845 = vpop.permute.xlu0 %10844
    %10847 = vset.pattern.permute.xlu0 15
    %10848 = vperm.xlu0 %10847, %v10776
    %v10849 = vpop.permute.xlu0 %10848
    %v10851 = vsel %vm432, %v10837, %v10841
    %v10852 = vsel %vm9995, %v10851, %v10845
    %v10853 = vsel %vm10618, %v10852, %v10849
    %v10855 = vrot.slane %v10815, 6
    %v10858 = vrot.slane %v10834, 4
    %v10861 = vrot.slane %v10853, 2
    %v10863 = vsel %vm372, %v10796, %v10855
    %v10864 = vsel %vm345, %v10863, %v10858
    %v10865 = vsel %vm318, %v10864, %v10861
    %v10866 = vmul.f32 %v10630, %v10865
    %v10867 = vld [vmem:[#allocation26] sm:$0x1]
    %v10869 = vlaneseq
    %v10870 = vshrl.u32 %v10869, 7
    %v10871 = vsub.s32 0, %v10870
    %v10872 = vrot.slane %v10867, %v10871
    %v10874 = vmul.f32 %v10866, %v10872
    %v10875 = vld [vmem:[#allocation28] sm:$0x1]
    %v10877 = vlaneseq
    %v10878 = vshrl.u32 %v10877, 7
    %v10879 = vsub.s32 0, %v10878
    %v10880 = vrot.slane %v10875, %v10879
    %v10882 = vadd.f32 %v10874, %v10880
    %v10883 = vmax.f32 %v10882, 0.0
    %v10884 = vld [vmem:[#allocation29] sm:$0xf]
    %v10885 = vpack.c.bf16 %v10883, %v10883
    %v10887 = vsel %vm10549, %v10884, 0
    %v10890 = vsel %vm345, %v10885, 0
    %10892 = vmatprep.subr.bf16.mxu0 0
    %10893 = vmatpush1.bf16.msra.mxu0 %v10890
    %10894 = vmatprep.subr.bf16.mxu0 0
    %10895 = vmatpush1.bf16.msra.mxu0 0
    %10896 = vmatprep.subr.bf16.mxu0 0
    %10897 = vmatpush1.bf16.msra.mxu0 0
    %10898 = vmatprep.subr.bf16.mxu0 0
    %10899 = vmatpush1.bf16.msra.mxu0 0
    %10900 = vmatprep.subr.bf16.mxu0 0
    %10901 = vmatpush1.bf16.msra.mxu0 0
    %10902 = vmatprep.subr.bf16.mxu0 0
    %10903 = vmatpush1.bf16.msra.mxu0 0
    %10904 = vmatprep.subr.bf16.mxu0 0
    %10905 = vmatpush1.bf16.msra.mxu0 0
    %10906 = vmatprep.subr.bf16.mxu0 0
    %10907 = vmatpush1.bf16.msra.mxu0 0
    %10908 = vmatprep.subr.bf16.mxu0 0
    %10909 = vmatpush1.bf16.msra.mxu0 0
    %10910 = vmatprep.subr.bf16.mxu0 0
    %10911 = vmatpush1.bf16.msra.mxu0 0
    %10912 = vmatprep.subr.bf16.mxu0 0
    %10913 = vmatpush1.bf16.msra.mxu0 0
    %10914 = vmatprep.subr.bf16.mxu0 0
    %10915 = vmatpush1.bf16.msra.mxu0 0
    %10916 = vmatprep.subr.bf16.mxu0 0
    %10917 = vmatpush1.bf16.msra.mxu0 0
    %10918 = vmatprep.subr.bf16.mxu0 0
    %10919 = vmatpush1.bf16.msra.mxu0 0
    %10920 = vmatprep.subr.bf16.mxu0 0
    %10921 = vmatpush1.bf16.msra.mxu0 0
    %10922 = vmatprep.subr.bf16.mxu0 0
    %10923 = vmatpush1.bf16.msra.mxu0 0
    %10924 = vmatprep.mubr.bf16.mxu0 0
    %10925 = vmatmul.mubr.bf16.gmra.mrb[0].mxu0 %v10887
    %v10926 = vpop.f32.mrb[0].mxu0
    %v10927 = vadd.f32 0.0, %v10926
    %v10928 = vpop.f32.mrb[0].mxu0
    %v10929 = vpop.f32.mrb[0].mxu0
    %v10930 = vpop.f32.mrb[0].mxu0
    %10931 = vdwg.mxu0
    %v10933 = vrot.slane %v10927, 4
    %v10935 = vmax.f32 %v10927, %v10933
    %v10936 = vpack.c.bf16 %v10935, %v10935
    %v10937 = vld [vmem:[#allocation31] sm:$0xf]
    %v10938 = vld [vmem:[#allocation31 + $0x4] sm:$0xf]
    %v10939 = vld [vmem:[#allocation31 + $0x8] sm:$0xf]
    %v10940 = vld [vmem:[#allocation31 + $0xc] sm:$0xf]
    %v10941 = vld [vmem:[#allocation31 + $0x10] sm:$0xf]
    %v10942 = vld [vmem:[#allocation31 + $0x14] sm:$0xf]
    %v10943 = vld [vmem:[#allocation31 + $0x18] sm:$0xf]
    %v10944 = vld [vmem:[#allocation31 + $0x1c] sm:$0xf]
    %v10945 = vld [vmem:[#allocation31 + $0x20] sm:$0xf]
    %v10946 = vld [vmem:[#allocation31 + $0x24] sm:$0xf]
    %v10947 = vld [vmem:[#allocation31 + $0x28] sm:$0xf]
    %v10948 = vld [vmem:[#allocation31 + $0x2c] sm:$0xf]
    %v10949 = vld [vmem:[#allocation31 + $0x30] sm:$0xf]
    %v10950 = vld [vmem:[#allocation31 + $0x34] sm:$0xf]
    %v10951 = vld [vmem:[#allocation31 + $0x38] sm:$0xf]
    %v10952 = vld [vmem:[#allocation31 + $0x3c] sm:$0xf]
    %v10969 = vunpack.c.l.b16 %v10937
    %v10970 = vunpack.c.l.b16 %v10938
    %v10971 = vunpack.c.l.b16 %v10939
    %v10972 = vunpack.c.l.b16 %v10940
    %v10973 = vunpack.c.l.b16 %v10941
    %v10974 = vunpack.c.l.b16 %v10942
    %v10975 = vunpack.c.l.b16 %v10943
    %v10976 = vunpack.c.l.b16 %v10944
    %v10977 = vunpack.c.l.b16 %v10945
    %v10978 = vunpack.c.l.b16 %v10946
    %v10979 = vunpack.c.l.b16 %v10947
    %v10980 = vunpack.c.l.b16 %v10948
    %v10981 = vunpack.c.l.b16 %v10949
    %v10982 = vunpack.c.l.b16 %v10950
    %v10983 = vunpack.c.l.b16 %v10951
    %v10984 = vunpack.c.l.b16 %v10952
    %v10985 = vpack.c.b16 %v10970, %v10969
    %v10986 = vpack.c.b16 %v10972, %v10971
    %v10987 = vpack.c.b16 %v10974, %v10973
    %v10988 = vpack.c.b16 %v10976, %v10975
    %v10989 = vpack.c.b16 %v10978, %v10977
    %v10990 = vpack.c.b16 %v10980, %v10979
    %v10991 = vpack.c.b16 %v10982, %v10981
    %v10992 = vpack.c.b16 %v10984, %v10983
    %11001 = vmatprep.subr.bf16.mxu0 0
    %11002 = vmatpush1.bf16.msra.mxu0 %v10985
    %11003 = vmatprep.subr.bf16.mxu0 0
    %11004 = vmatpush1.bf16.msra.mxu0 %v10986
    %11005 = vmatprep.subr.bf16.mxu0 0
    %11006 = vmatpush1.bf16.msra.mxu0 %v10987
    %11007 = vmatprep.subr.bf16.mxu0 0
    %11008 = vmatpush1.bf16.msra.mxu0 %v10988
    %11009 = vmatprep.subr.bf16.mxu0 0
    %11010 = vmatpush1.bf16.msra.mxu0 %v10989
    %11011 = vmatprep.subr.bf16.mxu0 0
    %11012 = vmatpush1.bf16.msra.mxu0 %v10990
    %11013 = vmatprep.subr.bf16.mxu0 0
    %11014 = vmatpush1.bf16.msra.mxu0 %v10991
    %11015 = vmatprep.subr.bf16.mxu0 0
    %11016 = vmatpush1.bf16.msra.mxu0 %v10992
    %11017 = vmatprep.subr.bf16.mxu0 0
    %11018 = vmatpush1.bf16.msra.mxu0 0
    %11019 = vmatprep.subr.bf16.mxu0 0
    %11020 = vmatpush1.bf16.msra.mxu0 0
    %11021 = vmatprep.subr.bf16.mxu0 0
    %11022 = vmatpush1.bf16.msra.mxu0 0
    %11023 = vmatprep.subr.bf16.mxu0 0
    %11024 = vmatpush1.bf16.msra.mxu0 0
    %11025 = vmatprep.subr.bf16.mxu0 0
    %11026 = vmatpush1.bf16.msra.mxu0 0
    %11027 = vmatprep.subr.bf16.mxu0 0
    %11028 = vmatpush1.bf16.msra.mxu0 0
    %11029 = vmatprep.subr.bf16.mxu0 0
    %11030 = vmatpush1.bf16.msra.mxu0 0
    %11031 = vmatprep.subr.bf16.mxu0 0
    %11032 = vmatpush1.bf16.msra.mxu0 0
    %11033 = vmatprep.mubr.bf16.mxu0 0
    %11034 = vmatmul.mubr.bf16.gmra.mrb[0].mxu0 %v10936
    %v11035 = vpop.f32.mrb[0].mxu0
    %v11036 = vadd.f32 0.0, %v11035
    %v11037 = vpop.f32.mrb[0].mxu0
    %v11038 = vpop.f32.mrb[0].mxu0
    %v11039 = vpop.f32.mrb[0].mxu0
    %11040 = vdwg.mxu0
    %11042 = vrot.lane.b32.xlu0 %v11036, 64
    %v11043 = vpop.permute.xlu0 %11042
    %v11045 = vmax.f32 %v11036, %v11043
    %vm11046 = vcmask 519168
    %11047 = vst.msk [vmem:[#allocation32] sm:$0xf] %vm11046, %v11045
    // Predicated region
    $region166: #{tpu_custom_call.1} parent=1 // pred_check
      _
    $region167: #{tpu_custom_call.1} parent=1 // pred_check_branch
      %11049 = sbr.rel (0) target = $region169
    $region168: #{tpu_custom_call.1} parent=1 // pred_region
      %s11051 = ssub.s32 64, 64
      %11052 = vsyncadd [#allocation4], %s11051
      %s11054 = sshll.u32 [#allocation32], 4
      %s11055 = int_to_ptr.vmem [resolvable:$true] %s11054
      %11057 = dma.vmem_to_hbm [thread:$0]  %s11055, 64, %s22, [#allocation4]
    $region169: #{tpu_custom_call.1} parent=1 // pred_fallthru
      _
    // Predicated region
    $region170: #{tpu_custom_call.1} parent=1 // pred_check
      _
    $region171: #{tpu_custom_call.1} parent=1 // pred_check_branch
      %11059 = sbr.rel (0) target = $region173
    $region172: #{tpu_custom_call.1} parent=1 // pred_region
      %11060 = dma.done [#allocation4], 64
    $region173: #{tpu_custom_call.1} parent=1 // pred_fallthru
      _
    %11061 = vsyncpa [#allocation3], 1
    %11062 = vsyncpa [#allocation6], 1
    %11063 = vsyncpa [#allocation9], 1
    %11064 = vsyncpa [#allocation12], 1
    %11065 = vsyncpa [#allocation15], 1
    %11066 = vsyncpa [#allocation18], 1
    %11067 = vsyncpa [#allocation21], 1
    %11068 = vsyncpa [#allocation24], 1
    %11069 = vsyncpa [#allocation27], 1
    %11070 = vsyncpa [#allocation30], 1
    %11071 = vsyncpa [#allocation4], 1

</llo_original>
